<compile_context>
chip_gen: v5e
topology: v5e:2x2
jax: 0.10.0
libtpu: 0.0.40
codegen_flags: <defaults>
</compile_context>

<pallas_src>
import functools

import jax
import jax.numpy as jnp
from jax.experimental import pallas as pl
from jax.experimental.pallas import tpu as pltpu

CPAD = 128                      # all channel dims padded to one full lane-width
_ACTS = ["relu", "relu", "relu", "sigmoid"]


def _fused_unet_kernel(x_ref, w_ref, b_ref, o_ref, buf_a, buf_b, col_ref, *, H, W):
    """Fused 4-layer UNet forward for one batch element.

    x_ref  : (1, H, W, CPAD)        input tile (VMEM)
    w_ref  : (4, 9*CPAD, CPAD)      per-layer tap-fused weights (VMEM)
    b_ref  : (4, CPAD)              per-layer biases (VMEM)
    o_ref  : (1, H, W, CPAD)        output tile (VMEM)
    buf_a/b: (H+2, W+2, CPAD)       ping-pong zero-padded activation buffers
    col_ref: (H*W, 9*CPAD)          im2col staging buffer
    """
    C = CPAD
    HW = H * W

    # Zero both padded buffers: the halo IS the 'same' (padding=1) zero padding.
    # (Re-done each grid step; scratch is uninitialised and may be per-core.)
    buf_a[...] = jnp.zeros_like(buf_a)
    buf_b[...] = jnp.zeros_like(buf_b)
    # Load this batch element into the interior of buffer A.
    buf_a[1:H + 1, 1:W + 1, :] = x_ref[0]

    bufs = (buf_a, buf_b)
    src = buf_a
    for layer in range(4):
        # Build the (H*W, 9*C) im2col slab.
        # Hoist the 3 width shifts (sublane relayout done 3x, not 9x); the
        # reshape is layout-free (W % 8 == 0) and the dy row-windows are
        # sublane-aligned slices (dy*W is a multiple of 8).
        for dx in range(3):
            sx = src[:, dx:dx + W, :].reshape((H + 2) * W, C)
            for dy in range(3):
                t = dx * 3 + dy
                col_ref[:, t * C:(t + 1) * C] = sx[dy * W:dy * W + HW, :]

        # One big MXU matmul per layer: (H*W, 9*C) @ (9*C, C), K = 1152.
        y = jnp.dot(col_ref[...], w_ref[layer],
                    preferred_element_type=jnp.float32)
        y = y + b_ref[layer:layer + 1, :]

        if layer < 3:
            y = jnp.maximum(y, 0.0)                       # ReLU (VPU)
            dst = bufs[(layer + 1) % 2]
            dst[1:H + 1, 1:W + 1, :] = y.reshape(H, W, C)
            src = dst
        else:
            y = jax.nn.sigmoid(y)                         # Sigmoid (EUP)
            o_ref[0] = y.reshape(H, W, C).astype(o_ref.dtype)


@jax.jit
def _fused_unet(x_pad, w_stack, b_stack):
    """x_pad: (N, H, W, CPAD) f32 -> (N, H, W, CPAD) f32."""
    N, H, W, C = x_pad.shape
    assert C == CPAD and W % 8 == 0, (C, W)
    kern = functools.partial(_fused_unet_kernel, H=H, W=W)
    return pl.pallas_call(
        kern,
        out_shape=jax.ShapeDtypeStruct((N, H, W, C), x_pad.dtype),
        grid_spec=pltpu.PrefetchScalarGridSpec(
            num_scalar_prefetch=0,
            grid=(N,),
            in_specs=[
                pl.BlockSpec((1, H, W, C), lambda n: (n, 0, 0, 0)),
                pl.BlockSpec(w_stack.shape, lambda n: (0, 0, 0)),
                pl.BlockSpec(b_stack.shape, lambda n: (0, 0)),
            ],
            out_specs=pl.BlockSpec((1, H, W, C), lambda n: (n, 0, 0, 0)),
            scratch_shapes=[
                pltpu.VMEM((H + 2, W + 2, C), jnp.float32),   # ping
                pltpu.VMEM((H + 2, W + 2, C), jnp.float32),   # pong
                pltpu.VMEM((H * W, 9 * C), jnp.float32),      # im2col slab
            ],
        ),
        compiler_params=pltpu.CompilerParams(
            dimension_semantics=("parallel",),
            vmem_limit_bytes=32 * 1024 * 1024,
        ),
    )(x_pad, w_stack, b_stack)


def _pack_layer(w_oihw, b, cin, cout):
    """PyTorch (Cout,Cin,3,3) weight -> lane-padded tap-fused (9*CPAD, CPAD)."""
    w_full = jnp.zeros((9 * CPAD, CPAD), jnp.float32)
    for dx in range(3):
        for dy in range(3):
            t = dx * 3 + dy
            blk = jnp.transpose(w_oihw[:, :, dy, dx], (1, 0))     # (cin, cout)
            w_full = w_full.at[t * CPAD:t * CPAD + cin, :cout].set(blk)
    b_full = jnp.zeros((CPAD,), jnp.float32).at[:cout].set(b)
    return w_full, b_full


def make_params(key, in_channels, out_channels):
    """Deterministic PyTorch-style init; returns packed + raw weights."""
    dims = [(in_channels, 64), (64, 128), (128, 64), (64, out_channels)]
    ks = jax.random.split(key, 4)
    raw, packed_w, packed_b = [], [], []
    for k, (ci, co) in zip(ks, dims):
        kw, kb = jax.random.split(k)
        bound = 1.0 / float((ci * 9) ** 0.5)
        w = jax.random.uniform(kw, (co, ci, 3, 3), jnp.float32, -bound, bound)
        b = jax.random.uniform(kb, (co,), jnp.float32, -bound, bound)
        raw.append((w, b))
        wf, bf = _pack_layer(w, b, ci, co)
        packed_w.append(wf)
        packed_b.append(bf)
    return {
        "w_stack": jnp.stack(packed_w),   # (4, 9*CPAD, CPAD)
        "b_stack": jnp.stack(packed_b),   # (4, CPAD)
        "raw": raw,
        "in_channels": in_channels,
        "out_channels": out_channels,
    }


def simple_unet_forward(x_nchw, params):
    """PyTorch-equivalent forward: NCHW in, NCHW out."""
    N, Cin, H, W = x_nchw.shape
    x = jnp.transpose(x_nchw, (0, 2, 3, 1))                       # NCHW -> NHWC
    x = jnp.pad(x, ((0, 0), (0, 0), (0, 0), (0, CPAD - Cin)))     # lane-pad Cin
    y = _fused_unet(x, params["w_stack"], params["b_stack"])      # (N,H,W,CPAD)
    y = y[..., :params["out_channels"]]                           # drop padded ch
    return jnp.transpose(y, (0, 3, 1, 2))                         # NHWC -> NCHW


def reference_forward(x_nchw, params):
    """Pure-JAX reference (lax.conv) for correctness checking."""
    x = x_nchw
    for (w, b), a in zip(params["raw"], _ACTS):
        x = jax.lax.conv_general_dilated(
            x, w, (1, 1), "SAME",
            dimension_numbers=("NCHW", "OIHW", "NCHW"))
        x = x + b.reshape(1, -1, 1, 1)
        x = jnp.maximum(x, 0.0) if a == "relu" else jax.nn.sigmoid(x)
    return x


if __name__ == "__main__":
    key = jax.random.PRNGKey(0)
    k_x, k_p = jax.random.split(key)

    N, C_IN, C_OUT, H, W = 2, 4, 3, 16, 16
    x = jax.random.normal(k_x, (N, C_IN, H, W), jnp.float32)
    params = make_params(k_p, C_IN, C_OUT)

    out = jax.block_until_ready(simple_unet_forward(x, params))
    ref = jax.block_until_ready(reference_forward(x, params))

    assert out.shape == (N, C_OUT, H, W), out.shape
    assert jnp.allclose(out, ref, atol=1e-4, rtol=1e-4), "mismatch vs reference"
    print("KERNEL_OK")
</pallas_src>

<mosaic_0001>
module attributes {stable_mosaic.version = 11 : i64} {
  func.func @_fused_unet_kernel(%arg0: i32, %arg1: memref<1x16x16x128xf32, #tpu.memory_space<vmem>>, %arg2: memref<4x1152x128xf32, #tpu.memory_space<vmem>>, %arg3: memref<4x128xf32, #tpu.memory_space<vmem>>, %arg4: memref<1x16x16x128xf32, #tpu.memory_space<vmem>>, %arg5: memref<18x18x128xf32, #tpu.memory_space<vmem>>, %arg6: memref<18x18x128xf32, #tpu.memory_space<vmem>>, %arg7: memref<256x1152xf32, #tpu.memory_space<vmem>>) attributes {dimension_semantics = [#tpu.dimension_semantics<parallel>], iteration_bounds = array<i64: 2>, scalar_prefetch = 0 : i64, scratch_operands = 3 : i64, tpu.core_type = #tpu.core_type<tc>, window_params = [{transform_indices = @transform_0, window_bounds = array<i64: 1, 16, 16, 128>}, {pipeline_mode = #tpu.pipeline_mode<synchronous>, transform_indices = @transform_1, window_bounds = array<i64: 4, 1152, 128>}, {pipeline_mode = #tpu.pipeline_mode<synchronous>, transform_indices = @transform_2, window_bounds = array<i64: 4, 128>}, {transform_indices = @transform_3, window_bounds = array<i64: 1, 16, 16, 128>}]} {
    %cst = arith.constant 0.000000e+00 : f32
    %0 = vector.broadcast %cst : f32 to vector<18x18x128xf32>
    %c0 = arith.constant 0 : index
    %c0_0 = arith.constant 0 : index
    %c0_1 = arith.constant 0 : index
    %1 = vector.load %arg5[%c0, %c0_0, %c0_1] : memref<18x18x128xf32, #tpu.memory_space<vmem>>, vector<18x18x128xf32>
    tpu.vector_store %arg5[%c0, %c0_0, %c0_1], %0 {strides = array<i32>} : memref<18x18x128xf32, #tpu.memory_space<vmem>>, vector<18x18x128xf32>,
    %cst_2 = arith.constant 0.000000e+00 : f32
    %2 = vector.broadcast %cst_2 : f32 to vector<18x18x128xf32>
    %c0_3 = arith.constant 0 : index
    %c0_4 = arith.constant 0 : index
    %c0_5 = arith.constant 0 : index
    %3 = vector.load %arg6[%c0_3, %c0_4, %c0_5] : memref<18x18x128xf32, #tpu.memory_space<vmem>>, vector<18x18x128xf32>
    tpu.vector_store %arg6[%c0_3, %c0_4, %c0_5], %2 {strides = array<i32>} : memref<18x18x128xf32, #tpu.memory_space<vmem>>, vector<18x18x128xf32>,
    %c0_6 = arith.constant 0 : index
    %c0_7 = arith.constant 0 : index
    %c0_8 = arith.constant 0 : index
    %c0_9 = arith.constant 0 : index
    %4 = vector.load %arg1[%c0_6, %c0_7, %c0_8, %c0_9] : memref<1x16x16x128xf32, #tpu.memory_space<vmem>>, vector<1x16x16x128xf32>
    %5 = vector.shape_cast %4 : vector<1x16x16x128xf32> to vector<16x16x128xf32>
    %c1 = arith.constant 1 : index
    %c1_10 = arith.constant 1 : index
    %c0_11 = arith.constant 0 : index
    %6 = vector.load %arg5[%c1, %c1_10, %c0_11] : memref<18x18x128xf32, #tpu.memory_space<vmem>>, vector<16x16x128xf32>
    tpu.vector_store %arg5[%c1, %c1_10, %c0_11], %5 {strides = array<i32>} : memref<18x18x128xf32, #tpu.memory_space<vmem>>, vector<16x16x128xf32>,
    %c0_12 = arith.constant 0 : index
    %c0_13 = arith.constant 0 : index
    %c0_14 = arith.constant 0 : index
    %7 = vector.load %arg5[%c0_12, %c0_13, %c0_14] : memref<18x18x128xf32, #tpu.memory_space<vmem>>, vector<18x16x128xf32>
    %8 = vector.shape_cast %7 : vector<18x16x128xf32> to vector<288x128xf32>
    %9 = vector.extract_strided_slice %8 {offsets = [0, 0], sizes = [256, 128], strides = [1, 1]} : vector<288x128xf32> to vector<256x128xf32>
    %c0_15 = arith.constant 0 : index
    %c0_16 = arith.constant 0 : index
    %10 = vector.load %arg7[%c0_15, %c0_16] : memref<256x1152xf32, #tpu.memory_space<vmem>>, vector<256x128xf32>
    tpu.vector_store %arg7[%c0_15, %c0_16], %9 {strides = array<i32>} : memref<256x1152xf32, #tpu.memory_space<vmem>>, vector<256x128xf32>,
    %11 = vector.extract_strided_slice %8 {offsets = [16, 0], sizes = [256, 128], strides = [1, 1]} : vector<288x128xf32> to vector<256x128xf32>
    %c0_17 = arith.constant 0 : index
    %c128 = arith.constant 128 : index
    %12 = vector.load %arg7[%c0_17, %c128] : memref<256x1152xf32, #tpu.memory_space<vmem>>, vector<256x128xf32>
    tpu.vector_store %arg7[%c0_17, %c128], %11 {strides = array<i32>} : memref<256x1152xf32, #tpu.memory_space<vmem>>, vector<256x128xf32>,
    %13 = vector.extract_strided_slice %8 {offsets = [32, 0], sizes = [256, 128], strides = [1, 1]} : vector<288x128xf32> to vector<256x128xf32>
    %c0_18 = arith.constant 0 : index
    %c256 = arith.constant 256 : index
    %14 = vector.load %arg7[%c0_18, %c256] : memref<256x1152xf32, #tpu.memory_space<vmem>>, vector<256x128xf32>
    tpu.vector_store %arg7[%c0_18, %c256], %13 {strides = array<i32>} : memref<256x1152xf32, #tpu.memory_space<vmem>>, vector<256x128xf32>,
    %c0_19 = arith.constant 0 : index
    %c1_20 = arith.constant 1 : index
    %c0_21 = arith.constant 0 : index
    %15 = vector.load %arg5[%c0_19, %c1_20, %c0_21] : memref<18x18x128xf32, #tpu.memory_space<vmem>>, vector<18x16x128xf32>
    %16 = vector.shape_cast %15 : vector<18x16x128xf32> to vector<288x128xf32>
    %17 = vector.extract_strided_slice %16 {offsets = [0, 0], sizes = [256, 128], strides = [1, 1]} : vector<288x128xf32> to vector<256x128xf32>
    %c0_22 = arith.constant 0 : index
    %c384 = arith.constant 384 : index
    %18 = vector.load %arg7[%c0_22, %c384] : memref<256x1152xf32, #tpu.memory_space<vmem>>, vector<256x128xf32>
    tpu.vector_store %arg7[%c0_22, %c384], %17 {strides = array<i32>} : memref<256x1152xf32, #tpu.memory_space<vmem>>, vector<256x128xf32>,
    %19 = vector.extract_strided_slice %16 {offsets = [16, 0], sizes = [256, 128], strides = [1, 1]} : vector<288x128xf32> to vector<256x128xf32>
    %c0_23 = arith.constant 0 : index
    %c512 = arith.constant 512 : index
    %20 = vector.load %arg7[%c0_23, %c512] : memref<256x1152xf32, #tpu.memory_space<vmem>>, vector<256x128xf32>
    tpu.vector_store %arg7[%c0_23, %c512], %19 {strides = array<i32>} : memref<256x1152xf32, #tpu.memory_space<vmem>>, vector<256x128xf32>,
    %21 = vector.extract_strided_slice %16 {offsets = [32, 0], sizes = [256, 128], strides = [1, 1]} : vector<288x128xf32> to vector<256x128xf32>
    %c0_24 = arith.constant 0 : index
    %c640 = arith.constant 640 : index
    %22 = vector.load %arg7[%c0_24, %c640] : memref<256x1152xf32, #tpu.memory_space<vmem>>, vector<256x128xf32>
    tpu.vector_store %arg7[%c0_24, %c640], %21 {strides = array<i32>} : memref<256x1152xf32, #tpu.memory_space<vmem>>, vector<256x128xf32>,
    %c0_25 = arith.constant 0 : index
    %c2 = arith.constant 2 : index
    %c0_26 = arith.constant 0 : index
    %23 = vector.load %arg5[%c0_25, %c2, %c0_26] : memref<18x18x128xf32, #tpu.memory_space<vmem>>, vector<18x16x128xf32>
    %24 = vector.shape_cast %23 : vector<18x16x128xf32> to vector<288x128xf32>
    %25 = vector.extract_strided_slice %24 {offsets = [0, 0], sizes = [256, 128], strides = [1, 1]} : vector<288x128xf32> to vector<256x128xf32>
    %c0_27 = arith.constant 0 : index
    %c768 = arith.constant 768 : index
    %26 = vector.load %arg7[%c0_27, %c768] : memref<256x1152xf32, #tpu.memory_space<vmem>>, vector<256x128xf32>
    tpu.vector_store %arg7[%c0_27, %c768], %25 {strides = array<i32>} : memref<256x1152xf32, #tpu.memory_space<vmem>>, vector<256x128xf32>,
    %27 = vector.extract_strided_slice %24 {offsets = [16, 0], sizes = [256, 128], strides = [1, 1]} : vector<288x128xf32> to vector<256x128xf32>
    %c0_28 = arith.constant 0 : index
    %c896 = arith.constant 896 : index
    %28 = vector.load %arg7[%c0_28, %c896] : memref<256x1152xf32, #tpu.memory_space<vmem>>, vector<256x128xf32>
    tpu.vector_store %arg7[%c0_28, %c896], %27 {strides = array<i32>} : memref<256x1152xf32, #tpu.memory_space<vmem>>, vector<256x128xf32>,
    %29 = vector.extract_strided_slice %24 {offsets = [32, 0], sizes = [256, 128], strides = [1, 1]} : vector<288x128xf32> to vector<256x128xf32>
    %c0_29 = arith.constant 0 : index
    %c1024 = arith.constant 1024 : index
    %30 = vector.load %arg7[%c0_29, %c1024] : memref<256x1152xf32, #tpu.memory_space<vmem>>, vector<256x128xf32>
    tpu.vector_store %arg7[%c0_29, %c1024], %29 {strides = array<i32>} : memref<256x1152xf32, #tpu.memory_space<vmem>>, vector<256x128xf32>,
    %c0_30 = arith.constant 0 : index
    %c0_31 = arith.constant 0 : index
    %31 = vector.load %arg7[%c0_30, %c0_31] : memref<256x1152xf32, #tpu.memory_space<vmem>>, vector<256x1152xf32>
    %c0_32 = arith.constant 0 : index
    %c0_33 = arith.constant 0 : index
    %c0_34 = arith.constant 0 : index
    %32 = vector.load %arg2[%c0_32, %c0_33, %c0_34] : memref<4x1152x128xf32, #tpu.memory_space<vmem>>, vector<1x1152x128xf32>
    %33 = vector.shape_cast %32 : vector<1x1152x128xf32> to vector<1152x128xf32>
    %cst_35 = arith.constant dense<0.000000e+00> : vector<256x128xf32>
    %34 = tpu.matmul %31, %33, %cst_35 {dimension_numbers = #tpu.dot_dimension_numbers<[1], [0], [0], [1], [0, 0, 1, 1], [], []>} : vector<256x1152xf32>, vector<1152x128xf32>, vector<256x128xf32> -> vector<256x128xf32>
    %c0_36 = arith.constant 0 : index
    %c0_37 = arith.constant 0 : index
    %35 = vector.load %arg3[%c0_36, %c0_37] : memref<4x128xf32, #tpu.memory_space<vmem>>, vector<1x128xf32>
    %36 = vector.broadcast %35 : vector<1x128xf32> to vector<256x128xf32>
    %37 = arith.addf %34, %36 : vector<256x128xf32>
    %cst_38 = arith.constant 0.000000e+00 : f32
    %38 = vector.broadcast %cst_38 : f32 to vector<256x128xf32>
    %39 = arith.maximumf %37, %38 : vector<256x128xf32>
    %40 = vector.shape_cast %39 : vector<256x128xf32> to vector<16x16x128xf32>
    %c1_39 = arith.constant 1 : index
    %c1_40 = arith.constant 1 : index
    %c0_41 = arith.constant 0 : index
    %41 = vector.load %arg6[%c1_39, %c1_40, %c0_41] : memref<18x18x128xf32, #tpu.memory_space<vmem>>, vector<16x16x128xf32>
    tpu.vector_store %arg6[%c1_39, %c1_40, %c0_41], %40 {strides = array<i32>} : memref<18x18x128xf32, #tpu.memory_space<vmem>>, vector<16x16x128xf32>,
    %c0_42 = arith.constant 0 : index
    %c0_43 = arith.constant 0 : index
    %c0_44 = arith.constant 0 : index
    %42 = vector.load %arg6[%c0_42, %c0_43, %c0_44] : memref<18x18x128xf32, #tpu.memory_space<vmem>>, vector<18x16x128xf32>
    %43 = vector.shape_cast %42 : vector<18x16x128xf32> to vector<288x128xf32>
    %44 = vector.extract_strided_slice %43 {offsets = [0, 0], sizes = [256, 128], strides = [1, 1]} : vector<288x128xf32> to vector<256x128xf32>
    %c0_45 = arith.constant 0 : index
    %c0_46 = arith.constant 0 : index
    %45 = vector.load %arg7[%c0_45, %c0_46] : memref<256x1152xf32, #tpu.memory_space<vmem>>, vector<256x128xf32>
    tpu.vector_store %arg7[%c0_45, %c0_46], %44 {strides = array<i32>} : memref<256x1152xf32, #tpu.memory_space<vmem>>, vector<256x128xf32>,
    %46 = vector.extract_strided_slice %43 {offsets = [16, 0], sizes = [256, 128], strides = [1, 1]} : vector<288x128xf32> to vector<256x128xf32>
    %c0_47 = arith.constant 0 : index
    %c128_48 = arith.constant 128 : index
    %47 = vector.load %arg7[%c0_47, %c128_48] : memref<256x1152xf32, #tpu.memory_space<vmem>>, vector<256x128xf32>
    tpu.vector_store %arg7[%c0_47, %c128_48], %46 {strides = array<i32>} : memref<256x1152xf32, #tpu.memory_space<vmem>>, vector<256x128xf32>,
    %48 = vector.extract_strided_slice %43 {offsets = [32, 0], sizes = [256, 128], strides = [1, 1]} : vector<288x128xf32> to vector<256x128xf32>
    %c0_49 = arith.constant 0 : index
    %c256_50 = arith.constant 256 : index
    %49 = vector.load %arg7[%c0_49, %c256_50] : memref<256x1152xf32, #tpu.memory_space<vmem>>, vector<256x128xf32>
    tpu.vector_store %arg7[%c0_49, %c256_50], %48 {strides = array<i32>} : memref<256x1152xf32, #tpu.memory_space<vmem>>, vector<256x128xf32>,
    %c0_51 = arith.constant 0 : index
    %c1_52 = arith.constant 1 : index
    %c0_53 = arith.constant 0 : index
    %50 = vector.load %arg6[%c0_51, %c1_52, %c0_53] : memref<18x18x128xf32, #tpu.memory_space<vmem>>, vector<18x16x128xf32>
    %51 = vector.shape_cast %50 : vector<18x16x128xf32> to vector<288x128xf32>
    %52 = vector.extract_strided_slice %51 {offsets = [0, 0], sizes = [256, 128], strides = [1, 1]} : vector<288x128xf32> to vector<256x128xf32>
    %c0_54 = arith.constant 0 : index
    %c384_55 = arith.constant 384 : index
    %53 = vector.load %arg7[%c0_54, %c384_55] : memref<256x1152xf32, #tpu.memory_space<vmem>>, vector<256x128xf32>
    tpu.vector_store %arg7[%c0_54, %c384_55], %52 {strides = array<i32>} : memref<256x1152xf32, #tpu.memory_space<vmem>>, vector<256x128xf32>,
    %54 = vector.extract_strided_slice %51 {offsets = [16, 0], sizes = [256, 128], strides = [1, 1]} : vector<288x128xf32> to vector<256x128xf32>
    %c0_56 = arith.constant 0 : index
    %c512_57 = arith.constant 512 : index
    %55 = vector.load %arg7[%c0_56, %c512_57] : memref<256x1152xf32, #tpu.memory_space<vmem>>, vector<256x128xf32>
    tpu.vector_store %arg7[%c0_56, %c512_57], %54 {strides = array<i32>} : memref<256x1152xf32, #tpu.memory_space<vmem>>, vector<256x128xf32>,
    %56 = vector.extract_strided_slice %51 {offsets = [32, 0], sizes = [256, 128], strides = [1, 1]} : vector<288x128xf32> to vector<256x128xf32>
    %c0_58 = arith.constant 0 : index
    %c640_59 = arith.constant 640 : index
    %57 = vector.load %arg7[%c0_58, %c640_59] : memref<256x1152xf32, #tpu.memory_space<vmem>>, vector<256x128xf32>
    tpu.vector_store %arg7[%c0_58, %c640_59], %56 {strides = array<i32>} : memref<256x1152xf32, #tpu.memory_space<vmem>>, vector<256x128xf32>,
    %c0_60 = arith.constant 0 : index
    %c2_61 = arith.constant 2 : index
    %c0_62 = arith.constant 0 : index
    %58 = vector.load %arg6[%c0_60, %c2_61, %c0_62] : memref<18x18x128xf32, #tpu.memory_space<vmem>>, vector<18x16x128xf32>
    %59 = vector.shape_cast %58 : vector<18x16x128xf32> to vector<288x128xf32>
    %60 = vector.extract_strided_slice %59 {offsets = [0, 0], sizes = [256, 128], strides = [1, 1]} : vector<288x128xf32> to vector<256x128xf32>
    %c0_63 = arith.constant 0 : index
    %c768_64 = arith.constant 768 : index
    %61 = vector.load %arg7[%c0_63, %c768_64] : memref<256x1152xf32, #tpu.memory_space<vmem>>, vector<256x128xf32>
    tpu.vector_store %arg7[%c0_63, %c768_64], %60 {strides = array<i32>} : memref<256x1152xf32, #tpu.memory_space<vmem>>, vector<256x128xf32>,
    %62 = vector.extract_strided_slice %59 {offsets = [16, 0], sizes = [256, 128], strides = [1, 1]} : vector<288x128xf32> to vector<256x128xf32>
    %c0_65 = arith.constant 0 : index
    %c896_66 = arith.constant 896 : index
    %63 = vector.load %arg7[%c0_65, %c896_66] : memref<256x1152xf32, #tpu.memory_space<vmem>>, vector<256x128xf32>
    tpu.vector_store %arg7[%c0_65, %c896_66], %62 {strides = array<i32>} : memref<256x1152xf32, #tpu.memory_space<vmem>>, vector<256x128xf32>,
    %64 = vector.extract_strided_slice %59 {offsets = [32, 0], sizes = [256, 128], strides = [1, 1]} : vector<288x128xf32> to vector<256x128xf32>
    %c0_67 = arith.constant 0 : index
    %c1024_68 = arith.constant 1024 : index
    %65 = vector.load %arg7[%c0_67, %c1024_68] : memref<256x1152xf32, #tpu.memory_space<vmem>>, vector<256x128xf32>
    tpu.vector_store %arg7[%c0_67, %c1024_68], %64 {strides = array<i32>} : memref<256x1152xf32, #tpu.memory_space<vmem>>, vector<256x128xf32>,
    %c0_69 = arith.constant 0 : index
    %c0_70 = arith.constant 0 : index
    %66 = vector.load %arg7[%c0_69, %c0_70] : memref<256x1152xf32, #tpu.memory_space<vmem>>, vector<256x1152xf32>
    %c1_71 = arith.constant 1 : index
    %c0_72 = arith.constant 0 : index
    %c0_73 = arith.constant 0 : index
    %67 = vector.load %arg2[%c1_71, %c0_72, %c0_73] : memref<4x1152x128xf32, #tpu.memory_space<vmem>>, vector<1x1152x128xf32>
    %68 = vector.shape_cast %67 : vector<1x1152x128xf32> to vector<1152x128xf32>
    %cst_74 = arith.constant dense<0.000000e+00> : vector<256x128xf32>
    %69 = tpu.matmul %66, %68, %cst_74 {dimension_numbers = #tpu.dot_dimension_numbers<[1], [0], [0], [1], [0, 0, 1, 1], [], []>} : vector<256x1152xf32>, vector<1152x128xf32>, vector<256x128xf32> -> vector<256x128xf32>
    %c1_75 = arith.constant 1 : index
    %c0_76 = arith.constant 0 : index
    %70 = vector.load %arg3[%c1_75, %c0_76] : memref<4x128xf32, #tpu.memory_space<vmem>>, vector<1x128xf32>
    %71 = vector.broadcast %70 : vector<1x128xf32> to vector<256x128xf32>
    %72 = arith.addf %69, %71 : vector<256x128xf32>
    %cst_77 = arith.constant 0.000000e+00 : f32
    %73 = vector.broadcast %cst_77 : f32 to vector<256x128xf32>
    %74 = arith.maximumf %72, %73 : vector<256x128xf32>
    %75 = vector.shape_cast %74 : vector<256x128xf32> to vector<16x16x128xf32>
    %c1_78 = arith.constant 1 : index
    %c1_79 = arith.constant 1 : index
    %c0_80 = arith.constant 0 : index
    %76 = vector.load %arg5[%c1_78, %c1_79, %c0_80] : memref<18x18x128xf32, #tpu.memory_space<vmem>>, vector<16x16x128xf32>
    tpu.vector_store %arg5[%c1_78, %c1_79, %c0_80], %75 {strides = array<i32>} : memref<18x18x128xf32, #tpu.memory_space<vmem>>, vector<16x16x128xf32>,
    %c0_81 = arith.constant 0 : index
    %c0_82 = arith.constant 0 : index
    %c0_83 = arith.constant 0 : index
    %77 = vector.load %arg5[%c0_81, %c0_82, %c0_83] : memref<18x18x128xf32, #tpu.memory_space<vmem>>, vector<18x16x128xf32>
    %78 = vector.shape_cast %77 : vector<18x16x128xf32> to vector<288x128xf32>
    %79 = vector.extract_strided_slice %78 {offsets = [0, 0], sizes = [256, 128], strides = [1, 1]} : vector<288x128xf32> to vector<256x128xf32>
    %c0_84 = arith.constant 0 : index
    %c0_85 = arith.constant 0 : index
    %80 = vector.load %arg7[%c0_84, %c0_85] : memref<256x1152xf32, #tpu.memory_space<vmem>>, vector<256x128xf32>
    tpu.vector_store %arg7[%c0_84, %c0_85], %79 {strides = array<i32>} : memref<256x1152xf32, #tpu.memory_space<vmem>>, vector<256x128xf32>,
    %81 = vector.extract_strided_slice %78 {offsets = [16, 0], sizes = [256, 128], strides = [1, 1]} : vector<288x128xf32> to vector<256x128xf32>
    %c0_86 = arith.constant 0 : index
    %c128_87 = arith.constant 128 : index
    %82 = vector.load %arg7[%c0_86, %c128_87] : memref<256x1152xf32, #tpu.memory_space<vmem>>, vector<256x128xf32>
    tpu.vector_store %arg7[%c0_86, %c128_87], %81 {strides = array<i32>} : memref<256x1152xf32, #tpu.memory_space<vmem>>, vector<256x128xf32>,
    %83 = vector.extract_strided_slice %78 {offsets = [32, 0], sizes = [256, 128], strides = [1, 1]} : vector<288x128xf32> to vector<256x128xf32>
    %c0_88 = arith.constant 0 : index
    %c256_89 = arith.constant 256 : index
    %84 = vector.load %arg7[%c0_88, %c256_89] : memref<256x1152xf32, #tpu.memory_space<vmem>>, vector<256x128xf32>
    tpu.vector_store %arg7[%c0_88, %c256_89], %83 {strides = array<i32>} : memref<256x1152xf32, #tpu.memory_space<vmem>>, vector<256x128xf32>,
    %c0_90 = arith.constant 0 : index
    %c1_91 = arith.constant 1 : index
    %c0_92 = arith.constant 0 : index
    %85 = vector.load %arg5[%c0_90, %c1_91, %c0_92] : memref<18x18x128xf32, #tpu.memory_space<vmem>>, vector<18x16x128xf32>
    %86 = vector.shape_cast %85 : vector<18x16x128xf32> to vector<288x128xf32>
    %87 = vector.extract_strided_slice %86 {offsets = [0, 0], sizes = [256, 128], strides = [1, 1]} : vector<288x128xf32> to vector<256x128xf32>
    %c0_93 = arith.constant 0 : index
    %c384_94 = arith.constant 384 : index
    %88 = vector.load %arg7[%c0_93, %c384_94] : memref<256x1152xf32, #tpu.memory_space<vmem>>, vector<256x128xf32>
    tpu.vector_store %arg7[%c0_93, %c384_94], %87 {strides = array<i32>} : memref<256x1152xf32, #tpu.memory_space<vmem>>, vector<256x128xf32>,
    %89 = vector.extract_strided_slice %86 {offsets = [16, 0], sizes = [256, 128], strides = [1, 1]} : vector<288x128xf32> to vector<256x128xf32>
    %c0_95 = arith.constant 0 : index
    %c512_96 = arith.constant 512 : index
    %90 = vector.load %arg7[%c0_95, %c512_96] : memref<256x1152xf32, #tpu.memory_space<vmem>>, vector<256x128xf32>
    tpu.vector_store %arg7[%c0_95, %c512_96], %89 {strides = array<i32>} : memref<256x1152xf32, #tpu.memory_space<vmem>>, vector<256x128xf32>,
    %91 = vector.extract_strided_slice %86 {offsets = [32, 0], sizes = [256, 128], strides = [1, 1]} : vector<288x128xf32> to vector<256x128xf32>
    %c0_97 = arith.constant 0 : index
    %c640_98 = arith.constant 640 : index
    %92 = vector.load %arg7[%c0_97, %c640_98] : memref<256x1152xf32, #tpu.memory_space<vmem>>, vector<256x128xf32>
    tpu.vector_store %arg7[%c0_97, %c640_98], %91 {strides = array<i32>} : memref<256x1152xf32, #tpu.memory_space<vmem>>, vector<256x128xf32>,
    %c0_99 = arith.constant 0 : index
    %c2_100 = arith.constant 2 : index
    %c0_101 = arith.constant 0 : index
    %93 = vector.load %arg5[%c0_99, %c2_100, %c0_101] : memref<18x18x128xf32, #tpu.memory_space<vmem>>, vector<18x16x128xf32>
    %94 = vector.shape_cast %93 : vector<18x16x128xf32> to vector<288x128xf32>
    %95 = vector.extract_strided_slice %94 {offsets = [0, 0], sizes = [256, 128], strides = [1, 1]} : vector<288x128xf32> to vector<256x128xf32>
    %c0_102 = arith.constant 0 : index
    %c768_103 = arith.constant 768 : index
    %96 = vector.load %arg7[%c0_102, %c768_103] : memref<256x1152xf32, #tpu.memory_space<vmem>>, vector<256x128xf32>
    tpu.vector_store %arg7[%c0_102, %c768_103], %95 {strides = array<i32>} : memref<256x1152xf32, #tpu.memory_space<vmem>>, vector<256x128xf32>,
    %97 = vector.extract_strided_slice %94 {offsets = [16, 0], sizes = [256, 128], strides = [1, 1]} : vector<288x128xf32> to vector<256x128xf32>
    %c0_104 = arith.constant 0 : index
    %c896_105 = arith.constant 896 : index
    %98 = vector.load %arg7[%c0_104, %c896_105] : memref<256x1152xf32, #tpu.memory_space<vmem>>, vector<256x128xf32>
    tpu.vector_store %arg7[%c0_104, %c896_105], %97 {strides = array<i32>} : memref<256x1152xf32, #tpu.memory_space<vmem>>, vector<256x128xf32>,
    %99 = vector.extract_strided_slice %94 {offsets = [32, 0], sizes = [256, 128], strides = [1, 1]} : vector<288x128xf32> to vector<256x128xf32>
    %c0_106 = arith.constant 0 : index
    %c1024_107 = arith.constant 1024 : index
    %100 = vector.load %arg7[%c0_106, %c1024_107] : memref<256x1152xf32, #tpu.memory_space<vmem>>, vector<256x128xf32>
    tpu.vector_store %arg7[%c0_106, %c1024_107], %99 {strides = array<i32>} : memref<256x1152xf32, #tpu.memory_space<vmem>>, vector<256x128xf32>,
    %c0_108 = arith.constant 0 : index
    %c0_109 = arith.constant 0 : index
    %101 = vector.load %arg7[%c0_108, %c0_109] : memref<256x1152xf32, #tpu.memory_space<vmem>>, vector<256x1152xf32>
    %c2_110 = arith.constant 2 : index
    %c0_111 = arith.constant 0 : index
    %c0_112 = arith.constant 0 : index
    %102 = vector.load %arg2[%c2_110, %c0_111, %c0_112] : memref<4x1152x128xf32, #tpu.memory_space<vmem>>, vector<1x1152x128xf32>
    %103 = vector.shape_cast %102 : vector<1x1152x128xf32> to vector<1152x128xf32>
    %cst_113 = arith.constant dense<0.000000e+00> : vector<256x128xf32>
    %104 = tpu.matmul %101, %103, %cst_113 {dimension_numbers = #tpu.dot_dimension_numbers<[1], [0], [0], [1], [0, 0, 1, 1], [], []>} : vector<256x1152xf32>, vector<1152x128xf32>, vector<256x128xf32> -> vector<256x128xf32>
    %c2_114 = arith.constant 2 : index
    %c0_115 = arith.constant 0 : index
    %105 = vector.load %arg3[%c2_114, %c0_115] : memref<4x128xf32, #tpu.memory_space<vmem>>, vector<1x128xf32>
    %106 = vector.broadcast %105 : vector<1x128xf32> to vector<256x128xf32>
    %107 = arith.addf %104, %106 : vector<256x128xf32>
    %cst_116 = arith.constant 0.000000e+00 : f32
    %108 = vector.broadcast %cst_116 : f32 to vector<256x128xf32>
    %109 = arith.maximumf %107, %108 : vector<256x128xf32>
    %110 = vector.shape_cast %109 : vector<256x128xf32> to vector<16x16x128xf32>
    %c1_117 = arith.constant 1 : index
    %c1_118 = arith.constant 1 : index
    %c0_119 = arith.constant 0 : index
    %111 = vector.load %arg6[%c1_117, %c1_118, %c0_119] : memref<18x18x128xf32, #tpu.memory_space<vmem>>, vector<16x16x128xf32>
    tpu.vector_store %arg6[%c1_117, %c1_118, %c0_119], %110 {strides = array<i32>} : memref<18x18x128xf32, #tpu.memory_space<vmem>>, vector<16x16x128xf32>,
    %c0_120 = arith.constant 0 : index
    %c0_121 = arith.constant 0 : index
    %c0_122 = arith.constant 0 : index
    %112 = vector.load %arg6[%c0_120, %c0_121, %c0_122] : memref<18x18x128xf32, #tpu.memory_space<vmem>>, vector<18x16x128xf32>
    %113 = vector.shape_cast %112 : vector<18x16x128xf32> to vector<288x128xf32>
    %114 = vector.extract_strided_slice %113 {offsets = [0, 0], sizes = [256, 128], strides = [1, 1]} : vector<288x128xf32> to vector<256x128xf32>
    %c0_123 = arith.constant 0 : index
    %c0_124 = arith.constant 0 : index
    %115 = vector.load %arg7[%c0_123, %c0_124] : memref<256x1152xf32, #tpu.memory_space<vmem>>, vector<256x128xf32>
    tpu.vector_store %arg7[%c0_123, %c0_124], %114 {strides = array<i32>} : memref<256x1152xf32, #tpu.memory_space<vmem>>, vector<256x128xf32>,
    %116 = vector.extract_strided_slice %113 {offsets = [16, 0], sizes = [256, 128], strides = [1, 1]} : vector<288x128xf32> to vector<256x128xf32>
    %c0_125 = arith.constant 0 : index
    %c128_126 = arith.constant 128 : index
    %117 = vector.load %arg7[%c0_125, %c128_126] : memref<256x1152xf32, #tpu.memory_space<vmem>>, vector<256x128xf32>
    tpu.vector_store %arg7[%c0_125, %c128_126], %116 {strides = array<i32>} : memref<256x1152xf32, #tpu.memory_space<vmem>>, vector<256x128xf32>,
    %118 = vector.extract_strided_slice %113 {offsets = [32, 0], sizes = [256, 128], strides = [1, 1]} : vector<288x128xf32> to vector<256x128xf32>
    %c0_127 = arith.constant 0 : index
    %c256_128 = arith.constant 256 : index
    %119 = vector.load %arg7[%c0_127, %c256_128] : memref<256x1152xf32, #tpu.memory_space<vmem>>, vector<256x128xf32>
    tpu.vector_store %arg7[%c0_127, %c256_128], %118 {strides = array<i32>} : memref<256x1152xf32, #tpu.memory_space<vmem>>, vector<256x128xf32>,
    %c0_129 = arith.constant 0 : index
    %c1_130 = arith.constant 1 : index
    %c0_131 = arith.constant 0 : index
    %120 = vector.load %arg6[%c0_129, %c1_130, %c0_131] : memref<18x18x128xf32, #tpu.memory_space<vmem>>, vector<18x16x128xf32>
    %121 = vector.shape_cast %120 : vector<18x16x128xf32> to vector<288x128xf32>
    %122 = vector.extract_strided_slice %121 {offsets = [0, 0], sizes = [256, 128], strides = [1, 1]} : vector<288x128xf32> to vector<256x128xf32>
    %c0_132 = arith.constant 0 : index
    %c384_133 = arith.constant 384 : index
    %123 = vector.load %arg7[%c0_132, %c384_133] : memref<256x1152xf32, #tpu.memory_space<vmem>>, vector<256x128xf32>
    tpu.vector_store %arg7[%c0_132, %c384_133], %122 {strides = array<i32>} : memref<256x1152xf32, #tpu.memory_space<vmem>>, vector<256x128xf32>,
    %124 = vector.extract_strided_slice %121 {offsets = [16, 0], sizes = [256, 128], strides = [1, 1]} : vector<288x128xf32> to vector<256x128xf32>
    %c0_134 = arith.constant 0 : index
    %c512_135 = arith.constant 512 : index
    %125 = vector.load %arg7[%c0_134, %c512_135] : memref<256x1152xf32, #tpu.memory_space<vmem>>, vector<256x128xf32>
    tpu.vector_store %arg7[%c0_134, %c512_135], %124 {strides = array<i32>} : memref<256x1152xf32, #tpu.memory_space<vmem>>, vector<256x128xf32>,
    %126 = vector.extract_strided_slice %121 {offsets = [32, 0], sizes = [256, 128], strides = [1, 1]} : vector<288x128xf32> to vector<256x128xf32>
    %c0_136 = arith.constant 0 : index
    %c640_137 = arith.constant 640 : index
    %127 = vector.load %arg7[%c0_136, %c640_137] : memref<256x1152xf32, #tpu.memory_space<vmem>>, vector<256x128xf32>
    tpu.vector_store %arg7[%c0_136, %c640_137], %126 {strides = array<i32>} : memref<256x1152xf32, #tpu.memory_space<vmem>>, vector<256x128xf32>,
    %c0_138 = arith.constant 0 : index
    %c2_139 = arith.constant 2 : index
    %c0_140 = arith.constant 0 : index
    %128 = vector.load %arg6[%c0_138, %c2_139, %c0_140] : memref<18x18x128xf32, #tpu.memory_space<vmem>>, vector<18x16x128xf32>
    %129 = vector.shape_cast %128 : vector<18x16x128xf32> to vector<288x128xf32>
    %130 = vector.extract_strided_slice %129 {offsets = [0, 0], sizes = [256, 128], strides = [1, 1]} : vector<288x128xf32> to vector<256x128xf32>
    %c0_141 = arith.constant 0 : index
    %c768_142 = arith.constant 768 : index
    %131 = vector.load %arg7[%c0_141, %c768_142] : memref<256x1152xf32, #tpu.memory_space<vmem>>, vector<256x128xf32>
    tpu.vector_store %arg7[%c0_141, %c768_142], %130 {strides = array<i32>} : memref<256x1152xf32, #tpu.memory_space<vmem>>, vector<256x128xf32>,
    %132 = vector.extract_strided_slice %129 {offsets = [16, 0], sizes = [256, 128], strides = [1, 1]} : vector<288x128xf32> to vector<256x128xf32>
    %c0_143 = arith.constant 0 : index
    %c896_144 = arith.constant 896 : index
    %133 = vector.load %arg7[%c0_143, %c896_144] : memref<256x1152xf32, #tpu.memory_space<vmem>>, vector<256x128xf32>
    tpu.vector_store %arg7[%c0_143, %c896_144], %132 {strides = array<i32>} : memref<256x1152xf32, #tpu.memory_space<vmem>>, vector<256x128xf32>,
    %134 = vector.extract_strided_slice %129 {offsets = [32, 0], sizes = [256, 128], strides = [1, 1]} : vector<288x128xf32> to vector<256x128xf32>
    %c0_145 = arith.constant 0 : index
    %c1024_146 = arith.constant 1024 : index
    %135 = vector.load %arg7[%c0_145, %c1024_146] : memref<256x1152xf32, #tpu.memory_space<vmem>>, vector<256x128xf32>
    tpu.vector_store %arg7[%c0_145, %c1024_146], %134 {strides = array<i32>} : memref<256x1152xf32, #tpu.memory_space<vmem>>, vector<256x128xf32>,
    %c0_147 = arith.constant 0 : index
    %c0_148 = arith.constant 0 : index
    %136 = vector.load %arg7[%c0_147, %c0_148] : memref<256x1152xf32, #tpu.memory_space<vmem>>, vector<256x1152xf32>
    %c3 = arith.constant 3 : index
    %c0_149 = arith.constant 0 : index
    %c0_150 = arith.constant 0 : index
    %137 = vector.load %arg2[%c3, %c0_149, %c0_150] : memref<4x1152x128xf32, #tpu.memory_space<vmem>>, vector<1x1152x128xf32>
    %138 = vector.shape_cast %137 : vector<1x1152x128xf32> to vector<1152x128xf32>
    %cst_151 = arith.constant dense<0.000000e+00> : vector<256x128xf32>
    %139 = tpu.matmul %136, %138, %cst_151 {dimension_numbers = #tpu.dot_dimension_numbers<[1], [0], [0], [1], [0, 0, 1, 1], [], []>} : vector<256x1152xf32>, vector<1152x128xf32>, vector<256x128xf32> -> vector<256x128xf32>
    %c3_152 = arith.constant 3 : index
    %c0_153 = arith.constant 0 : index
    %140 = vector.load %arg3[%c3_152, %c0_153] : memref<4x128xf32, #tpu.memory_space<vmem>>, vector<1x128xf32>
    %141 = vector.broadcast %140 : vector<1x128xf32> to vector<256x128xf32>
    %142 = arith.addf %139, %141 : vector<256x128xf32>
    %143 = arith.negf %142 : vector<256x128xf32>
    %144 = math.exp %143 : vector<256x128xf32>
    %cst_154 = arith.constant 1.000000e+00 : f32
    %145 = vector.broadcast %cst_154 : f32 to vector<256x128xf32>
    %146 = arith.addf %145, %144 : vector<256x128xf32>
    %147 = arith.divf %145, %146 : vector<256x128xf32>
    %148 = vector.shape_cast %147 : vector<256x128xf32> to vector<16x16x128xf32>
    %c0_155 = arith.constant 0 : index
    %c0_156 = arith.constant 0 : index
    %c0_157 = arith.constant 0 : index
    %c0_158 = arith.constant 0 : index
    %149 = vector.load %arg4[%c0_155, %c0_156, %c0_157, %c0_158] : memref<1x16x16x128xf32, #tpu.memory_space<vmem>>, vector<1x16x16x128xf32>
    %150 = vector.shape_cast %149 : vector<1x16x16x128xf32> to vector<16x16x128xf32>
    %151 = vector.shape_cast %148 : vector<16x16x128xf32> to vector<1x16x16x128xf32>
    tpu.vector_store %arg4[%c0_155, %c0_156, %c0_157, %c0_158], %151 {strides = array<i32>} : memref<1x16x16x128xf32, #tpu.memory_space<vmem>>, vector<1x16x16x128xf32>,
    return
  }
  func.func @transform_0(%arg0: i32) -> (i32, i32, i32, i32) {
    %c0_i32 = arith.constant 0 : i32
    %c0_i32_0 = arith.constant 0 : i32
    %c0_i32_1 = arith.constant 0 : i32
    %c0_i32_2 = arith.constant 0 : i32
    return %arg0, %c0_i32, %c0_i32_0, %c0_i32_1 : i32, i32, i32, i32
  }
  func.func @transform_1(%arg0: i32) -> (i32, i32, i32) {
    %c0_i32 = arith.constant 0 : i32
    %c0_i32_0 = arith.constant 0 : i32
    %c0_i32_1 = arith.constant 0 : i32
    %c0_i32_2 = arith.constant 0 : i32
    return %c0_i32, %c0_i32_0, %c0_i32_1 : i32, i32, i32
  }
  func.func @transform_2(%arg0: i32) -> (i32, i32) {
    %c0_i32 = arith.constant 0 : i32
    %c0_i32_0 = arith.constant 0 : i32
    %c0_i32_1 = arith.constant 0 : i32
    return %c0_i32, %c0_i32_0 : i32, i32
  }
  func.func @transform_3(%arg0: i32) -> (i32, i32, i32, i32) {
    %c0_i32 = arith.constant 0 : i32
    %c0_i32_0 = arith.constant 0 : i32
    %c0_i32_1 = arith.constant 0 : i32
    %c0_i32_2 = arith.constant 0 : i32
    return %arg0, %c0_i32, %c0_i32_0, %c0_i32_1 : i32, i32, i32, i32
  }
}

</mosaic_0001>

<llo_original>
// kernel: _fused_unet.1
$region0: #{_fused_unet.1}
  #allocation0 [shape = 'u32[]', space=smem, size = 0x4, offset = 0x4, fixed_abs, tag = 'smem constant byte address 0x4 - core index']
  #allocation1 [shape = 'u32[72,128]{1,0:T(1,128)}', space=vmem, size = 0x9000, scoped, tag = 'internal scratch']
  #allocation2 [shape = 'f32[18,18,128]{2,1,0:T(8,128)}', space=vmem, size = 0x36000, scoped, tag = 'scratch operand']
  #allocation3 [shape = 'f32[18,18,128]{2,1,0:T(8,128)}', space=vmem, size = 0x36000, scoped, tag = 'scratch operand']
  #allocation4 [shape = 'f32[256,1152]{1,0:T(8,128)}', space=vmem, size = 0x120000, scoped, tag = 'scratch operand']
  %s0 = inlined_call_operand.hbm [shape: f32[2,16,16,128], index: 0, kind: input, shape index: {}]
  %s1 = inlined_call_operand.hbm [shape: f32[4,1152,128], index: 1, kind: input, shape index: {}]
  %s2 = inlined_call_operand.hbm [shape: f32[4,128], index: 2, kind: input, shape index: {}]
  %s3 = inlined_call_operand.hbm [shape: f32[2,16,16,128], index: 3, kind: output, shape index: {}]
  %s4 = sld [smem:[#allocation0]]
  $region57: #{_fused_unet.1} parent=0
    _
  %s6 = ssub.s32 1, %s4
  %s7 = scalar_select 0, %s6, %s4
  $region1: #{_fused_unet.1} parent=0
    #allocation5 [shape = 'u8[262144]{0}', space=vmem, size = 0x40000, scoped, tag = 'input window, operand 0']
    #allocation6 [shape = 's32[2]{0}', space=sflag, size = 0x8, scoped, tag = 'scoped memory for _fused_unet.1']
    #allocation7 [shape = 's32[2]{0}', space=sflag, size = 0x8, scoped, tag = 'scoped memory for _fused_unet.1']
    #allocation8 [shape = 'u8[2359296]{0}', space=vmem, size = 0x240000, scoped, tag = 'input window, operand 1, single buffered']
    #allocation9 [shape = 's32[1]{0}', space=sflag, size = 0x4, scoped, tag = 'scoped memory for _fused_unet.1']
    #allocation10 [shape = 'u8[2048]{0}', space=vmem, size = 0x800, scoped, tag = 'input window, operand 2, single buffered']
    #allocation11 [shape = 'u8[262144]{0}', space=vmem, size = 0x40000, scoped, tag = 'output window, operand 0']
    %8 = vsyncpa [#allocation6], 0
    %s9 = scalar_lea.sflag [#allocation6], 1
    %10 = vsyncpa %s9, 0
    %11 = vsyncpa [#allocation9], 0
    %12 = vsyncpa [#allocation7], 0
    %s13 = scalar_lea.sflag [#allocation7], 1
    %14 = vsyncpa %s13, 0
    loop: start=0, step=1, limit=4
    $region2: #{_fused_unet.1} parent=1 // loop_pre_header
      _
    $region3: #{_fused_unet.1} parent=1 // loop_header
      %s16 = sphi 0, %s20
      %p17 = scmp.ge.s32.totalorder %s16, 4
      %s26 = sphi 0, %s28
      %s29 = sphi 0, %s26
      %s30 = sphi 0, %s29
      %s46 = sphi 0, %s30
      %s50 = sphi 0, %s50
      %s52 = sphi 0, %s50
      %s53 = sphi 0, %s52
      %s67 = sphi 0, %s53
      %s71 = sphi 0, %s71
      %s73 = sphi 0, %s71
      %s74 = sphi 0, %s73
      %s88 = sphi 0, %s74
      %s94 = sphi 0, %s96
      %s97 = sphi 0, %s94
      %s98 = sphi 0, %s97
      %s114 = sphi 0, %s98
    $region4: #{_fused_unet.1} parent=1 // loop_header_branch
      %19 = sbr.rel (%p17) target = $region8
    $region5: #{_fused_unet.1} parent=1 // loop_body
      %s21 = ssub.s32 %s16, 1
      %s22 = ssub.s32 %s16, 2
      %s23 = sadd.s32 %s16, 1
      %s24 = ssub.s32 %s16, %s23
      %p25 = scmp.eq.s32.totalorder %s24, 0
      %s27 = sadd.s32 %s26, 1
      %s28 = scalar_select %p25, %s26, %s27
      %p31 = pneg %p25
      %p32 = scmp.eq.s32.totalorder %s16, 1
      %p33 = por %p31, %p32
      %p34 = scmp.ne.s32.totalorder %s26, %s29
      %p35 = scmp.eq.s32.totalorder %s16, 0
      %p36 = por %p34, %p35
      %p37 = scmp.ne.s32.totalorder %s26, %s29
      %p38 = scmp.eq.s32.totalorder %s21, 1
      %p39 = por %p37, %p38
      %p40 = scmp.ne.s32.totalorder %s29, %s30
      %p41 = scmp.eq.s32.totalorder %s21, 0
      %p42 = por %p40, %p41
      %p43 = scmp.ne.s32.totalorder %s29, %s30
      %p44 = scmp.eq.s32.totalorder %s22, 1
      %p45 = por %p43, %p44
      %p47 = scmp.ne.s32.totalorder %s30, %s46
      %p48 = scmp.eq.s32.totalorder %s22, 0
      %p49 = por %p47, %p48
      %s51 = sadd.s32 %s50, 1
      %p54 = scmp.eq.s32.totalorder %s16, 1
      %p55 = scmp.ne.s32.totalorder %s50, %s52
      %p56 = scmp.eq.s32.totalorder %s16, 0
      %p57 = por %p55, %p56
      %p58 = scmp.ne.s32.totalorder %s50, %s52
      %p59 = scmp.eq.s32.totalorder %s21, 1
      %p60 = por %p58, %p59
      %p61 = scmp.ne.s32.totalorder %s52, %s53
      %p62 = scmp.eq.s32.totalorder %s21, 0
      %p63 = por %p61, %p62
      %p64 = scmp.ne.s32.totalorder %s52, %s53
      %p65 = scmp.eq.s32.totalorder %s22, 1
      %p66 = por %p64, %p65
      %p68 = scmp.ne.s32.totalorder %s53, %s67
      %p69 = scmp.eq.s32.totalorder %s22, 0
      %p70 = por %p68, %p69
      %s72 = sadd.s32 %s71, 1
      %p75 = scmp.eq.s32.totalorder %s16, 1
      %p76 = scmp.ne.s32.totalorder %s71, %s73
      %p77 = scmp.eq.s32.totalorder %s16, 0
      %p78 = por %p76, %p77
      %p79 = scmp.ne.s32.totalorder %s71, %s73
      %p80 = scmp.eq.s32.totalorder %s21, 1
      %p81 = por %p79, %p80
      %p82 = scmp.ne.s32.totalorder %s73, %s74
      %p83 = scmp.eq.s32.totalorder %s21, 0
      %p84 = por %p82, %p83
      %p85 = scmp.ne.s32.totalorder %s73, %s74
      %p86 = scmp.eq.s32.totalorder %s22, 1
      %p87 = por %p85, %p86
      %p89 = scmp.ne.s32.totalorder %s74, %s88
      %p90 = scmp.eq.s32.totalorder %s22, 0
      %p91 = por %p89, %p90
      %s92 = ssub.s32 %s16, %s23
      %p93 = scmp.eq.s32.totalorder %s92, 0
      %s95 = sadd.s32 %s94, 1
      %s96 = scalar_select %p93, %s94, %s95
      %p99 = pneg %p93
      %p100 = scmp.eq.s32.totalorder %s16, 1
      %p101 = por %p99, %p100
      %p102 = scmp.ne.s32.totalorder %s94, %s97
      %p103 = scmp.eq.s32.totalorder %s16, 0
      %p104 = por %p102, %p103
      %p105 = scmp.ne.s32.totalorder %s94, %s97
      %p106 = scmp.eq.s32.totalorder %s21, 1
      %p107 = por %p105, %p106
      %p108 = scmp.ne.s32.totalorder %s97, %s98
      %p109 = scmp.eq.s32.totalorder %s21, 0
      %p110 = por %p108, %p109
      %p111 = scmp.ne.s32.totalorder %s97, %s98
      %p112 = scmp.eq.s32.totalorder %s22, 1
      %p113 = por %p111, %p112
      %p115 = scmp.ne.s32.totalorder %s98, %s114
      %p116 = scmp.eq.s32.totalorder %s22, 0
      %p117 = por %p115, %p116
      %p118 = scmp.le.s32.totalorder 1, %s16
      %p119 = scmp.lt.s32.totalorder %s16, 3
      %p120 = pnand %p118, %p119
      %p121 = pneg %p120
      // Predicated region
      $region9: #{_fused_unet.1} parent=5 // pred_check
        _
      $region10: #{_fused_unet.1} parent=5 // pred_check_branch
        %123 = sbr.rel (%p120) target = $region12
      $region11: #{_fused_unet.1} parent=5 // pred_region
        %s124 = ssub.s32 %s16, 1
        // Predicated region
        $region13: #{_fused_unet.1} parent=11 // pred_check
          %p125 = pneg %p63
        $region14: #{_fused_unet.1} parent=11 // pred_check_branch
          %127 = sbr.rel (%p125) target = $region16
        $region15: #{_fused_unet.1} parent=11 // pred_region
          %129 = vsyncadd [#allocation9], 0
          %s130 = sshll.u32 %s1, 4
          %s131 = int_to_ptr.hbm [resolvable:$true] %s130
          %s132 = sshll.u32 [#allocation8], 4
          %s133 = int_to_ptr.vmem [resolvable:$true] %s132
          %138 = dma.hbm_to_vmem [thread:$0]  %s131, 73728, %s133, [#allocation9], 128, 128, 8
        $region16: #{_fused_unet.1} parent=11 // pred_fallthru
          _
        // Predicated region
        $region17: #{_fused_unet.1} parent=11 // pred_check
          %p139 = pneg %p84
        $region18: #{_fused_unet.1} parent=11 // pred_check_branch
          %141 = sbr.rel (%p139) target = $region20
        $region19: #{_fused_unet.1} parent=11 // pred_region
          %143 = vsyncadd [#allocation9], 0
          %s145 = sshll.u32 %s2, 4
          %s146 = int_to_ptr.hbm [resolvable:$true] %s145
          %s147 = sshll.u32 [#allocation10], 4
          %s148 = int_to_ptr.vmem [resolvable:$true] %s147
          %150 = dma.hbm_to_vmem [thread:$0]  %s146, 64, %s148, [#allocation9]
        $region20: #{_fused_unet.1} parent=11 // pred_fallthru
          _
      $region12: #{_fused_unet.1} parent=5 // pred_fallthru
        _
      %p151 = scmp.lt.s32.totalorder %s16, 2
      // Predicated region
      $region21: #{_fused_unet.1} parent=5 // pred_check
        %p152 = pneg %p151
      $region22: #{_fused_unet.1} parent=5 // pred_check_branch
        %154 = sbr.rel (%p152) target = $region24
      $region23: #{_fused_unet.1} parent=5 // pred_region
        // Predicated region
        $region25: #{_fused_unet.1} parent=23 // pred_check
          %p155 = pneg %p36
        $region26: #{_fused_unet.1} parent=23 // pred_check_branch
          %157 = sbr.rel (%p155) target = $region28
        $region27: #{_fused_unet.1} parent=23 // pred_region
          %s158 = sand.u32 %s26, 1
          %s159 = scalar_lea.sflag [#allocation6], %s158
          %s160 = sand.u32 %s26, 1
          %s161 = smul.addr %s160, 256
          %s162 = scalar_lea.vmem [#allocation5], %s161
          %164 = vsyncadd %s159, 0
          %s165 = smul.addr %s16, 32
          %s166 = smul.addr %s165, 8
          %s167 = scalar_lea.hbm %s0, %s166
          %s168 = sshll.u32 %s167, 4
          %s169 = int_to_ptr.hbm [resolvable:$true] %s168
          %s170 = sshll.u32 %s162, 4
          %s171 = int_to_ptr.vmem [resolvable:$true] %s170
          %176 = dma.hbm_to_vmem [thread:$0]  %s169, 4096, %s171, %s159, 128, 128, 8
        $region28: #{_fused_unet.1} parent=23 // pred_fallthru
          _
      $region24: #{_fused_unet.1} parent=5 // pred_fallthru
        _
      %p177 = scmp.le.s32.totalorder 1, %s16
      %p178 = scmp.lt.s32.totalorder %s16, 3
      %p179 = pnand %p177, %p178
      %p180 = pneg %p179
      // Predicated region
      $region29: #{_fused_unet.1} parent=5 // pred_check
        _
      $region30: #{_fused_unet.1} parent=5 // pred_check_branch
        %182 = sbr.rel (%p179) target = $region32
      $region31: #{_fused_unet.1} parent=5 // pred_region
        %s183 = ssub.s32 %s16, 1
        %s184 = sand.u32 %s29, 1
        %s185 = scalar_lea.sflag [#allocation6], %s184
        %s186 = sand.u32 %s29, 1
        %s187 = smul.addr %s186, 256
        %s188 = scalar_lea.vmem [#allocation5], %s187
        // Predicated region
        $region33: #{_fused_unet.1} parent=31 // pred_check
          %p189 = pneg %p42
        $region34: #{_fused_unet.1} parent=31 // pred_check_branch
          %191 = sbr.rel (%p189) target = $region36
        $region35: #{_fused_unet.1} parent=31 // pred_region
          %193 = dma.done %s185, 4096
        $region36: #{_fused_unet.1} parent=31 // pred_fallthru
          _
        // Predicated region
        $region37: #{_fused_unet.1} parent=31 // pred_check
          %p194 = pneg %p63
        $region38: #{_fused_unet.1} parent=31 // pred_check_branch
          %196 = sbr.rel (%p194) target = $region40
        $region39: #{_fused_unet.1} parent=31 // pred_region
          %198 = dma.done [#allocation9], 73728
        $region40: #{_fused_unet.1} parent=31 // pred_fallthru
          _
        // Predicated region
        $region41: #{_fused_unet.1} parent=31 // pred_check
          %p199 = pneg %p84
        $region42: #{_fused_unet.1} parent=31 // pred_check_branch
          %201 = sbr.rel (%p199) target = $region44
        $region43: #{_fused_unet.1} parent=31 // pred_region
          %203 = dma.done [#allocation9], 64
        $region44: #{_fused_unet.1} parent=31 // pred_fallthru
          _
        %s204 = sand.u32 %s29, 1
        %s205 = scalar_lea.sflag [#allocation6], %s204
        %s206 = sand.u32 %s29, 1
        %s207 = smul.addr %s206, 256
        %s208 = scalar_lea.vmem [#allocation5], %s207
        %p209 = pneg %p42
        %p210 = pneg %p39
        %p211 = pneg %p63
        %p212 = pneg %p60
        %p213 = pneg %p84
        %p214 = pneg %p81
        %p215 = pneg %p110
        %p216 = pneg %p107
        %s217 = sand.u32 %s97, 1
        %s218 = scalar_lea.sflag [#allocation7], %s217
        %s219 = sand.u32 %s97, 1
        %s220 = smul.addr %s219, 256
        %s221 = scalar_lea.vmem [#allocation11], %s220
        %222 = vst [vmem:[#allocation2] sm:$0xff] 0.0
        %223 = vst [vmem:[#allocation2 + $0x8] sm:$0xff] 0.0
        %224 = vst [vmem:[#allocation2 + $0x10] sm:$0x3] 0.0
        %225 = vst [vmem:[#allocation2 + $0x18] sm:$0xff] 0.0
        %226 = vst [vmem:[#allocation2 + $0x20] sm:$0xff] 0.0
        %227 = vst [vmem:[#allocation2 + $0x28] sm:$0x3] 0.0
        %228 = vst [vmem:[#allocation2 + $0x30] sm:$0xff] 0.0
        %229 = vst [vmem:[#allocation2 + $0x38] sm:$0xff] 0.0
        %230 = vst [vmem:[#allocation2 + $0x40] sm:$0x3] 0.0
        %231 = vst [vmem:[#allocation2 + $0x48] sm:$0xff] 0.0
        %232 = vst [vmem:[#allocation2 + $0x50] sm:$0xff] 0.0
        %233 = vst [vmem:[#allocation2 + $0x58] sm:$0x3] 0.0
        %234 = vst [vmem:[#allocation2 + $0x60] sm:$0xff] 0.0
        %235 = vst [vmem:[#allocation2 + $0x68] sm:$0xff] 0.0
        %236 = vst [vmem:[#allocation2 + $0x70] sm:$0x3] 0.0
        %237 = vst [vmem:[#allocation2 + $0x78] sm:$0xff] 0.0
        %238 = vst [vmem:[#allocation2 + $0x80] sm:$0xff] 0.0
        %239 = vst [vmem:[#allocation2 + $0x88] sm:$0x3] 0.0
        %240 = vst [vmem:[#allocation2 + $0x90] sm:$0xff] 0.0
        %241 = vst [vmem:[#allocation2 + $0x98] sm:$0xff] 0.0
        %242 = vst [vmem:[#allocation2 + $0xa0] sm:$0x3] 0.0
        %243 = vst [vmem:[#allocation2 + $0xa8] sm:$0xff] 0.0
        %244 = vst [vmem:[#allocation2 + $0xb0] sm:$0xff] 0.0
        %245 = vst [vmem:[#allocation2 + $0xb8] sm:$0x3] 0.0
        %246 = vst [vmem:[#allocation2 + $0xc0] sm:$0xff] 0.0
        %247 = vst [vmem:[#allocation2 + $0xc8] sm:$0xff] 0.0
        %248 = vst [vmem:[#allocation2 + $0xd0] sm:$0x3] 0.0
        %249 = vst [vmem:[#allocation2 + $0xd8] sm:$0xff] 0.0
        %250 = vst [vmem:[#allocation2 + $0xe0] sm:$0xff] 0.0
        %251 = vst [vmem:[#allocation2 + $0xe8] sm:$0x3] 0.0
        %252 = vst [vmem:[#allocation2 + $0xf0] sm:$0xff] 0.0
        %253 = vst [vmem:[#allocation2 + $0xf8] sm:$0xff] 0.0
        %254 = vst [vmem:[#allocation2 + $0x100] sm:$0x3] 0.0
        %255 = vst [vmem:[#allocation2 + $0x108] sm:$0xff] 0.0
        %256 = vst [vmem:[#allocation2 + $0x110] sm:$0xff] 0.0
        %257 = vst [vmem:[#allocation2 + $0x118] sm:$0x3] 0.0
        %258 = vst [vmem:[#allocation2 + $0x120] sm:$0xff] 0.0
        %259 = vst [vmem:[#allocation2 + $0x128] sm:$0xff] 0.0
        %260 = vst [vmem:[#allocation2 + $0x130] sm:$0x3] 0.0
        %261 = vst [vmem:[#allocation2 + $0x138] sm:$0xff] 0.0
        %262 = vst [vmem:[#allocation2 + $0x140] sm:$0xff] 0.0
        %263 = vst [vmem:[#allocation2 + $0x148] sm:$0x3] 0.0
        %264 = vst [vmem:[#allocation2 + $0x150] sm:$0xff] 0.0
        %265 = vst [vmem:[#allocation2 + $0x158] sm:$0xff] 0.0
        %266 = vst [vmem:[#allocation2 + $0x160] sm:$0x3] 0.0
        %267 = vst [vmem:[#allocation2 + $0x168] sm:$0xff] 0.0
        %268 = vst [vmem:[#allocation2 + $0x170] sm:$0xff] 0.0
        %269 = vst [vmem:[#allocation2 + $0x178] sm:$0x3] 0.0
        %270 = vst [vmem:[#allocation2 + $0x180] sm:$0xff] 0.0
        %271 = vst [vmem:[#allocation2 + $0x188] sm:$0xff] 0.0
        %272 = vst [vmem:[#allocation2 + $0x190] sm:$0x3] 0.0
        %273 = vst [vmem:[#allocation2 + $0x198] sm:$0xff] 0.0
        %274 = vst [vmem:[#allocation2 + $0x1a0] sm:$0xff] 0.0
        %275 = vst [vmem:[#allocation2 + $0x1a8] sm:$0x3] 0.0
        %276 = vst [vmem:[#allocation3] sm:$0xff] 0.0
        %277 = vst [vmem:[#allocation3 + $0x8] sm:$0xff] 0.0
        %278 = vst [vmem:[#allocation3 + $0x10] sm:$0x3] 0.0
        %279 = vst [vmem:[#allocation3 + $0x18] sm:$0xff] 0.0
        %280 = vst [vmem:[#allocation3 + $0x20] sm:$0xff] 0.0
        %281 = vst [vmem:[#allocation3 + $0x28] sm:$0x3] 0.0
        %282 = vst [vmem:[#allocation3 + $0x30] sm:$0xff] 0.0
        %283 = vst [vmem:[#allocation3 + $0x38] sm:$0xff] 0.0
        %284 = vst [vmem:[#allocation3 + $0x40] sm:$0x3] 0.0
        %285 = vst [vmem:[#allocation3 + $0x48] sm:$0xff] 0.0
        %286 = vst [vmem:[#allocation3 + $0x50] sm:$0xff] 0.0
        %287 = vst [vmem:[#allocation3 + $0x58] sm:$0x3] 0.0
        %288 = vst [vmem:[#allocation3 + $0x60] sm:$0xff] 0.0
        %289 = vst [vmem:[#allocation3 + $0x68] sm:$0xff] 0.0
        %290 = vst [vmem:[#allocation3 + $0x70] sm:$0x3] 0.0
        %291 = vst [vmem:[#allocation3 + $0x78] sm:$0xff] 0.0
        %292 = vst [vmem:[#allocation3 + $0x80] sm:$0xff] 0.0
        %293 = vst [vmem:[#allocation3 + $0x88] sm:$0x3] 0.0
        %294 = vst [vmem:[#allocation3 + $0x90] sm:$0xff] 0.0
        %295 = vst [vmem:[#allocation3 + $0x98] sm:$0xff] 0.0
        %296 = vst [vmem:[#allocation3 + $0xa0] sm:$0x3] 0.0
        %297 = vst [vmem:[#allocation3 + $0xa8] sm:$0xff] 0.0
        %298 = vst [vmem:[#allocation3 + $0xb0] sm:$0xff] 0.0
        %299 = vst [vmem:[#allocation3 + $0xb8] sm:$0x3] 0.0
        %300 = vst [vmem:[#allocation3 + $0xc0] sm:$0xff] 0.0
        %301 = vst [vmem:[#allocation3 + $0xc8] sm:$0xff] 0.0
        %302 = vst [vmem:[#allocation3 + $0xd0] sm:$0x3] 0.0
        %303 = vst [vmem:[#allocation3 + $0xd8] sm:$0xff] 0.0
        %304 = vst [vmem:[#allocation3 + $0xe0] sm:$0xff] 0.0
        %305 = vst [vmem:[#allocation3 + $0xe8] sm:$0x3] 0.0
        %306 = vst [vmem:[#allocation3 + $0xf0] sm:$0xff] 0.0
        %307 = vst [vmem:[#allocation3 + $0xf8] sm:$0xff] 0.0
        %308 = vst [vmem:[#allocation3 + $0x100] sm:$0x3] 0.0
        %309 = vst [vmem:[#allocation3 + $0x108] sm:$0xff] 0.0
        %310 = vst [vmem:[#allocation3 + $0x110] sm:$0xff] 0.0
        %311 = vst [vmem:[#allocation3 + $0x118] sm:$0x3] 0.0
        %312 = vst [vmem:[#allocation3 + $0x120] sm:$0xff] 0.0
        %313 = vst [vmem:[#allocation3 + $0x128] sm:$0xff] 0.0
        %314 = vst [vmem:[#allocation3 + $0x130] sm:$0x3] 0.0
        %315 = vst [vmem:[#allocation3 + $0x138] sm:$0xff] 0.0
        %316 = vst [vmem:[#allocation3 + $0x140] sm:$0xff] 0.0
        %317 = vst [vmem:[#allocation3 + $0x148] sm:$0x3] 0.0
        %318 = vst [vmem:[#allocation3 + $0x150] sm:$0xff] 0.0
        %319 = vst [vmem:[#allocation3 + $0x158] sm:$0xff] 0.0
        %320 = vst [vmem:[#allocation3 + $0x160] sm:$0x3] 0.0
        %321 = vst [vmem:[#allocation3 + $0x168] sm:$0xff] 0.0
        %322 = vst [vmem:[#allocation3 + $0x170] sm:$0xff] 0.0
        %323 = vst [vmem:[#allocation3 + $0x178] sm:$0x3] 0.0
        %324 = vst [vmem:[#allocation3 + $0x180] sm:$0xff] 0.0
        %325 = vst [vmem:[#allocation3 + $0x188] sm:$0xff] 0.0
        %326 = vst [vmem:[#allocation3 + $0x190] sm:$0x3] 0.0
        %327 = vst [vmem:[#allocation3 + $0x198] sm:$0xff] 0.0
        %328 = vst [vmem:[#allocation3 + $0x1a0] sm:$0xff] 0.0
        %329 = vst [vmem:[#allocation3 + $0x1a8] sm:$0x3] 0.0
        %v330 = vld [vmem:[%s188] sm:$0xff]
        %v331 = vld [vmem:[%s188 + $0x8] sm:$0xff]
        %v332 = vld [vmem:[%s188 + $0x10] sm:$0xff]
        %v333 = vld [vmem:[%s188 + $0x18] sm:$0xff]
        %v334 = vld [vmem:[%s188 + $0x20] sm:$0xff]
        %v335 = vld [vmem:[%s188 + $0x28] sm:$0xff]
        %v336 = vld [vmem:[%s188 + $0x30] sm:$0xff]
        %v337 = vld [vmem:[%s188 + $0x38] sm:$0xff]
        %v338 = vld [vmem:[%s188 + $0x40] sm:$0xff]
        %v339 = vld [vmem:[%s188 + $0x48] sm:$0xff]
        %v340 = vld [vmem:[%s188 + $0x50] sm:$0xff]
        %v341 = vld [vmem:[%s188 + $0x58] sm:$0xff]
        %v342 = vld [vmem:[%s188 + $0x60] sm:$0xff]
        %v343 = vld [vmem:[%s188 + $0x68] sm:$0xff]
        %v344 = vld [vmem:[%s188 + $0x70] sm:$0xff]
        %v345 = vld [vmem:[%s188 + $0x78] sm:$0xff]
        %v346 = vld [vmem:[%s188 + $0x80] sm:$0xff]
        %v347 = vld [vmem:[%s188 + $0x88] sm:$0xff]
        %v348 = vld [vmem:[%s188 + $0x90] sm:$0xff]
        %v349 = vld [vmem:[%s188 + $0x98] sm:$0xff]
        %v350 = vld [vmem:[%s188 + $0xa0] sm:$0xff]
        %v351 = vld [vmem:[%s188 + $0xa8] sm:$0xff]
        %v352 = vld [vmem:[%s188 + $0xb0] sm:$0xff]
        %v353 = vld [vmem:[%s188 + $0xb8] sm:$0xff]
        %v354 = vld [vmem:[%s188 + $0xc0] sm:$0xff]
        %v355 = vld [vmem:[%s188 + $0xc8] sm:$0xff]
        %v356 = vld [vmem:[%s188 + $0xd0] sm:$0xff]
        %v357 = vld [vmem:[%s188 + $0xd8] sm:$0xff]
        %v358 = vld [vmem:[%s188 + $0xe0] sm:$0xff]
        %v359 = vld [vmem:[%s188 + $0xe8] sm:$0xff]
        %v360 = vld [vmem:[%s188 + $0xf0] sm:$0xff]
        %v361 = vld [vmem:[%s188 + $0xf8] sm:$0xff]
        %s362 = scalar_lea.vmem [#allocation2], 24
        %363 = vst [vmem:[%s362 + $0x1] sm:$0xff] %v330
        %364 = vst [vmem:[%s362 + $0x9] sm:$0xff] %v331
        %365 = vst [vmem:[%s362 + $0x19] sm:$0xff] %v332
        %366 = vst [vmem:[%s362 + $0x21] sm:$0xff] %v333
        %367 = vst [vmem:[%s362 + $0x31] sm:$0xff] %v334
        %368 = vst [vmem:[%s362 + $0x39] sm:$0xff] %v335
        %369 = vst [vmem:[%s362 + $0x49] sm:$0xff] %v336
        %370 = vst [vmem:[%s362 + $0x51] sm:$0xff] %v337
        %371 = vst [vmem:[%s362 + $0x61] sm:$0xff] %v338
        %372 = vst [vmem:[%s362 + $0x69] sm:$0xff] %v339
        %373 = vst [vmem:[%s362 + $0x79] sm:$0xff] %v340
        %374 = vst [vmem:[%s362 + $0x81] sm:$0xff] %v341
        %375 = vst [vmem:[%s362 + $0x91] sm:$0xff] %v342
        %376 = vst [vmem:[%s362 + $0x99] sm:$0xff] %v343
        %377 = vst [vmem:[%s362 + $0xa9] sm:$0xff] %v344
        %378 = vst [vmem:[%s362 + $0xb1] sm:$0xff] %v345
        %379 = vst [vmem:[%s362 + $0xc1] sm:$0xff] %v346
        %380 = vst [vmem:[%s362 + $0xc9] sm:$0xff] %v347
        %381 = vst [vmem:[%s362 + $0xd9] sm:$0xff] %v348
        %382 = vst [vmem:[%s362 + $0xe1] sm:$0xff] %v349
        %383 = vst [vmem:[%s362 + $0xf1] sm:$0xff] %v350
        %384 = vst [vmem:[%s362 + $0xf9] sm:$0xff] %v351
        %385 = vst [vmem:[%s362 + $0x109] sm:$0xff] %v352
        %386 = vst [vmem:[%s362 + $0x111] sm:$0xff] %v353
        %387 = vst [vmem:[%s362 + $0x121] sm:$0xff] %v354
        %388 = vst [vmem:[%s362 + $0x129] sm:$0xff] %v355
        %389 = vst [vmem:[%s362 + $0x139] sm:$0xff] %v356
        %390 = vst [vmem:[%s362 + $0x141] sm:$0xff] %v357
        %391 = vst [vmem:[%s362 + $0x151] sm:$0xff] %v358
        %392 = vst [vmem:[%s362 + $0x159] sm:$0xff] %v359
        %393 = vst [vmem:[%s362 + $0x169] sm:$0xff] %v360
        %394 = vst [vmem:[%s362 + $0x171] sm:$0xff] %v361
        %v395 = vld [vmem:[#allocation2] sm:$0xff]
        %v396 = vld [vmem:[#allocation2 + $0x8] sm:$0xff]
        %v397 = vld [vmem:[#allocation2 + $0x18] sm:$0xff]
        %v398 = vld [vmem:[#allocation2 + $0x20] sm:$0xff]
        %v399 = vld [vmem:[#allocation2 + $0x30] sm:$0xff]
        %v400 = vld [vmem:[#allocation2 + $0x38] sm:$0xff]
        %v401 = vld [vmem:[#allocation2 + $0x48] sm:$0xff]
        %v402 = vld [vmem:[#allocation2 + $0x50] sm:$0xff]
        %v403 = vld [vmem:[#allocation2 + $0x60] sm:$0xff]
        %v404 = vld [vmem:[#allocation2 + $0x68] sm:$0xff]
        %v405 = vld [vmem:[#allocation2 + $0x78] sm:$0xff]
        %v406 = vld [vmem:[#allocation2 + $0x80] sm:$0xff]
        %v407 = vld [vmem:[#allocation2 + $0x90] sm:$0xff]
        %v408 = vld [vmem:[#allocation2 + $0x98] sm:$0xff]
        %v409 = vld [vmem:[#allocation2 + $0xa8] sm:$0xff]
        %v410 = vld [vmem:[#allocation2 + $0xb0] sm:$0xff]
        %v411 = vld [vmem:[#allocation2 + $0xc0] sm:$0xff]
        %v412 = vld [vmem:[#allocation2 + $0xc8] sm:$0xff]
        %v413 = vld [vmem:[#allocation2 + $0xd8] sm:$0xff]
        %v414 = vld [vmem:[#allocation2 + $0xe0] sm:$0xff]
        %v415 = vld [vmem:[#allocation2 + $0xf0] sm:$0xff]
        %v416 = vld [vmem:[#allocation2 + $0xf8] sm:$0xff]
        %v417 = vld [vmem:[#allocation2 + $0x108] sm:$0xff]
        %v418 = vld [vmem:[#allocation2 + $0x110] sm:$0xff]
        %v419 = vld [vmem:[#allocation2 + $0x120] sm:$0xff]
        %v420 = vld [vmem:[#allocation2 + $0x128] sm:$0xff]
        %v421 = vld [vmem:[#allocation2 + $0x138] sm:$0xff]
        %v422 = vld [vmem:[#allocation2 + $0x140] sm:$0xff]
        %v423 = vld [vmem:[#allocation2 + $0x150] sm:$0xff]
        %v424 = vld [vmem:[#allocation2 + $0x158] sm:$0xff]
        %v425 = vld [vmem:[#allocation2 + $0x168] sm:$0xff]
        %v426 = vld [vmem:[#allocation2 + $0x170] sm:$0xff]
        %v427 = vld [vmem:[#allocation2 + $0x180] sm:$0xff]
        %v428 = vld [vmem:[#allocation2 + $0x188] sm:$0xff]
        %v429 = vld [vmem:[#allocation2 + $0x198] sm:$0xff]
        %v430 = vld [vmem:[#allocation2 + $0x1a0] sm:$0xff]
        %431 = vst [vmem:[#allocation4] sm:$0xff] %v395
        %432 = vst [vmem:[#allocation4 + $0x48] sm:$0xff] %v396
        %433 = vst [vmem:[#allocation4 + $0x90] sm:$0xff] %v397
        %434 = vst [vmem:[#allocation4 + $0xd8] sm:$0xff] %v398
        %435 = vst [vmem:[#allocation4 + $0x120] sm:$0xff] %v399
        %436 = vst [vmem:[#allocation4 + $0x168] sm:$0xff] %v400
        %437 = vst [vmem:[#allocation4 + $0x1b0] sm:$0xff] %v401
        %438 = vst [vmem:[#allocation4 + $0x1f8] sm:$0xff] %v402
        %439 = vst [vmem:[#allocation4 + $0x240] sm:$0xff] %v403
        %440 = vst [vmem:[#allocation4 + $0x288] sm:$0xff] %v404
        %441 = vst [vmem:[#allocation4 + $0x2d0] sm:$0xff] %v405
        %442 = vst [vmem:[#allocation4 + $0x318] sm:$0xff] %v406
        %443 = vst [vmem:[#allocation4 + $0x360] sm:$0xff] %v407
        %444 = vst [vmem:[#allocation4 + $0x3a8] sm:$0xff] %v408
        %445 = vst [vmem:[#allocation4 + $0x3f0] sm:$0xff] %v409
        %446 = vst [vmem:[#allocation4 + $0x438] sm:$0xff] %v410
        %447 = vst [vmem:[#allocation4 + $0x480] sm:$0xff] %v411
        %448 = vst [vmem:[#allocation4 + $0x4c8] sm:$0xff] %v412
        %449 = vst [vmem:[#allocation4 + $0x510] sm:$0xff] %v413
        %450 = vst [vmem:[#allocation4 + $0x558] sm:$0xff] %v414
        %451 = vst [vmem:[#allocation4 + $0x5a0] sm:$0xff] %v415
        %452 = vst [vmem:[#allocation4 + $0x5e8] sm:$0xff] %v416
        %453 = vst [vmem:[#allocation4 + $0x630] sm:$0xff] %v417
        %454 = vst [vmem:[#allocation4 + $0x678] sm:$0xff] %v418
        %455 = vst [vmem:[#allocation4 + $0x6c0] sm:$0xff] %v419
        %456 = vst [vmem:[#allocation4 + $0x708] sm:$0xff] %v420
        %457 = vst [vmem:[#allocation4 + $0x750] sm:$0xff] %v421
        %458 = vst [vmem:[#allocation4 + $0x798] sm:$0xff] %v422
        %459 = vst [vmem:[#allocation4 + $0x7e0] sm:$0xff] %v423
        %460 = vst [vmem:[#allocation4 + $0x828] sm:$0xff] %v424
        %461 = vst [vmem:[#allocation4 + $0x870] sm:$0xff] %v425
        %462 = vst [vmem:[#allocation4 + $0x8b8] sm:$0xff] %v426
        %463 = vst [vmem:[#allocation4 + $0x8] sm:$0xff] %v397
        %464 = vst [vmem:[#allocation4 + $0x50] sm:$0xff] %v398
        %465 = vst [vmem:[#allocation4 + $0x98] sm:$0xff] %v399
        %466 = vst [vmem:[#allocation4 + $0xe0] sm:$0xff] %v400
        %467 = vst [vmem:[#allocation4 + $0x128] sm:$0xff] %v401
        %468 = vst [vmem:[#allocation4 + $0x170] sm:$0xff] %v402
        %469 = vst [vmem:[#allocation4 + $0x1b8] sm:$0xff] %v403
        %470 = vst [vmem:[#allocation4 + $0x200] sm:$0xff] %v404
        %471 = vst [vmem:[#allocation4 + $0x248] sm:$0xff] %v405
        %472 = vst [vmem:[#allocation4 + $0x290] sm:$0xff] %v406
        %473 = vst [vmem:[#allocation4 + $0x2d8] sm:$0xff] %v407
        %474 = vst [vmem:[#allocation4 + $0x320] sm:$0xff] %v408
        %475 = vst [vmem:[#allocation4 + $0x368] sm:$0xff] %v409
        %476 = vst [vmem:[#allocation4 + $0x3b0] sm:$0xff] %v410
        %477 = vst [vmem:[#allocation4 + $0x3f8] sm:$0xff] %v411
        %478 = vst [vmem:[#allocation4 + $0x440] sm:$0xff] %v412
        %479 = vst [vmem:[#allocation4 + $0x488] sm:$0xff] %v413
        %480 = vst [vmem:[#allocation4 + $0x4d0] sm:$0xff] %v414
        %481 = vst [vmem:[#allocation4 + $0x518] sm:$0xff] %v415
        %482 = vst [vmem:[#allocation4 + $0x560] sm:$0xff] %v416
        %483 = vst [vmem:[#allocation4 + $0x5a8] sm:$0xff] %v417
        %484 = vst [vmem:[#allocation4 + $0x5f0] sm:$0xff] %v418
        %485 = vst [vmem:[#allocation4 + $0x638] sm:$0xff] %v419
        %486 = vst [vmem:[#allocation4 + $0x680] sm:$0xff] %v420
        %487 = vst [vmem:[#allocation4 + $0x6c8] sm:$0xff] %v421
        %488 = vst [vmem:[#allocation4 + $0x710] sm:$0xff] %v422
        %489 = vst [vmem:[#allocation4 + $0x758] sm:$0xff] %v423
        %490 = vst [vmem:[#allocation4 + $0x7a0] sm:$0xff] %v424
        %491 = vst [vmem:[#allocation4 + $0x7e8] sm:$0xff] %v425
        %492 = vst [vmem:[#allocation4 + $0x830] sm:$0xff] %v426
        %493 = vst [vmem:[#allocation4 + $0x878] sm:$0xff] %v427
        %494 = vst [vmem:[#allocation4 + $0x8c0] sm:$0xff] %v428
        %495 = vst [vmem:[#allocation4 + $0x10] sm:$0xff] %v399
        %496 = vst [vmem:[#allocation4 + $0x58] sm:$0xff] %v400
        %497 = vst [vmem:[#allocation4 + $0xa0] sm:$0xff] %v401
        %498 = vst [vmem:[#allocation4 + $0xe8] sm:$0xff] %v402
        %499 = vst [vmem:[#allocation4 + $0x130] sm:$0xff] %v403
        %500 = vst [vmem:[#allocation4 + $0x178] sm:$0xff] %v404
        %501 = vst [vmem:[#allocation4 + $0x1c0] sm:$0xff] %v405
        %502 = vst [vmem:[#allocation4 + $0x208] sm:$0xff] %v406
        %503 = vst [vmem:[#allocation4 + $0x250] sm:$0xff] %v407
        %504 = vst [vmem:[#allocation4 + $0x298] sm:$0xff] %v408
        %505 = vst [vmem:[#allocation4 + $0x2e0] sm:$0xff] %v409
        %506 = vst [vmem:[#allocation4 + $0x328] sm:$0xff] %v410
        %507 = vst [vmem:[#allocation4 + $0x370] sm:$0xff] %v411
        %508 = vst [vmem:[#allocation4 + $0x3b8] sm:$0xff] %v412
        %509 = vst [vmem:[#allocation4 + $0x400] sm:$0xff] %v413
        %510 = vst [vmem:[#allocation4 + $0x448] sm:$0xff] %v414
        %511 = vst [vmem:[#allocation4 + $0x490] sm:$0xff] %v415
        %512 = vst [vmem:[#allocation4 + $0x4d8] sm:$0xff] %v416
        %513 = vst [vmem:[#allocation4 + $0x520] sm:$0xff] %v417
        %514 = vst [vmem:[#allocation4 + $0x568] sm:$0xff] %v418
        %515 = vst [vmem:[#allocation4 + $0x5b0] sm:$0xff] %v419
        %516 = vst [vmem:[#allocation4 + $0x5f8] sm:$0xff] %v420
        %517 = vst [vmem:[#allocation4 + $0x640] sm:$0xff] %v421
        %518 = vst [vmem:[#allocation4 + $0x688] sm:$0xff] %v422
        %519 = vst [vmem:[#allocation4 + $0x6d0] sm:$0xff] %v423
        %520 = vst [vmem:[#allocation4 + $0x718] sm:$0xff] %v424
        %521 = vst [vmem:[#allocation4 + $0x760] sm:$0xff] %v425
        %522 = vst [vmem:[#allocation4 + $0x7a8] sm:$0xff] %v426
        %523 = vst [vmem:[#allocation4 + $0x7f0] sm:$0xff] %v427
        %524 = vst [vmem:[#allocation4 + $0x838] sm:$0xff] %v428
        %525 = vst [vmem:[#allocation4 + $0x880] sm:$0xff] %v429
        %526 = vst [vmem:[#allocation4 + $0x8c8] sm:$0xff] %v430
        %v527 = vld [vmem:[#allocation2 + $0x1] sm:$0xff]
        %v528 = vld [vmem:[#allocation2 + $0x9] sm:$0xff]
        %v529 = vld [vmem:[#allocation2 + $0x19] sm:$0xff]
        %v530 = vld [vmem:[#allocation2 + $0x21] sm:$0xff]
        %v531 = vld [vmem:[#allocation2 + $0x31] sm:$0xff]
        %v532 = vld [vmem:[#allocation2 + $0x39] sm:$0xff]
        %v533 = vld [vmem:[#allocation2 + $0x49] sm:$0xff]
        %v534 = vld [vmem:[#allocation2 + $0x51] sm:$0xff]
        %v535 = vld [vmem:[#allocation2 + $0x61] sm:$0xff]
        %v536 = vld [vmem:[#allocation2 + $0x69] sm:$0xff]
        %v537 = vld [vmem:[#allocation2 + $0x79] sm:$0xff]
        %v538 = vld [vmem:[#allocation2 + $0x81] sm:$0xff]
        %v539 = vld [vmem:[#allocation2 + $0x91] sm:$0xff]
        %v540 = vld [vmem:[#allocation2 + $0x99] sm:$0xff]
        %v541 = vld [vmem:[#allocation2 + $0xa9] sm:$0xff]
        %v542 = vld [vmem:[#allocation2 + $0xb1] sm:$0xff]
        %v543 = vld [vmem:[#allocation2 + $0xc1] sm:$0xff]
        %v544 = vld [vmem:[#allocation2 + $0xc9] sm:$0xff]
        %v545 = vld [vmem:[#allocation2 + $0xd9] sm:$0xff]
        %v546 = vld [vmem:[#allocation2 + $0xe1] sm:$0xff]
        %v547 = vld [vmem:[#allocation2 + $0xf1] sm:$0xff]
        %v548 = vld [vmem:[#allocation2 + $0xf9] sm:$0xff]
        %v549 = vld [vmem:[#allocation2 + $0x109] sm:$0xff]
        %v550 = vld [vmem:[#allocation2 + $0x111] sm:$0xff]
        %v551 = vld [vmem:[#allocation2 + $0x121] sm:$0xff]
        %v552 = vld [vmem:[#allocation2 + $0x129] sm:$0xff]
        %v553 = vld [vmem:[#allocation2 + $0x139] sm:$0xff]
        %v554 = vld [vmem:[#allocation2 + $0x141] sm:$0xff]
        %v555 = vld [vmem:[#allocation2 + $0x151] sm:$0xff]
        %v556 = vld [vmem:[#allocation2 + $0x159] sm:$0xff]
        %v557 = vld [vmem:[#allocation2 + $0x169] sm:$0xff]
        %v558 = vld [vmem:[#allocation2 + $0x171] sm:$0xff]
        %v559 = vld [vmem:[#allocation2 + $0x181] sm:$0xff]
        %v560 = vld [vmem:[#allocation2 + $0x189] sm:$0xff]
        %v561 = vld [vmem:[#allocation2 + $0x199] sm:$0xff]
        %v562 = vld [vmem:[#allocation2 + $0x1a1] sm:$0xff]
        %563 = vst [vmem:[#allocation4 + $0x18] sm:$0xff] %v527
        %564 = vst [vmem:[#allocation4 + $0x60] sm:$0xff] %v528
        %565 = vst [vmem:[#allocation4 + $0xa8] sm:$0xff] %v529
        %566 = vst [vmem:[#allocation4 + $0xf0] sm:$0xff] %v530
        %567 = vst [vmem:[#allocation4 + $0x138] sm:$0xff] %v531
        %568 = vst [vmem:[#allocation4 + $0x180] sm:$0xff] %v532
        %569 = vst [vmem:[#allocation4 + $0x1c8] sm:$0xff] %v533
        %570 = vst [vmem:[#allocation4 + $0x210] sm:$0xff] %v534
        %571 = vst [vmem:[#allocation4 + $0x258] sm:$0xff] %v535
        %572 = vst [vmem:[#allocation4 + $0x2a0] sm:$0xff] %v536
        %573 = vst [vmem:[#allocation4 + $0x2e8] sm:$0xff] %v537
        %574 = vst [vmem:[#allocation4 + $0x330] sm:$0xff] %v538
        %575 = vst [vmem:[#allocation4 + $0x378] sm:$0xff] %v539
        %576 = vst [vmem:[#allocation4 + $0x3c0] sm:$0xff] %v540
        %577 = vst [vmem:[#allocation4 + $0x408] sm:$0xff] %v541
        %578 = vst [vmem:[#allocation4 + $0x450] sm:$0xff] %v542
        %579 = vst [vmem:[#allocation4 + $0x498] sm:$0xff] %v543
        %580 = vst [vmem:[#allocation4 + $0x4e0] sm:$0xff] %v544
        %581 = vst [vmem:[#allocation4 + $0x528] sm:$0xff] %v545
        %582 = vst [vmem:[#allocation4 + $0x570] sm:$0xff] %v546
        %583 = vst [vmem:[#allocation4 + $0x5b8] sm:$0xff] %v547
        %584 = vst [vmem:[#allocation4 + $0x600] sm:$0xff] %v548
        %585 = vst [vmem:[#allocation4 + $0x648] sm:$0xff] %v549
        %586 = vst [vmem:[#allocation4 + $0x690] sm:$0xff] %v550
        %587 = vst [vmem:[#allocation4 + $0x6d8] sm:$0xff] %v551
        %588 = vst [vmem:[#allocation4 + $0x720] sm:$0xff] %v552
        %589 = vst [vmem:[#allocation4 + $0x768] sm:$0xff] %v553
        %590 = vst [vmem:[#allocation4 + $0x7b0] sm:$0xff] %v554
        %591 = vst [vmem:[#allocation4 + $0x7f8] sm:$0xff] %v555
        %592 = vst [vmem:[#allocation4 + $0x840] sm:$0xff] %v556
        %593 = vst [vmem:[#allocation4 + $0x888] sm:$0xff] %v557
        %594 = vst [vmem:[#allocation4 + $0x8d0] sm:$0xff] %v558
        %595 = vst [vmem:[#allocation4 + $0x20] sm:$0xff] %v529
        %596 = vst [vmem:[#allocation4 + $0x68] sm:$0xff] %v530
        %597 = vst [vmem:[#allocation4 + $0xb0] sm:$0xff] %v531
        %598 = vst [vmem:[#allocation4 + $0xf8] sm:$0xff] %v532
        %599 = vst [vmem:[#allocation4 + $0x140] sm:$0xff] %v533
        %600 = vst [vmem:[#allocation4 + $0x188] sm:$0xff] %v534
        %601 = vst [vmem:[#allocation4 + $0x1d0] sm:$0xff] %v535
        %602 = vst [vmem:[#allocation4 + $0x218] sm:$0xff] %v536
        %603 = vst [vmem:[#allocation4 + $0x260] sm:$0xff] %v537
        %604 = vst [vmem:[#allocation4 + $0x2a8] sm:$0xff] %v538
        %605 = vst [vmem:[#allocation4 + $0x2f0] sm:$0xff] %v539
        %606 = vst [vmem:[#allocation4 + $0x338] sm:$0xff] %v540
        %607 = vst [vmem:[#allocation4 + $0x380] sm:$0xff] %v541
        %608 = vst [vmem:[#allocation4 + $0x3c8] sm:$0xff] %v542
        %609 = vst [vmem:[#allocation4 + $0x410] sm:$0xff] %v543
        %610 = vst [vmem:[#allocation4 + $0x458] sm:$0xff] %v544
        %611 = vst [vmem:[#allocation4 + $0x4a0] sm:$0xff] %v545
        %612 = vst [vmem:[#allocation4 + $0x4e8] sm:$0xff] %v546
        %613 = vst [vmem:[#allocation4 + $0x530] sm:$0xff] %v547
        %614 = vst [vmem:[#allocation4 + $0x578] sm:$0xff] %v548
        %615 = vst [vmem:[#allocation4 + $0x5c0] sm:$0xff] %v549
        %616 = vst [vmem:[#allocation4 + $0x608] sm:$0xff] %v550
        %617 = vst [vmem:[#allocation4 + $0x650] sm:$0xff] %v551
        %618 = vst [vmem:[#allocation4 + $0x698] sm:$0xff] %v552
        %619 = vst [vmem:[#allocation4 + $0x6e0] sm:$0xff] %v553
        %620 = vst [vmem:[#allocation4 + $0x728] sm:$0xff] %v554
        %621 = vst [vmem:[#allocation4 + $0x770] sm:$0xff] %v555
        %622 = vst [vmem:[#allocation4 + $0x7b8] sm:$0xff] %v556
        %623 = vst [vmem:[#allocation4 + $0x800] sm:$0xff] %v557
        %624 = vst [vmem:[#allocation4 + $0x848] sm:$0xff] %v558
        %625 = vst [vmem:[#allocation4 + $0x890] sm:$0xff] %v559
        %626 = vst [vmem:[#allocation4 + $0x8d8] sm:$0xff] %v560
        %627 = vst [vmem:[#allocation4 + $0x28] sm:$0xff] %v531
        %628 = vst [vmem:[#allocation4 + $0x70] sm:$0xff] %v532
        %629 = vst [vmem:[#allocation4 + $0xb8] sm:$0xff] %v533
        %630 = vst [vmem:[#allocation4 + $0x100] sm:$0xff] %v534
        %631 = vst [vmem:[#allocation4 + $0x148] sm:$0xff] %v535
        %632 = vst [vmem:[#allocation4 + $0x190] sm:$0xff] %v536
        %633 = vst [vmem:[#allocation4 + $0x1d8] sm:$0xff] %v537
        %634 = vst [vmem:[#allocation4 + $0x220] sm:$0xff] %v538
        %635 = vst [vmem:[#allocation4 + $0x268] sm:$0xff] %v539
        %636 = vst [vmem:[#allocation4 + $0x2b0] sm:$0xff] %v540
        %637 = vst [vmem:[#allocation4 + $0x2f8] sm:$0xff] %v541
        %638 = vst [vmem:[#allocation4 + $0x340] sm:$0xff] %v542
        %639 = vst [vmem:[#allocation4 + $0x388] sm:$0xff] %v543
        %640 = vst [vmem:[#allocation4 + $0x3d0] sm:$0xff] %v544
        %641 = vst [vmem:[#allocation4 + $0x418] sm:$0xff] %v545
        %642 = vst [vmem:[#allocation4 + $0x460] sm:$0xff] %v546
        %643 = vst [vmem:[#allocation4 + $0x4a8] sm:$0xff] %v547
        %644 = vst [vmem:[#allocation4 + $0x4f0] sm:$0xff] %v548
        %645 = vst [vmem:[#allocation4 + $0x538] sm:$0xff] %v549
        %646 = vst [vmem:[#allocation4 + $0x580] sm:$0xff] %v550
        %647 = vst [vmem:[#allocation4 + $0x5c8] sm:$0xff] %v551
        %648 = vst [vmem:[#allocation4 + $0x610] sm:$0xff] %v552
        %649 = vst [vmem:[#allocation4 + $0x658] sm:$0xff] %v553
        %650 = vst [vmem:[#allocation4 + $0x6a0] sm:$0xff] %v554
        %651 = vst [vmem:[#allocation4 + $0x6e8] sm:$0xff] %v555
        %652 = vst [vmem:[#allocation4 + $0x730] sm:$0xff] %v556
        %653 = vst [vmem:[#allocation4 + $0x778] sm:$0xff] %v557
        %654 = vst [vmem:[#allocation4 + $0x7c0] sm:$0xff] %v558
        %655 = vst [vmem:[#allocation4 + $0x808] sm:$0xff] %v559
        %656 = vst [vmem:[#allocation4 + $0x850] sm:$0xff] %v560
        %657 = vst [vmem:[#allocation4 + $0x898] sm:$0xff] %v561
        %658 = vst [vmem:[#allocation4 + $0x8e0] sm:$0xff] %v562
        %v659 = vld [vmem:[#allocation2 + $0x2] sm:$0xff]
        %v660 = vld [vmem:[#allocation2 + $0xa] sm:$0xff]
        %v661 = vld [vmem:[#allocation2 + $0x1a] sm:$0xff]
        %v662 = vld [vmem:[#allocation2 + $0x22] sm:$0xff]
        %v663 = vld [vmem:[#allocation2 + $0x32] sm:$0xff]
        %v664 = vld [vmem:[#allocation2 + $0x3a] sm:$0xff]
        %v665 = vld [vmem:[#allocation2 + $0x4a] sm:$0xff]
        %v666 = vld [vmem:[#allocation2 + $0x52] sm:$0xff]
        %v667 = vld [vmem:[#allocation2 + $0x62] sm:$0xff]
        %v668 = vld [vmem:[#allocation2 + $0x6a] sm:$0xff]
        %v669 = vld [vmem:[#allocation2 + $0x7a] sm:$0xff]
        %v670 = vld [vmem:[#allocation2 + $0x82] sm:$0xff]
        %v671 = vld [vmem:[#allocation2 + $0x92] sm:$0xff]
        %v672 = vld [vmem:[#allocation2 + $0x9a] sm:$0xff]
        %v673 = vld [vmem:[#allocation2 + $0xaa] sm:$0xff]
        %v674 = vld [vmem:[#allocation2 + $0xb2] sm:$0xff]
        %v675 = vld [vmem:[#allocation2 + $0xc2] sm:$0xff]
        %v676 = vld [vmem:[#allocation2 + $0xca] sm:$0xff]
        %v677 = vld [vmem:[#allocation2 + $0xda] sm:$0xff]
        %v678 = vld [vmem:[#allocation2 + $0xe2] sm:$0xff]
        %v679 = vld [vmem:[#allocation2 + $0xf2] sm:$0xff]
        %v680 = vld [vmem:[#allocation2 + $0xfa] sm:$0xff]
        %v681 = vld [vmem:[#allocation2 + $0x10a] sm:$0xff]
        %v682 = vld [vmem:[#allocation2 + $0x112] sm:$0xff]
        %v683 = vld [vmem:[#allocation2 + $0x122] sm:$0xff]
        %v684 = vld [vmem:[#allocation2 + $0x12a] sm:$0xff]
        %v685 = vld [vmem:[#allocation2 + $0x13a] sm:$0xff]
        %v686 = vld [vmem:[#allocation2 + $0x142] sm:$0xff]
        %v687 = vld [vmem:[#allocation2 + $0x152] sm:$0xff]
        %v688 = vld [vmem:[#allocation2 + $0x15a] sm:$0xff]
        %v689 = vld [vmem:[#allocation2 + $0x16a] sm:$0xff]
        %v690 = vld [vmem:[#allocation2 + $0x172] sm:$0xff]
        %v691 = vld [vmem:[#allocation2 + $0x182] sm:$0xff]
        %v692 = vld [vmem:[#allocation2 + $0x18a] sm:$0xff]
        %v693 = vld [vmem:[#allocation2 + $0x19a] sm:$0xff]
        %v694 = vld [vmem:[#allocation2 + $0x1a2] sm:$0xff]
        %695 = vst [vmem:[#allocation4 + $0x30] sm:$0xff] %v659
        %696 = vst [vmem:[#allocation4 + $0x78] sm:$0xff] %v660
        %697 = vst [vmem:[#allocation4 + $0xc0] sm:$0xff] %v661
        %698 = vst [vmem:[#allocation4 + $0x108] sm:$0xff] %v662
        %699 = vst [vmem:[#allocation4 + $0x150] sm:$0xff] %v663
        %700 = vst [vmem:[#allocation4 + $0x198] sm:$0xff] %v664
        %701 = vst [vmem:[#allocation4 + $0x1e0] sm:$0xff] %v665
        %702 = vst [vmem:[#allocation4 + $0x228] sm:$0xff] %v666
        %703 = vst [vmem:[#allocation4 + $0x270] sm:$0xff] %v667
        %704 = vst [vmem:[#allocation4 + $0x2b8] sm:$0xff] %v668
        %705 = vst [vmem:[#allocation4 + $0x300] sm:$0xff] %v669
        %706 = vst [vmem:[#allocation4 + $0x348] sm:$0xff] %v670
        %707 = vst [vmem:[#allocation4 + $0x390] sm:$0xff] %v671
        %708 = vst [vmem:[#allocation4 + $0x3d8] sm:$0xff] %v672
        %709 = vst [vmem:[#allocation4 + $0x420] sm:$0xff] %v673
        %710 = vst [vmem:[#allocation4 + $0x468] sm:$0xff] %v674
        %711 = vst [vmem:[#allocation4 + $0x4b0] sm:$0xff] %v675
        %712 = vst [vmem:[#allocation4 + $0x4f8] sm:$0xff] %v676
        %713 = vst [vmem:[#allocation4 + $0x540] sm:$0xff] %v677
        %714 = vst [vmem:[#allocation4 + $0x588] sm:$0xff] %v678
        %715 = vst [vmem:[#allocation4 + $0x5d0] sm:$0xff] %v679
        %716 = vst [vmem:[#allocation4 + $0x618] sm:$0xff] %v680
        %717 = vst [vmem:[#allocation4 + $0x660] sm:$0xff] %v681
        %718 = vst [vmem:[#allocation4 + $0x6a8] sm:$0xff] %v682
        %719 = vst [vmem:[#allocation4 + $0x6f0] sm:$0xff] %v683
        %720 = vst [vmem:[#allocation4 + $0x738] sm:$0xff] %v684
        %721 = vst [vmem:[#allocation4 + $0x780] sm:$0xff] %v685
        %722 = vst [vmem:[#allocation4 + $0x7c8] sm:$0xff] %v686
        %723 = vst [vmem:[#allocation4 + $0x810] sm:$0xff] %v687
        %724 = vst [vmem:[#allocation4 + $0x858] sm:$0xff] %v688
        %725 = vst [vmem:[#allocation4 + $0x8a0] sm:$0xff] %v689
        %726 = vst [vmem:[#allocation4 + $0x8e8] sm:$0xff] %v690
        %727 = vst [vmem:[#allocation4 + $0x38] sm:$0xff] %v661
        %728 = vst [vmem:[#allocation4 + $0x80] sm:$0xff] %v662
        %729 = vst [vmem:[#allocation4 + $0xc8] sm:$0xff] %v663
        %730 = vst [vmem:[#allocation4 + $0x110] sm:$0xff] %v664
        %731 = vst [vmem:[#allocation4 + $0x158] sm:$0xff] %v665
        %732 = vst [vmem:[#allocation4 + $0x1a0] sm:$0xff] %v666
        %733 = vst [vmem:[#allocation4 + $0x1e8] sm:$0xff] %v667
        %734 = vst [vmem:[#allocation4 + $0x230] sm:$0xff] %v668
        %735 = vst [vmem:[#allocation4 + $0x278] sm:$0xff] %v669
        %736 = vst [vmem:[#allocation4 + $0x2c0] sm:$0xff] %v670
        %737 = vst [vmem:[#allocation4 + $0x308] sm:$0xff] %v671
        %738 = vst [vmem:[#allocation4 + $0x350] sm:$0xff] %v672
        %739 = vst [vmem:[#allocation4 + $0x398] sm:$0xff] %v673
        %740 = vst [vmem:[#allocation4 + $0x3e0] sm:$0xff] %v674
        %741 = vst [vmem:[#allocation4 + $0x428] sm:$0xff] %v675
        %742 = vst [vmem:[#allocation4 + $0x470] sm:$0xff] %v676
        %743 = vst [vmem:[#allocation4 + $0x4b8] sm:$0xff] %v677
        %744 = vst [vmem:[#allocation4 + $0x500] sm:$0xff] %v678
        %745 = vst [vmem:[#allocation4 + $0x548] sm:$0xff] %v679
        %746 = vst [vmem:[#allocation4 + $0x590] sm:$0xff] %v680
        %747 = vst [vmem:[#allocation4 + $0x5d8] sm:$0xff] %v681
        %748 = vst [vmem:[#allocation4 + $0x620] sm:$0xff] %v682
        %749 = vst [vmem:[#allocation4 + $0x668] sm:$0xff] %v683
        %750 = vst [vmem:[#allocation4 + $0x6b0] sm:$0xff] %v684
        %751 = vst [vmem:[#allocation4 + $0x6f8] sm:$0xff] %v685
        %752 = vst [vmem:[#allocation4 + $0x740] sm:$0xff] %v686
        %753 = vst [vmem:[#allocation4 + $0x788] sm:$0xff] %v687
        %754 = vst [vmem:[#allocation4 + $0x7d0] sm:$0xff] %v688
        %755 = vst [vmem:[#allocation4 + $0x818] sm:$0xff] %v689
        %756 = vst [vmem:[#allocation4 + $0x860] sm:$0xff] %v690
        %757 = vst [vmem:[#allocation4 + $0x8a8] sm:$0xff] %v691
        %758 = vst [vmem:[#allocation4 + $0x8f0] sm:$0xff] %v692
        %759 = vst [vmem:[#allocation4 + $0x40] sm:$0xff] %v663
        %760 = vst [vmem:[#allocation4 + $0x88] sm:$0xff] %v664
        %761 = vst [vmem:[#allocation4 + $0xd0] sm:$0xff] %v665
        %762 = vst [vmem:[#allocation4 + $0x118] sm:$0xff] %v666
        %763 = vst [vmem:[#allocation4 + $0x160] sm:$0xff] %v667
        %764 = vst [vmem:[#allocation4 + $0x1a8] sm:$0xff] %v668
        %765 = vst [vmem:[#allocation4 + $0x1f0] sm:$0xff] %v669
        %766 = vst [vmem:[#allocation4 + $0x238] sm:$0xff] %v670
        %767 = vst [vmem:[#allocation4 + $0x280] sm:$0xff] %v671
        %768 = vst [vmem:[#allocation4 + $0x2c8] sm:$0xff] %v672
        %769 = vst [vmem:[#allocation4 + $0x310] sm:$0xff] %v673
        %770 = vst [vmem:[#allocation4 + $0x358] sm:$0xff] %v674
        %771 = vst [vmem:[#allocation4 + $0x3a0] sm:$0xff] %v675
        %772 = vst [vmem:[#allocation4 + $0x3e8] sm:$0xff] %v676
        %773 = vst [vmem:[#allocation4 + $0x430] sm:$0xff] %v677
        %774 = vst [vmem:[#allocation4 + $0x478] sm:$0xff] %v678
        %775 = vst [vmem:[#allocation4 + $0x4c0] sm:$0xff] %v679
        %776 = vst [vmem:[#allocation4 + $0x508] sm:$0xff] %v680
        %777 = vst [vmem:[#allocation4 + $0x550] sm:$0xff] %v681
        %778 = vst [vmem:[#allocation4 + $0x598] sm:$0xff] %v682
        %779 = vst [vmem:[#allocation4 + $0x5e0] sm:$0xff] %v683
        %780 = vst [vmem:[#allocation4 + $0x628] sm:$0xff] %v684
        %781 = vst [vmem:[#allocation4 + $0x670] sm:$0xff] %v685
        %782 = vst [vmem:[#allocation4 + $0x6b8] sm:$0xff] %v686
        %783 = vst [vmem:[#allocation4 + $0x700] sm:$0xff] %v687
        %784 = vst [vmem:[#allocation4 + $0x748] sm:$0xff] %v688
        %785 = vst [vmem:[#allocation4 + $0x790] sm:$0xff] %v689
        %786 = vst [vmem:[#allocation4 + $0x7d8] sm:$0xff] %v690
        %787 = vst [vmem:[#allocation4 + $0x820] sm:$0xff] %v691
        %788 = vst [vmem:[#allocation4 + $0x868] sm:$0xff] %v692
        %789 = vst [vmem:[#allocation4 + $0x8b0] sm:$0xff] %v693
        %790 = vst [vmem:[#allocation4 + $0x8f8] sm:$0xff] %v694
        %v791 = vld [vmem:[#allocation4] sm:$0xff]
        %v792 = vld [vmem:[#allocation4 + $0x8] sm:$0xff]
        %v793 = vld [vmem:[#allocation4 + $0x10] sm:$0xff]
        %v794 = vld [vmem:[#allocation4 + $0x18] sm:$0xff]
        %v795 = vld [vmem:[#allocation4 + $0x20] sm:$0xff]
        %v796 = vld [vmem:[#allocation4 + $0x28] sm:$0xff]
        %v797 = vld [vmem:[#allocation4 + $0x30] sm:$0xff]
        %v798 = vld [vmem:[#allocation4 + $0x38] sm:$0xff]
        %v799 = vld [vmem:[#allocation4 + $0x40] sm:$0xff]
        %v800 = vld [vmem:[#allocation4 + $0x48] sm:$0xff]
        %v801 = vld [vmem:[#allocation4 + $0x50] sm:$0xff]
        %v802 = vld [vmem:[#allocation4 + $0x58] sm:$0xff]
        %v803 = vld [vmem:[#allocation4 + $0x60] sm:$0xff]
        %v804 = vld [vmem:[#allocation4 + $0x68] sm:$0xff]
        %v805 = vld [vmem:[#allocation4 + $0x70] sm:$0xff]
        %v806 = vld [vmem:[#allocation4 + $0x78] sm:$0xff]
        %v807 = vld [vmem:[#allocation4 + $0x80] sm:$0xff]
        %v808 = vld [vmem:[#allocation4 + $0x88] sm:$0xff]
        %v809 = vld [vmem:[#allocation4 + $0x90] sm:$0xff]
        %v810 = vld [vmem:[#allocation4 + $0x98] sm:$0xff]
        %v811 = vld [vmem:[#allocation4 + $0xa0] sm:$0xff]
        %v812 = vld [vmem:[#allocation4 + $0xa8] sm:$0xff]
        %v813 = vld [vmem:[#allocation4 + $0xb0] sm:$0xff]
        %v814 = vld [vmem:[#allocation4 + $0xb8] sm:$0xff]
        %v815 = vld [vmem:[#allocation4 + $0xc0] sm:$0xff]
        %v816 = vld [vmem:[#allocation4 + $0xc8] sm:$0xff]
        %v817 = vld [vmem:[#allocation4 + $0xd0] sm:$0xff]
        %v818 = vld [vmem:[#allocation4 + $0xd8] sm:$0xff]
        %v819 = vld [vmem:[#allocation4 + $0xe0] sm:$0xff]
        %v820 = vld [vmem:[#allocation4 + $0xe8] sm:$0xff]
        %v821 = vld [vmem:[#allocation4 + $0xf0] sm:$0xff]
        %v822 = vld [vmem:[#allocation4 + $0xf8] sm:$0xff]
        %v823 = vld [vmem:[#allocation4 + $0x100] sm:$0xff]
        %v824 = vld [vmem:[#allocation4 + $0x108] sm:$0xff]
        %v825 = vld [vmem:[#allocation4 + $0x110] sm:$0xff]
        %v826 = vld [vmem:[#allocation4 + $0x118] sm:$0xff]
        %v827 = vld [vmem:[#allocation4 + $0x120] sm:$0xff]
        %v828 = vld [vmem:[#allocation4 + $0x128] sm:$0xff]
        %v829 = vld [vmem:[#allocation4 + $0x130] sm:$0xff]
        %v830 = vld [vmem:[#allocation4 + $0x138] sm:$0xff]
        %v831 = vld [vmem:[#allocation4 + $0x140] sm:$0xff]
        %v832 = vld [vmem:[#allocation4 + $0x148] sm:$0xff]
        %v833 = vld [vmem:[#allocation4 + $0x150] sm:$0xff]
        %v834 = vld [vmem:[#allocation4 + $0x158] sm:$0xff]
        %v835 = vld [vmem:[#allocation4 + $0x160] sm:$0xff]
        %v836 = vld [vmem:[#allocation4 + $0x168] sm:$0xff]
        %v837 = vld [vmem:[#allocation4 + $0x170] sm:$0xff]
        %v838 = vld [vmem:[#allocation4 + $0x178] sm:$0xff]
        %v839 = vld [vmem:[#allocation4 + $0x180] sm:$0xff]
        %v840 = vld [vmem:[#allocation4 + $0x188] sm:$0xff]
        %v841 = vld [vmem:[#allocation4 + $0x190] sm:$0xff]
        %v842 = vld [vmem:[#allocation4 + $0x198] sm:$0xff]
        %v843 = vld [vmem:[#allocation4 + $0x1a0] sm:$0xff]
        %v844 = vld [vmem:[#allocation4 + $0x1a8] sm:$0xff]
        %v845 = vld [vmem:[#allocation4 + $0x1b0] sm:$0xff]
        %v846 = vld [vmem:[#allocation4 + $0x1b8] sm:$0xff]
        %v847 = vld [vmem:[#allocation4 + $0x1c0] sm:$0xff]
        %v848 = vld [vmem:[#allocation4 + $0x1c8] sm:$0xff]
        %v849 = vld [vmem:[#allocation4 + $0x1d0] sm:$0xff]
        %v850 = vld [vmem:[#allocation4 + $0x1d8] sm:$0xff]
        %v851 = vld [vmem:[#allocation4 + $0x1e0] sm:$0xff]
        %v852 = vld [vmem:[#allocation4 + $0x1e8] sm:$0xff]
        %v853 = vld [vmem:[#allocation4 + $0x1f0] sm:$0xff]
        %v854 = vld [vmem:[#allocation4 + $0x1f8] sm:$0xff]
        %v855 = vld [vmem:[#allocation4 + $0x200] sm:$0xff]
        %v856 = vld [vmem:[#allocation4 + $0x208] sm:$0xff]
        %v857 = vld [vmem:[#allocation4 + $0x210] sm:$0xff]
        %v858 = vld [vmem:[#allocation4 + $0x218] sm:$0xff]
        %v859 = vld [vmem:[#allocation4 + $0x220] sm:$0xff]
        %v860 = vld [vmem:[#allocation4 + $0x228] sm:$0xff]
        %v861 = vld [vmem:[#allocation4 + $0x230] sm:$0xff]
        %v862 = vld [vmem:[#allocation4 + $0x238] sm:$0xff]
        %v863 = vld [vmem:[#allocation4 + $0x240] sm:$0xff]
        %v864 = vld [vmem:[#allocation4 + $0x248] sm:$0xff]
        %v865 = vld [vmem:[#allocation4 + $0x250] sm:$0xff]
        %v866 = vld [vmem:[#allocation4 + $0x258] sm:$0xff]
        %v867 = vld [vmem:[#allocation4 + $0x260] sm:$0xff]
        %v868 = vld [vmem:[#allocation4 + $0x268] sm:$0xff]
        %v869 = vld [vmem:[#allocation4 + $0x270] sm:$0xff]
        %v870 = vld [vmem:[#allocation4 + $0x278] sm:$0xff]
        %v871 = vld [vmem:[#allocation4 + $0x280] sm:$0xff]
        %v872 = vld [vmem:[#allocation4 + $0x288] sm:$0xff]
        %v873 = vld [vmem:[#allocation4 + $0x290] sm:$0xff]
        %v874 = vld [vmem:[#allocation4 + $0x298] sm:$0xff]
        %v875 = vld [vmem:[#allocation4 + $0x2a0] sm:$0xff]
        %v876 = vld [vmem:[#allocation4 + $0x2a8] sm:$0xff]
        %v877 = vld [vmem:[#allocation4 + $0x2b0] sm:$0xff]
        %v878 = vld [vmem:[#allocation4 + $0x2b8] sm:$0xff]
        %v879 = vld [vmem:[#allocation4 + $0x2c0] sm:$0xff]
        %v880 = vld [vmem:[#allocation4 + $0x2c8] sm:$0xff]
        %v881 = vld [vmem:[#allocation4 + $0x2d0] sm:$0xff]
        %v882 = vld [vmem:[#allocation4 + $0x2d8] sm:$0xff]
        %v883 = vld [vmem:[#allocation4 + $0x2e0] sm:$0xff]
        %v884 = vld [vmem:[#allocation4 + $0x2e8] sm:$0xff]
        %v885 = vld [vmem:[#allocation4 + $0x2f0] sm:$0xff]
        %v886 = vld [vmem:[#allocation4 + $0x2f8] sm:$0xff]
        %v887 = vld [vmem:[#allocation4 + $0x300] sm:$0xff]
        %v888 = vld [vmem:[#allocation4 + $0x308] sm:$0xff]
        %v889 = vld [vmem:[#allocation4 + $0x310] sm:$0xff]
        %v890 = vld [vmem:[#allocation4 + $0x318] sm:$0xff]
        %v891 = vld [vmem:[#allocation4 + $0x320] sm:$0xff]
        %v892 = vld [vmem:[#allocation4 + $0x328] sm:$0xff]
        %v893 = vld [vmem:[#allocation4 + $0x330] sm:$0xff]
        %v894 = vld [vmem:[#allocation4 + $0x338] sm:$0xff]
        %v895 = vld [vmem:[#allocation4 + $0x340] sm:$0xff]
        %v896 = vld [vmem:[#allocation4 + $0x348] sm:$0xff]
        %v897 = vld [vmem:[#allocation4 + $0x350] sm:$0xff]
        %v898 = vld [vmem:[#allocation4 + $0x358] sm:$0xff]
        %v899 = vld [vmem:[#allocation4 + $0x360] sm:$0xff]
        %v900 = vld [vmem:[#allocation4 + $0x368] sm:$0xff]
        %v901 = vld [vmem:[#allocation4 + $0x370] sm:$0xff]
        %v902 = vld [vmem:[#allocation4 + $0x378] sm:$0xff]
        %v903 = vld [vmem:[#allocation4 + $0x380] sm:$0xff]
        %v904 = vld [vmem:[#allocation4 + $0x388] sm:$0xff]
        %v905 = vld [vmem:[#allocation4 + $0x390] sm:$0xff]
        %v906 = vld [vmem:[#allocation4 + $0x398] sm:$0xff]
        %v907 = vld [vmem:[#allocation4 + $0x3a0] sm:$0xff]
        %v908 = vld [vmem:[#allocation4 + $0x3a8] sm:$0xff]
        %v909 = vld [vmem:[#allocation4 + $0x3b0] sm:$0xff]
        %v910 = vld [vmem:[#allocation4 + $0x3b8] sm:$0xff]
        %v911 = vld [vmem:[#allocation4 + $0x3c0] sm:$0xff]
        %v912 = vld [vmem:[#allocation4 + $0x3c8] sm:$0xff]
        %v913 = vld [vmem:[#allocation4 + $0x3d0] sm:$0xff]
        %v914 = vld [vmem:[#allocation4 + $0x3d8] sm:$0xff]
        %v915 = vld [vmem:[#allocation4 + $0x3e0] sm:$0xff]
        %v916 = vld [vmem:[#allocation4 + $0x3e8] sm:$0xff]
        %v917 = vld [vmem:[#allocation4 + $0x3f0] sm:$0xff]
        %v918 = vld [vmem:[#allocation4 + $0x3f8] sm:$0xff]
        %v919 = vld [vmem:[#allocation4 + $0x400] sm:$0xff]
        %v920 = vld [vmem:[#allocation4 + $0x408] sm:$0xff]
        %v921 = vld [vmem:[#allocation4 + $0x410] sm:$0xff]
        %v922 = vld [vmem:[#allocation4 + $0x418] sm:$0xff]
        %v923 = vld [vmem:[#allocation4 + $0x420] sm:$0xff]
        %v924 = vld [vmem:[#allocation4 + $0x428] sm:$0xff]
        %v925 = vld [vmem:[#allocation4 + $0x430] sm:$0xff]
        %v926 = vld [vmem:[#allocation4 + $0x438] sm:$0xff]
        %v927 = vld [vmem:[#allocation4 + $0x440] sm:$0xff]
        %v928 = vld [vmem:[#allocation4 + $0x448] sm:$0xff]
        %v929 = vld [vmem:[#allocation4 + $0x450] sm:$0xff]
        %v930 = vld [vmem:[#allocation4 + $0x458] sm:$0xff]
        %v931 = vld [vmem:[#allocation4 + $0x460] sm:$0xff]
        %v932 = vld [vmem:[#allocation4 + $0x468] sm:$0xff]
        %v933 = vld [vmem:[#allocation4 + $0x470] sm:$0xff]
        %v934 = vld [vmem:[#allocation4 + $0x478] sm:$0xff]
        %v935 = vld [vmem:[#allocation4 + $0x480] sm:$0xff]
        %v936 = vld [vmem:[#allocation4 + $0x488] sm:$0xff]
        %v937 = vld [vmem:[#allocation4 + $0x490] sm:$0xff]
        %v938 = vld [vmem:[#allocation4 + $0x498] sm:$0xff]
        %v939 = vld [vmem:[#allocation4 + $0x4a0] sm:$0xff]
        %v940 = vld [vmem:[#allocation4 + $0x4a8] sm:$0xff]
        %v941 = vld [vmem:[#allocation4 + $0x4b0] sm:$0xff]
        %v942 = vld [vmem:[#allocation4 + $0x4b8] sm:$0xff]
        %v943 = vld [vmem:[#allocation4 + $0x4c0] sm:$0xff]
        %v944 = vld [vmem:[#allocation4 + $0x4c8] sm:$0xff]
        %v945 = vld [vmem:[#allocation4 + $0x4d0] sm:$0xff]
        %v946 = vld [vmem:[#allocation4 + $0x4d8] sm:$0xff]
        %v947 = vld [vmem:[#allocation4 + $0x4e0] sm:$0xff]
        %v948 = vld [vmem:[#allocation4 + $0x4e8] sm:$0xff]
        %v949 = vld [vmem:[#allocation4 + $0x4f0] sm:$0xff]
        %v950 = vld [vmem:[#allocation4 + $0x4f8] sm:$0xff]
        %v951 = vld [vmem:[#allocation4 + $0x500] sm:$0xff]
        %v952 = vld [vmem:[#allocation4 + $0x508] sm:$0xff]
        %v953 = vld [vmem:[#allocation4 + $0x510] sm:$0xff]
        %v954 = vld [vmem:[#allocation4 + $0x518] sm:$0xff]
        %v955 = vld [vmem:[#allocation4 + $0x520] sm:$0xff]
        %v956 = vld [vmem:[#allocation4 + $0x528] sm:$0xff]
        %v957 = vld [vmem:[#allocation4 + $0x530] sm:$0xff]
        %v958 = vld [vmem:[#allocation4 + $0x538] sm:$0xff]
        %v959 = vld [vmem:[#allocation4 + $0x540] sm:$0xff]
        %v960 = vld [vmem:[#allocation4 + $0x548] sm:$0xff]
        %v961 = vld [vmem:[#allocation4 + $0x550] sm:$0xff]
        %v962 = vld [vmem:[#allocation4 + $0x558] sm:$0xff]
        %v963 = vld [vmem:[#allocation4 + $0x560] sm:$0xff]
        %v964 = vld [vmem:[#allocation4 + $0x568] sm:$0xff]
        %v965 = vld [vmem:[#allocation4 + $0x570] sm:$0xff]
        %v966 = vld [vmem:[#allocation4 + $0x578] sm:$0xff]
        %v967 = vld [vmem:[#allocation4 + $0x580] sm:$0xff]
        %v968 = vld [vmem:[#allocation4 + $0x588] sm:$0xff]
        %v969 = vld [vmem:[#allocation4 + $0x590] sm:$0xff]
        %v970 = vld [vmem:[#allocation4 + $0x598] sm:$0xff]
        %v971 = vld [vmem:[#allocation4 + $0x5a0] sm:$0xff]
        %v972 = vld [vmem:[#allocation4 + $0x5a8] sm:$0xff]
        %v973 = vld [vmem:[#allocation4 + $0x5b0] sm:$0xff]
        %v974 = vld [vmem:[#allocation4 + $0x5b8] sm:$0xff]
        %v975 = vld [vmem:[#allocation4 + $0x5c0] sm:$0xff]
        %v976 = vld [vmem:[#allocation4 + $0x5c8] sm:$0xff]
        %v977 = vld [vmem:[#allocation4 + $0x5d0] sm:$0xff]
        %v978 = vld [vmem:[#allocation4 + $0x5d8] sm:$0xff]
        %v979 = vld [vmem:[#allocation4 + $0x5e0] sm:$0xff]
        %v980 = vld [vmem:[#allocation4 + $0x5e8] sm:$0xff]
        %v981 = vld [vmem:[#allocation4 + $0x5f0] sm:$0xff]
        %v982 = vld [vmem:[#allocation4 + $0x5f8] sm:$0xff]
        %v983 = vld [vmem:[#allocation4 + $0x600] sm:$0xff]
        %v984 = vld [vmem:[#allocation4 + $0x608] sm:$0xff]
        %v985 = vld [vmem:[#allocation4 + $0x610] sm:$0xff]
        %v986 = vld [vmem:[#allocation4 + $0x618] sm:$0xff]
        %v987 = vld [vmem:[#allocation4 + $0x620] sm:$0xff]
        %v988 = vld [vmem:[#allocation4 + $0x628] sm:$0xff]
        %v989 = vld [vmem:[#allocation4 + $0x630] sm:$0xff]
        %v990 = vld [vmem:[#allocation4 + $0x638] sm:$0xff]
        %v991 = vld [vmem:[#allocation4 + $0x640] sm:$0xff]
        %v992 = vld [vmem:[#allocation4 + $0x648] sm:$0xff]
        %v993 = vld [vmem:[#allocation4 + $0x650] sm:$0xff]
        %v994 = vld [vmem:[#allocation4 + $0x658] sm:$0xff]
        %v995 = vld [vmem:[#allocation4 + $0x660] sm:$0xff]
        %v996 = vld [vmem:[#allocation4 + $0x668] sm:$0xff]
        %v997 = vld [vmem:[#allocation4 + $0x670] sm:$0xff]
        %v998 = vld [vmem:[#allocation4 + $0x678] sm:$0xff]
        %v999 = vld [vmem:[#allocation4 + $0x680] sm:$0xff]
        %v1000 = vld [vmem:[#allocation4 + $0x688] sm:$0xff]
        %v1001 = vld [vmem:[#allocation4 + $0x690] sm:$0xff]
        %v1002 = vld [vmem:[#allocation4 + $0x698] sm:$0xff]
        %v1003 = vld [vmem:[#allocation4 + $0x6a0] sm:$0xff]
        %v1004 = vld [vmem:[#allocation4 + $0x6a8] sm:$0xff]
        %v1005 = vld [vmem:[#allocation4 + $0x6b0] sm:$0xff]
        %v1006 = vld [vmem:[#allocation4 + $0x6b8] sm:$0xff]
        %v1007 = vld [vmem:[#allocation4 + $0x6c0] sm:$0xff]
        %v1008 = vld [vmem:[#allocation4 + $0x6c8] sm:$0xff]
        %v1009 = vld [vmem:[#allocation4 + $0x6d0] sm:$0xff]
        %v1010 = vld [vmem:[#allocation4 + $0x6d8] sm:$0xff]
        %v1011 = vld [vmem:[#allocation4 + $0x6e0] sm:$0xff]
        %v1012 = vld [vmem:[#allocation4 + $0x6e8] sm:$0xff]
        %v1013 = vld [vmem:[#allocation4 + $0x6f0] sm:$0xff]
        %v1014 = vld [vmem:[#allocation4 + $0x6f8] sm:$0xff]
        %v1015 = vld [vmem:[#allocation4 + $0x700] sm:$0xff]
        %v1016 = vld [vmem:[#allocation4 + $0x708] sm:$0xff]
        %v1017 = vld [vmem:[#allocation4 + $0x710] sm:$0xff]
        %v1018 = vld [vmem:[#allocation4 + $0x718] sm:$0xff]
        %v1019 = vld [vmem:[#allocation4 + $0x720] sm:$0xff]
        %v1020 = vld [vmem:[#allocation4 + $0x728] sm:$0xff]
        %v1021 = vld [vmem:[#allocation4 + $0x730] sm:$0xff]
        %v1022 = vld [vmem:[#allocation4 + $0x738] sm:$0xff]
        %v1023 = vld [vmem:[#allocation4 + $0x740] sm:$0xff]
        %v1024 = vld [vmem:[#allocation4 + $0x748] sm:$0xff]
        %v1025 = vld [vmem:[#allocation4 + $0x750] sm:$0xff]
        %v1026 = vld [vmem:[#allocation4 + $0x758] sm:$0xff]
        %v1027 = vld [vmem:[#allocation4 + $0x760] sm:$0xff]
        %v1028 = vld [vmem:[#allocation4 + $0x768] sm:$0xff]
        %v1029 = vld [vmem:[#allocation4 + $0x770] sm:$0xff]
        %v1030 = vld [vmem:[#allocation4 + $0x778] sm:$0xff]
        %v1031 = vld [vmem:[#allocation4 + $0x780] sm:$0xff]
        %v1032 = vld [vmem:[#allocation4 + $0x788] sm:$0xff]
        %v1033 = vld [vmem:[#allocation4 + $0x790] sm:$0xff]
        %v1034 = vld [vmem:[#allocation4 + $0x798] sm:$0xff]
        %v1035 = vld [vmem:[#allocation4 + $0x7a0] sm:$0xff]
        %v1036 = vld [vmem:[#allocation4 + $0x7a8] sm:$0xff]
        %v1037 = vld [vmem:[#allocation4 + $0x7b0] sm:$0xff]
        %v1038 = vld [vmem:[#allocation4 + $0x7b8] sm:$0xff]
        %v1039 = vld [vmem:[#allocation4 + $0x7c0] sm:$0xff]
        %v1040 = vld [vmem:[#allocation4 + $0x7c8] sm:$0xff]
        %v1041 = vld [vmem:[#allocation4 + $0x7d0] sm:$0xff]
        %v1042 = vld [vmem:[#allocation4 + $0x7d8] sm:$0xff]
        %v1043 = vld [vmem:[#allocation4 + $0x7e0] sm:$0xff]
        %v1044 = vld [vmem:[#allocation4 + $0x7e8] sm:$0xff]
        %v1045 = vld [vmem:[#allocation4 + $0x7f0] sm:$0xff]
        %v1046 = vld [vmem:[#allocation4 + $0x7f8] sm:$0xff]
        %v1047 = vld [vmem:[#allocation4 + $0x800] sm:$0xff]
        %v1048 = vld [vmem:[#allocation4 + $0x808] sm:$0xff]
        %v1049 = vld [vmem:[#allocation4 + $0x810] sm:$0xff]
        %v1050 = vld [vmem:[#allocation4 + $0x818] sm:$0xff]
        %v1051 = vld [vmem:[#allocation4 + $0x820] sm:$0xff]
        %v1052 = vld [vmem:[#allocation4 + $0x828] sm:$0xff]
        %v1053 = vld [vmem:[#allocation4 + $0x830] sm:$0xff]
        %v1054 = vld [vmem:[#allocation4 + $0x838] sm:$0xff]
        %v1055 = vld [vmem:[#allocation4 + $0x840] sm:$0xff]
        %v1056 = vld [vmem:[#allocation4 + $0x848] sm:$0xff]
        %v1057 = vld [vmem:[#allocation4 + $0x850] sm:$0xff]
        %v1058 = vld [vmem:[#allocation4 + $0x858] sm:$0xff]
        %v1059 = vld [vmem:[#allocation4 + $0x860] sm:$0xff]
        %v1060 = vld [vmem:[#allocation4 + $0x868] sm:$0xff]
        %v1061 = vld [vmem:[#allocation4 + $0x870] sm:$0xff]
        %v1062 = vld [vmem:[#allocation4 + $0x878] sm:$0xff]
        %v1063 = vld [vmem:[#allocation4 + $0x880] sm:$0xff]
        %v1064 = vld [vmem:[#allocation4 + $0x888] sm:$0xff]
        %v1065 = vld [vmem:[#allocation4 + $0x890] sm:$0xff]
        %v1066 = vld [vmem:[#allocation4 + $0x898] sm:$0xff]
        %v1067 = vld [vmem:[#allocation4 + $0x8a0] sm:$0xff]
        %v1068 = vld [vmem:[#allocation4 + $0x8a8] sm:$0xff]
        %v1069 = vld [vmem:[#allocation4 + $0x8b0] sm:$0xff]
        %v1070 = vld [vmem:[#allocation4 + $0x8b8] sm:$0xff]
        %v1071 = vld [vmem:[#allocation4 + $0x8c0] sm:$0xff]
        %v1072 = vld [vmem:[#allocation4 + $0x8c8] sm:$0xff]
        %v1073 = vld [vmem:[#allocation4 + $0x8d0] sm:$0xff]
        %v1074 = vld [vmem:[#allocation4 + $0x8d8] sm:$0xff]
        %v1075 = vld [vmem:[#allocation4 + $0x8e0] sm:$0xff]
        %v1076 = vld [vmem:[#allocation4 + $0x8e8] sm:$0xff]
        %v1077 = vld [vmem:[#allocation4 + $0x8f0] sm:$0xff]
        %v1078 = vld [vmem:[#allocation4 + $0x8f8] sm:$0xff]
        %v1079 = vld [vmem:[#allocation8] sm:$0xff]
        %v1080 = vld [vmem:[#allocation8 + $0x8] sm:$0xff]
        %v1081 = vld [vmem:[#allocation8 + $0x10] sm:$0xff]
        %v1082 = vld [vmem:[#allocation8 + $0x18] sm:$0xff]
        %v1083 = vld [vmem:[#allocation8 + $0x20] sm:$0xff]
        %v1084 = vld [vmem:[#allocation8 + $0x28] sm:$0xff]
        %v1085 = vld [vmem:[#allocation8 + $0x30] sm:$0xff]
        %v1086 = vld [vmem:[#allocation8 + $0x38] sm:$0xff]
        %v1087 = vld [vmem:[#allocation8 + $0x40] sm:$0xff]
        %v1088 = vld [vmem:[#allocation8 + $0x48] sm:$0xff]
        %v1089 = vld [vmem:[#allocation8 + $0x50] sm:$0xff]
        %v1090 = vld [vmem:[#allocation8 + $0x58] sm:$0xff]
        %v1091 = vld [vmem:[#allocation8 + $0x60] sm:$0xff]
        %v1092 = vld [vmem:[#allocation8 + $0x68] sm:$0xff]
        %v1093 = vld [vmem:[#allocation8 + $0x70] sm:$0xff]
        %v1094 = vld [vmem:[#allocation8 + $0x78] sm:$0xff]
        %v1095 = vld [vmem:[#allocation8 + $0x80] sm:$0xff]
        %v1096 = vld [vmem:[#allocation8 + $0x88] sm:$0xff]
        %v1097 = vld [vmem:[#allocation8 + $0x90] sm:$0xff]
        %v1098 = vld [vmem:[#allocation8 + $0x98] sm:$0xff]
        %v1099 = vld [vmem:[#allocation8 + $0xa0] sm:$0xff]
        %v1100 = vld [vmem:[#allocation8 + $0xa8] sm:$0xff]
        %v1101 = vld [vmem:[#allocation8 + $0xb0] sm:$0xff]
        %v1102 = vld [vmem:[#allocation8 + $0xb8] sm:$0xff]
        %v1103 = vld [vmem:[#allocation8 + $0xc0] sm:$0xff]
        %v1104 = vld [vmem:[#allocation8 + $0xc8] sm:$0xff]
        %v1105 = vld [vmem:[#allocation8 + $0xd0] sm:$0xff]
        %v1106 = vld [vmem:[#allocation8 + $0xd8] sm:$0xff]
        %v1107 = vld [vmem:[#allocation8 + $0xe0] sm:$0xff]
        %v1108 = vld [vmem:[#allocation8 + $0xe8] sm:$0xff]
        %v1109 = vld [vmem:[#allocation8 + $0xf0] sm:$0xff]
        %v1110 = vld [vmem:[#allocation8 + $0xf8] sm:$0xff]
        %v1111 = vld [vmem:[#allocation8 + $0x100] sm:$0xff]
        %v1112 = vld [vmem:[#allocation8 + $0x108] sm:$0xff]
        %v1113 = vld [vmem:[#allocation8 + $0x110] sm:$0xff]
        %v1114 = vld [vmem:[#allocation8 + $0x118] sm:$0xff]
        %v1115 = vld [vmem:[#allocation8 + $0x120] sm:$0xff]
        %v1116 = vld [vmem:[#allocation8 + $0x128] sm:$0xff]
        %v1117 = vld [vmem:[#allocation8 + $0x130] sm:$0xff]
        %v1118 = vld [vmem:[#allocation8 + $0x138] sm:$0xff]
        %v1119 = vld [vmem:[#allocation8 + $0x140] sm:$0xff]
        %v1120 = vld [vmem:[#allocation8 + $0x148] sm:$0xff]
        %v1121 = vld [vmem:[#allocation8 + $0x150] sm:$0xff]
        %v1122 = vld [vmem:[#allocation8 + $0x158] sm:$0xff]
        %v1123 = vld [vmem:[#allocation8 + $0x160] sm:$0xff]
        %v1124 = vld [vmem:[#allocation8 + $0x168] sm:$0xff]
        %v1125 = vld [vmem:[#allocation8 + $0x170] sm:$0xff]
        %v1126 = vld [vmem:[#allocation8 + $0x178] sm:$0xff]
        %v1127 = vld [vmem:[#allocation8 + $0x180] sm:$0xff]
        %v1128 = vld [vmem:[#allocation8 + $0x188] sm:$0xff]
        %v1129 = vld [vmem:[#allocation8 + $0x190] sm:$0xff]
        %v1130 = vld [vmem:[#allocation8 + $0x198] sm:$0xff]
        %v1131 = vld [vmem:[#allocation8 + $0x1a0] sm:$0xff]
        %v1132 = vld [vmem:[#allocation8 + $0x1a8] sm:$0xff]
        %v1133 = vld [vmem:[#allocation8 + $0x1b0] sm:$0xff]
        %v1134 = vld [vmem:[#allocation8 + $0x1b8] sm:$0xff]
        %v1135 = vld [vmem:[#allocation8 + $0x1c0] sm:$0xff]
        %v1136 = vld [vmem:[#allocation8 + $0x1c8] sm:$0xff]
        %v1137 = vld [vmem:[#allocation8 + $0x1d0] sm:$0xff]
        %v1138 = vld [vmem:[#allocation8 + $0x1d8] sm:$0xff]
        %v1139 = vld [vmem:[#allocation8 + $0x1e0] sm:$0xff]
        %v1140 = vld [vmem:[#allocation8 + $0x1e8] sm:$0xff]
        %v1141 = vld [vmem:[#allocation8 + $0x1f0] sm:$0xff]
        %v1142 = vld [vmem:[#allocation8 + $0x1f8] sm:$0xff]
        %v1143 = vld [vmem:[#allocation8 + $0x200] sm:$0xff]
        %v1144 = vld [vmem:[#allocation8 + $0x208] sm:$0xff]
        %v1145 = vld [vmem:[#allocation8 + $0x210] sm:$0xff]
        %v1146 = vld [vmem:[#allocation8 + $0x218] sm:$0xff]
        %v1147 = vld [vmem:[#allocation8 + $0x220] sm:$0xff]
        %v1148 = vld [vmem:[#allocation8 + $0x228] sm:$0xff]
        %v1149 = vld [vmem:[#allocation8 + $0x230] sm:$0xff]
        %v1150 = vld [vmem:[#allocation8 + $0x238] sm:$0xff]
        %v1151 = vld [vmem:[#allocation8 + $0x240] sm:$0xff]
        %v1152 = vld [vmem:[#allocation8 + $0x248] sm:$0xff]
        %v1153 = vld [vmem:[#allocation8 + $0x250] sm:$0xff]
        %v1154 = vld [vmem:[#allocation8 + $0x258] sm:$0xff]
        %v1155 = vld [vmem:[#allocation8 + $0x260] sm:$0xff]
        %v1156 = vld [vmem:[#allocation8 + $0x268] sm:$0xff]
        %v1157 = vld [vmem:[#allocation8 + $0x270] sm:$0xff]
        %v1158 = vld [vmem:[#allocation8 + $0x278] sm:$0xff]
        %v1159 = vld [vmem:[#allocation8 + $0x280] sm:$0xff]
        %v1160 = vld [vmem:[#allocation8 + $0x288] sm:$0xff]
        %v1161 = vld [vmem:[#allocation8 + $0x290] sm:$0xff]
        %v1162 = vld [vmem:[#allocation8 + $0x298] sm:$0xff]
        %v1163 = vld [vmem:[#allocation8 + $0x2a0] sm:$0xff]
        %v1164 = vld [vmem:[#allocation8 + $0x2a8] sm:$0xff]
        %v1165 = vld [vmem:[#allocation8 + $0x2b0] sm:$0xff]
        %v1166 = vld [vmem:[#allocation8 + $0x2b8] sm:$0xff]
        %v1167 = vld [vmem:[#allocation8 + $0x2c0] sm:$0xff]
        %v1168 = vld [vmem:[#allocation8 + $0x2c8] sm:$0xff]
        %v1169 = vld [vmem:[#allocation8 + $0x2d0] sm:$0xff]
        %v1170 = vld [vmem:[#allocation8 + $0x2d8] sm:$0xff]
        %v1171 = vld [vmem:[#allocation8 + $0x2e0] sm:$0xff]
        %v1172 = vld [vmem:[#allocation8 + $0x2e8] sm:$0xff]
        %v1173 = vld [vmem:[#allocation8 + $0x2f0] sm:$0xff]
        %v1174 = vld [vmem:[#allocation8 + $0x2f8] sm:$0xff]
        %v1175 = vld [vmem:[#allocation8 + $0x300] sm:$0xff]
        %v1176 = vld [vmem:[#allocation8 + $0x308] sm:$0xff]
        %v1177 = vld [vmem:[#allocation8 + $0x310] sm:$0xff]
        %v1178 = vld [vmem:[#allocation8 + $0x318] sm:$0xff]
        %v1179 = vld [vmem:[#allocation8 + $0x320] sm:$0xff]
        %v1180 = vld [vmem:[#allocation8 + $0x328] sm:$0xff]
        %v1181 = vld [vmem:[#allocation8 + $0x330] sm:$0xff]
        %v1182 = vld [vmem:[#allocation8 + $0x338] sm:$0xff]
        %v1183 = vld [vmem:[#allocation8 + $0x340] sm:$0xff]
        %v1184 = vld [vmem:[#allocation8 + $0x348] sm:$0xff]
        %v1185 = vld [vmem:[#allocation8 + $0x350] sm:$0xff]
        %v1186 = vld [vmem:[#allocation8 + $0x358] sm:$0xff]
        %v1187 = vld [vmem:[#allocation8 + $0x360] sm:$0xff]
        %v1188 = vld [vmem:[#allocation8 + $0x368] sm:$0xff]
        %v1189 = vld [vmem:[#allocation8 + $0x370] sm:$0xff]
        %v1190 = vld [vmem:[#allocation8 + $0x378] sm:$0xff]
        %v1191 = vld [vmem:[#allocation8 + $0x380] sm:$0xff]
        %v1192 = vld [vmem:[#allocation8 + $0x388] sm:$0xff]
        %v1193 = vld [vmem:[#allocation8 + $0x390] sm:$0xff]
        %v1194 = vld [vmem:[#allocation8 + $0x398] sm:$0xff]
        %v1195 = vld [vmem:[#allocation8 + $0x3a0] sm:$0xff]
        %v1196 = vld [vmem:[#allocation8 + $0x3a8] sm:$0xff]
        %v1197 = vld [vmem:[#allocation8 + $0x3b0] sm:$0xff]
        %v1198 = vld [vmem:[#allocation8 + $0x3b8] sm:$0xff]
        %v1199 = vld [vmem:[#allocation8 + $0x3c0] sm:$0xff]
        %v1200 = vld [vmem:[#allocation8 + $0x3c8] sm:$0xff]
        %v1201 = vld [vmem:[#allocation8 + $0x3d0] sm:$0xff]
        %v1202 = vld [vmem:[#allocation8 + $0x3d8] sm:$0xff]
        %v1203 = vld [vmem:[#allocation8 + $0x3e0] sm:$0xff]
        %v1204 = vld [vmem:[#allocation8 + $0x3e8] sm:$0xff]
        %v1205 = vld [vmem:[#allocation8 + $0x3f0] sm:$0xff]
        %v1206 = vld [vmem:[#allocation8 + $0x3f8] sm:$0xff]
        %v1207 = vld [vmem:[#allocation8 + $0x400] sm:$0xff]
        %v1208 = vld [vmem:[#allocation8 + $0x408] sm:$0xff]
        %v1209 = vld [vmem:[#allocation8 + $0x410] sm:$0xff]
        %v1210 = vld [vmem:[#allocation8 + $0x418] sm:$0xff]
        %v1211 = vld [vmem:[#allocation8 + $0x420] sm:$0xff]
        %v1212 = vld [vmem:[#allocation8 + $0x428] sm:$0xff]
        %v1213 = vld [vmem:[#allocation8 + $0x430] sm:$0xff]
        %v1214 = vld [vmem:[#allocation8 + $0x438] sm:$0xff]
        %v1215 = vld [vmem:[#allocation8 + $0x440] sm:$0xff]
        %v1216 = vld [vmem:[#allocation8 + $0x448] sm:$0xff]
        %v1217 = vld [vmem:[#allocation8 + $0x450] sm:$0xff]
        %v1218 = vld [vmem:[#allocation8 + $0x458] sm:$0xff]
        %v1219 = vld [vmem:[#allocation8 + $0x460] sm:$0xff]
        %v1220 = vld [vmem:[#allocation8 + $0x468] sm:$0xff]
        %v1221 = vld [vmem:[#allocation8 + $0x470] sm:$0xff]
        %v1222 = vld [vmem:[#allocation8 + $0x478] sm:$0xff]
        %v1223 = vld [vmem:[#allocation10] sm:$0x1]
        %v1224 = vperm.slane %v1223, 0
        %1225 = vmatpush.msra.mxu0 %v1094
        %1226 = vmatpush.msra.mxu0 %v1093
        %1227 = vmatpush.msra.mxu0 %v1092
        %1228 = vmatpush.msra.mxu0 %v1091
        %1229 = vmatpush.msra.mxu0 %v1090
        %1230 = vmatpush.msra.mxu0 %v1089
        %1231 = vmatpush.msra.mxu0 %v1088
        %1232 = vmatpush.msra.mxu0 %v1087
        %1233 = vmatpush.msra.mxu0 %v1086
        %1234 = vmatpush.msra.mxu0 %v1085
        %1235 = vmatpush.msra.mxu0 %v1084
        %1236 = vmatpush.msra.mxu0 %v1083
        %1237 = vmatpush.msra.mxu0 %v1082
        %1238 = vmatpush.msra.mxu0 %v1081
        %1239 = vmatpush.msra.mxu0 %v1080
        %1240 = vmatpush.msra.mxu0 %v1079
        %1241 = vmatmul.f32.gmra.mxu0 %v791
        %v1242 = vpop.f32.mrf.mxu0
        %v1243 = vadd.f32 %v1224, %v1242
        %1244 = vmatmul.f32.gmra.mxu0 %v800
        %v1245 = vpop.f32.mrf.mxu0
        %v1246 = vadd.f32 %v1224, %v1245
        %1247 = vmatmul.f32.gmra.mxu0 %v809
        %v1248 = vpop.f32.mrf.mxu0
        %v1249 = vadd.f32 %v1224, %v1248
        %1250 = vmatmul.f32.gmra.mxu0 %v818
        %v1251 = vpop.f32.mrf.mxu0
        %v1252 = vadd.f32 %v1224, %v1251
        %1253 = vmatmul.f32.gmra.mxu0 %v827
        %v1254 = vpop.f32.mrf.mxu0
        %v1255 = vadd.f32 %v1224, %v1254
        %1256 = vmatmul.f32.gmra.mxu0 %v836
        %v1257 = vpop.f32.mrf.mxu0
        %v1258 = vadd.f32 %v1224, %v1257
        %1259 = vmatmul.f32.gmra.mxu0 %v845
        %v1260 = vpop.f32.mrf.mxu0
        %v1261 = vadd.f32 %v1224, %v1260
        %1262 = vmatmul.f32.gmra.mxu0 %v854
        %v1263 = vpop.f32.mrf.mxu0
        %v1264 = vadd.f32 %v1224, %v1263
        %1265 = vmatmul.f32.gmra.mxu0 %v863
        %v1266 = vpop.f32.mrf.mxu0
        %v1267 = vadd.f32 %v1224, %v1266
        %1268 = vmatmul.f32.gmra.mxu0 %v872
        %v1269 = vpop.f32.mrf.mxu0
        %v1270 = vadd.f32 %v1224, %v1269
        %1271 = vmatmul.f32.gmra.mxu0 %v881
        %v1272 = vpop.f32.mrf.mxu0
        %v1273 = vadd.f32 %v1224, %v1272
        %1274 = vmatmul.f32.gmra.mxu0 %v890
        %v1275 = vpop.f32.mrf.mxu0
        %v1276 = vadd.f32 %v1224, %v1275
        %1277 = vmatmul.f32.gmra.mxu0 %v899
        %v1278 = vpop.f32.mrf.mxu0
        %v1279 = vadd.f32 %v1224, %v1278
        %1280 = vmatmul.f32.gmra.mxu0 %v908
        %v1281 = vpop.f32.mrf.mxu0
        %v1282 = vadd.f32 %v1224, %v1281
        %1283 = vmatmul.f32.gmra.mxu0 %v917
        %v1284 = vpop.f32.mrf.mxu0
        %v1285 = vadd.f32 %v1224, %v1284
        %1286 = vmatmul.f32.gmra.mxu0 %v926
        %v1287 = vpop.f32.mrf.mxu0
        %v1288 = vadd.f32 %v1224, %v1287
        %1289 = vmatmul.f32.gmra.mxu0 %v935
        %v1290 = vpop.f32.mrf.mxu0
        %v1291 = vadd.f32 %v1224, %v1290
        %1292 = vmatmul.f32.gmra.mxu0 %v944
        %v1293 = vpop.f32.mrf.mxu0
        %v1294 = vadd.f32 %v1224, %v1293
        %1295 = vmatmul.f32.gmra.mxu0 %v953
        %v1296 = vpop.f32.mrf.mxu0
        %v1297 = vadd.f32 %v1224, %v1296
        %1298 = vmatmul.f32.gmra.mxu0 %v962
        %v1299 = vpop.f32.mrf.mxu0
        %v1300 = vadd.f32 %v1224, %v1299
        %1301 = vmatmul.f32.gmra.mxu0 %v971
        %v1302 = vpop.f32.mrf.mxu0
        %v1303 = vadd.f32 %v1224, %v1302
        %1304 = vmatmul.f32.gmra.mxu0 %v980
        %v1305 = vpop.f32.mrf.mxu0
        %v1306 = vadd.f32 %v1224, %v1305
        %1307 = vmatmul.f32.gmra.mxu0 %v989
        %v1308 = vpop.f32.mrf.mxu0
        %v1309 = vadd.f32 %v1224, %v1308
        %1310 = vmatmul.f32.gmra.mxu0 %v998
        %v1311 = vpop.f32.mrf.mxu0
        %v1312 = vadd.f32 %v1224, %v1311
        %1313 = vmatmul.f32.gmra.mxu0 %v1007
        %v1314 = vpop.f32.mrf.mxu0
        %v1315 = vadd.f32 %v1224, %v1314
        %1316 = vmatmul.f32.gmra.mxu0 %v1016
        %v1317 = vpop.f32.mrf.mxu0
        %v1318 = vadd.f32 %v1224, %v1317
        %1319 = vmatmul.f32.gmra.mxu0 %v1025
        %v1320 = vpop.f32.mrf.mxu0
        %v1321 = vadd.f32 %v1224, %v1320
        %1322 = vmatmul.f32.gmra.mxu0 %v1034
        %v1323 = vpop.f32.mrf.mxu0
        %v1324 = vadd.f32 %v1224, %v1323
        %1325 = vmatmul.f32.gmra.mxu0 %v1043
        %v1326 = vpop.f32.mrf.mxu0
        %v1327 = vadd.f32 %v1224, %v1326
        %1328 = vmatmul.f32.gmra.mxu0 %v1052
        %v1329 = vpop.f32.mrf.mxu0
        %v1330 = vadd.f32 %v1224, %v1329
        %1331 = vmatmul.f32.gmra.mxu0 %v1061
        %v1332 = vpop.f32.mrf.mxu0
        %v1333 = vadd.f32 %v1224, %v1332
        %1334 = vmatmul.f32.gmra.mxu0 %v1070
        %v1335 = vpop.f32.mrf.mxu0
        %v1336 = vadd.f32 %v1224, %v1335
        %1337 = vdwg.mxu0
        %1338 = vmatpush.msra.mxu0 %v1110
        %1339 = vmatpush.msra.mxu0 %v1109
        %1340 = vmatpush.msra.mxu0 %v1108
        %1341 = vmatpush.msra.mxu0 %v1107
        %1342 = vmatpush.msra.mxu0 %v1106
        %1343 = vmatpush.msra.mxu0 %v1105
        %1344 = vmatpush.msra.mxu0 %v1104
        %1345 = vmatpush.msra.mxu0 %v1103
        %1346 = vmatpush.msra.mxu0 %v1102
        %1347 = vmatpush.msra.mxu0 %v1101
        %1348 = vmatpush.msra.mxu0 %v1100
        %1349 = vmatpush.msra.mxu0 %v1099
        %1350 = vmatpush.msra.mxu0 %v1098
        %1351 = vmatpush.msra.mxu0 %v1097
        %1352 = vmatpush.msra.mxu0 %v1096
        %1353 = vmatpush.msra.mxu0 %v1095
        %1354 = vmatmul.f32.gmra.mxu0 %v792
        %v1355 = vpop.f32.mrf.mxu0
        %v1356 = vadd.f32 %v1243, %v1355
        %1357 = vmatmul.f32.gmra.mxu0 %v801
        %v1358 = vpop.f32.mrf.mxu0
        %v1359 = vadd.f32 %v1246, %v1358
        %1360 = vmatmul.f32.gmra.mxu0 %v810
        %v1361 = vpop.f32.mrf.mxu0
        %v1362 = vadd.f32 %v1249, %v1361
        %1363 = vmatmul.f32.gmra.mxu0 %v819
        %v1364 = vpop.f32.mrf.mxu0
        %v1365 = vadd.f32 %v1252, %v1364
        %1366 = vmatmul.f32.gmra.mxu0 %v828
        %v1367 = vpop.f32.mrf.mxu0
        %v1368 = vadd.f32 %v1255, %v1367
        %1369 = vmatmul.f32.gmra.mxu0 %v837
        %v1370 = vpop.f32.mrf.mxu0
        %v1371 = vadd.f32 %v1258, %v1370
        %1372 = vmatmul.f32.gmra.mxu0 %v846
        %v1373 = vpop.f32.mrf.mxu0
        %v1374 = vadd.f32 %v1261, %v1373
        %1375 = vmatmul.f32.gmra.mxu0 %v855
        %v1376 = vpop.f32.mrf.mxu0
        %v1377 = vadd.f32 %v1264, %v1376
        %1378 = vmatmul.f32.gmra.mxu0 %v864
        %v1379 = vpop.f32.mrf.mxu0
        %v1380 = vadd.f32 %v1267, %v1379
        %1381 = vmatmul.f32.gmra.mxu0 %v873
        %v1382 = vpop.f32.mrf.mxu0
        %v1383 = vadd.f32 %v1270, %v1382
        %1384 = vmatmul.f32.gmra.mxu0 %v882
        %v1385 = vpop.f32.mrf.mxu0
        %v1386 = vadd.f32 %v1273, %v1385
        %1387 = vmatmul.f32.gmra.mxu0 %v891
        %v1388 = vpop.f32.mrf.mxu0
        %v1389 = vadd.f32 %v1276, %v1388
        %1390 = vmatmul.f32.gmra.mxu0 %v900
        %v1391 = vpop.f32.mrf.mxu0
        %v1392 = vadd.f32 %v1279, %v1391
        %1393 = vmatmul.f32.gmra.mxu0 %v909
        %v1394 = vpop.f32.mrf.mxu0
        %v1395 = vadd.f32 %v1282, %v1394
        %1396 = vmatmul.f32.gmra.mxu0 %v918
        %v1397 = vpop.f32.mrf.mxu0
        %v1398 = vadd.f32 %v1285, %v1397
        %1399 = vmatmul.f32.gmra.mxu0 %v927
        %v1400 = vpop.f32.mrf.mxu0
        %v1401 = vadd.f32 %v1288, %v1400
        %1402 = vmatmul.f32.gmra.mxu0 %v936
        %v1403 = vpop.f32.mrf.mxu0
        %v1404 = vadd.f32 %v1291, %v1403
        %1405 = vmatmul.f32.gmra.mxu0 %v945
        %v1406 = vpop.f32.mrf.mxu0
        %v1407 = vadd.f32 %v1294, %v1406
        %1408 = vmatmul.f32.gmra.mxu0 %v954
        %v1409 = vpop.f32.mrf.mxu0
        %v1410 = vadd.f32 %v1297, %v1409
        %1411 = vmatmul.f32.gmra.mxu0 %v963
        %v1412 = vpop.f32.mrf.mxu0
        %v1413 = vadd.f32 %v1300, %v1412
        %1414 = vmatmul.f32.gmra.mxu0 %v972
        %v1415 = vpop.f32.mrf.mxu0
        %v1416 = vadd.f32 %v1303, %v1415
        %1417 = vmatmul.f32.gmra.mxu0 %v981
        %v1418 = vpop.f32.mrf.mxu0
        %v1419 = vadd.f32 %v1306, %v1418
        %1420 = vmatmul.f32.gmra.mxu0 %v990
        %v1421 = vpop.f32.mrf.mxu0
        %v1422 = vadd.f32 %v1309, %v1421
        %1423 = vmatmul.f32.gmra.mxu0 %v999
        %v1424 = vpop.f32.mrf.mxu0
        %v1425 = vadd.f32 %v1312, %v1424
        %1426 = vmatmul.f32.gmra.mxu0 %v1008
        %v1427 = vpop.f32.mrf.mxu0
        %v1428 = vadd.f32 %v1315, %v1427
        %1429 = vmatmul.f32.gmra.mxu0 %v1017
        %v1430 = vpop.f32.mrf.mxu0
        %v1431 = vadd.f32 %v1318, %v1430
        %1432 = vmatmul.f32.gmra.mxu0 %v1026
        %v1433 = vpop.f32.mrf.mxu0
        %v1434 = vadd.f32 %v1321, %v1433
        %1435 = vmatmul.f32.gmra.mxu0 %v1035
        %v1436 = vpop.f32.mrf.mxu0
        %v1437 = vadd.f32 %v1324, %v1436
        %1438 = vmatmul.f32.gmra.mxu0 %v1044
        %v1439 = vpop.f32.mrf.mxu0
        %v1440 = vadd.f32 %v1327, %v1439
        %1441 = vmatmul.f32.gmra.mxu0 %v1053
        %v1442 = vpop.f32.mrf.mxu0
        %v1443 = vadd.f32 %v1330, %v1442
        %1444 = vmatmul.f32.gmra.mxu0 %v1062
        %v1445 = vpop.f32.mrf.mxu0
        %v1446 = vadd.f32 %v1333, %v1445
        %1447 = vmatmul.f32.gmra.mxu0 %v1071
        %v1448 = vpop.f32.mrf.mxu0
        %v1449 = vadd.f32 %v1336, %v1448
        %1450 = vdwg.mxu0
        %1451 = vmatpush.msra.mxu0 %v1126
        %1452 = vmatpush.msra.mxu0 %v1125
        %1453 = vmatpush.msra.mxu0 %v1124
        %1454 = vmatpush.msra.mxu0 %v1123
        %1455 = vmatpush.msra.mxu0 %v1122
        %1456 = vmatpush.msra.mxu0 %v1121
        %1457 = vmatpush.msra.mxu0 %v1120
        %1458 = vmatpush.msra.mxu0 %v1119
        %1459 = vmatpush.msra.mxu0 %v1118
        %1460 = vmatpush.msra.mxu0 %v1117
        %1461 = vmatpush.msra.mxu0 %v1116
        %1462 = vmatpush.msra.mxu0 %v1115
        %1463 = vmatpush.msra.mxu0 %v1114
        %1464 = vmatpush.msra.mxu0 %v1113
        %1465 = vmatpush.msra.mxu0 %v1112
        %1466 = vmatpush.msra.mxu0 %v1111
        %1467 = vmatmul.f32.gmra.mxu0 %v793
        %v1468 = vpop.f32.mrf.mxu0
        %v1469 = vadd.f32 %v1356, %v1468
        %1470 = vmatmul.f32.gmra.mxu0 %v802
        %v1471 = vpop.f32.mrf.mxu0
        %v1472 = vadd.f32 %v1359, %v1471
        %1473 = vmatmul.f32.gmra.mxu0 %v811
        %v1474 = vpop.f32.mrf.mxu0
        %v1475 = vadd.f32 %v1362, %v1474
        %1476 = vmatmul.f32.gmra.mxu0 %v820
        %v1477 = vpop.f32.mrf.mxu0
        %v1478 = vadd.f32 %v1365, %v1477
        %1479 = vmatmul.f32.gmra.mxu0 %v829
        %v1480 = vpop.f32.mrf.mxu0
        %v1481 = vadd.f32 %v1368, %v1480
        %1482 = vmatmul.f32.gmra.mxu0 %v838
        %v1483 = vpop.f32.mrf.mxu0
        %v1484 = vadd.f32 %v1371, %v1483
        %1485 = vmatmul.f32.gmra.mxu0 %v847
        %v1486 = vpop.f32.mrf.mxu0
        %v1487 = vadd.f32 %v1374, %v1486
        %1488 = vmatmul.f32.gmra.mxu0 %v856
        %v1489 = vpop.f32.mrf.mxu0
        %v1490 = vadd.f32 %v1377, %v1489
        %1491 = vmatmul.f32.gmra.mxu0 %v865
        %v1492 = vpop.f32.mrf.mxu0
        %v1493 = vadd.f32 %v1380, %v1492
        %1494 = vmatmul.f32.gmra.mxu0 %v874
        %v1495 = vpop.f32.mrf.mxu0
        %v1496 = vadd.f32 %v1383, %v1495
        %1497 = vmatmul.f32.gmra.mxu0 %v883
        %v1498 = vpop.f32.mrf.mxu0
        %v1499 = vadd.f32 %v1386, %v1498
        %1500 = vmatmul.f32.gmra.mxu0 %v892
        %v1501 = vpop.f32.mrf.mxu0
        %v1502 = vadd.f32 %v1389, %v1501
        %1503 = vmatmul.f32.gmra.mxu0 %v901
        %v1504 = vpop.f32.mrf.mxu0
        %v1505 = vadd.f32 %v1392, %v1504
        %1506 = vmatmul.f32.gmra.mxu0 %v910
        %v1507 = vpop.f32.mrf.mxu0
        %v1508 = vadd.f32 %v1395, %v1507
        %1509 = vmatmul.f32.gmra.mxu0 %v919
        %v1510 = vpop.f32.mrf.mxu0
        %v1511 = vadd.f32 %v1398, %v1510
        %1512 = vmatmul.f32.gmra.mxu0 %v928
        %v1513 = vpop.f32.mrf.mxu0
        %v1514 = vadd.f32 %v1401, %v1513
        %1515 = vmatmul.f32.gmra.mxu0 %v937
        %v1516 = vpop.f32.mrf.mxu0
        %v1517 = vadd.f32 %v1404, %v1516
        %1518 = vmatmul.f32.gmra.mxu0 %v946
        %v1519 = vpop.f32.mrf.mxu0
        %v1520 = vadd.f32 %v1407, %v1519
        %1521 = vmatmul.f32.gmra.mxu0 %v955
        %v1522 = vpop.f32.mrf.mxu0
        %v1523 = vadd.f32 %v1410, %v1522
        %1524 = vmatmul.f32.gmra.mxu0 %v964
        %v1525 = vpop.f32.mrf.mxu0
        %v1526 = vadd.f32 %v1413, %v1525
        %1527 = vmatmul.f32.gmra.mxu0 %v973
        %v1528 = vpop.f32.mrf.mxu0
        %v1529 = vadd.f32 %v1416, %v1528
        %1530 = vmatmul.f32.gmra.mxu0 %v982
        %v1531 = vpop.f32.mrf.mxu0
        %v1532 = vadd.f32 %v1419, %v1531
        %1533 = vmatmul.f32.gmra.mxu0 %v991
        %v1534 = vpop.f32.mrf.mxu0
        %v1535 = vadd.f32 %v1422, %v1534
        %1536 = vmatmul.f32.gmra.mxu0 %v1000
        %v1537 = vpop.f32.mrf.mxu0
        %v1538 = vadd.f32 %v1425, %v1537
        %1539 = vmatmul.f32.gmra.mxu0 %v1009
        %v1540 = vpop.f32.mrf.mxu0
        %v1541 = vadd.f32 %v1428, %v1540
        %1542 = vmatmul.f32.gmra.mxu0 %v1018
        %v1543 = vpop.f32.mrf.mxu0
        %v1544 = vadd.f32 %v1431, %v1543
        %1545 = vmatmul.f32.gmra.mxu0 %v1027
        %v1546 = vpop.f32.mrf.mxu0
        %v1547 = vadd.f32 %v1434, %v1546
        %1548 = vmatmul.f32.gmra.mxu0 %v1036
        %v1549 = vpop.f32.mrf.mxu0
        %v1550 = vadd.f32 %v1437, %v1549
        %1551 = vmatmul.f32.gmra.mxu0 %v1045
        %v1552 = vpop.f32.mrf.mxu0
        %v1553 = vadd.f32 %v1440, %v1552
        %1554 = vmatmul.f32.gmra.mxu0 %v1054
        %v1555 = vpop.f32.mrf.mxu0
        %v1556 = vadd.f32 %v1443, %v1555
        %1557 = vmatmul.f32.gmra.mxu0 %v1063
        %v1558 = vpop.f32.mrf.mxu0
        %v1559 = vadd.f32 %v1446, %v1558
        %1560 = vmatmul.f32.gmra.mxu0 %v1072
        %v1561 = vpop.f32.mrf.mxu0
        %v1562 = vadd.f32 %v1449, %v1561
        %1563 = vdwg.mxu0
        %1564 = vmatpush.msra.mxu0 %v1142
        %1565 = vmatpush.msra.mxu0 %v1141
        %1566 = vmatpush.msra.mxu0 %v1140
        %1567 = vmatpush.msra.mxu0 %v1139
        %1568 = vmatpush.msra.mxu0 %v1138
        %1569 = vmatpush.msra.mxu0 %v1137
        %1570 = vmatpush.msra.mxu0 %v1136
        %1571 = vmatpush.msra.mxu0 %v1135
        %1572 = vmatpush.msra.mxu0 %v1134
        %1573 = vmatpush.msra.mxu0 %v1133
        %1574 = vmatpush.msra.mxu0 %v1132
        %1575 = vmatpush.msra.mxu0 %v1131
        %1576 = vmatpush.msra.mxu0 %v1130
        %1577 = vmatpush.msra.mxu0 %v1129
        %1578 = vmatpush.msra.mxu0 %v1128
        %1579 = vmatpush.msra.mxu0 %v1127
        %1580 = vmatmul.f32.gmra.mxu0 %v794
        %v1581 = vpop.f32.mrf.mxu0
        %v1582 = vadd.f32 %v1469, %v1581
        %1583 = vmatmul.f32.gmra.mxu0 %v803
        %v1584 = vpop.f32.mrf.mxu0
        %v1585 = vadd.f32 %v1472, %v1584
        %1586 = vmatmul.f32.gmra.mxu0 %v812
        %v1587 = vpop.f32.mrf.mxu0
        %v1588 = vadd.f32 %v1475, %v1587
        %1589 = vmatmul.f32.gmra.mxu0 %v821
        %v1590 = vpop.f32.mrf.mxu0
        %v1591 = vadd.f32 %v1478, %v1590
        %1592 = vmatmul.f32.gmra.mxu0 %v830
        %v1593 = vpop.f32.mrf.mxu0
        %v1594 = vadd.f32 %v1481, %v1593
        %1595 = vmatmul.f32.gmra.mxu0 %v839
        %v1596 = vpop.f32.mrf.mxu0
        %v1597 = vadd.f32 %v1484, %v1596
        %1598 = vmatmul.f32.gmra.mxu0 %v848
        %v1599 = vpop.f32.mrf.mxu0
        %v1600 = vadd.f32 %v1487, %v1599
        %1601 = vmatmul.f32.gmra.mxu0 %v857
        %v1602 = vpop.f32.mrf.mxu0
        %v1603 = vadd.f32 %v1490, %v1602
        %1604 = vmatmul.f32.gmra.mxu0 %v866
        %v1605 = vpop.f32.mrf.mxu0
        %v1606 = vadd.f32 %v1493, %v1605
        %1607 = vmatmul.f32.gmra.mxu0 %v875
        %v1608 = vpop.f32.mrf.mxu0
        %v1609 = vadd.f32 %v1496, %v1608
        %1610 = vmatmul.f32.gmra.mxu0 %v884
        %v1611 = vpop.f32.mrf.mxu0
        %v1612 = vadd.f32 %v1499, %v1611
        %1613 = vmatmul.f32.gmra.mxu0 %v893
        %v1614 = vpop.f32.mrf.mxu0
        %v1615 = vadd.f32 %v1502, %v1614
        %1616 = vmatmul.f32.gmra.mxu0 %v902
        %v1617 = vpop.f32.mrf.mxu0
        %v1618 = vadd.f32 %v1505, %v1617
        %1619 = vmatmul.f32.gmra.mxu0 %v911
        %v1620 = vpop.f32.mrf.mxu0
        %v1621 = vadd.f32 %v1508, %v1620
        %1622 = vmatmul.f32.gmra.mxu0 %v920
        %v1623 = vpop.f32.mrf.mxu0
        %v1624 = vadd.f32 %v1511, %v1623
        %1625 = vmatmul.f32.gmra.mxu0 %v929
        %v1626 = vpop.f32.mrf.mxu0
        %v1627 = vadd.f32 %v1514, %v1626
        %1628 = vmatmul.f32.gmra.mxu0 %v938
        %v1629 = vpop.f32.mrf.mxu0
        %v1630 = vadd.f32 %v1517, %v1629
        %1631 = vmatmul.f32.gmra.mxu0 %v947
        %v1632 = vpop.f32.mrf.mxu0
        %v1633 = vadd.f32 %v1520, %v1632
        %1634 = vmatmul.f32.gmra.mxu0 %v956
        %v1635 = vpop.f32.mrf.mxu0
        %v1636 = vadd.f32 %v1523, %v1635
        %1637 = vmatmul.f32.gmra.mxu0 %v965
        %v1638 = vpop.f32.mrf.mxu0
        %v1639 = vadd.f32 %v1526, %v1638
        %1640 = vmatmul.f32.gmra.mxu0 %v974
        %v1641 = vpop.f32.mrf.mxu0
        %v1642 = vadd.f32 %v1529, %v1641
        %1643 = vmatmul.f32.gmra.mxu0 %v983
        %v1644 = vpop.f32.mrf.mxu0
        %v1645 = vadd.f32 %v1532, %v1644
        %1646 = vmatmul.f32.gmra.mxu0 %v992
        %v1647 = vpop.f32.mrf.mxu0
        %v1648 = vadd.f32 %v1535, %v1647
        %1649 = vmatmul.f32.gmra.mxu0 %v1001
        %v1650 = vpop.f32.mrf.mxu0
        %v1651 = vadd.f32 %v1538, %v1650
        %1652 = vmatmul.f32.gmra.mxu0 %v1010
        %v1653 = vpop.f32.mrf.mxu0
        %v1654 = vadd.f32 %v1541, %v1653
        %1655 = vmatmul.f32.gmra.mxu0 %v1019
        %v1656 = vpop.f32.mrf.mxu0
        %v1657 = vadd.f32 %v1544, %v1656
        %1658 = vmatmul.f32.gmra.mxu0 %v1028
        %v1659 = vpop.f32.mrf.mxu0
        %v1660 = vadd.f32 %v1547, %v1659
        %1661 = vmatmul.f32.gmra.mxu0 %v1037
        %v1662 = vpop.f32.mrf.mxu0
        %v1663 = vadd.f32 %v1550, %v1662
        %1664 = vmatmul.f32.gmra.mxu0 %v1046
        %v1665 = vpop.f32.mrf.mxu0
        %v1666 = vadd.f32 %v1553, %v1665
        %1667 = vmatmul.f32.gmra.mxu0 %v1055
        %v1668 = vpop.f32.mrf.mxu0
        %v1669 = vadd.f32 %v1556, %v1668
        %1670 = vmatmul.f32.gmra.mxu0 %v1064
        %v1671 = vpop.f32.mrf.mxu0
        %v1672 = vadd.f32 %v1559, %v1671
        %1673 = vmatmul.f32.gmra.mxu0 %v1073
        %v1674 = vpop.f32.mrf.mxu0
        %v1675 = vadd.f32 %v1562, %v1674
        %1676 = vdwg.mxu0
        %1677 = vmatpush.msra.mxu0 %v1158
        %1678 = vmatpush.msra.mxu0 %v1157
        %1679 = vmatpush.msra.mxu0 %v1156
        %1680 = vmatpush.msra.mxu0 %v1155
        %1681 = vmatpush.msra.mxu0 %v1154
        %1682 = vmatpush.msra.mxu0 %v1153
        %1683 = vmatpush.msra.mxu0 %v1152
        %1684 = vmatpush.msra.mxu0 %v1151
        %1685 = vmatpush.msra.mxu0 %v1150
        %1686 = vmatpush.msra.mxu0 %v1149
        %1687 = vmatpush.msra.mxu0 %v1148
        %1688 = vmatpush.msra.mxu0 %v1147
        %1689 = vmatpush.msra.mxu0 %v1146
        %1690 = vmatpush.msra.mxu0 %v1145
        %1691 = vmatpush.msra.mxu0 %v1144
        %1692 = vmatpush.msra.mxu0 %v1143
        %1693 = vmatmul.f32.gmra.mxu0 %v795
        %v1694 = vpop.f32.mrf.mxu0
        %v1695 = vadd.f32 %v1582, %v1694
        %1696 = vmatmul.f32.gmra.mxu0 %v804
        %v1697 = vpop.f32.mrf.mxu0
        %v1698 = vadd.f32 %v1585, %v1697
        %1699 = vmatmul.f32.gmra.mxu0 %v813
        %v1700 = vpop.f32.mrf.mxu0
        %v1701 = vadd.f32 %v1588, %v1700
        %1702 = vmatmul.f32.gmra.mxu0 %v822
        %v1703 = vpop.f32.mrf.mxu0
        %v1704 = vadd.f32 %v1591, %v1703
        %1705 = vmatmul.f32.gmra.mxu0 %v831
        %v1706 = vpop.f32.mrf.mxu0
        %v1707 = vadd.f32 %v1594, %v1706
        %1708 = vmatmul.f32.gmra.mxu0 %v840
        %v1709 = vpop.f32.mrf.mxu0
        %v1710 = vadd.f32 %v1597, %v1709
        %1711 = vmatmul.f32.gmra.mxu0 %v849
        %v1712 = vpop.f32.mrf.mxu0
        %v1713 = vadd.f32 %v1600, %v1712
        %1714 = vmatmul.f32.gmra.mxu0 %v858
        %v1715 = vpop.f32.mrf.mxu0
        %v1716 = vadd.f32 %v1603, %v1715
        %1717 = vmatmul.f32.gmra.mxu0 %v867
        %v1718 = vpop.f32.mrf.mxu0
        %v1719 = vadd.f32 %v1606, %v1718
        %1720 = vmatmul.f32.gmra.mxu0 %v876
        %v1721 = vpop.f32.mrf.mxu0
        %v1722 = vadd.f32 %v1609, %v1721
        %1723 = vmatmul.f32.gmra.mxu0 %v885
        %v1724 = vpop.f32.mrf.mxu0
        %v1725 = vadd.f32 %v1612, %v1724
        %1726 = vmatmul.f32.gmra.mxu0 %v894
        %v1727 = vpop.f32.mrf.mxu0
        %v1728 = vadd.f32 %v1615, %v1727
        %1729 = vmatmul.f32.gmra.mxu0 %v903
        %v1730 = vpop.f32.mrf.mxu0
        %v1731 = vadd.f32 %v1618, %v1730
        %1732 = vmatmul.f32.gmra.mxu0 %v912
        %v1733 = vpop.f32.mrf.mxu0
        %v1734 = vadd.f32 %v1621, %v1733
        %1735 = vmatmul.f32.gmra.mxu0 %v921
        %v1736 = vpop.f32.mrf.mxu0
        %v1737 = vadd.f32 %v1624, %v1736
        %1738 = vmatmul.f32.gmra.mxu0 %v930
        %v1739 = vpop.f32.mrf.mxu0
        %v1740 = vadd.f32 %v1627, %v1739
        %1741 = vmatmul.f32.gmra.mxu0 %v939
        %v1742 = vpop.f32.mrf.mxu0
        %v1743 = vadd.f32 %v1630, %v1742
        %1744 = vmatmul.f32.gmra.mxu0 %v948
        %v1745 = vpop.f32.mrf.mxu0
        %v1746 = vadd.f32 %v1633, %v1745
        %1747 = vmatmul.f32.gmra.mxu0 %v957
        %v1748 = vpop.f32.mrf.mxu0
        %v1749 = vadd.f32 %v1636, %v1748
        %1750 = vmatmul.f32.gmra.mxu0 %v966
        %v1751 = vpop.f32.mrf.mxu0
        %v1752 = vadd.f32 %v1639, %v1751
        %1753 = vmatmul.f32.gmra.mxu0 %v975
        %v1754 = vpop.f32.mrf.mxu0
        %v1755 = vadd.f32 %v1642, %v1754
        %1756 = vmatmul.f32.gmra.mxu0 %v984
        %v1757 = vpop.f32.mrf.mxu0
        %v1758 = vadd.f32 %v1645, %v1757
        %1759 = vmatmul.f32.gmra.mxu0 %v993
        %v1760 = vpop.f32.mrf.mxu0
        %v1761 = vadd.f32 %v1648, %v1760
        %1762 = vmatmul.f32.gmra.mxu0 %v1002
        %v1763 = vpop.f32.mrf.mxu0
        %v1764 = vadd.f32 %v1651, %v1763
        %1765 = vmatmul.f32.gmra.mxu0 %v1011
        %v1766 = vpop.f32.mrf.mxu0
        %v1767 = vadd.f32 %v1654, %v1766
        %1768 = vmatmul.f32.gmra.mxu0 %v1020
        %v1769 = vpop.f32.mrf.mxu0
        %v1770 = vadd.f32 %v1657, %v1769
        %1771 = vmatmul.f32.gmra.mxu0 %v1029
        %v1772 = vpop.f32.mrf.mxu0
        %v1773 = vadd.f32 %v1660, %v1772
        %1774 = vmatmul.f32.gmra.mxu0 %v1038
        %v1775 = vpop.f32.mrf.mxu0
        %v1776 = vadd.f32 %v1663, %v1775
        %1777 = vmatmul.f32.gmra.mxu0 %v1047
        %v1778 = vpop.f32.mrf.mxu0
        %v1779 = vadd.f32 %v1666, %v1778
        %1780 = vmatmul.f32.gmra.mxu0 %v1056
        %v1781 = vpop.f32.mrf.mxu0
        %v1782 = vadd.f32 %v1669, %v1781
        %1783 = vmatmul.f32.gmra.mxu0 %v1065
        %v1784 = vpop.f32.mrf.mxu0
        %v1785 = vadd.f32 %v1672, %v1784
        %1786 = vmatmul.f32.gmra.mxu0 %v1074
        %v1787 = vpop.f32.mrf.mxu0
        %v1788 = vadd.f32 %v1675, %v1787
        %1789 = vdwg.mxu0
        %1790 = vmatpush.msra.mxu0 %v1174
        %1791 = vmatpush.msra.mxu0 %v1173
        %1792 = vmatpush.msra.mxu0 %v1172
        %1793 = vmatpush.msra.mxu0 %v1171
        %1794 = vmatpush.msra.mxu0 %v1170
        %1795 = vmatpush.msra.mxu0 %v1169
        %1796 = vmatpush.msra.mxu0 %v1168
        %1797 = vmatpush.msra.mxu0 %v1167
        %1798 = vmatpush.msra.mxu0 %v1166
        %1799 = vmatpush.msra.mxu0 %v1165
        %1800 = vmatpush.msra.mxu0 %v1164
        %1801 = vmatpush.msra.mxu0 %v1163
        %1802 = vmatpush.msra.mxu0 %v1162
        %1803 = vmatpush.msra.mxu0 %v1161
        %1804 = vmatpush.msra.mxu0 %v1160
        %1805 = vmatpush.msra.mxu0 %v1159
        %1806 = vmatmul.f32.gmra.mxu0 %v796
        %v1807 = vpop.f32.mrf.mxu0
        %v1808 = vadd.f32 %v1695, %v1807
        %1809 = vmatmul.f32.gmra.mxu0 %v805
        %v1810 = vpop.f32.mrf.mxu0
        %v1811 = vadd.f32 %v1698, %v1810
        %1812 = vmatmul.f32.gmra.mxu0 %v814
        %v1813 = vpop.f32.mrf.mxu0
        %v1814 = vadd.f32 %v1701, %v1813
        %1815 = vmatmul.f32.gmra.mxu0 %v823
        %v1816 = vpop.f32.mrf.mxu0
        %v1817 = vadd.f32 %v1704, %v1816
        %1818 = vmatmul.f32.gmra.mxu0 %v832
        %v1819 = vpop.f32.mrf.mxu0
        %v1820 = vadd.f32 %v1707, %v1819
        %1821 = vmatmul.f32.gmra.mxu0 %v841
        %v1822 = vpop.f32.mrf.mxu0
        %v1823 = vadd.f32 %v1710, %v1822
        %1824 = vmatmul.f32.gmra.mxu0 %v850
        %v1825 = vpop.f32.mrf.mxu0
        %v1826 = vadd.f32 %v1713, %v1825
        %1827 = vmatmul.f32.gmra.mxu0 %v859
        %v1828 = vpop.f32.mrf.mxu0
        %v1829 = vadd.f32 %v1716, %v1828
        %1830 = vmatmul.f32.gmra.mxu0 %v868
        %v1831 = vpop.f32.mrf.mxu0
        %v1832 = vadd.f32 %v1719, %v1831
        %1833 = vmatmul.f32.gmra.mxu0 %v877
        %v1834 = vpop.f32.mrf.mxu0
        %v1835 = vadd.f32 %v1722, %v1834
        %1836 = vmatmul.f32.gmra.mxu0 %v886
        %v1837 = vpop.f32.mrf.mxu0
        %v1838 = vadd.f32 %v1725, %v1837
        %1839 = vmatmul.f32.gmra.mxu0 %v895
        %v1840 = vpop.f32.mrf.mxu0
        %v1841 = vadd.f32 %v1728, %v1840
        %1842 = vmatmul.f32.gmra.mxu0 %v904
        %v1843 = vpop.f32.mrf.mxu0
        %v1844 = vadd.f32 %v1731, %v1843
        %1845 = vmatmul.f32.gmra.mxu0 %v913
        %v1846 = vpop.f32.mrf.mxu0
        %v1847 = vadd.f32 %v1734, %v1846
        %1848 = vmatmul.f32.gmra.mxu0 %v922
        %v1849 = vpop.f32.mrf.mxu0
        %v1850 = vadd.f32 %v1737, %v1849
        %1851 = vmatmul.f32.gmra.mxu0 %v931
        %v1852 = vpop.f32.mrf.mxu0
        %v1853 = vadd.f32 %v1740, %v1852
        %1854 = vmatmul.f32.gmra.mxu0 %v940
        %v1855 = vpop.f32.mrf.mxu0
        %v1856 = vadd.f32 %v1743, %v1855
        %1857 = vmatmul.f32.gmra.mxu0 %v949
        %v1858 = vpop.f32.mrf.mxu0
        %v1859 = vadd.f32 %v1746, %v1858
        %1860 = vmatmul.f32.gmra.mxu0 %v958
        %v1861 = vpop.f32.mrf.mxu0
        %v1862 = vadd.f32 %v1749, %v1861
        %1863 = vmatmul.f32.gmra.mxu0 %v967
        %v1864 = vpop.f32.mrf.mxu0
        %v1865 = vadd.f32 %v1752, %v1864
        %1866 = vmatmul.f32.gmra.mxu0 %v976
        %v1867 = vpop.f32.mrf.mxu0
        %v1868 = vadd.f32 %v1755, %v1867
        %1869 = vmatmul.f32.gmra.mxu0 %v985
        %v1870 = vpop.f32.mrf.mxu0
        %v1871 = vadd.f32 %v1758, %v1870
        %1872 = vmatmul.f32.gmra.mxu0 %v994
        %v1873 = vpop.f32.mrf.mxu0
        %v1874 = vadd.f32 %v1761, %v1873
        %1875 = vmatmul.f32.gmra.mxu0 %v1003
        %v1876 = vpop.f32.mrf.mxu0
        %v1877 = vadd.f32 %v1764, %v1876
        %1878 = vmatmul.f32.gmra.mxu0 %v1012
        %v1879 = vpop.f32.mrf.mxu0
        %v1880 = vadd.f32 %v1767, %v1879
        %1881 = vmatmul.f32.gmra.mxu0 %v1021
        %v1882 = vpop.f32.mrf.mxu0
        %v1883 = vadd.f32 %v1770, %v1882
        %1884 = vmatmul.f32.gmra.mxu0 %v1030
        %v1885 = vpop.f32.mrf.mxu0
        %v1886 = vadd.f32 %v1773, %v1885
        %1887 = vmatmul.f32.gmra.mxu0 %v1039
        %v1888 = vpop.f32.mrf.mxu0
        %v1889 = vadd.f32 %v1776, %v1888
        %1890 = vmatmul.f32.gmra.mxu0 %v1048
        %v1891 = vpop.f32.mrf.mxu0
        %v1892 = vadd.f32 %v1779, %v1891
        %1893 = vmatmul.f32.gmra.mxu0 %v1057
        %v1894 = vpop.f32.mrf.mxu0
        %v1895 = vadd.f32 %v1782, %v1894
        %1896 = vmatmul.f32.gmra.mxu0 %v1066
        %v1897 = vpop.f32.mrf.mxu0
        %v1898 = vadd.f32 %v1785, %v1897
        %1899 = vmatmul.f32.gmra.mxu0 %v1075
        %v1900 = vpop.f32.mrf.mxu0
        %v1901 = vadd.f32 %v1788, %v1900
        %1902 = vdwg.mxu0
        %1903 = vmatpush.msra.mxu0 %v1190
        %1904 = vmatpush.msra.mxu0 %v1189
        %1905 = vmatpush.msra.mxu0 %v1188
        %1906 = vmatpush.msra.mxu0 %v1187
        %1907 = vmatpush.msra.mxu0 %v1186
        %1908 = vmatpush.msra.mxu0 %v1185
        %1909 = vmatpush.msra.mxu0 %v1184
        %1910 = vmatpush.msra.mxu0 %v1183
        %1911 = vmatpush.msra.mxu0 %v1182
        %1912 = vmatpush.msra.mxu0 %v1181
        %1913 = vmatpush.msra.mxu0 %v1180
        %1914 = vmatpush.msra.mxu0 %v1179
        %1915 = vmatpush.msra.mxu0 %v1178
        %1916 = vmatpush.msra.mxu0 %v1177
        %1917 = vmatpush.msra.mxu0 %v1176
        %1918 = vmatpush.msra.mxu0 %v1175
        %1919 = vmatmul.f32.gmra.mxu0 %v797
        %v1920 = vpop.f32.mrf.mxu0
        %v1921 = vadd.f32 %v1808, %v1920
        %1922 = vmatmul.f32.gmra.mxu0 %v806
        %v1923 = vpop.f32.mrf.mxu0
        %v1924 = vadd.f32 %v1811, %v1923
        %1925 = vmatmul.f32.gmra.mxu0 %v815
        %v1926 = vpop.f32.mrf.mxu0
        %v1927 = vadd.f32 %v1814, %v1926
        %1928 = vmatmul.f32.gmra.mxu0 %v824
        %v1929 = vpop.f32.mrf.mxu0
        %v1930 = vadd.f32 %v1817, %v1929
        %1931 = vmatmul.f32.gmra.mxu0 %v833
        %v1932 = vpop.f32.mrf.mxu0
        %v1933 = vadd.f32 %v1820, %v1932
        %1934 = vmatmul.f32.gmra.mxu0 %v842
        %v1935 = vpop.f32.mrf.mxu0
        %v1936 = vadd.f32 %v1823, %v1935
        %1937 = vmatmul.f32.gmra.mxu0 %v851
        %v1938 = vpop.f32.mrf.mxu0
        %v1939 = vadd.f32 %v1826, %v1938
        %1940 = vmatmul.f32.gmra.mxu0 %v860
        %v1941 = vpop.f32.mrf.mxu0
        %v1942 = vadd.f32 %v1829, %v1941
        %1943 = vmatmul.f32.gmra.mxu0 %v869
        %v1944 = vpop.f32.mrf.mxu0
        %v1945 = vadd.f32 %v1832, %v1944
        %1946 = vmatmul.f32.gmra.mxu0 %v878
        %v1947 = vpop.f32.mrf.mxu0
        %v1948 = vadd.f32 %v1835, %v1947
        %1949 = vmatmul.f32.gmra.mxu0 %v887
        %v1950 = vpop.f32.mrf.mxu0
        %v1951 = vadd.f32 %v1838, %v1950
        %1952 = vmatmul.f32.gmra.mxu0 %v896
        %v1953 = vpop.f32.mrf.mxu0
        %v1954 = vadd.f32 %v1841, %v1953
        %1955 = vmatmul.f32.gmra.mxu0 %v905
        %v1956 = vpop.f32.mrf.mxu0
        %v1957 = vadd.f32 %v1844, %v1956
        %1958 = vmatmul.f32.gmra.mxu0 %v914
        %v1959 = vpop.f32.mrf.mxu0
        %v1960 = vadd.f32 %v1847, %v1959
        %1961 = vmatmul.f32.gmra.mxu0 %v923
        %v1962 = vpop.f32.mrf.mxu0
        %v1963 = vadd.f32 %v1850, %v1962
        %1964 = vmatmul.f32.gmra.mxu0 %v932
        %v1965 = vpop.f32.mrf.mxu0
        %v1966 = vadd.f32 %v1853, %v1965
        %1967 = vmatmul.f32.gmra.mxu0 %v941
        %v1968 = vpop.f32.mrf.mxu0
        %v1969 = vadd.f32 %v1856, %v1968
        %1970 = vmatmul.f32.gmra.mxu0 %v950
        %v1971 = vpop.f32.mrf.mxu0
        %v1972 = vadd.f32 %v1859, %v1971
        %1973 = vmatmul.f32.gmra.mxu0 %v959
        %v1974 = vpop.f32.mrf.mxu0
        %v1975 = vadd.f32 %v1862, %v1974
        %1976 = vmatmul.f32.gmra.mxu0 %v968
        %v1977 = vpop.f32.mrf.mxu0
        %v1978 = vadd.f32 %v1865, %v1977
        %1979 = vmatmul.f32.gmra.mxu0 %v977
        %v1980 = vpop.f32.mrf.mxu0
        %v1981 = vadd.f32 %v1868, %v1980
        %1982 = vmatmul.f32.gmra.mxu0 %v986
        %v1983 = vpop.f32.mrf.mxu0
        %v1984 = vadd.f32 %v1871, %v1983
        %1985 = vmatmul.f32.gmra.mxu0 %v995
        %v1986 = vpop.f32.mrf.mxu0
        %v1987 = vadd.f32 %v1874, %v1986
        %1988 = vmatmul.f32.gmra.mxu0 %v1004
        %v1989 = vpop.f32.mrf.mxu0
        %v1990 = vadd.f32 %v1877, %v1989
        %1991 = vmatmul.f32.gmra.mxu0 %v1013
        %v1992 = vpop.f32.mrf.mxu0
        %v1993 = vadd.f32 %v1880, %v1992
        %1994 = vmatmul.f32.gmra.mxu0 %v1022
        %v1995 = vpop.f32.mrf.mxu0
        %v1996 = vadd.f32 %v1883, %v1995
        %1997 = vmatmul.f32.gmra.mxu0 %v1031
        %v1998 = vpop.f32.mrf.mxu0
        %v1999 = vadd.f32 %v1886, %v1998
        %2000 = vmatmul.f32.gmra.mxu0 %v1040
        %v2001 = vpop.f32.mrf.mxu0
        %v2002 = vadd.f32 %v1889, %v2001
        %2003 = vmatmul.f32.gmra.mxu0 %v1049
        %v2004 = vpop.f32.mrf.mxu0
        %v2005 = vadd.f32 %v1892, %v2004
        %2006 = vmatmul.f32.gmra.mxu0 %v1058
        %v2007 = vpop.f32.mrf.mxu0
        %v2008 = vadd.f32 %v1895, %v2007
        %2009 = vmatmul.f32.gmra.mxu0 %v1067
        %v2010 = vpop.f32.mrf.mxu0
        %v2011 = vadd.f32 %v1898, %v2010
        %2012 = vmatmul.f32.gmra.mxu0 %v1076
        %v2013 = vpop.f32.mrf.mxu0
        %v2014 = vadd.f32 %v1901, %v2013
        %2015 = vdwg.mxu0
        %2016 = vmatpush.msra.mxu0 %v1206
        %2017 = vmatpush.msra.mxu0 %v1205
        %2018 = vmatpush.msra.mxu0 %v1204
        %2019 = vmatpush.msra.mxu0 %v1203
        %2020 = vmatpush.msra.mxu0 %v1202
        %2021 = vmatpush.msra.mxu0 %v1201
        %2022 = vmatpush.msra.mxu0 %v1200
        %2023 = vmatpush.msra.mxu0 %v1199
        %2024 = vmatpush.msra.mxu0 %v1198
        %2025 = vmatpush.msra.mxu0 %v1197
        %2026 = vmatpush.msra.mxu0 %v1196
        %2027 = vmatpush.msra.mxu0 %v1195
        %2028 = vmatpush.msra.mxu0 %v1194
        %2029 = vmatpush.msra.mxu0 %v1193
        %2030 = vmatpush.msra.mxu0 %v1192
        %2031 = vmatpush.msra.mxu0 %v1191
        %2032 = vmatmul.f32.gmra.mxu0 %v798
        %v2033 = vpop.f32.mrf.mxu0
        %v2034 = vadd.f32 %v1921, %v2033
        %2035 = vmatmul.f32.gmra.mxu0 %v807
        %v2036 = vpop.f32.mrf.mxu0
        %v2037 = vadd.f32 %v1924, %v2036
        %2038 = vmatmul.f32.gmra.mxu0 %v816
        %v2039 = vpop.f32.mrf.mxu0
        %v2040 = vadd.f32 %v1927, %v2039
        %2041 = vmatmul.f32.gmra.mxu0 %v825
        %v2042 = vpop.f32.mrf.mxu0
        %v2043 = vadd.f32 %v1930, %v2042
        %2044 = vmatmul.f32.gmra.mxu0 %v834
        %v2045 = vpop.f32.mrf.mxu0
        %v2046 = vadd.f32 %v1933, %v2045
        %2047 = vmatmul.f32.gmra.mxu0 %v843
        %v2048 = vpop.f32.mrf.mxu0
        %v2049 = vadd.f32 %v1936, %v2048
        %2050 = vmatmul.f32.gmra.mxu0 %v852
        %v2051 = vpop.f32.mrf.mxu0
        %v2052 = vadd.f32 %v1939, %v2051
        %2053 = vmatmul.f32.gmra.mxu0 %v861
        %v2054 = vpop.f32.mrf.mxu0
        %v2055 = vadd.f32 %v1942, %v2054
        %2056 = vmatmul.f32.gmra.mxu0 %v870
        %v2057 = vpop.f32.mrf.mxu0
        %v2058 = vadd.f32 %v1945, %v2057
        %2059 = vmatmul.f32.gmra.mxu0 %v879
        %v2060 = vpop.f32.mrf.mxu0
        %v2061 = vadd.f32 %v1948, %v2060
        %2062 = vmatmul.f32.gmra.mxu0 %v888
        %v2063 = vpop.f32.mrf.mxu0
        %v2064 = vadd.f32 %v1951, %v2063
        %2065 = vmatmul.f32.gmra.mxu0 %v897
        %v2066 = vpop.f32.mrf.mxu0
        %v2067 = vadd.f32 %v1954, %v2066
        %2068 = vmatmul.f32.gmra.mxu0 %v906
        %v2069 = vpop.f32.mrf.mxu0
        %v2070 = vadd.f32 %v1957, %v2069
        %2071 = vmatmul.f32.gmra.mxu0 %v915
        %v2072 = vpop.f32.mrf.mxu0
        %v2073 = vadd.f32 %v1960, %v2072
        %2074 = vmatmul.f32.gmra.mxu0 %v924
        %v2075 = vpop.f32.mrf.mxu0
        %v2076 = vadd.f32 %v1963, %v2075
        %2077 = vmatmul.f32.gmra.mxu0 %v933
        %v2078 = vpop.f32.mrf.mxu0
        %v2079 = vadd.f32 %v1966, %v2078
        %2080 = vmatmul.f32.gmra.mxu0 %v942
        %v2081 = vpop.f32.mrf.mxu0
        %v2082 = vadd.f32 %v1969, %v2081
        %2083 = vmatmul.f32.gmra.mxu0 %v951
        %v2084 = vpop.f32.mrf.mxu0
        %v2085 = vadd.f32 %v1972, %v2084
        %2086 = vmatmul.f32.gmra.mxu0 %v960
        %v2087 = vpop.f32.mrf.mxu0
        %v2088 = vadd.f32 %v1975, %v2087
        %2089 = vmatmul.f32.gmra.mxu0 %v969
        %v2090 = vpop.f32.mrf.mxu0
        %v2091 = vadd.f32 %v1978, %v2090
        %2092 = vmatmul.f32.gmra.mxu0 %v978
        %v2093 = vpop.f32.mrf.mxu0
        %v2094 = vadd.f32 %v1981, %v2093
        %2095 = vmatmul.f32.gmra.mxu0 %v987
        %v2096 = vpop.f32.mrf.mxu0
        %v2097 = vadd.f32 %v1984, %v2096
        %2098 = vmatmul.f32.gmra.mxu0 %v996
        %v2099 = vpop.f32.mrf.mxu0
        %v2100 = vadd.f32 %v1987, %v2099
        %2101 = vmatmul.f32.gmra.mxu0 %v1005
        %v2102 = vpop.f32.mrf.mxu0
        %v2103 = vadd.f32 %v1990, %v2102
        %2104 = vmatmul.f32.gmra.mxu0 %v1014
        %v2105 = vpop.f32.mrf.mxu0
        %v2106 = vadd.f32 %v1993, %v2105
        %2107 = vmatmul.f32.gmra.mxu0 %v1023
        %v2108 = vpop.f32.mrf.mxu0
        %v2109 = vadd.f32 %v1996, %v2108
        %2110 = vmatmul.f32.gmra.mxu0 %v1032
        %v2111 = vpop.f32.mrf.mxu0
        %v2112 = vadd.f32 %v1999, %v2111
        %2113 = vmatmul.f32.gmra.mxu0 %v1041
        %v2114 = vpop.f32.mrf.mxu0
        %v2115 = vadd.f32 %v2002, %v2114
        %2116 = vmatmul.f32.gmra.mxu0 %v1050
        %v2117 = vpop.f32.mrf.mxu0
        %v2118 = vadd.f32 %v2005, %v2117
        %2119 = vmatmul.f32.gmra.mxu0 %v1059
        %v2120 = vpop.f32.mrf.mxu0
        %v2121 = vadd.f32 %v2008, %v2120
        %2122 = vmatmul.f32.gmra.mxu0 %v1068
        %v2123 = vpop.f32.mrf.mxu0
        %v2124 = vadd.f32 %v2011, %v2123
        %2125 = vmatmul.f32.gmra.mxu0 %v1077
        %v2126 = vpop.f32.mrf.mxu0
        %v2127 = vadd.f32 %v2014, %v2126
        %2128 = vdwg.mxu0
        %2129 = vmatpush.msra.mxu0 %v1222
        %2130 = vmatpush.msra.mxu0 %v1221
        %2131 = vmatpush.msra.mxu0 %v1220
        %2132 = vmatpush.msra.mxu0 %v1219
        %2133 = vmatpush.msra.mxu0 %v1218
        %2134 = vmatpush.msra.mxu0 %v1217
        %2135 = vmatpush.msra.mxu0 %v1216
        %2136 = vmatpush.msra.mxu0 %v1215
        %2137 = vmatpush.msra.mxu0 %v1214
        %2138 = vmatpush.msra.mxu0 %v1213
        %2139 = vmatpush.msra.mxu0 %v1212
        %2140 = vmatpush.msra.mxu0 %v1211
        %2141 = vmatpush.msra.mxu0 %v1210
        %2142 = vmatpush.msra.mxu0 %v1209
        %2143 = vmatpush.msra.mxu0 %v1208
        %2144 = vmatpush.msra.mxu0 %v1207
        %2145 = vmatmul.f32.gmra.mxu0 %v799
        %v2146 = vpop.f32.mrf.mxu0
        %v2147 = vadd.f32 %v2034, %v2146
        %2148 = vmatmul.f32.gmra.mxu0 %v808
        %v2149 = vpop.f32.mrf.mxu0
        %v2150 = vadd.f32 %v2037, %v2149
        %2151 = vmatmul.f32.gmra.mxu0 %v817
        %v2152 = vpop.f32.mrf.mxu0
        %v2153 = vadd.f32 %v2040, %v2152
        %2154 = vmatmul.f32.gmra.mxu0 %v826
        %v2155 = vpop.f32.mrf.mxu0
        %v2156 = vadd.f32 %v2043, %v2155
        %2157 = vmatmul.f32.gmra.mxu0 %v835
        %v2158 = vpop.f32.mrf.mxu0
        %v2159 = vadd.f32 %v2046, %v2158
        %2160 = vmatmul.f32.gmra.mxu0 %v844
        %v2161 = vpop.f32.mrf.mxu0
        %v2162 = vadd.f32 %v2049, %v2161
        %2163 = vmatmul.f32.gmra.mxu0 %v853
        %v2164 = vpop.f32.mrf.mxu0
        %v2165 = vadd.f32 %v2052, %v2164
        %2166 = vmatmul.f32.gmra.mxu0 %v862
        %v2167 = vpop.f32.mrf.mxu0
        %v2168 = vadd.f32 %v2055, %v2167
        %2169 = vmatmul.f32.gmra.mxu0 %v871
        %v2170 = vpop.f32.mrf.mxu0
        %v2171 = vadd.f32 %v2058, %v2170
        %2172 = vmatmul.f32.gmra.mxu0 %v880
        %v2173 = vpop.f32.mrf.mxu0
        %v2174 = vadd.f32 %v2061, %v2173
        %2175 = vmatmul.f32.gmra.mxu0 %v889
        %v2176 = vpop.f32.mrf.mxu0
        %v2177 = vadd.f32 %v2064, %v2176
        %2178 = vmatmul.f32.gmra.mxu0 %v898
        %v2179 = vpop.f32.mrf.mxu0
        %v2180 = vadd.f32 %v2067, %v2179
        %2181 = vmatmul.f32.gmra.mxu0 %v907
        %v2182 = vpop.f32.mrf.mxu0
        %v2183 = vadd.f32 %v2070, %v2182
        %2184 = vmatmul.f32.gmra.mxu0 %v916
        %v2185 = vpop.f32.mrf.mxu0
        %v2186 = vadd.f32 %v2073, %v2185
        %2187 = vmatmul.f32.gmra.mxu0 %v925
        %v2188 = vpop.f32.mrf.mxu0
        %v2189 = vadd.f32 %v2076, %v2188
        %2190 = vmatmul.f32.gmra.mxu0 %v934
        %v2191 = vpop.f32.mrf.mxu0
        %v2192 = vadd.f32 %v2079, %v2191
        %2193 = vmatmul.f32.gmra.mxu0 %v943
        %v2194 = vpop.f32.mrf.mxu0
        %v2195 = vadd.f32 %v2082, %v2194
        %2196 = vmatmul.f32.gmra.mxu0 %v952
        %v2197 = vpop.f32.mrf.mxu0
        %v2198 = vadd.f32 %v2085, %v2197
        %2199 = vmatmul.f32.gmra.mxu0 %v961
        %v2200 = vpop.f32.mrf.mxu0
        %v2201 = vadd.f32 %v2088, %v2200
        %2202 = vmatmul.f32.gmra.mxu0 %v970
        %v2203 = vpop.f32.mrf.mxu0
        %v2204 = vadd.f32 %v2091, %v2203
        %2205 = vmatmul.f32.gmra.mxu0 %v979
        %v2206 = vpop.f32.mrf.mxu0
        %v2207 = vadd.f32 %v2094, %v2206
        %2208 = vmatmul.f32.gmra.mxu0 %v988
        %v2209 = vpop.f32.mrf.mxu0
        %v2210 = vadd.f32 %v2097, %v2209
        %2211 = vmatmul.f32.gmra.mxu0 %v997
        %v2212 = vpop.f32.mrf.mxu0
        %v2213 = vadd.f32 %v2100, %v2212
        %2214 = vmatmul.f32.gmra.mxu0 %v1006
        %v2215 = vpop.f32.mrf.mxu0
        %v2216 = vadd.f32 %v2103, %v2215
        %2217 = vmatmul.f32.gmra.mxu0 %v1015
        %v2218 = vpop.f32.mrf.mxu0
        %v2219 = vadd.f32 %v2106, %v2218
        %2220 = vmatmul.f32.gmra.mxu0 %v1024
        %v2221 = vpop.f32.mrf.mxu0
        %v2222 = vadd.f32 %v2109, %v2221
        %2223 = vmatmul.f32.gmra.mxu0 %v1033
        %v2224 = vpop.f32.mrf.mxu0
        %v2225 = vadd.f32 %v2112, %v2224
        %2226 = vmatmul.f32.gmra.mxu0 %v1042
        %v2227 = vpop.f32.mrf.mxu0
        %v2228 = vadd.f32 %v2115, %v2227
        %2229 = vmatmul.f32.gmra.mxu0 %v1051
        %v2230 = vpop.f32.mrf.mxu0
        %v2231 = vadd.f32 %v2118, %v2230
        %2232 = vmatmul.f32.gmra.mxu0 %v1060
        %v2233 = vpop.f32.mrf.mxu0
        %v2234 = vadd.f32 %v2121, %v2233
        %2235 = vmatmul.f32.gmra.mxu0 %v1069
        %v2236 = vpop.f32.mrf.mxu0
        %v2237 = vadd.f32 %v2124, %v2236
        %2238 = vmatmul.f32.gmra.mxu0 %v1078
        %v2239 = vpop.f32.mrf.mxu0
        %v2240 = vadd.f32 %v2127, %v2239
        %2241 = vdwg.mxu0
        %v2242 = vmax.f32 %v2147, 0.0
        %v2243 = vmax.f32 %v2150, 0.0
        %v2244 = vmax.f32 %v2153, 0.0
        %v2245 = vmax.f32 %v2156, 0.0
        %v2246 = vmax.f32 %v2159, 0.0
        %v2247 = vmax.f32 %v2162, 0.0
        %v2248 = vmax.f32 %v2165, 0.0
        %v2249 = vmax.f32 %v2168, 0.0
        %v2250 = vmax.f32 %v2171, 0.0
        %v2251 = vmax.f32 %v2174, 0.0
        %v2252 = vmax.f32 %v2177, 0.0
        %v2253 = vmax.f32 %v2180, 0.0
        %v2254 = vmax.f32 %v2183, 0.0
        %v2255 = vmax.f32 %v2186, 0.0
        %v2256 = vmax.f32 %v2189, 0.0
        %v2257 = vmax.f32 %v2192, 0.0
        %v2258 = vmax.f32 %v2195, 0.0
        %v2259 = vmax.f32 %v2198, 0.0
        %v2260 = vmax.f32 %v2201, 0.0
        %v2261 = vmax.f32 %v2204, 0.0
        %v2262 = vmax.f32 %v2207, 0.0
        %v2263 = vmax.f32 %v2210, 0.0
        %v2264 = vmax.f32 %v2213, 0.0
        %v2265 = vmax.f32 %v2216, 0.0
        %v2266 = vmax.f32 %v2219, 0.0
        %v2267 = vmax.f32 %v2222, 0.0
        %v2268 = vmax.f32 %v2225, 0.0
        %v2269 = vmax.f32 %v2228, 0.0
        %v2270 = vmax.f32 %v2231, 0.0
        %v2271 = vmax.f32 %v2234, 0.0
        %v2272 = vmax.f32 %v2237, 0.0
        %v2273 = vmax.f32 %v2240, 0.0
        %s2274 = scalar_lea.vmem [#allocation3], 24
        %2275 = vst [vmem:[%s2274 + $0x1] sm:$0xff] %v2242
        %2276 = vst [vmem:[%s2274 + $0x9] sm:$0xff] %v2243
        %2277 = vst [vmem:[%s2274 + $0x19] sm:$0xff] %v2244
        %2278 = vst [vmem:[%s2274 + $0x21] sm:$0xff] %v2245
        %2279 = vst [vmem:[%s2274 + $0x31] sm:$0xff] %v2246
        %2280 = vst [vmem:[%s2274 + $0x39] sm:$0xff] %v2247
        %2281 = vst [vmem:[%s2274 + $0x49] sm:$0xff] %v2248
        %2282 = vst [vmem:[%s2274 + $0x51] sm:$0xff] %v2249
        %2283 = vst [vmem:[%s2274 + $0x61] sm:$0xff] %v2250
        %2284 = vst [vmem:[%s2274 + $0x69] sm:$0xff] %v2251
        %2285 = vst [vmem:[%s2274 + $0x79] sm:$0xff] %v2252
        %2286 = vst [vmem:[%s2274 + $0x81] sm:$0xff] %v2253
        %2287 = vst [vmem:[%s2274 + $0x91] sm:$0xff] %v2254
        %2288 = vst [vmem:[%s2274 + $0x99] sm:$0xff] %v2255
        %2289 = vst [vmem:[%s2274 + $0xa9] sm:$0xff] %v2256
        %2290 = vst [vmem:[%s2274 + $0xb1] sm:$0xff] %v2257
        %2291 = vst [vmem:[%s2274 + $0xc1] sm:$0xff] %v2258
        %2292 = vst [vmem:[%s2274 + $0xc9] sm:$0xff] %v2259
        %2293 = vst [vmem:[%s2274 + $0xd9] sm:$0xff] %v2260
        %2294 = vst [vmem:[%s2274 + $0xe1] sm:$0xff] %v2261
        %2295 = vst [vmem:[%s2274 + $0xf1] sm:$0xff] %v2262
        %2296 = vst [vmem:[%s2274 + $0xf9] sm:$0xff] %v2263
        %2297 = vst [vmem:[%s2274 + $0x109] sm:$0xff] %v2264
        %2298 = vst [vmem:[%s2274 + $0x111] sm:$0xff] %v2265
        %2299 = vst [vmem:[%s2274 + $0x121] sm:$0xff] %v2266
        %2300 = vst [vmem:[%s2274 + $0x129] sm:$0xff] %v2267
        %2301 = vst [vmem:[%s2274 + $0x139] sm:$0xff] %v2268
        %2302 = vst [vmem:[%s2274 + $0x141] sm:$0xff] %v2269
        %2303 = vst [vmem:[%s2274 + $0x151] sm:$0xff] %v2270
        %2304 = vst [vmem:[%s2274 + $0x159] sm:$0xff] %v2271
        %2305 = vst [vmem:[%s2274 + $0x169] sm:$0xff] %v2272
        %2306 = vst [vmem:[%s2274 + $0x171] sm:$0xff] %v2273
        %v2307 = vld [vmem:[#allocation3] sm:$0xff]
        %v2308 = vld [vmem:[#allocation3 + $0x8] sm:$0xff]
        %v2309 = vld [vmem:[#allocation3 + $0x18] sm:$0xff]
        %v2310 = vld [vmem:[#allocation3 + $0x20] sm:$0xff]
        %v2311 = vld [vmem:[#allocation3 + $0x30] sm:$0xff]
        %v2312 = vld [vmem:[#allocation3 + $0x38] sm:$0xff]
        %v2313 = vld [vmem:[#allocation3 + $0x48] sm:$0xff]
        %v2314 = vld [vmem:[#allocation3 + $0x50] sm:$0xff]
        %v2315 = vld [vmem:[#allocation3 + $0x60] sm:$0xff]
        %v2316 = vld [vmem:[#allocation3 + $0x68] sm:$0xff]
        %v2317 = vld [vmem:[#allocation3 + $0x78] sm:$0xff]
        %v2318 = vld [vmem:[#allocation3 + $0x80] sm:$0xff]
        %v2319 = vld [vmem:[#allocation3 + $0x90] sm:$0xff]
        %v2320 = vld [vmem:[#allocation3 + $0x98] sm:$0xff]
        %v2321 = vld [vmem:[#allocation3 + $0xa8] sm:$0xff]
        %v2322 = vld [vmem:[#allocation3 + $0xb0] sm:$0xff]
        %v2323 = vld [vmem:[#allocation3 + $0xc0] sm:$0xff]
        %v2324 = vld [vmem:[#allocation3 + $0xc8] sm:$0xff]
        %v2325 = vld [vmem:[#allocation3 + $0xd8] sm:$0xff]
        %v2326 = vld [vmem:[#allocation3 + $0xe0] sm:$0xff]
        %v2327 = vld [vmem:[#allocation3 + $0xf0] sm:$0xff]
        %v2328 = vld [vmem:[#allocation3 + $0xf8] sm:$0xff]
        %v2329 = vld [vmem:[#allocation3 + $0x108] sm:$0xff]
        %v2330 = vld [vmem:[#allocation3 + $0x110] sm:$0xff]
        %v2331 = vld [vmem:[#allocation3 + $0x120] sm:$0xff]
        %v2332 = vld [vmem:[#allocation3 + $0x128] sm:$0xff]
        %v2333 = vld [vmem:[#allocation3 + $0x138] sm:$0xff]
        %v2334 = vld [vmem:[#allocation3 + $0x140] sm:$0xff]
        %v2335 = vld [vmem:[#allocation3 + $0x150] sm:$0xff]
        %v2336 = vld [vmem:[#allocation3 + $0x158] sm:$0xff]
        %v2337 = vld [vmem:[#allocation3 + $0x168] sm:$0xff]
        %v2338 = vld [vmem:[#allocation3 + $0x170] sm:$0xff]
        %v2339 = vld [vmem:[#allocation3 + $0x180] sm:$0xff]
        %v2340 = vld [vmem:[#allocation3 + $0x188] sm:$0xff]
        %v2341 = vld [vmem:[#allocation3 + $0x198] sm:$0xff]
        %v2342 = vld [vmem:[#allocation3 + $0x1a0] sm:$0xff]
        %2343 = vst [vmem:[#allocation4] sm:$0xff] %v2307
        %2344 = vst [vmem:[#allocation4 + $0x48] sm:$0xff] %v2308
        %2345 = vst [vmem:[#allocation4 + $0x90] sm:$0xff] %v2309
        %2346 = vst [vmem:[#allocation4 + $0xd8] sm:$0xff] %v2310
        %2347 = vst [vmem:[#allocation4 + $0x120] sm:$0xff] %v2311
        %2348 = vst [vmem:[#allocation4 + $0x168] sm:$0xff] %v2312
        %2349 = vst [vmem:[#allocation4 + $0x1b0] sm:$0xff] %v2313
        %2350 = vst [vmem:[#allocation4 + $0x1f8] sm:$0xff] %v2314
        %2351 = vst [vmem:[#allocation4 + $0x240] sm:$0xff] %v2315
        %2352 = vst [vmem:[#allocation4 + $0x288] sm:$0xff] %v2316
        %2353 = vst [vmem:[#allocation4 + $0x2d0] sm:$0xff] %v2317
        %2354 = vst [vmem:[#allocation4 + $0x318] sm:$0xff] %v2318
        %2355 = vst [vmem:[#allocation4 + $0x360] sm:$0xff] %v2319
        %2356 = vst [vmem:[#allocation4 + $0x3a8] sm:$0xff] %v2320
        %2357 = vst [vmem:[#allocation4 + $0x3f0] sm:$0xff] %v2321
        %2358 = vst [vmem:[#allocation4 + $0x438] sm:$0xff] %v2322
        %2359 = vst [vmem:[#allocation4 + $0x480] sm:$0xff] %v2323
        %2360 = vst [vmem:[#allocation4 + $0x4c8] sm:$0xff] %v2324
        %2361 = vst [vmem:[#allocation4 + $0x510] sm:$0xff] %v2325
        %2362 = vst [vmem:[#allocation4 + $0x558] sm:$0xff] %v2326
        %2363 = vst [vmem:[#allocation4 + $0x5a0] sm:$0xff] %v2327
        %2364 = vst [vmem:[#allocation4 + $0x5e8] sm:$0xff] %v2328
        %2365 = vst [vmem:[#allocation4 + $0x630] sm:$0xff] %v2329
        %2366 = vst [vmem:[#allocation4 + $0x678] sm:$0xff] %v2330
        %2367 = vst [vmem:[#allocation4 + $0x6c0] sm:$0xff] %v2331
        %2368 = vst [vmem:[#allocation4 + $0x708] sm:$0xff] %v2332
        %2369 = vst [vmem:[#allocation4 + $0x750] sm:$0xff] %v2333
        %2370 = vst [vmem:[#allocation4 + $0x798] sm:$0xff] %v2334
        %2371 = vst [vmem:[#allocation4 + $0x7e0] sm:$0xff] %v2335
        %2372 = vst [vmem:[#allocation4 + $0x828] sm:$0xff] %v2336
        %2373 = vst [vmem:[#allocation4 + $0x870] sm:$0xff] %v2337
        %2374 = vst [vmem:[#allocation4 + $0x8b8] sm:$0xff] %v2338
        %2375 = vst [vmem:[#allocation4 + $0x8] sm:$0xff] %v2309
        %2376 = vst [vmem:[#allocation4 + $0x50] sm:$0xff] %v2310
        %2377 = vst [vmem:[#allocation4 + $0x98] sm:$0xff] %v2311
        %2378 = vst [vmem:[#allocation4 + $0xe0] sm:$0xff] %v2312
        %2379 = vst [vmem:[#allocation4 + $0x128] sm:$0xff] %v2313
        %2380 = vst [vmem:[#allocation4 + $0x170] sm:$0xff] %v2314
        %2381 = vst [vmem:[#allocation4 + $0x1b8] sm:$0xff] %v2315
        %2382 = vst [vmem:[#allocation4 + $0x200] sm:$0xff] %v2316
        %2383 = vst [vmem:[#allocation4 + $0x248] sm:$0xff] %v2317
        %2384 = vst [vmem:[#allocation4 + $0x290] sm:$0xff] %v2318
        %2385 = vst [vmem:[#allocation4 + $0x2d8] sm:$0xff] %v2319
        %2386 = vst [vmem:[#allocation4 + $0x320] sm:$0xff] %v2320
        %2387 = vst [vmem:[#allocation4 + $0x368] sm:$0xff] %v2321
        %2388 = vst [vmem:[#allocation4 + $0x3b0] sm:$0xff] %v2322
        %2389 = vst [vmem:[#allocation4 + $0x3f8] sm:$0xff] %v2323
        %2390 = vst [vmem:[#allocation4 + $0x440] sm:$0xff] %v2324
        %2391 = vst [vmem:[#allocation4 + $0x488] sm:$0xff] %v2325
        %2392 = vst [vmem:[#allocation4 + $0x4d0] sm:$0xff] %v2326
        %2393 = vst [vmem:[#allocation4 + $0x518] sm:$0xff] %v2327
        %2394 = vst [vmem:[#allocation4 + $0x560] sm:$0xff] %v2328
        %2395 = vst [vmem:[#allocation4 + $0x5a8] sm:$0xff] %v2329
        %2396 = vst [vmem:[#allocation4 + $0x5f0] sm:$0xff] %v2330
        %2397 = vst [vmem:[#allocation4 + $0x638] sm:$0xff] %v2331
        %2398 = vst [vmem:[#allocation4 + $0x680] sm:$0xff] %v2332
        %2399 = vst [vmem:[#allocation4 + $0x6c8] sm:$0xff] %v2333
        %2400 = vst [vmem:[#allocation4 + $0x710] sm:$0xff] %v2334
        %2401 = vst [vmem:[#allocation4 + $0x758] sm:$0xff] %v2335
        %2402 = vst [vmem:[#allocation4 + $0x7a0] sm:$0xff] %v2336
        %2403 = vst [vmem:[#allocation4 + $0x7e8] sm:$0xff] %v2337
        %2404 = vst [vmem:[#allocation4 + $0x830] sm:$0xff] %v2338
        %2405 = vst [vmem:[#allocation4 + $0x878] sm:$0xff] %v2339
        %2406 = vst [vmem:[#allocation4 + $0x8c0] sm:$0xff] %v2340
        %2407 = vst [vmem:[#allocation4 + $0x10] sm:$0xff] %v2311
        %2408 = vst [vmem:[#allocation4 + $0x58] sm:$0xff] %v2312
        %2409 = vst [vmem:[#allocation4 + $0xa0] sm:$0xff] %v2313
        %2410 = vst [vmem:[#allocation4 + $0xe8] sm:$0xff] %v2314
        %2411 = vst [vmem:[#allocation4 + $0x130] sm:$0xff] %v2315
        %2412 = vst [vmem:[#allocation4 + $0x178] sm:$0xff] %v2316
        %2413 = vst [vmem:[#allocation4 + $0x1c0] sm:$0xff] %v2317
        %2414 = vst [vmem:[#allocation4 + $0x208] sm:$0xff] %v2318
        %2415 = vst [vmem:[#allocation4 + $0x250] sm:$0xff] %v2319
        %2416 = vst [vmem:[#allocation4 + $0x298] sm:$0xff] %v2320
        %2417 = vst [vmem:[#allocation4 + $0x2e0] sm:$0xff] %v2321
        %2418 = vst [vmem:[#allocation4 + $0x328] sm:$0xff] %v2322
        %2419 = vst [vmem:[#allocation4 + $0x370] sm:$0xff] %v2323
        %2420 = vst [vmem:[#allocation4 + $0x3b8] sm:$0xff] %v2324
        %2421 = vst [vmem:[#allocation4 + $0x400] sm:$0xff] %v2325
        %2422 = vst [vmem:[#allocation4 + $0x448] sm:$0xff] %v2326
        %2423 = vst [vmem:[#allocation4 + $0x490] sm:$0xff] %v2327
        %2424 = vst [vmem:[#allocation4 + $0x4d8] sm:$0xff] %v2328
        %2425 = vst [vmem:[#allocation4 + $0x520] sm:$0xff] %v2329
        %2426 = vst [vmem:[#allocation4 + $0x568] sm:$0xff] %v2330
        %2427 = vst [vmem:[#allocation4 + $0x5b0] sm:$0xff] %v2331
        %2428 = vst [vmem:[#allocation4 + $0x5f8] sm:$0xff] %v2332
        %2429 = vst [vmem:[#allocation4 + $0x640] sm:$0xff] %v2333
        %2430 = vst [vmem:[#allocation4 + $0x688] sm:$0xff] %v2334
        %2431 = vst [vmem:[#allocation4 + $0x6d0] sm:$0xff] %v2335
        %2432 = vst [vmem:[#allocation4 + $0x718] sm:$0xff] %v2336
        %2433 = vst [vmem:[#allocation4 + $0x760] sm:$0xff] %v2337
        %2434 = vst [vmem:[#allocation4 + $0x7a8] sm:$0xff] %v2338
        %2435 = vst [vmem:[#allocation4 + $0x7f0] sm:$0xff] %v2339
        %2436 = vst [vmem:[#allocation4 + $0x838] sm:$0xff] %v2340
        %2437 = vst [vmem:[#allocation4 + $0x880] sm:$0xff] %v2341
        %2438 = vst [vmem:[#allocation4 + $0x8c8] sm:$0xff] %v2342
        %v2439 = vld [vmem:[#allocation3 + $0x1] sm:$0xff]
        %v2440 = vld [vmem:[#allocation3 + $0x9] sm:$0xff]
        %v2441 = vld [vmem:[#allocation3 + $0x19] sm:$0xff]
        %v2442 = vld [vmem:[#allocation3 + $0x21] sm:$0xff]
        %v2443 = vld [vmem:[#allocation3 + $0x31] sm:$0xff]
        %v2444 = vld [vmem:[#allocation3 + $0x39] sm:$0xff]
        %v2445 = vld [vmem:[#allocation3 + $0x49] sm:$0xff]
        %v2446 = vld [vmem:[#allocation3 + $0x51] sm:$0xff]
        %v2447 = vld [vmem:[#allocation3 + $0x61] sm:$0xff]
        %v2448 = vld [vmem:[#allocation3 + $0x69] sm:$0xff]
        %v2449 = vld [vmem:[#allocation3 + $0x79] sm:$0xff]
        %v2450 = vld [vmem:[#allocation3 + $0x81] sm:$0xff]
        %v2451 = vld [vmem:[#allocation3 + $0x91] sm:$0xff]
        %v2452 = vld [vmem:[#allocation3 + $0x99] sm:$0xff]
        %v2453 = vld [vmem:[#allocation3 + $0xa9] sm:$0xff]
        %v2454 = vld [vmem:[#allocation3 + $0xb1] sm:$0xff]
        %v2455 = vld [vmem:[#allocation3 + $0xc1] sm:$0xff]
        %v2456 = vld [vmem:[#allocation3 + $0xc9] sm:$0xff]
        %v2457 = vld [vmem:[#allocation3 + $0xd9] sm:$0xff]
        %v2458 = vld [vmem:[#allocation3 + $0xe1] sm:$0xff]
        %v2459 = vld [vmem:[#allocation3 + $0xf1] sm:$0xff]
        %v2460 = vld [vmem:[#allocation3 + $0xf9] sm:$0xff]
        %v2461 = vld [vmem:[#allocation3 + $0x109] sm:$0xff]
        %v2462 = vld [vmem:[#allocation3 + $0x111] sm:$0xff]
        %v2463 = vld [vmem:[#allocation3 + $0x121] sm:$0xff]
        %v2464 = vld [vmem:[#allocation3 + $0x129] sm:$0xff]
        %v2465 = vld [vmem:[#allocation3 + $0x139] sm:$0xff]
        %v2466 = vld [vmem:[#allocation3 + $0x141] sm:$0xff]
        %v2467 = vld [vmem:[#allocation3 + $0x151] sm:$0xff]
        %v2468 = vld [vmem:[#allocation3 + $0x159] sm:$0xff]
        %v2469 = vld [vmem:[#allocation3 + $0x169] sm:$0xff]
        %v2470 = vld [vmem:[#allocation3 + $0x171] sm:$0xff]
        %v2471 = vld [vmem:[#allocation3 + $0x181] sm:$0xff]
        %v2472 = vld [vmem:[#allocation3 + $0x189] sm:$0xff]
        %v2473 = vld [vmem:[#allocation3 + $0x199] sm:$0xff]
        %v2474 = vld [vmem:[#allocation3 + $0x1a1] sm:$0xff]
        %2475 = vst [vmem:[#allocation4 + $0x18] sm:$0xff] %v2439
        %2476 = vst [vmem:[#allocation4 + $0x60] sm:$0xff] %v2440
        %2477 = vst [vmem:[#allocation4 + $0xa8] sm:$0xff] %v2441
        %2478 = vst [vmem:[#allocation4 + $0xf0] sm:$0xff] %v2442
        %2479 = vst [vmem:[#allocation4 + $0x138] sm:$0xff] %v2443
        %2480 = vst [vmem:[#allocation4 + $0x180] sm:$0xff] %v2444
        %2481 = vst [vmem:[#allocation4 + $0x1c8] sm:$0xff] %v2445
        %2482 = vst [vmem:[#allocation4 + $0x210] sm:$0xff] %v2446
        %2483 = vst [vmem:[#allocation4 + $0x258] sm:$0xff] %v2447
        %2484 = vst [vmem:[#allocation4 + $0x2a0] sm:$0xff] %v2448
        %2485 = vst [vmem:[#allocation4 + $0x2e8] sm:$0xff] %v2449
        %2486 = vst [vmem:[#allocation4 + $0x330] sm:$0xff] %v2450
        %2487 = vst [vmem:[#allocation4 + $0x378] sm:$0xff] %v2451
        %2488 = vst [vmem:[#allocation4 + $0x3c0] sm:$0xff] %v2452
        %2489 = vst [vmem:[#allocation4 + $0x408] sm:$0xff] %v2453
        %2490 = vst [vmem:[#allocation4 + $0x450] sm:$0xff] %v2454
        %2491 = vst [vmem:[#allocation4 + $0x498] sm:$0xff] %v2455
        %2492 = vst [vmem:[#allocation4 + $0x4e0] sm:$0xff] %v2456
        %2493 = vst [vmem:[#allocation4 + $0x528] sm:$0xff] %v2457
        %2494 = vst [vmem:[#allocation4 + $0x570] sm:$0xff] %v2458
        %2495 = vst [vmem:[#allocation4 + $0x5b8] sm:$0xff] %v2459
        %2496 = vst [vmem:[#allocation4 + $0x600] sm:$0xff] %v2460
        %2497 = vst [vmem:[#allocation4 + $0x648] sm:$0xff] %v2461
        %2498 = vst [vmem:[#allocation4 + $0x690] sm:$0xff] %v2462
        %2499 = vst [vmem:[#allocation4 + $0x6d8] sm:$0xff] %v2463
        %2500 = vst [vmem:[#allocation4 + $0x720] sm:$0xff] %v2464
        %2501 = vst [vmem:[#allocation4 + $0x768] sm:$0xff] %v2465
        %2502 = vst [vmem:[#allocation4 + $0x7b0] sm:$0xff] %v2466
        %2503 = vst [vmem:[#allocation4 + $0x7f8] sm:$0xff] %v2467
        %2504 = vst [vmem:[#allocation4 + $0x840] sm:$0xff] %v2468
        %2505 = vst [vmem:[#allocation4 + $0x888] sm:$0xff] %v2469
        %2506 = vst [vmem:[#allocation4 + $0x8d0] sm:$0xff] %v2470
        %2507 = vst [vmem:[#allocation4 + $0x20] sm:$0xff] %v2441
        %2508 = vst [vmem:[#allocation4 + $0x68] sm:$0xff] %v2442
        %2509 = vst [vmem:[#allocation4 + $0xb0] sm:$0xff] %v2443
        %2510 = vst [vmem:[#allocation4 + $0xf8] sm:$0xff] %v2444
        %2511 = vst [vmem:[#allocation4 + $0x140] sm:$0xff] %v2445
        %2512 = vst [vmem:[#allocation4 + $0x188] sm:$0xff] %v2446
        %2513 = vst [vmem:[#allocation4 + $0x1d0] sm:$0xff] %v2447
        %2514 = vst [vmem:[#allocation4 + $0x218] sm:$0xff] %v2448
        %2515 = vst [vmem:[#allocation4 + $0x260] sm:$0xff] %v2449
        %2516 = vst [vmem:[#allocation4 + $0x2a8] sm:$0xff] %v2450
        %2517 = vst [vmem:[#allocation4 + $0x2f0] sm:$0xff] %v2451
        %2518 = vst [vmem:[#allocation4 + $0x338] sm:$0xff] %v2452
        %2519 = vst [vmem:[#allocation4 + $0x380] sm:$0xff] %v2453
        %2520 = vst [vmem:[#allocation4 + $0x3c8] sm:$0xff] %v2454
        %2521 = vst [vmem:[#allocation4 + $0x410] sm:$0xff] %v2455
        %2522 = vst [vmem:[#allocation4 + $0x458] sm:$0xff] %v2456
        %2523 = vst [vmem:[#allocation4 + $0x4a0] sm:$0xff] %v2457
        %2524 = vst [vmem:[#allocation4 + $0x4e8] sm:$0xff] %v2458
        %2525 = vst [vmem:[#allocation4 + $0x530] sm:$0xff] %v2459
        %2526 = vst [vmem:[#allocation4 + $0x578] sm:$0xff] %v2460
        %2527 = vst [vmem:[#allocation4 + $0x5c0] sm:$0xff] %v2461
        %2528 = vst [vmem:[#allocation4 + $0x608] sm:$0xff] %v2462
        %2529 = vst [vmem:[#allocation4 + $0x650] sm:$0xff] %v2463
        %2530 = vst [vmem:[#allocation4 + $0x698] sm:$0xff] %v2464
        %2531 = vst [vmem:[#allocation4 + $0x6e0] sm:$0xff] %v2465
        %2532 = vst [vmem:[#allocation4 + $0x728] sm:$0xff] %v2466
        %2533 = vst [vmem:[#allocation4 + $0x770] sm:$0xff] %v2467
        %2534 = vst [vmem:[#allocation4 + $0x7b8] sm:$0xff] %v2468
        %2535 = vst [vmem:[#allocation4 + $0x800] sm:$0xff] %v2469
        %2536 = vst [vmem:[#allocation4 + $0x848] sm:$0xff] %v2470
        %2537 = vst [vmem:[#allocation4 + $0x890] sm:$0xff] %v2471
        %2538 = vst [vmem:[#allocation4 + $0x8d8] sm:$0xff] %v2472
        %2539 = vst [vmem:[#allocation4 + $0x28] sm:$0xff] %v2443
        %2540 = vst [vmem:[#allocation4 + $0x70] sm:$0xff] %v2444
        %2541 = vst [vmem:[#allocation4 + $0xb8] sm:$0xff] %v2445
        %2542 = vst [vmem:[#allocation4 + $0x100] sm:$0xff] %v2446
        %2543 = vst [vmem:[#allocation4 + $0x148] sm:$0xff] %v2447
        %2544 = vst [vmem:[#allocation4 + $0x190] sm:$0xff] %v2448
        %2545 = vst [vmem:[#allocation4 + $0x1d8] sm:$0xff] %v2449
        %2546 = vst [vmem:[#allocation4 + $0x220] sm:$0xff] %v2450
        %2547 = vst [vmem:[#allocation4 + $0x268] sm:$0xff] %v2451
        %2548 = vst [vmem:[#allocation4 + $0x2b0] sm:$0xff] %v2452
        %2549 = vst [vmem:[#allocation4 + $0x2f8] sm:$0xff] %v2453
        %2550 = vst [vmem:[#allocation4 + $0x340] sm:$0xff] %v2454
        %2551 = vst [vmem:[#allocation4 + $0x388] sm:$0xff] %v2455
        %2552 = vst [vmem:[#allocation4 + $0x3d0] sm:$0xff] %v2456
        %2553 = vst [vmem:[#allocation4 + $0x418] sm:$0xff] %v2457
        %2554 = vst [vmem:[#allocation4 + $0x460] sm:$0xff] %v2458
        %2555 = vst [vmem:[#allocation4 + $0x4a8] sm:$0xff] %v2459
        %2556 = vst [vmem:[#allocation4 + $0x4f0] sm:$0xff] %v2460
        %2557 = vst [vmem:[#allocation4 + $0x538] sm:$0xff] %v2461
        %2558 = vst [vmem:[#allocation4 + $0x580] sm:$0xff] %v2462
        %2559 = vst [vmem:[#allocation4 + $0x5c8] sm:$0xff] %v2463
        %2560 = vst [vmem:[#allocation4 + $0x610] sm:$0xff] %v2464
        %2561 = vst [vmem:[#allocation4 + $0x658] sm:$0xff] %v2465
        %2562 = vst [vmem:[#allocation4 + $0x6a0] sm:$0xff] %v2466
        %2563 = vst [vmem:[#allocation4 + $0x6e8] sm:$0xff] %v2467
        %2564 = vst [vmem:[#allocation4 + $0x730] sm:$0xff] %v2468
        %2565 = vst [vmem:[#allocation4 + $0x778] sm:$0xff] %v2469
        %2566 = vst [vmem:[#allocation4 + $0x7c0] sm:$0xff] %v2470
        %2567 = vst [vmem:[#allocation4 + $0x808] sm:$0xff] %v2471
        %2568 = vst [vmem:[#allocation4 + $0x850] sm:$0xff] %v2472
        %2569 = vst [vmem:[#allocation4 + $0x898] sm:$0xff] %v2473
        %2570 = vst [vmem:[#allocation4 + $0x8e0] sm:$0xff] %v2474
        %v2571 = vld [vmem:[#allocation3 + $0x2] sm:$0xff]
        %v2572 = vld [vmem:[#allocation3 + $0xa] sm:$0xff]
        %v2573 = vld [vmem:[#allocation3 + $0x1a] sm:$0xff]
        %v2574 = vld [vmem:[#allocation3 + $0x22] sm:$0xff]
        %v2575 = vld [vmem:[#allocation3 + $0x32] sm:$0xff]
        %v2576 = vld [vmem:[#allocation3 + $0x3a] sm:$0xff]
        %v2577 = vld [vmem:[#allocation3 + $0x4a] sm:$0xff]
        %v2578 = vld [vmem:[#allocation3 + $0x52] sm:$0xff]
        %v2579 = vld [vmem:[#allocation3 + $0x62] sm:$0xff]
        %v2580 = vld [vmem:[#allocation3 + $0x6a] sm:$0xff]
        %v2581 = vld [vmem:[#allocation3 + $0x7a] sm:$0xff]
        %v2582 = vld [vmem:[#allocation3 + $0x82] sm:$0xff]
        %v2583 = vld [vmem:[#allocation3 + $0x92] sm:$0xff]
        %v2584 = vld [vmem:[#allocation3 + $0x9a] sm:$0xff]
        %v2585 = vld [vmem:[#allocation3 + $0xaa] sm:$0xff]
        %v2586 = vld [vmem:[#allocation3 + $0xb2] sm:$0xff]
        %v2587 = vld [vmem:[#allocation3 + $0xc2] sm:$0xff]
        %v2588 = vld [vmem:[#allocation3 + $0xca] sm:$0xff]
        %v2589 = vld [vmem:[#allocation3 + $0xda] sm:$0xff]
        %v2590 = vld [vmem:[#allocation3 + $0xe2] sm:$0xff]
        %v2591 = vld [vmem:[#allocation3 + $0xf2] sm:$0xff]
        %v2592 = vld [vmem:[#allocation3 + $0xfa] sm:$0xff]
        %v2593 = vld [vmem:[#allocation3 + $0x10a] sm:$0xff]
        %v2594 = vld [vmem:[#allocation3 + $0x112] sm:$0xff]
        %v2595 = vld [vmem:[#allocation3 + $0x122] sm:$0xff]
        %v2596 = vld [vmem:[#allocation3 + $0x12a] sm:$0xff]
        %v2597 = vld [vmem:[#allocation3 + $0x13a] sm:$0xff]
        %v2598 = vld [vmem:[#allocation3 + $0x142] sm:$0xff]
        %v2599 = vld [vmem:[#allocation3 + $0x152] sm:$0xff]
        %v2600 = vld [vmem:[#allocation3 + $0x15a] sm:$0xff]
        %v2601 = vld [vmem:[#allocation3 + $0x16a] sm:$0xff]
        %v2602 = vld [vmem:[#allocation3 + $0x172] sm:$0xff]
        %v2603 = vld [vmem:[#allocation3 + $0x182] sm:$0xff]
        %v2604 = vld [vmem:[#allocation3 + $0x18a] sm:$0xff]
        %v2605 = vld [vmem:[#allocation3 + $0x19a] sm:$0xff]
        %v2606 = vld [vmem:[#allocation3 + $0x1a2] sm:$0xff]
        %2607 = vst [vmem:[#allocation4 + $0x30] sm:$0xff] %v2571
        %2608 = vst [vmem:[#allocation4 + $0x78] sm:$0xff] %v2572
        %2609 = vst [vmem:[#allocation4 + $0xc0] sm:$0xff] %v2573
        %2610 = vst [vmem:[#allocation4 + $0x108] sm:$0xff] %v2574
        %2611 = vst [vmem:[#allocation4 + $0x150] sm:$0xff] %v2575
        %2612 = vst [vmem:[#allocation4 + $0x198] sm:$0xff] %v2576
        %2613 = vst [vmem:[#allocation4 + $0x1e0] sm:$0xff] %v2577
        %2614 = vst [vmem:[#allocation4 + $0x228] sm:$0xff] %v2578
        %2615 = vst [vmem:[#allocation4 + $0x270] sm:$0xff] %v2579
        %2616 = vst [vmem:[#allocation4 + $0x2b8] sm:$0xff] %v2580
        %2617 = vst [vmem:[#allocation4 + $0x300] sm:$0xff] %v2581
        %2618 = vst [vmem:[#allocation4 + $0x348] sm:$0xff] %v2582
        %2619 = vst [vmem:[#allocation4 + $0x390] sm:$0xff] %v2583
        %2620 = vst [vmem:[#allocation4 + $0x3d8] sm:$0xff] %v2584
        %2621 = vst [vmem:[#allocation4 + $0x420] sm:$0xff] %v2585
        %2622 = vst [vmem:[#allocation4 + $0x468] sm:$0xff] %v2586
        %2623 = vst [vmem:[#allocation4 + $0x4b0] sm:$0xff] %v2587
        %2624 = vst [vmem:[#allocation4 + $0x4f8] sm:$0xff] %v2588
        %2625 = vst [vmem:[#allocation4 + $0x540] sm:$0xff] %v2589
        %2626 = vst [vmem:[#allocation4 + $0x588] sm:$0xff] %v2590
        %2627 = vst [vmem:[#allocation4 + $0x5d0] sm:$0xff] %v2591
        %2628 = vst [vmem:[#allocation4 + $0x618] sm:$0xff] %v2592
        %2629 = vst [vmem:[#allocation4 + $0x660] sm:$0xff] %v2593
        %2630 = vst [vmem:[#allocation4 + $0x6a8] sm:$0xff] %v2594
        %2631 = vst [vmem:[#allocation4 + $0x6f0] sm:$0xff] %v2595
        %2632 = vst [vmem:[#allocation4 + $0x738] sm:$0xff] %v2596
        %2633 = vst [vmem:[#allocation4 + $0x780] sm:$0xff] %v2597
        %2634 = vst [vmem:[#allocation4 + $0x7c8] sm:$0xff] %v2598
        %2635 = vst [vmem:[#allocation4 + $0x810] sm:$0xff] %v2599
        %2636 = vst [vmem:[#allocation4 + $0x858] sm:$0xff] %v2600
        %2637 = vst [vmem:[#allocation4 + $0x8a0] sm:$0xff] %v2601
        %2638 = vst [vmem:[#allocation4 + $0x8e8] sm:$0xff] %v2602
        %2639 = vst [vmem:[#allocation4 + $0x38] sm:$0xff] %v2573
        %2640 = vst [vmem:[#allocation4 + $0x80] sm:$0xff] %v2574
        %2641 = vst [vmem:[#allocation4 + $0xc8] sm:$0xff] %v2575
        %2642 = vst [vmem:[#allocation4 + $0x110] sm:$0xff] %v2576
        %2643 = vst [vmem:[#allocation4 + $0x158] sm:$0xff] %v2577
        %2644 = vst [vmem:[#allocation4 + $0x1a0] sm:$0xff] %v2578
        %2645 = vst [vmem:[#allocation4 + $0x1e8] sm:$0xff] %v2579
        %2646 = vst [vmem:[#allocation4 + $0x230] sm:$0xff] %v2580
        %2647 = vst [vmem:[#allocation4 + $0x278] sm:$0xff] %v2581
        %2648 = vst [vmem:[#allocation4 + $0x2c0] sm:$0xff] %v2582
        %2649 = vst [vmem:[#allocation4 + $0x308] sm:$0xff] %v2583
        %2650 = vst [vmem:[#allocation4 + $0x350] sm:$0xff] %v2584
        %2651 = vst [vmem:[#allocation4 + $0x398] sm:$0xff] %v2585
        %2652 = vst [vmem:[#allocation4 + $0x3e0] sm:$0xff] %v2586
        %2653 = vst [vmem:[#allocation4 + $0x428] sm:$0xff] %v2587
        %2654 = vst [vmem:[#allocation4 + $0x470] sm:$0xff] %v2588
        %2655 = vst [vmem:[#allocation4 + $0x4b8] sm:$0xff] %v2589
        %2656 = vst [vmem:[#allocation4 + $0x500] sm:$0xff] %v2590
        %2657 = vst [vmem:[#allocation4 + $0x548] sm:$0xff] %v2591
        %2658 = vst [vmem:[#allocation4 + $0x590] sm:$0xff] %v2592
        %2659 = vst [vmem:[#allocation4 + $0x5d8] sm:$0xff] %v2593
        %2660 = vst [vmem:[#allocation4 + $0x620] sm:$0xff] %v2594
        %2661 = vst [vmem:[#allocation4 + $0x668] sm:$0xff] %v2595
        %2662 = vst [vmem:[#allocation4 + $0x6b0] sm:$0xff] %v2596
        %2663 = vst [vmem:[#allocation4 + $0x6f8] sm:$0xff] %v2597
        %2664 = vst [vmem:[#allocation4 + $0x740] sm:$0xff] %v2598
        %2665 = vst [vmem:[#allocation4 + $0x788] sm:$0xff] %v2599
        %2666 = vst [vmem:[#allocation4 + $0x7d0] sm:$0xff] %v2600
        %2667 = vst [vmem:[#allocation4 + $0x818] sm:$0xff] %v2601
        %2668 = vst [vmem:[#allocation4 + $0x860] sm:$0xff] %v2602
        %2669 = vst [vmem:[#allocation4 + $0x8a8] sm:$0xff] %v2603
        %2670 = vst [vmem:[#allocation4 + $0x8f0] sm:$0xff] %v2604
        %2671 = vst [vmem:[#allocation4 + $0x40] sm:$0xff] %v2575
        %2672 = vst [vmem:[#allocation4 + $0x88] sm:$0xff] %v2576
        %2673 = vst [vmem:[#allocation4 + $0xd0] sm:$0xff] %v2577
        %2674 = vst [vmem:[#allocation4 + $0x118] sm:$0xff] %v2578
        %2675 = vst [vmem:[#allocation4 + $0x160] sm:$0xff] %v2579
        %2676 = vst [vmem:[#allocation4 + $0x1a8] sm:$0xff] %v2580
        %2677 = vst [vmem:[#allocation4 + $0x1f0] sm:$0xff] %v2581
        %2678 = vst [vmem:[#allocation4 + $0x238] sm:$0xff] %v2582
        %2679 = vst [vmem:[#allocation4 + $0x280] sm:$0xff] %v2583
        %2680 = vst [vmem:[#allocation4 + $0x2c8] sm:$0xff] %v2584
        %2681 = vst [vmem:[#allocation4 + $0x310] sm:$0xff] %v2585
        %2682 = vst [vmem:[#allocation4 + $0x358] sm:$0xff] %v2586
        %2683 = vst [vmem:[#allocation4 + $0x3a0] sm:$0xff] %v2587
        %2684 = vst [vmem:[#allocation4 + $0x3e8] sm:$0xff] %v2588
        %2685 = vst [vmem:[#allocation4 + $0x430] sm:$0xff] %v2589
        %2686 = vst [vmem:[#allocation4 + $0x478] sm:$0xff] %v2590
        %2687 = vst [vmem:[#allocation4 + $0x4c0] sm:$0xff] %v2591
        %2688 = vst [vmem:[#allocation4 + $0x508] sm:$0xff] %v2592
        %2689 = vst [vmem:[#allocation4 + $0x550] sm:$0xff] %v2593
        %2690 = vst [vmem:[#allocation4 + $0x598] sm:$0xff] %v2594
        %2691 = vst [vmem:[#allocation4 + $0x5e0] sm:$0xff] %v2595
        %2692 = vst [vmem:[#allocation4 + $0x628] sm:$0xff] %v2596
        %2693 = vst [vmem:[#allocation4 + $0x670] sm:$0xff] %v2597
        %2694 = vst [vmem:[#allocation4 + $0x6b8] sm:$0xff] %v2598
        %2695 = vst [vmem:[#allocation4 + $0x700] sm:$0xff] %v2599
        %2696 = vst [vmem:[#allocation4 + $0x748] sm:$0xff] %v2600
        %2697 = vst [vmem:[#allocation4 + $0x790] sm:$0xff] %v2601
        %2698 = vst [vmem:[#allocation4 + $0x7d8] sm:$0xff] %v2602
        %2699 = vst [vmem:[#allocation4 + $0x820] sm:$0xff] %v2603
        %2700 = vst [vmem:[#allocation4 + $0x868] sm:$0xff] %v2604
        %2701 = vst [vmem:[#allocation4 + $0x8b0] sm:$0xff] %v2605
        %2702 = vst [vmem:[#allocation4 + $0x8f8] sm:$0xff] %v2606
        %v2703 = vld [vmem:[#allocation4] sm:$0xff]
        %v2704 = vld [vmem:[#allocation4 + $0x8] sm:$0xff]
        %v2705 = vld [vmem:[#allocation4 + $0x10] sm:$0xff]
        %v2706 = vld [vmem:[#allocation4 + $0x18] sm:$0xff]
        %v2707 = vld [vmem:[#allocation4 + $0x20] sm:$0xff]
        %v2708 = vld [vmem:[#allocation4 + $0x28] sm:$0xff]
        %v2709 = vld [vmem:[#allocation4 + $0x30] sm:$0xff]
        %v2710 = vld [vmem:[#allocation4 + $0x38] sm:$0xff]
        %v2711 = vld [vmem:[#allocation4 + $0x40] sm:$0xff]
        %v2712 = vld [vmem:[#allocation4 + $0x48] sm:$0xff]
        %v2713 = vld [vmem:[#allocation4 + $0x50] sm:$0xff]
        %v2714 = vld [vmem:[#allocation4 + $0x58] sm:$0xff]
        %v2715 = vld [vmem:[#allocation4 + $0x60] sm:$0xff]
        %v2716 = vld [vmem:[#allocation4 + $0x68] sm:$0xff]
        %v2717 = vld [vmem:[#allocation4 + $0x70] sm:$0xff]
        %v2718 = vld [vmem:[#allocation4 + $0x78] sm:$0xff]
        %v2719 = vld [vmem:[#allocation4 + $0x80] sm:$0xff]
        %v2720 = vld [vmem:[#allocation4 + $0x88] sm:$0xff]
        %v2721 = vld [vmem:[#allocation4 + $0x90] sm:$0xff]
        %v2722 = vld [vmem:[#allocation4 + $0x98] sm:$0xff]
        %v2723 = vld [vmem:[#allocation4 + $0xa0] sm:$0xff]
        %v2724 = vld [vmem:[#allocation4 + $0xa8] sm:$0xff]
        %v2725 = vld [vmem:[#allocation4 + $0xb0] sm:$0xff]
        %v2726 = vld [vmem:[#allocation4 + $0xb8] sm:$0xff]
        %v2727 = vld [vmem:[#allocation4 + $0xc0] sm:$0xff]
        %v2728 = vld [vmem:[#allocation4 + $0xc8] sm:$0xff]
        %v2729 = vld [vmem:[#allocation4 + $0xd0] sm:$0xff]
        %v2730 = vld [vmem:[#allocation4 + $0xd8] sm:$0xff]
        %v2731 = vld [vmem:[#allocation4 + $0xe0] sm:$0xff]
        %v2732 = vld [vmem:[#allocation4 + $0xe8] sm:$0xff]
        %v2733 = vld [vmem:[#allocation4 + $0xf0] sm:$0xff]
        %v2734 = vld [vmem:[#allocation4 + $0xf8] sm:$0xff]
        %v2735 = vld [vmem:[#allocation4 + $0x100] sm:$0xff]
        %v2736 = vld [vmem:[#allocation4 + $0x108] sm:$0xff]
        %v2737 = vld [vmem:[#allocation4 + $0x110] sm:$0xff]
        %v2738 = vld [vmem:[#allocation4 + $0x118] sm:$0xff]
        %v2739 = vld [vmem:[#allocation4 + $0x120] sm:$0xff]
        %v2740 = vld [vmem:[#allocation4 + $0x128] sm:$0xff]
        %v2741 = vld [vmem:[#allocation4 + $0x130] sm:$0xff]
        %v2742 = vld [vmem:[#allocation4 + $0x138] sm:$0xff]
        %v2743 = vld [vmem:[#allocation4 + $0x140] sm:$0xff]
        %v2744 = vld [vmem:[#allocation4 + $0x148] sm:$0xff]
        %v2745 = vld [vmem:[#allocation4 + $0x150] sm:$0xff]
        %v2746 = vld [vmem:[#allocation4 + $0x158] sm:$0xff]
        %v2747 = vld [vmem:[#allocation4 + $0x160] sm:$0xff]
        %v2748 = vld [vmem:[#allocation4 + $0x168] sm:$0xff]
        %v2749 = vld [vmem:[#allocation4 + $0x170] sm:$0xff]
        %v2750 = vld [vmem:[#allocation4 + $0x178] sm:$0xff]
        %v2751 = vld [vmem:[#allocation4 + $0x180] sm:$0xff]
        %v2752 = vld [vmem:[#allocation4 + $0x188] sm:$0xff]
        %v2753 = vld [vmem:[#allocation4 + $0x190] sm:$0xff]
        %v2754 = vld [vmem:[#allocation4 + $0x198] sm:$0xff]
        %v2755 = vld [vmem:[#allocation4 + $0x1a0] sm:$0xff]
        %v2756 = vld [vmem:[#allocation4 + $0x1a8] sm:$0xff]
        %v2757 = vld [vmem:[#allocation4 + $0x1b0] sm:$0xff]
        %v2758 = vld [vmem:[#allocation4 + $0x1b8] sm:$0xff]
        %v2759 = vld [vmem:[#allocation4 + $0x1c0] sm:$0xff]
        %v2760 = vld [vmem:[#allocation4 + $0x1c8] sm:$0xff]
        %v2761 = vld [vmem:[#allocation4 + $0x1d0] sm:$0xff]
        %v2762 = vld [vmem:[#allocation4 + $0x1d8] sm:$0xff]
        %v2763 = vld [vmem:[#allocation4 + $0x1e0] sm:$0xff]
        %v2764 = vld [vmem:[#allocation4 + $0x1e8] sm:$0xff]
        %v2765 = vld [vmem:[#allocation4 + $0x1f0] sm:$0xff]
        %v2766 = vld [vmem:[#allocation4 + $0x1f8] sm:$0xff]
        %v2767 = vld [vmem:[#allocation4 + $0x200] sm:$0xff]
        %v2768 = vld [vmem:[#allocation4 + $0x208] sm:$0xff]
        %v2769 = vld [vmem:[#allocation4 + $0x210] sm:$0xff]
        %v2770 = vld [vmem:[#allocation4 + $0x218] sm:$0xff]
        %v2771 = vld [vmem:[#allocation4 + $0x220] sm:$0xff]
        %v2772 = vld [vmem:[#allocation4 + $0x228] sm:$0xff]
        %v2773 = vld [vmem:[#allocation4 + $0x230] sm:$0xff]
        %v2774 = vld [vmem:[#allocation4 + $0x238] sm:$0xff]
        %v2775 = vld [vmem:[#allocation4 + $0x240] sm:$0xff]
        %v2776 = vld [vmem:[#allocation4 + $0x248] sm:$0xff]
        %v2777 = vld [vmem:[#allocation4 + $0x250] sm:$0xff]
        %v2778 = vld [vmem:[#allocation4 + $0x258] sm:$0xff]
        %v2779 = vld [vmem:[#allocation4 + $0x260] sm:$0xff]
        %v2780 = vld [vmem:[#allocation4 + $0x268] sm:$0xff]
        %v2781 = vld [vmem:[#allocation4 + $0x270] sm:$0xff]
        %v2782 = vld [vmem:[#allocation4 + $0x278] sm:$0xff]
        %v2783 = vld [vmem:[#allocation4 + $0x280] sm:$0xff]
        %v2784 = vld [vmem:[#allocation4 + $0x288] sm:$0xff]
        %v2785 = vld [vmem:[#allocation4 + $0x290] sm:$0xff]
        %v2786 = vld [vmem:[#allocation4 + $0x298] sm:$0xff]
        %v2787 = vld [vmem:[#allocation4 + $0x2a0] sm:$0xff]
        %v2788 = vld [vmem:[#allocation4 + $0x2a8] sm:$0xff]
        %v2789 = vld [vmem:[#allocation4 + $0x2b0] sm:$0xff]
        %v2790 = vld [vmem:[#allocation4 + $0x2b8] sm:$0xff]
        %v2791 = vld [vmem:[#allocation4 + $0x2c0] sm:$0xff]
        %v2792 = vld [vmem:[#allocation4 + $0x2c8] sm:$0xff]
        %v2793 = vld [vmem:[#allocation4 + $0x2d0] sm:$0xff]
        %v2794 = vld [vmem:[#allocation4 + $0x2d8] sm:$0xff]
        %v2795 = vld [vmem:[#allocation4 + $0x2e0] sm:$0xff]
        %v2796 = vld [vmem:[#allocation4 + $0x2e8] sm:$0xff]
        %v2797 = vld [vmem:[#allocation4 + $0x2f0] sm:$0xff]
        %v2798 = vld [vmem:[#allocation4 + $0x2f8] sm:$0xff]
        %v2799 = vld [vmem:[#allocation4 + $0x300] sm:$0xff]
        %v2800 = vld [vmem:[#allocation4 + $0x308] sm:$0xff]
        %v2801 = vld [vmem:[#allocation4 + $0x310] sm:$0xff]
        %v2802 = vld [vmem:[#allocation4 + $0x318] sm:$0xff]
        %v2803 = vld [vmem:[#allocation4 + $0x320] sm:$0xff]
        %v2804 = vld [vmem:[#allocation4 + $0x328] sm:$0xff]
        %v2805 = vld [vmem:[#allocation4 + $0x330] sm:$0xff]
        %v2806 = vld [vmem:[#allocation4 + $0x338] sm:$0xff]
        %v2807 = vld [vmem:[#allocation4 + $0x340] sm:$0xff]
        %v2808 = vld [vmem:[#allocation4 + $0x348] sm:$0xff]
        %v2809 = vld [vmem:[#allocation4 + $0x350] sm:$0xff]
        %v2810 = vld [vmem:[#allocation4 + $0x358] sm:$0xff]
        %v2811 = vld [vmem:[#allocation4 + $0x360] sm:$0xff]
        %v2812 = vld [vmem:[#allocation4 + $0x368] sm:$0xff]
        %v2813 = vld [vmem:[#allocation4 + $0x370] sm:$0xff]
        %v2814 = vld [vmem:[#allocation4 + $0x378] sm:$0xff]
        %v2815 = vld [vmem:[#allocation4 + $0x380] sm:$0xff]
        %v2816 = vld [vmem:[#allocation4 + $0x388] sm:$0xff]
        %v2817 = vld [vmem:[#allocation4 + $0x390] sm:$0xff]
        %v2818 = vld [vmem:[#allocation4 + $0x398] sm:$0xff]
        %v2819 = vld [vmem:[#allocation4 + $0x3a0] sm:$0xff]
        %v2820 = vld [vmem:[#allocation4 + $0x3a8] sm:$0xff]
        %v2821 = vld [vmem:[#allocation4 + $0x3b0] sm:$0xff]
        %v2822 = vld [vmem:[#allocation4 + $0x3b8] sm:$0xff]
        %v2823 = vld [vmem:[#allocation4 + $0x3c0] sm:$0xff]
        %v2824 = vld [vmem:[#allocation4 + $0x3c8] sm:$0xff]
        %v2825 = vld [vmem:[#allocation4 + $0x3d0] sm:$0xff]
        %v2826 = vld [vmem:[#allocation4 + $0x3d8] sm:$0xff]
        %v2827 = vld [vmem:[#allocation4 + $0x3e0] sm:$0xff]
        %v2828 = vld [vmem:[#allocation4 + $0x3e8] sm:$0xff]
        %v2829 = vld [vmem:[#allocation4 + $0x3f0] sm:$0xff]
        %v2830 = vld [vmem:[#allocation4 + $0x3f8] sm:$0xff]
        %v2831 = vld [vmem:[#allocation4 + $0x400] sm:$0xff]
        %v2832 = vld [vmem:[#allocation4 + $0x408] sm:$0xff]
        %v2833 = vld [vmem:[#allocation4 + $0x410] sm:$0xff]
        %v2834 = vld [vmem:[#allocation4 + $0x418] sm:$0xff]
        %v2835 = vld [vmem:[#allocation4 + $0x420] sm:$0xff]
        %v2836 = vld [vmem:[#allocation4 + $0x428] sm:$0xff]
        %v2837 = vld [vmem:[#allocation4 + $0x430] sm:$0xff]
        %v2838 = vld [vmem:[#allocation4 + $0x438] sm:$0xff]
        %v2839 = vld [vmem:[#allocation4 + $0x440] sm:$0xff]
        %v2840 = vld [vmem:[#allocation4 + $0x448] sm:$0xff]
        %v2841 = vld [vmem:[#allocation4 + $0x450] sm:$0xff]
        %v2842 = vld [vmem:[#allocation4 + $0x458] sm:$0xff]
        %v2843 = vld [vmem:[#allocation4 + $0x460] sm:$0xff]
        %v2844 = vld [vmem:[#allocation4 + $0x468] sm:$0xff]
        %v2845 = vld [vmem:[#allocation4 + $0x470] sm:$0xff]
        %v2846 = vld [vmem:[#allocation4 + $0x478] sm:$0xff]
        %v2847 = vld [vmem:[#allocation4 + $0x480] sm:$0xff]
        %v2848 = vld [vmem:[#allocation4 + $0x488] sm:$0xff]
        %v2849 = vld [vmem:[#allocation4 + $0x490] sm:$0xff]
        %v2850 = vld [vmem:[#allocation4 + $0x498] sm:$0xff]
        %v2851 = vld [vmem:[#allocation4 + $0x4a0] sm:$0xff]
        %v2852 = vld [vmem:[#allocation4 + $0x4a8] sm:$0xff]
        %v2853 = vld [vmem:[#allocation4 + $0x4b0] sm:$0xff]
        %v2854 = vld [vmem:[#allocation4 + $0x4b8] sm:$0xff]
        %v2855 = vld [vmem:[#allocation4 + $0x4c0] sm:$0xff]
        %v2856 = vld [vmem:[#allocation4 + $0x4c8] sm:$0xff]
        %v2857 = vld [vmem:[#allocation4 + $0x4d0] sm:$0xff]
        %v2858 = vld [vmem:[#allocation4 + $0x4d8] sm:$0xff]
        %v2859 = vld [vmem:[#allocation4 + $0x4e0] sm:$0xff]
        %v2860 = vld [vmem:[#allocation4 + $0x4e8] sm:$0xff]
        %v2861 = vld [vmem:[#allocation4 + $0x4f0] sm:$0xff]
        %v2862 = vld [vmem:[#allocation4 + $0x4f8] sm:$0xff]
        %v2863 = vld [vmem:[#allocation4 + $0x500] sm:$0xff]
        %v2864 = vld [vmem:[#allocation4 + $0x508] sm:$0xff]
        %v2865 = vld [vmem:[#allocation4 + $0x510] sm:$0xff]
        %v2866 = vld [vmem:[#allocation4 + $0x518] sm:$0xff]
        %v2867 = vld [vmem:[#allocation4 + $0x520] sm:$0xff]
        %v2868 = vld [vmem:[#allocation4 + $0x528] sm:$0xff]
        %v2869 = vld [vmem:[#allocation4 + $0x530] sm:$0xff]
        %v2870 = vld [vmem:[#allocation4 + $0x538] sm:$0xff]
        %v2871 = vld [vmem:[#allocation4 + $0x540] sm:$0xff]
        %v2872 = vld [vmem:[#allocation4 + $0x548] sm:$0xff]
        %v2873 = vld [vmem:[#allocation4 + $0x550] sm:$0xff]
        %v2874 = vld [vmem:[#allocation4 + $0x558] sm:$0xff]
        %v2875 = vld [vmem:[#allocation4 + $0x560] sm:$0xff]
        %v2876 = vld [vmem:[#allocation4 + $0x568] sm:$0xff]
        %v2877 = vld [vmem:[#allocation4 + $0x570] sm:$0xff]
        %v2878 = vld [vmem:[#allocation4 + $0x578] sm:$0xff]
        %v2879 = vld [vmem:[#allocation4 + $0x580] sm:$0xff]
        %v2880 = vld [vmem:[#allocation4 + $0x588] sm:$0xff]
        %v2881 = vld [vmem:[#allocation4 + $0x590] sm:$0xff]
        %v2882 = vld [vmem:[#allocation4 + $0x598] sm:$0xff]
        %v2883 = vld [vmem:[#allocation4 + $0x5a0] sm:$0xff]
        %v2884 = vld [vmem:[#allocation4 + $0x5a8] sm:$0xff]
        %v2885 = vld [vmem:[#allocation4 + $0x5b0] sm:$0xff]
        %v2886 = vld [vmem:[#allocation4 + $0x5b8] sm:$0xff]
        %v2887 = vld [vmem:[#allocation4 + $0x5c0] sm:$0xff]
        %v2888 = vld [vmem:[#allocation4 + $0x5c8] sm:$0xff]
        %v2889 = vld [vmem:[#allocation4 + $0x5d0] sm:$0xff]
        %v2890 = vld [vmem:[#allocation4 + $0x5d8] sm:$0xff]
        %v2891 = vld [vmem:[#allocation4 + $0x5e0] sm:$0xff]
        %v2892 = vld [vmem:[#allocation4 + $0x5e8] sm:$0xff]
        %v2893 = vld [vmem:[#allocation4 + $0x5f0] sm:$0xff]
        %v2894 = vld [vmem:[#allocation4 + $0x5f8] sm:$0xff]
        %v2895 = vld [vmem:[#allocation4 + $0x600] sm:$0xff]
        %v2896 = vld [vmem:[#allocation4 + $0x608] sm:$0xff]
        %v2897 = vld [vmem:[#allocation4 + $0x610] sm:$0xff]
        %v2898 = vld [vmem:[#allocation4 + $0x618] sm:$0xff]
        %v2899 = vld [vmem:[#allocation4 + $0x620] sm:$0xff]
        %v2900 = vld [vmem:[#allocation4 + $0x628] sm:$0xff]
        %v2901 = vld [vmem:[#allocation4 + $0x630] sm:$0xff]
        %v2902 = vld [vmem:[#allocation4 + $0x638] sm:$0xff]
        %v2903 = vld [vmem:[#allocation4 + $0x640] sm:$0xff]
        %v2904 = vld [vmem:[#allocation4 + $0x648] sm:$0xff]
        %v2905 = vld [vmem:[#allocation4 + $0x650] sm:$0xff]
        %v2906 = vld [vmem:[#allocation4 + $0x658] sm:$0xff]
        %v2907 = vld [vmem:[#allocation4 + $0x660] sm:$0xff]
        %v2908 = vld [vmem:[#allocation4 + $0x668] sm:$0xff]
        %v2909 = vld [vmem:[#allocation4 + $0x670] sm:$0xff]
        %v2910 = vld [vmem:[#allocation4 + $0x678] sm:$0xff]
        %v2911 = vld [vmem:[#allocation4 + $0x680] sm:$0xff]
        %v2912 = vld [vmem:[#allocation4 + $0x688] sm:$0xff]
        %v2913 = vld [vmem:[#allocation4 + $0x690] sm:$0xff]
        %v2914 = vld [vmem:[#allocation4 + $0x698] sm:$0xff]
        %v2915 = vld [vmem:[#allocation4 + $0x6a0] sm:$0xff]
        %v2916 = vld [vmem:[#allocation4 + $0x6a8] sm:$0xff]
        %v2917 = vld [vmem:[#allocation4 + $0x6b0] sm:$0xff]
        %v2918 = vld [vmem:[#allocation4 + $0x6b8] sm:$0xff]
        %v2919 = vld [vmem:[#allocation4 + $0x6c0] sm:$0xff]
        %v2920 = vld [vmem:[#allocation4 + $0x6c8] sm:$0xff]
        %v2921 = vld [vmem:[#allocation4 + $0x6d0] sm:$0xff]
        %v2922 = vld [vmem:[#allocation4 + $0x6d8] sm:$0xff]
        %v2923 = vld [vmem:[#allocation4 + $0x6e0] sm:$0xff]
        %v2924 = vld [vmem:[#allocation4 + $0x6e8] sm:$0xff]
        %v2925 = vld [vmem:[#allocation4 + $0x6f0] sm:$0xff]
        %v2926 = vld [vmem:[#allocation4 + $0x6f8] sm:$0xff]
        %v2927 = vld [vmem:[#allocation4 + $0x700] sm:$0xff]
        %v2928 = vld [vmem:[#allocation4 + $0x708] sm:$0xff]
        %v2929 = vld [vmem:[#allocation4 + $0x710] sm:$0xff]
        %v2930 = vld [vmem:[#allocation4 + $0x718] sm:$0xff]
        %v2931 = vld [vmem:[#allocation4 + $0x720] sm:$0xff]
        %v2932 = vld [vmem:[#allocation4 + $0x728] sm:$0xff]
        %v2933 = vld [vmem:[#allocation4 + $0x730] sm:$0xff]
        %v2934 = vld [vmem:[#allocation4 + $0x738] sm:$0xff]
        %v2935 = vld [vmem:[#allocation4 + $0x740] sm:$0xff]
        %v2936 = vld [vmem:[#allocation4 + $0x748] sm:$0xff]
        %v2937 = vld [vmem:[#allocation4 + $0x750] sm:$0xff]
        %v2938 = vld [vmem:[#allocation4 + $0x758] sm:$0xff]
        %v2939 = vld [vmem:[#allocation4 + $0x760] sm:$0xff]
        %v2940 = vld [vmem:[#allocation4 + $0x768] sm:$0xff]
        %v2941 = vld [vmem:[#allocation4 + $0x770] sm:$0xff]
        %v2942 = vld [vmem:[#allocation4 + $0x778] sm:$0xff]
        %v2943 = vld [vmem:[#allocation4 + $0x780] sm:$0xff]
        %v2944 = vld [vmem:[#allocation4 + $0x788] sm:$0xff]
        %v2945 = vld [vmem:[#allocation4 + $0x790] sm:$0xff]
        %v2946 = vld [vmem:[#allocation4 + $0x798] sm:$0xff]
        %v2947 = vld [vmem:[#allocation4 + $0x7a0] sm:$0xff]
        %v2948 = vld [vmem:[#allocation4 + $0x7a8] sm:$0xff]
        %v2949 = vld [vmem:[#allocation4 + $0x7b0] sm:$0xff]
        %v2950 = vld [vmem:[#allocation4 + $0x7b8] sm:$0xff]
        %v2951 = vld [vmem:[#allocation4 + $0x7c0] sm:$0xff]
        %v2952 = vld [vmem:[#allocation4 + $0x7c8] sm:$0xff]
        %v2953 = vld [vmem:[#allocation4 + $0x7d0] sm:$0xff]
        %v2954 = vld [vmem:[#allocation4 + $0x7d8] sm:$0xff]
        %v2955 = vld [vmem:[#allocation4 + $0x7e0] sm:$0xff]
        %v2956 = vld [vmem:[#allocation4 + $0x7e8] sm:$0xff]
        %v2957 = vld [vmem:[#allocation4 + $0x7f0] sm:$0xff]
        %v2958 = vld [vmem:[#allocation4 + $0x7f8] sm:$0xff]
        %v2959 = vld [vmem:[#allocation4 + $0x800] sm:$0xff]
        %v2960 = vld [vmem:[#allocation4 + $0x808] sm:$0xff]
        %v2961 = vld [vmem:[#allocation4 + $0x810] sm:$0xff]
        %v2962 = vld [vmem:[#allocation4 + $0x818] sm:$0xff]
        %v2963 = vld [vmem:[#allocation4 + $0x820] sm:$0xff]
        %v2964 = vld [vmem:[#allocation4 + $0x828] sm:$0xff]
        %v2965 = vld [vmem:[#allocation4 + $0x830] sm:$0xff]
        %v2966 = vld [vmem:[#allocation4 + $0x838] sm:$0xff]
        %v2967 = vld [vmem:[#allocation4 + $0x840] sm:$0xff]
        %v2968 = vld [vmem:[#allocation4 + $0x848] sm:$0xff]
        %v2969 = vld [vmem:[#allocation4 + $0x850] sm:$0xff]
        %v2970 = vld [vmem:[#allocation4 + $0x858] sm:$0xff]
        %v2971 = vld [vmem:[#allocation4 + $0x860] sm:$0xff]
        %v2972 = vld [vmem:[#allocation4 + $0x868] sm:$0xff]
        %v2973 = vld [vmem:[#allocation4 + $0x870] sm:$0xff]
        %v2974 = vld [vmem:[#allocation4 + $0x878] sm:$0xff]
        %v2975 = vld [vmem:[#allocation4 + $0x880] sm:$0xff]
        %v2976 = vld [vmem:[#allocation4 + $0x888] sm:$0xff]
        %v2977 = vld [vmem:[#allocation4 + $0x890] sm:$0xff]
        %v2978 = vld [vmem:[#allocation4 + $0x898] sm:$0xff]
        %v2979 = vld [vmem:[#allocation4 + $0x8a0] sm:$0xff]
        %v2980 = vld [vmem:[#allocation4 + $0x8a8] sm:$0xff]
        %v2981 = vld [vmem:[#allocation4 + $0x8b0] sm:$0xff]
        %v2982 = vld [vmem:[#allocation4 + $0x8b8] sm:$0xff]
        %v2983 = vld [vmem:[#allocation4 + $0x8c0] sm:$0xff]
        %v2984 = vld [vmem:[#allocation4 + $0x8c8] sm:$0xff]
        %v2985 = vld [vmem:[#allocation4 + $0x8d0] sm:$0xff]
        %v2986 = vld [vmem:[#allocation4 + $0x8d8] sm:$0xff]
        %v2987 = vld [vmem:[#allocation4 + $0x8e0] sm:$0xff]
        %v2988 = vld [vmem:[#allocation4 + $0x8e8] sm:$0xff]
        %v2989 = vld [vmem:[#allocation4 + $0x8f0] sm:$0xff]
        %v2990 = vld [vmem:[#allocation4 + $0x8f8] sm:$0xff]
        %s2991 = scalar_lea.vmem [#allocation8], 1152
        %v2992 = vld [vmem:[%s2991] sm:$0xff]
        %v2993 = vld [vmem:[%s2991 + $0x8] sm:$0xff]
        %v2994 = vld [vmem:[%s2991 + $0x10] sm:$0xff]
        %v2995 = vld [vmem:[%s2991 + $0x18] sm:$0xff]
        %v2996 = vld [vmem:[%s2991 + $0x20] sm:$0xff]
        %v2997 = vld [vmem:[%s2991 + $0x28] sm:$0xff]
        %v2998 = vld [vmem:[%s2991 + $0x30] sm:$0xff]
        %v2999 = vld [vmem:[%s2991 + $0x38] sm:$0xff]
        %v3000 = vld [vmem:[%s2991 + $0x40] sm:$0xff]
        %v3001 = vld [vmem:[%s2991 + $0x48] sm:$0xff]
        %v3002 = vld [vmem:[%s2991 + $0x50] sm:$0xff]
        %v3003 = vld [vmem:[%s2991 + $0x58] sm:$0xff]
        %v3004 = vld [vmem:[%s2991 + $0x60] sm:$0xff]
        %v3005 = vld [vmem:[%s2991 + $0x68] sm:$0xff]
        %v3006 = vld [vmem:[%s2991 + $0x70] sm:$0xff]
        %v3007 = vld [vmem:[%s2991 + $0x78] sm:$0xff]
        %v3008 = vld [vmem:[%s2991 + $0x80] sm:$0xff]
        %v3009 = vld [vmem:[%s2991 + $0x88] sm:$0xff]
        %v3010 = vld [vmem:[%s2991 + $0x90] sm:$0xff]
        %v3011 = vld [vmem:[%s2991 + $0x98] sm:$0xff]
        %v3012 = vld [vmem:[%s2991 + $0xa0] sm:$0xff]
        %v3013 = vld [vmem:[%s2991 + $0xa8] sm:$0xff]
        %v3014 = vld [vmem:[%s2991 + $0xb0] sm:$0xff]
        %v3015 = vld [vmem:[%s2991 + $0xb8] sm:$0xff]
        %v3016 = vld [vmem:[%s2991 + $0xc0] sm:$0xff]
        %v3017 = vld [vmem:[%s2991 + $0xc8] sm:$0xff]
        %v3018 = vld [vmem:[%s2991 + $0xd0] sm:$0xff]
        %v3019 = vld [vmem:[%s2991 + $0xd8] sm:$0xff]
        %v3020 = vld [vmem:[%s2991 + $0xe0] sm:$0xff]
        %v3021 = vld [vmem:[%s2991 + $0xe8] sm:$0xff]
        %v3022 = vld [vmem:[%s2991 + $0xf0] sm:$0xff]
        %v3023 = vld [vmem:[%s2991 + $0xf8] sm:$0xff]
        %v3024 = vld [vmem:[%s2991 + $0x100] sm:$0xff]
        %v3025 = vld [vmem:[%s2991 + $0x108] sm:$0xff]
        %v3026 = vld [vmem:[%s2991 + $0x110] sm:$0xff]
        %v3027 = vld [vmem:[%s2991 + $0x118] sm:$0xff]
        %v3028 = vld [vmem:[%s2991 + $0x120] sm:$0xff]
        %v3029 = vld [vmem:[%s2991 + $0x128] sm:$0xff]
        %v3030 = vld [vmem:[%s2991 + $0x130] sm:$0xff]
        %v3031 = vld [vmem:[%s2991 + $0x138] sm:$0xff]
        %v3032 = vld [vmem:[%s2991 + $0x140] sm:$0xff]
        %v3033 = vld [vmem:[%s2991 + $0x148] sm:$0xff]
        %v3034 = vld [vmem:[%s2991 + $0x150] sm:$0xff]
        %v3035 = vld [vmem:[%s2991 + $0x158] sm:$0xff]
        %v3036 = vld [vmem:[%s2991 + $0x160] sm:$0xff]
        %v3037 = vld [vmem:[%s2991 + $0x168] sm:$0xff]
        %v3038 = vld [vmem:[%s2991 + $0x170] sm:$0xff]
        %v3039 = vld [vmem:[%s2991 + $0x178] sm:$0xff]
        %v3040 = vld [vmem:[%s2991 + $0x180] sm:$0xff]
        %v3041 = vld [vmem:[%s2991 + $0x188] sm:$0xff]
        %v3042 = vld [vmem:[%s2991 + $0x190] sm:$0xff]
        %v3043 = vld [vmem:[%s2991 + $0x198] sm:$0xff]
        %v3044 = vld [vmem:[%s2991 + $0x1a0] sm:$0xff]
        %v3045 = vld [vmem:[%s2991 + $0x1a8] sm:$0xff]
        %v3046 = vld [vmem:[%s2991 + $0x1b0] sm:$0xff]
        %v3047 = vld [vmem:[%s2991 + $0x1b8] sm:$0xff]
        %v3048 = vld [vmem:[%s2991 + $0x1c0] sm:$0xff]
        %v3049 = vld [vmem:[%s2991 + $0x1c8] sm:$0xff]
        %v3050 = vld [vmem:[%s2991 + $0x1d0] sm:$0xff]
        %v3051 = vld [vmem:[%s2991 + $0x1d8] sm:$0xff]
        %v3052 = vld [vmem:[%s2991 + $0x1e0] sm:$0xff]
        %v3053 = vld [vmem:[%s2991 + $0x1e8] sm:$0xff]
        %v3054 = vld [vmem:[%s2991 + $0x1f0] sm:$0xff]
        %v3055 = vld [vmem:[%s2991 + $0x1f8] sm:$0xff]
        %v3056 = vld [vmem:[%s2991 + $0x200] sm:$0xff]
        %v3057 = vld [vmem:[%s2991 + $0x208] sm:$0xff]
        %v3058 = vld [vmem:[%s2991 + $0x210] sm:$0xff]
        %v3059 = vld [vmem:[%s2991 + $0x218] sm:$0xff]
        %v3060 = vld [vmem:[%s2991 + $0x220] sm:$0xff]
        %v3061 = vld [vmem:[%s2991 + $0x228] sm:$0xff]
        %v3062 = vld [vmem:[%s2991 + $0x230] sm:$0xff]
        %v3063 = vld [vmem:[%s2991 + $0x238] sm:$0xff]
        %v3064 = vld [vmem:[%s2991 + $0x240] sm:$0xff]
        %v3065 = vld [vmem:[%s2991 + $0x248] sm:$0xff]
        %v3066 = vld [vmem:[%s2991 + $0x250] sm:$0xff]
        %v3067 = vld [vmem:[%s2991 + $0x258] sm:$0xff]
        %v3068 = vld [vmem:[%s2991 + $0x260] sm:$0xff]
        %v3069 = vld [vmem:[%s2991 + $0x268] sm:$0xff]
        %v3070 = vld [vmem:[%s2991 + $0x270] sm:$0xff]
        %v3071 = vld [vmem:[%s2991 + $0x278] sm:$0xff]
        %v3072 = vld [vmem:[%s2991 + $0x280] sm:$0xff]
        %v3073 = vld [vmem:[%s2991 + $0x288] sm:$0xff]
        %v3074 = vld [vmem:[%s2991 + $0x290] sm:$0xff]
        %v3075 = vld [vmem:[%s2991 + $0x298] sm:$0xff]
        %v3076 = vld [vmem:[%s2991 + $0x2a0] sm:$0xff]
        %v3077 = vld [vmem:[%s2991 + $0x2a8] sm:$0xff]
        %v3078 = vld [vmem:[%s2991 + $0x2b0] sm:$0xff]
        %v3079 = vld [vmem:[%s2991 + $0x2b8] sm:$0xff]
        %v3080 = vld [vmem:[%s2991 + $0x2c0] sm:$0xff]
        %v3081 = vld [vmem:[%s2991 + $0x2c8] sm:$0xff]
        %v3082 = vld [vmem:[%s2991 + $0x2d0] sm:$0xff]
        %v3083 = vld [vmem:[%s2991 + $0x2d8] sm:$0xff]
        %v3084 = vld [vmem:[%s2991 + $0x2e0] sm:$0xff]
        %v3085 = vld [vmem:[%s2991 + $0x2e8] sm:$0xff]
        %v3086 = vld [vmem:[%s2991 + $0x2f0] sm:$0xff]
        %v3087 = vld [vmem:[%s2991 + $0x2f8] sm:$0xff]
        %v3088 = vld [vmem:[%s2991 + $0x300] sm:$0xff]
        %v3089 = vld [vmem:[%s2991 + $0x308] sm:$0xff]
        %v3090 = vld [vmem:[%s2991 + $0x310] sm:$0xff]
        %v3091 = vld [vmem:[%s2991 + $0x318] sm:$0xff]
        %v3092 = vld [vmem:[%s2991 + $0x320] sm:$0xff]
        %v3093 = vld [vmem:[%s2991 + $0x328] sm:$0xff]
        %v3094 = vld [vmem:[%s2991 + $0x330] sm:$0xff]
        %v3095 = vld [vmem:[%s2991 + $0x338] sm:$0xff]
        %v3096 = vld [vmem:[%s2991 + $0x340] sm:$0xff]
        %v3097 = vld [vmem:[%s2991 + $0x348] sm:$0xff]
        %v3098 = vld [vmem:[%s2991 + $0x350] sm:$0xff]
        %v3099 = vld [vmem:[%s2991 + $0x358] sm:$0xff]
        %v3100 = vld [vmem:[%s2991 + $0x360] sm:$0xff]
        %v3101 = vld [vmem:[%s2991 + $0x368] sm:$0xff]
        %v3102 = vld [vmem:[%s2991 + $0x370] sm:$0xff]
        %v3103 = vld [vmem:[%s2991 + $0x378] sm:$0xff]
        %v3104 = vld [vmem:[%s2991 + $0x380] sm:$0xff]
        %v3105 = vld [vmem:[%s2991 + $0x388] sm:$0xff]
        %v3106 = vld [vmem:[%s2991 + $0x390] sm:$0xff]
        %v3107 = vld [vmem:[%s2991 + $0x398] sm:$0xff]
        %v3108 = vld [vmem:[%s2991 + $0x3a0] sm:$0xff]
        %v3109 = vld [vmem:[%s2991 + $0x3a8] sm:$0xff]
        %v3110 = vld [vmem:[%s2991 + $0x3b0] sm:$0xff]
        %v3111 = vld [vmem:[%s2991 + $0x3b8] sm:$0xff]
        %v3112 = vld [vmem:[%s2991 + $0x3c0] sm:$0xff]
        %v3113 = vld [vmem:[%s2991 + $0x3c8] sm:$0xff]
        %v3114 = vld [vmem:[%s2991 + $0x3d0] sm:$0xff]
        %v3115 = vld [vmem:[%s2991 + $0x3d8] sm:$0xff]
        %v3116 = vld [vmem:[%s2991 + $0x3e0] sm:$0xff]
        %v3117 = vld [vmem:[%s2991 + $0x3e8] sm:$0xff]
        %v3118 = vld [vmem:[%s2991 + $0x3f0] sm:$0xff]
        %v3119 = vld [vmem:[%s2991 + $0x3f8] sm:$0xff]
        %v3120 = vld [vmem:[%s2991 + $0x400] sm:$0xff]
        %v3121 = vld [vmem:[%s2991 + $0x408] sm:$0xff]
        %v3122 = vld [vmem:[%s2991 + $0x410] sm:$0xff]
        %v3123 = vld [vmem:[%s2991 + $0x418] sm:$0xff]
        %v3124 = vld [vmem:[%s2991 + $0x420] sm:$0xff]
        %v3125 = vld [vmem:[%s2991 + $0x428] sm:$0xff]
        %v3126 = vld [vmem:[%s2991 + $0x430] sm:$0xff]
        %v3127 = vld [vmem:[%s2991 + $0x438] sm:$0xff]
        %v3128 = vld [vmem:[%s2991 + $0x440] sm:$0xff]
        %v3129 = vld [vmem:[%s2991 + $0x448] sm:$0xff]
        %v3130 = vld [vmem:[%s2991 + $0x450] sm:$0xff]
        %v3131 = vld [vmem:[%s2991 + $0x458] sm:$0xff]
        %v3132 = vld [vmem:[%s2991 + $0x460] sm:$0xff]
        %v3133 = vld [vmem:[%s2991 + $0x468] sm:$0xff]
        %v3134 = vld [vmem:[%s2991 + $0x470] sm:$0xff]
        %v3135 = vld [vmem:[%s2991 + $0x478] sm:$0xff]
        %v3136 = vld [vmem:[#allocation10 + $0x1] sm:$0x1]
        %v3137 = vperm.slane %v3136, 0
        %3138 = vmatpush.msra.mxu0 %v3007
        %3139 = vmatpush.msra.mxu0 %v3006
        %3140 = vmatpush.msra.mxu0 %v3005
        %3141 = vmatpush.msra.mxu0 %v3004
        %3142 = vmatpush.msra.mxu0 %v3003
        %3143 = vmatpush.msra.mxu0 %v3002
        %3144 = vmatpush.msra.mxu0 %v3001
        %3145 = vmatpush.msra.mxu0 %v3000
        %3146 = vmatpush.msra.mxu0 %v2999
        %3147 = vmatpush.msra.mxu0 %v2998
        %3148 = vmatpush.msra.mxu0 %v2997
        %3149 = vmatpush.msra.mxu0 %v2996
        %3150 = vmatpush.msra.mxu0 %v2995
        %3151 = vmatpush.msra.mxu0 %v2994
        %3152 = vmatpush.msra.mxu0 %v2993
        %3153 = vmatpush.msra.mxu0 %v2992
        %3154 = vmatmul.f32.gmra.mxu0 %v2703
        %v3155 = vpop.f32.mrf.mxu0
        %v3156 = vadd.f32 %v3137, %v3155
        %3157 = vmatmul.f32.gmra.mxu0 %v2712
        %v3158 = vpop.f32.mrf.mxu0
        %v3159 = vadd.f32 %v3137, %v3158
        %3160 = vmatmul.f32.gmra.mxu0 %v2721
        %v3161 = vpop.f32.mrf.mxu0
        %v3162 = vadd.f32 %v3137, %v3161
        %3163 = vmatmul.f32.gmra.mxu0 %v2730
        %v3164 = vpop.f32.mrf.mxu0
        %v3165 = vadd.f32 %v3137, %v3164
        %3166 = vmatmul.f32.gmra.mxu0 %v2739
        %v3167 = vpop.f32.mrf.mxu0
        %v3168 = vadd.f32 %v3137, %v3167
        %3169 = vmatmul.f32.gmra.mxu0 %v2748
        %v3170 = vpop.f32.mrf.mxu0
        %v3171 = vadd.f32 %v3137, %v3170
        %3172 = vmatmul.f32.gmra.mxu0 %v2757
        %v3173 = vpop.f32.mrf.mxu0
        %v3174 = vadd.f32 %v3137, %v3173
        %3175 = vmatmul.f32.gmra.mxu0 %v2766
        %v3176 = vpop.f32.mrf.mxu0
        %v3177 = vadd.f32 %v3137, %v3176
        %3178 = vmatmul.f32.gmra.mxu0 %v2775
        %v3179 = vpop.f32.mrf.mxu0
        %v3180 = vadd.f32 %v3137, %v3179
        %3181 = vmatmul.f32.gmra.mxu0 %v2784
        %v3182 = vpop.f32.mrf.mxu0
        %v3183 = vadd.f32 %v3137, %v3182
        %3184 = vmatmul.f32.gmra.mxu0 %v2793
        %v3185 = vpop.f32.mrf.mxu0
        %v3186 = vadd.f32 %v3137, %v3185
        %3187 = vmatmul.f32.gmra.mxu0 %v2802
        %v3188 = vpop.f32.mrf.mxu0
        %v3189 = vadd.f32 %v3137, %v3188
        %3190 = vmatmul.f32.gmra.mxu0 %v2811
        %v3191 = vpop.f32.mrf.mxu0
        %v3192 = vadd.f32 %v3137, %v3191
        %3193 = vmatmul.f32.gmra.mxu0 %v2820
        %v3194 = vpop.f32.mrf.mxu0
        %v3195 = vadd.f32 %v3137, %v3194
        %3196 = vmatmul.f32.gmra.mxu0 %v2829
        %v3197 = vpop.f32.mrf.mxu0
        %v3198 = vadd.f32 %v3137, %v3197
        %3199 = vmatmul.f32.gmra.mxu0 %v2838
        %v3200 = vpop.f32.mrf.mxu0
        %v3201 = vadd.f32 %v3137, %v3200
        %3202 = vmatmul.f32.gmra.mxu0 %v2847
        %v3203 = vpop.f32.mrf.mxu0
        %v3204 = vadd.f32 %v3137, %v3203
        %3205 = vmatmul.f32.gmra.mxu0 %v2856
        %v3206 = vpop.f32.mrf.mxu0
        %v3207 = vadd.f32 %v3137, %v3206
        %3208 = vmatmul.f32.gmra.mxu0 %v2865
        %v3209 = vpop.f32.mrf.mxu0
        %v3210 = vadd.f32 %v3137, %v3209
        %3211 = vmatmul.f32.gmra.mxu0 %v2874
        %v3212 = vpop.f32.mrf.mxu0
        %v3213 = vadd.f32 %v3137, %v3212
        %3214 = vmatmul.f32.gmra.mxu0 %v2883
        %v3215 = vpop.f32.mrf.mxu0
        %v3216 = vadd.f32 %v3137, %v3215
        %3217 = vmatmul.f32.gmra.mxu0 %v2892
        %v3218 = vpop.f32.mrf.mxu0
        %v3219 = vadd.f32 %v3137, %v3218
        %3220 = vmatmul.f32.gmra.mxu0 %v2901
        %v3221 = vpop.f32.mrf.mxu0
        %v3222 = vadd.f32 %v3137, %v3221
        %3223 = vmatmul.f32.gmra.mxu0 %v2910
        %v3224 = vpop.f32.mrf.mxu0
        %v3225 = vadd.f32 %v3137, %v3224
        %3226 = vmatmul.f32.gmra.mxu0 %v2919
        %v3227 = vpop.f32.mrf.mxu0
        %v3228 = vadd.f32 %v3137, %v3227
        %3229 = vmatmul.f32.gmra.mxu0 %v2928
        %v3230 = vpop.f32.mrf.mxu0
        %v3231 = vadd.f32 %v3137, %v3230
        %3232 = vmatmul.f32.gmra.mxu0 %v2937
        %v3233 = vpop.f32.mrf.mxu0
        %v3234 = vadd.f32 %v3137, %v3233
        %3235 = vmatmul.f32.gmra.mxu0 %v2946
        %v3236 = vpop.f32.mrf.mxu0
        %v3237 = vadd.f32 %v3137, %v3236
        %3238 = vmatmul.f32.gmra.mxu0 %v2955
        %v3239 = vpop.f32.mrf.mxu0
        %v3240 = vadd.f32 %v3137, %v3239
        %3241 = vmatmul.f32.gmra.mxu0 %v2964
        %v3242 = vpop.f32.mrf.mxu0
        %v3243 = vadd.f32 %v3137, %v3242
        %3244 = vmatmul.f32.gmra.mxu0 %v2973
        %v3245 = vpop.f32.mrf.mxu0
        %v3246 = vadd.f32 %v3137, %v3245
        %3247 = vmatmul.f32.gmra.mxu0 %v2982
        %v3248 = vpop.f32.mrf.mxu0
        %v3249 = vadd.f32 %v3137, %v3248
        %3250 = vdwg.mxu0
        %3251 = vmatpush.msra.mxu0 %v3023
        %3252 = vmatpush.msra.mxu0 %v3022
        %3253 = vmatpush.msra.mxu0 %v3021
        %3254 = vmatpush.msra.mxu0 %v3020
        %3255 = vmatpush.msra.mxu0 %v3019
        %3256 = vmatpush.msra.mxu0 %v3018
        %3257 = vmatpush.msra.mxu0 %v3017
        %3258 = vmatpush.msra.mxu0 %v3016
        %3259 = vmatpush.msra.mxu0 %v3015
        %3260 = vmatpush.msra.mxu0 %v3014
        %3261 = vmatpush.msra.mxu0 %v3013
        %3262 = vmatpush.msra.mxu0 %v3012
        %3263 = vmatpush.msra.mxu0 %v3011
        %3264 = vmatpush.msra.mxu0 %v3010
        %3265 = vmatpush.msra.mxu0 %v3009
        %3266 = vmatpush.msra.mxu0 %v3008
        %3267 = vmatmul.f32.gmra.mxu0 %v2704
        %v3268 = vpop.f32.mrf.mxu0
        %v3269 = vadd.f32 %v3156, %v3268
        %3270 = vmatmul.f32.gmra.mxu0 %v2713
        %v3271 = vpop.f32.mrf.mxu0
        %v3272 = vadd.f32 %v3159, %v3271
        %3273 = vmatmul.f32.gmra.mxu0 %v2722
        %v3274 = vpop.f32.mrf.mxu0
        %v3275 = vadd.f32 %v3162, %v3274
        %3276 = vmatmul.f32.gmra.mxu0 %v2731
        %v3277 = vpop.f32.mrf.mxu0
        %v3278 = vadd.f32 %v3165, %v3277
        %3279 = vmatmul.f32.gmra.mxu0 %v2740
        %v3280 = vpop.f32.mrf.mxu0
        %v3281 = vadd.f32 %v3168, %v3280
        %3282 = vmatmul.f32.gmra.mxu0 %v2749
        %v3283 = vpop.f32.mrf.mxu0
        %v3284 = vadd.f32 %v3171, %v3283
        %3285 = vmatmul.f32.gmra.mxu0 %v2758
        %v3286 = vpop.f32.mrf.mxu0
        %v3287 = vadd.f32 %v3174, %v3286
        %3288 = vmatmul.f32.gmra.mxu0 %v2767
        %v3289 = vpop.f32.mrf.mxu0
        %v3290 = vadd.f32 %v3177, %v3289
        %3291 = vmatmul.f32.gmra.mxu0 %v2776
        %v3292 = vpop.f32.mrf.mxu0
        %v3293 = vadd.f32 %v3180, %v3292
        %3294 = vmatmul.f32.gmra.mxu0 %v2785
        %v3295 = vpop.f32.mrf.mxu0
        %v3296 = vadd.f32 %v3183, %v3295
        %3297 = vmatmul.f32.gmra.mxu0 %v2794
        %v3298 = vpop.f32.mrf.mxu0
        %v3299 = vadd.f32 %v3186, %v3298
        %3300 = vmatmul.f32.gmra.mxu0 %v2803
        %v3301 = vpop.f32.mrf.mxu0
        %v3302 = vadd.f32 %v3189, %v3301
        %3303 = vmatmul.f32.gmra.mxu0 %v2812
        %v3304 = vpop.f32.mrf.mxu0
        %v3305 = vadd.f32 %v3192, %v3304
        %3306 = vmatmul.f32.gmra.mxu0 %v2821
        %v3307 = vpop.f32.mrf.mxu0
        %v3308 = vadd.f32 %v3195, %v3307
        %3309 = vmatmul.f32.gmra.mxu0 %v2830
        %v3310 = vpop.f32.mrf.mxu0
        %v3311 = vadd.f32 %v3198, %v3310
        %3312 = vmatmul.f32.gmra.mxu0 %v2839
        %v3313 = vpop.f32.mrf.mxu0
        %v3314 = vadd.f32 %v3201, %v3313
        %3315 = vmatmul.f32.gmra.mxu0 %v2848
        %v3316 = vpop.f32.mrf.mxu0
        %v3317 = vadd.f32 %v3204, %v3316
        %3318 = vmatmul.f32.gmra.mxu0 %v2857
        %v3319 = vpop.f32.mrf.mxu0
        %v3320 = vadd.f32 %v3207, %v3319
        %3321 = vmatmul.f32.gmra.mxu0 %v2866
        %v3322 = vpop.f32.mrf.mxu0
        %v3323 = vadd.f32 %v3210, %v3322
        %3324 = vmatmul.f32.gmra.mxu0 %v2875
        %v3325 = vpop.f32.mrf.mxu0
        %v3326 = vadd.f32 %v3213, %v3325
        %3327 = vmatmul.f32.gmra.mxu0 %v2884
        %v3328 = vpop.f32.mrf.mxu0
        %v3329 = vadd.f32 %v3216, %v3328
        %3330 = vmatmul.f32.gmra.mxu0 %v2893
        %v3331 = vpop.f32.mrf.mxu0
        %v3332 = vadd.f32 %v3219, %v3331
        %3333 = vmatmul.f32.gmra.mxu0 %v2902
        %v3334 = vpop.f32.mrf.mxu0
        %v3335 = vadd.f32 %v3222, %v3334
        %3336 = vmatmul.f32.gmra.mxu0 %v2911
        %v3337 = vpop.f32.mrf.mxu0
        %v3338 = vadd.f32 %v3225, %v3337
        %3339 = vmatmul.f32.gmra.mxu0 %v2920
        %v3340 = vpop.f32.mrf.mxu0
        %v3341 = vadd.f32 %v3228, %v3340
        %3342 = vmatmul.f32.gmra.mxu0 %v2929
        %v3343 = vpop.f32.mrf.mxu0
        %v3344 = vadd.f32 %v3231, %v3343
        %3345 = vmatmul.f32.gmra.mxu0 %v2938
        %v3346 = vpop.f32.mrf.mxu0
        %v3347 = vadd.f32 %v3234, %v3346
        %3348 = vmatmul.f32.gmra.mxu0 %v2947
        %v3349 = vpop.f32.mrf.mxu0
        %v3350 = vadd.f32 %v3237, %v3349
        %3351 = vmatmul.f32.gmra.mxu0 %v2956
        %v3352 = vpop.f32.mrf.mxu0
        %v3353 = vadd.f32 %v3240, %v3352
        %3354 = vmatmul.f32.gmra.mxu0 %v2965
        %v3355 = vpop.f32.mrf.mxu0
        %v3356 = vadd.f32 %v3243, %v3355
        %3357 = vmatmul.f32.gmra.mxu0 %v2974
        %v3358 = vpop.f32.mrf.mxu0
        %v3359 = vadd.f32 %v3246, %v3358
        %3360 = vmatmul.f32.gmra.mxu0 %v2983
        %v3361 = vpop.f32.mrf.mxu0
        %v3362 = vadd.f32 %v3249, %v3361
        %3363 = vdwg.mxu0
        %3364 = vmatpush.msra.mxu0 %v3039
        %3365 = vmatpush.msra.mxu0 %v3038
        %3366 = vmatpush.msra.mxu0 %v3037
        %3367 = vmatpush.msra.mxu0 %v3036
        %3368 = vmatpush.msra.mxu0 %v3035
        %3369 = vmatpush.msra.mxu0 %v3034
        %3370 = vmatpush.msra.mxu0 %v3033
        %3371 = vmatpush.msra.mxu0 %v3032
        %3372 = vmatpush.msra.mxu0 %v3031
        %3373 = vmatpush.msra.mxu0 %v3030
        %3374 = vmatpush.msra.mxu0 %v3029
        %3375 = vmatpush.msra.mxu0 %v3028
        %3376 = vmatpush.msra.mxu0 %v3027
        %3377 = vmatpush.msra.mxu0 %v3026
        %3378 = vmatpush.msra.mxu0 %v3025
        %3379 = vmatpush.msra.mxu0 %v3024
        %3380 = vmatmul.f32.gmra.mxu0 %v2705
        %v3381 = vpop.f32.mrf.mxu0
        %v3382 = vadd.f32 %v3269, %v3381
        %3383 = vmatmul.f32.gmra.mxu0 %v2714
        %v3384 = vpop.f32.mrf.mxu0
        %v3385 = vadd.f32 %v3272, %v3384
        %3386 = vmatmul.f32.gmra.mxu0 %v2723
        %v3387 = vpop.f32.mrf.mxu0
        %v3388 = vadd.f32 %v3275, %v3387
        %3389 = vmatmul.f32.gmra.mxu0 %v2732
        %v3390 = vpop.f32.mrf.mxu0
        %v3391 = vadd.f32 %v3278, %v3390
        %3392 = vmatmul.f32.gmra.mxu0 %v2741
        %v3393 = vpop.f32.mrf.mxu0
        %v3394 = vadd.f32 %v3281, %v3393
        %3395 = vmatmul.f32.gmra.mxu0 %v2750
        %v3396 = vpop.f32.mrf.mxu0
        %v3397 = vadd.f32 %v3284, %v3396
        %3398 = vmatmul.f32.gmra.mxu0 %v2759
        %v3399 = vpop.f32.mrf.mxu0
        %v3400 = vadd.f32 %v3287, %v3399
        %3401 = vmatmul.f32.gmra.mxu0 %v2768
        %v3402 = vpop.f32.mrf.mxu0
        %v3403 = vadd.f32 %v3290, %v3402
        %3404 = vmatmul.f32.gmra.mxu0 %v2777
        %v3405 = vpop.f32.mrf.mxu0
        %v3406 = vadd.f32 %v3293, %v3405
        %3407 = vmatmul.f32.gmra.mxu0 %v2786
        %v3408 = vpop.f32.mrf.mxu0
        %v3409 = vadd.f32 %v3296, %v3408
        %3410 = vmatmul.f32.gmra.mxu0 %v2795
        %v3411 = vpop.f32.mrf.mxu0
        %v3412 = vadd.f32 %v3299, %v3411
        %3413 = vmatmul.f32.gmra.mxu0 %v2804
        %v3414 = vpop.f32.mrf.mxu0
        %v3415 = vadd.f32 %v3302, %v3414
        %3416 = vmatmul.f32.gmra.mxu0 %v2813
        %v3417 = vpop.f32.mrf.mxu0
        %v3418 = vadd.f32 %v3305, %v3417
        %3419 = vmatmul.f32.gmra.mxu0 %v2822
        %v3420 = vpop.f32.mrf.mxu0
        %v3421 = vadd.f32 %v3308, %v3420
        %3422 = vmatmul.f32.gmra.mxu0 %v2831
        %v3423 = vpop.f32.mrf.mxu0
        %v3424 = vadd.f32 %v3311, %v3423
        %3425 = vmatmul.f32.gmra.mxu0 %v2840
        %v3426 = vpop.f32.mrf.mxu0
        %v3427 = vadd.f32 %v3314, %v3426
        %3428 = vmatmul.f32.gmra.mxu0 %v2849
        %v3429 = vpop.f32.mrf.mxu0
        %v3430 = vadd.f32 %v3317, %v3429
        %3431 = vmatmul.f32.gmra.mxu0 %v2858
        %v3432 = vpop.f32.mrf.mxu0
        %v3433 = vadd.f32 %v3320, %v3432
        %3434 = vmatmul.f32.gmra.mxu0 %v2867
        %v3435 = vpop.f32.mrf.mxu0
        %v3436 = vadd.f32 %v3323, %v3435
        %3437 = vmatmul.f32.gmra.mxu0 %v2876
        %v3438 = vpop.f32.mrf.mxu0
        %v3439 = vadd.f32 %v3326, %v3438
        %3440 = vmatmul.f32.gmra.mxu0 %v2885
        %v3441 = vpop.f32.mrf.mxu0
        %v3442 = vadd.f32 %v3329, %v3441
        %3443 = vmatmul.f32.gmra.mxu0 %v2894
        %v3444 = vpop.f32.mrf.mxu0
        %v3445 = vadd.f32 %v3332, %v3444
        %3446 = vmatmul.f32.gmra.mxu0 %v2903
        %v3447 = vpop.f32.mrf.mxu0
        %v3448 = vadd.f32 %v3335, %v3447
        %3449 = vmatmul.f32.gmra.mxu0 %v2912
        %v3450 = vpop.f32.mrf.mxu0
        %v3451 = vadd.f32 %v3338, %v3450
        %3452 = vmatmul.f32.gmra.mxu0 %v2921
        %v3453 = vpop.f32.mrf.mxu0
        %v3454 = vadd.f32 %v3341, %v3453
        %3455 = vmatmul.f32.gmra.mxu0 %v2930
        %v3456 = vpop.f32.mrf.mxu0
        %v3457 = vadd.f32 %v3344, %v3456
        %3458 = vmatmul.f32.gmra.mxu0 %v2939
        %v3459 = vpop.f32.mrf.mxu0
        %v3460 = vadd.f32 %v3347, %v3459
        %3461 = vmatmul.f32.gmra.mxu0 %v2948
        %v3462 = vpop.f32.mrf.mxu0
        %v3463 = vadd.f32 %v3350, %v3462
        %3464 = vmatmul.f32.gmra.mxu0 %v2957
        %v3465 = vpop.f32.mrf.mxu0
        %v3466 = vadd.f32 %v3353, %v3465
        %3467 = vmatmul.f32.gmra.mxu0 %v2966
        %v3468 = vpop.f32.mrf.mxu0
        %v3469 = vadd.f32 %v3356, %v3468
        %3470 = vmatmul.f32.gmra.mxu0 %v2975
        %v3471 = vpop.f32.mrf.mxu0
        %v3472 = vadd.f32 %v3359, %v3471
        %3473 = vmatmul.f32.gmra.mxu0 %v2984
        %v3474 = vpop.f32.mrf.mxu0
        %v3475 = vadd.f32 %v3362, %v3474
        %3476 = vdwg.mxu0
        %3477 = vmatpush.msra.mxu0 %v3055
        %3478 = vmatpush.msra.mxu0 %v3054
        %3479 = vmatpush.msra.mxu0 %v3053
        %3480 = vmatpush.msra.mxu0 %v3052
        %3481 = vmatpush.msra.mxu0 %v3051
        %3482 = vmatpush.msra.mxu0 %v3050
        %3483 = vmatpush.msra.mxu0 %v3049
        %3484 = vmatpush.msra.mxu0 %v3048
        %3485 = vmatpush.msra.mxu0 %v3047
        %3486 = vmatpush.msra.mxu0 %v3046
        %3487 = vmatpush.msra.mxu0 %v3045
        %3488 = vmatpush.msra.mxu0 %v3044
        %3489 = vmatpush.msra.mxu0 %v3043
        %3490 = vmatpush.msra.mxu0 %v3042
        %3491 = vmatpush.msra.mxu0 %v3041
        %3492 = vmatpush.msra.mxu0 %v3040
        %3493 = vmatmul.f32.gmra.mxu0 %v2706
        %v3494 = vpop.f32.mrf.mxu0
        %v3495 = vadd.f32 %v3382, %v3494
        %3496 = vmatmul.f32.gmra.mxu0 %v2715
        %v3497 = vpop.f32.mrf.mxu0
        %v3498 = vadd.f32 %v3385, %v3497
        %3499 = vmatmul.f32.gmra.mxu0 %v2724
        %v3500 = vpop.f32.mrf.mxu0
        %v3501 = vadd.f32 %v3388, %v3500
        %3502 = vmatmul.f32.gmra.mxu0 %v2733
        %v3503 = vpop.f32.mrf.mxu0
        %v3504 = vadd.f32 %v3391, %v3503
        %3505 = vmatmul.f32.gmra.mxu0 %v2742
        %v3506 = vpop.f32.mrf.mxu0
        %v3507 = vadd.f32 %v3394, %v3506
        %3508 = vmatmul.f32.gmra.mxu0 %v2751
        %v3509 = vpop.f32.mrf.mxu0
        %v3510 = vadd.f32 %v3397, %v3509
        %3511 = vmatmul.f32.gmra.mxu0 %v2760
        %v3512 = vpop.f32.mrf.mxu0
        %v3513 = vadd.f32 %v3400, %v3512
        %3514 = vmatmul.f32.gmra.mxu0 %v2769
        %v3515 = vpop.f32.mrf.mxu0
        %v3516 = vadd.f32 %v3403, %v3515
        %3517 = vmatmul.f32.gmra.mxu0 %v2778
        %v3518 = vpop.f32.mrf.mxu0
        %v3519 = vadd.f32 %v3406, %v3518
        %3520 = vmatmul.f32.gmra.mxu0 %v2787
        %v3521 = vpop.f32.mrf.mxu0
        %v3522 = vadd.f32 %v3409, %v3521
        %3523 = vmatmul.f32.gmra.mxu0 %v2796
        %v3524 = vpop.f32.mrf.mxu0
        %v3525 = vadd.f32 %v3412, %v3524
        %3526 = vmatmul.f32.gmra.mxu0 %v2805
        %v3527 = vpop.f32.mrf.mxu0
        %v3528 = vadd.f32 %v3415, %v3527
        %3529 = vmatmul.f32.gmra.mxu0 %v2814
        %v3530 = vpop.f32.mrf.mxu0
        %v3531 = vadd.f32 %v3418, %v3530
        %3532 = vmatmul.f32.gmra.mxu0 %v2823
        %v3533 = vpop.f32.mrf.mxu0
        %v3534 = vadd.f32 %v3421, %v3533
        %3535 = vmatmul.f32.gmra.mxu0 %v2832
        %v3536 = vpop.f32.mrf.mxu0
        %v3537 = vadd.f32 %v3424, %v3536
        %3538 = vmatmul.f32.gmra.mxu0 %v2841
        %v3539 = vpop.f32.mrf.mxu0
        %v3540 = vadd.f32 %v3427, %v3539
        %3541 = vmatmul.f32.gmra.mxu0 %v2850
        %v3542 = vpop.f32.mrf.mxu0
        %v3543 = vadd.f32 %v3430, %v3542
        %3544 = vmatmul.f32.gmra.mxu0 %v2859
        %v3545 = vpop.f32.mrf.mxu0
        %v3546 = vadd.f32 %v3433, %v3545
        %3547 = vmatmul.f32.gmra.mxu0 %v2868
        %v3548 = vpop.f32.mrf.mxu0
        %v3549 = vadd.f32 %v3436, %v3548
        %3550 = vmatmul.f32.gmra.mxu0 %v2877
        %v3551 = vpop.f32.mrf.mxu0
        %v3552 = vadd.f32 %v3439, %v3551
        %3553 = vmatmul.f32.gmra.mxu0 %v2886
        %v3554 = vpop.f32.mrf.mxu0
        %v3555 = vadd.f32 %v3442, %v3554
        %3556 = vmatmul.f32.gmra.mxu0 %v2895
        %v3557 = vpop.f32.mrf.mxu0
        %v3558 = vadd.f32 %v3445, %v3557
        %3559 = vmatmul.f32.gmra.mxu0 %v2904
        %v3560 = vpop.f32.mrf.mxu0
        %v3561 = vadd.f32 %v3448, %v3560
        %3562 = vmatmul.f32.gmra.mxu0 %v2913
        %v3563 = vpop.f32.mrf.mxu0
        %v3564 = vadd.f32 %v3451, %v3563
        %3565 = vmatmul.f32.gmra.mxu0 %v2922
        %v3566 = vpop.f32.mrf.mxu0
        %v3567 = vadd.f32 %v3454, %v3566
        %3568 = vmatmul.f32.gmra.mxu0 %v2931
        %v3569 = vpop.f32.mrf.mxu0
        %v3570 = vadd.f32 %v3457, %v3569
        %3571 = vmatmul.f32.gmra.mxu0 %v2940
        %v3572 = vpop.f32.mrf.mxu0
        %v3573 = vadd.f32 %v3460, %v3572
        %3574 = vmatmul.f32.gmra.mxu0 %v2949
        %v3575 = vpop.f32.mrf.mxu0
        %v3576 = vadd.f32 %v3463, %v3575
        %3577 = vmatmul.f32.gmra.mxu0 %v2958
        %v3578 = vpop.f32.mrf.mxu0
        %v3579 = vadd.f32 %v3466, %v3578
        %3580 = vmatmul.f32.gmra.mxu0 %v2967
        %v3581 = vpop.f32.mrf.mxu0
        %v3582 = vadd.f32 %v3469, %v3581
        %3583 = vmatmul.f32.gmra.mxu0 %v2976
        %v3584 = vpop.f32.mrf.mxu0
        %v3585 = vadd.f32 %v3472, %v3584
        %3586 = vmatmul.f32.gmra.mxu0 %v2985
        %v3587 = vpop.f32.mrf.mxu0
        %v3588 = vadd.f32 %v3475, %v3587
        %3589 = vdwg.mxu0
        %3590 = vmatpush.msra.mxu0 %v3071
        %3591 = vmatpush.msra.mxu0 %v3070
        %3592 = vmatpush.msra.mxu0 %v3069
        %3593 = vmatpush.msra.mxu0 %v3068
        %3594 = vmatpush.msra.mxu0 %v3067
        %3595 = vmatpush.msra.mxu0 %v3066
        %3596 = vmatpush.msra.mxu0 %v3065
        %3597 = vmatpush.msra.mxu0 %v3064
        %3598 = vmatpush.msra.mxu0 %v3063
        %3599 = vmatpush.msra.mxu0 %v3062
        %3600 = vmatpush.msra.mxu0 %v3061
        %3601 = vmatpush.msra.mxu0 %v3060
        %3602 = vmatpush.msra.mxu0 %v3059
        %3603 = vmatpush.msra.mxu0 %v3058
        %3604 = vmatpush.msra.mxu0 %v3057
        %3605 = vmatpush.msra.mxu0 %v3056
        %3606 = vmatmul.f32.gmra.mxu0 %v2707
        %v3607 = vpop.f32.mrf.mxu0
        %v3608 = vadd.f32 %v3495, %v3607
        %3609 = vmatmul.f32.gmra.mxu0 %v2716
        %v3610 = vpop.f32.mrf.mxu0
        %v3611 = vadd.f32 %v3498, %v3610
        %3612 = vmatmul.f32.gmra.mxu0 %v2725
        %v3613 = vpop.f32.mrf.mxu0
        %v3614 = vadd.f32 %v3501, %v3613
        %3615 = vmatmul.f32.gmra.mxu0 %v2734
        %v3616 = vpop.f32.mrf.mxu0
        %v3617 = vadd.f32 %v3504, %v3616
        %3618 = vmatmul.f32.gmra.mxu0 %v2743
        %v3619 = vpop.f32.mrf.mxu0
        %v3620 = vadd.f32 %v3507, %v3619
        %3621 = vmatmul.f32.gmra.mxu0 %v2752
        %v3622 = vpop.f32.mrf.mxu0
        %v3623 = vadd.f32 %v3510, %v3622
        %3624 = vmatmul.f32.gmra.mxu0 %v2761
        %v3625 = vpop.f32.mrf.mxu0
        %v3626 = vadd.f32 %v3513, %v3625
        %3627 = vmatmul.f32.gmra.mxu0 %v2770
        %v3628 = vpop.f32.mrf.mxu0
        %v3629 = vadd.f32 %v3516, %v3628
        %3630 = vmatmul.f32.gmra.mxu0 %v2779
        %v3631 = vpop.f32.mrf.mxu0
        %v3632 = vadd.f32 %v3519, %v3631
        %3633 = vmatmul.f32.gmra.mxu0 %v2788
        %v3634 = vpop.f32.mrf.mxu0
        %v3635 = vadd.f32 %v3522, %v3634
        %3636 = vmatmul.f32.gmra.mxu0 %v2797
        %v3637 = vpop.f32.mrf.mxu0
        %v3638 = vadd.f32 %v3525, %v3637
        %3639 = vmatmul.f32.gmra.mxu0 %v2806
        %v3640 = vpop.f32.mrf.mxu0
        %v3641 = vadd.f32 %v3528, %v3640
        %3642 = vmatmul.f32.gmra.mxu0 %v2815
        %v3643 = vpop.f32.mrf.mxu0
        %v3644 = vadd.f32 %v3531, %v3643
        %3645 = vmatmul.f32.gmra.mxu0 %v2824
        %v3646 = vpop.f32.mrf.mxu0
        %v3647 = vadd.f32 %v3534, %v3646
        %3648 = vmatmul.f32.gmra.mxu0 %v2833
        %v3649 = vpop.f32.mrf.mxu0
        %v3650 = vadd.f32 %v3537, %v3649
        %3651 = vmatmul.f32.gmra.mxu0 %v2842
        %v3652 = vpop.f32.mrf.mxu0
        %v3653 = vadd.f32 %v3540, %v3652
        %3654 = vmatmul.f32.gmra.mxu0 %v2851
        %v3655 = vpop.f32.mrf.mxu0
        %v3656 = vadd.f32 %v3543, %v3655
        %3657 = vmatmul.f32.gmra.mxu0 %v2860
        %v3658 = vpop.f32.mrf.mxu0
        %v3659 = vadd.f32 %v3546, %v3658
        %3660 = vmatmul.f32.gmra.mxu0 %v2869
        %v3661 = vpop.f32.mrf.mxu0
        %v3662 = vadd.f32 %v3549, %v3661
        %3663 = vmatmul.f32.gmra.mxu0 %v2878
        %v3664 = vpop.f32.mrf.mxu0
        %v3665 = vadd.f32 %v3552, %v3664
        %3666 = vmatmul.f32.gmra.mxu0 %v2887
        %v3667 = vpop.f32.mrf.mxu0
        %v3668 = vadd.f32 %v3555, %v3667
        %3669 = vmatmul.f32.gmra.mxu0 %v2896
        %v3670 = vpop.f32.mrf.mxu0
        %v3671 = vadd.f32 %v3558, %v3670
        %3672 = vmatmul.f32.gmra.mxu0 %v2905
        %v3673 = vpop.f32.mrf.mxu0
        %v3674 = vadd.f32 %v3561, %v3673
        %3675 = vmatmul.f32.gmra.mxu0 %v2914
        %v3676 = vpop.f32.mrf.mxu0
        %v3677 = vadd.f32 %v3564, %v3676
        %3678 = vmatmul.f32.gmra.mxu0 %v2923
        %v3679 = vpop.f32.mrf.mxu0
        %v3680 = vadd.f32 %v3567, %v3679
        %3681 = vmatmul.f32.gmra.mxu0 %v2932
        %v3682 = vpop.f32.mrf.mxu0
        %v3683 = vadd.f32 %v3570, %v3682
        %3684 = vmatmul.f32.gmra.mxu0 %v2941
        %v3685 = vpop.f32.mrf.mxu0
        %v3686 = vadd.f32 %v3573, %v3685
        %3687 = vmatmul.f32.gmra.mxu0 %v2950
        %v3688 = vpop.f32.mrf.mxu0
        %v3689 = vadd.f32 %v3576, %v3688
        %3690 = vmatmul.f32.gmra.mxu0 %v2959
        %v3691 = vpop.f32.mrf.mxu0
        %v3692 = vadd.f32 %v3579, %v3691
        %3693 = vmatmul.f32.gmra.mxu0 %v2968
        %v3694 = vpop.f32.mrf.mxu0
        %v3695 = vadd.f32 %v3582, %v3694
        %3696 = vmatmul.f32.gmra.mxu0 %v2977
        %v3697 = vpop.f32.mrf.mxu0
        %v3698 = vadd.f32 %v3585, %v3697
        %3699 = vmatmul.f32.gmra.mxu0 %v2986
        %v3700 = vpop.f32.mrf.mxu0
        %v3701 = vadd.f32 %v3588, %v3700
        %3702 = vdwg.mxu0
        %3703 = vmatpush.msra.mxu0 %v3087
        %3704 = vmatpush.msra.mxu0 %v3086
        %3705 = vmatpush.msra.mxu0 %v3085
        %3706 = vmatpush.msra.mxu0 %v3084
        %3707 = vmatpush.msra.mxu0 %v3083
        %3708 = vmatpush.msra.mxu0 %v3082
        %3709 = vmatpush.msra.mxu0 %v3081
        %3710 = vmatpush.msra.mxu0 %v3080
        %3711 = vmatpush.msra.mxu0 %v3079
        %3712 = vmatpush.msra.mxu0 %v3078
        %3713 = vmatpush.msra.mxu0 %v3077
        %3714 = vmatpush.msra.mxu0 %v3076
        %3715 = vmatpush.msra.mxu0 %v3075
        %3716 = vmatpush.msra.mxu0 %v3074
        %3717 = vmatpush.msra.mxu0 %v3073
        %3718 = vmatpush.msra.mxu0 %v3072
        %3719 = vmatmul.f32.gmra.mxu0 %v2708
        %v3720 = vpop.f32.mrf.mxu0
        %v3721 = vadd.f32 %v3608, %v3720
        %3722 = vmatmul.f32.gmra.mxu0 %v2717
        %v3723 = vpop.f32.mrf.mxu0
        %v3724 = vadd.f32 %v3611, %v3723
        %3725 = vmatmul.f32.gmra.mxu0 %v2726
        %v3726 = vpop.f32.mrf.mxu0
        %v3727 = vadd.f32 %v3614, %v3726
        %3728 = vmatmul.f32.gmra.mxu0 %v2735
        %v3729 = vpop.f32.mrf.mxu0
        %v3730 = vadd.f32 %v3617, %v3729
        %3731 = vmatmul.f32.gmra.mxu0 %v2744
        %v3732 = vpop.f32.mrf.mxu0
        %v3733 = vadd.f32 %v3620, %v3732
        %3734 = vmatmul.f32.gmra.mxu0 %v2753
        %v3735 = vpop.f32.mrf.mxu0
        %v3736 = vadd.f32 %v3623, %v3735
        %3737 = vmatmul.f32.gmra.mxu0 %v2762
        %v3738 = vpop.f32.mrf.mxu0
        %v3739 = vadd.f32 %v3626, %v3738
        %3740 = vmatmul.f32.gmra.mxu0 %v2771
        %v3741 = vpop.f32.mrf.mxu0
        %v3742 = vadd.f32 %v3629, %v3741
        %3743 = vmatmul.f32.gmra.mxu0 %v2780
        %v3744 = vpop.f32.mrf.mxu0
        %v3745 = vadd.f32 %v3632, %v3744
        %3746 = vmatmul.f32.gmra.mxu0 %v2789
        %v3747 = vpop.f32.mrf.mxu0
        %v3748 = vadd.f32 %v3635, %v3747
        %3749 = vmatmul.f32.gmra.mxu0 %v2798
        %v3750 = vpop.f32.mrf.mxu0
        %v3751 = vadd.f32 %v3638, %v3750
        %3752 = vmatmul.f32.gmra.mxu0 %v2807
        %v3753 = vpop.f32.mrf.mxu0
        %v3754 = vadd.f32 %v3641, %v3753
        %3755 = vmatmul.f32.gmra.mxu0 %v2816
        %v3756 = vpop.f32.mrf.mxu0
        %v3757 = vadd.f32 %v3644, %v3756
        %3758 = vmatmul.f32.gmra.mxu0 %v2825
        %v3759 = vpop.f32.mrf.mxu0
        %v3760 = vadd.f32 %v3647, %v3759
        %3761 = vmatmul.f32.gmra.mxu0 %v2834
        %v3762 = vpop.f32.mrf.mxu0
        %v3763 = vadd.f32 %v3650, %v3762
        %3764 = vmatmul.f32.gmra.mxu0 %v2843
        %v3765 = vpop.f32.mrf.mxu0
        %v3766 = vadd.f32 %v3653, %v3765
        %3767 = vmatmul.f32.gmra.mxu0 %v2852
        %v3768 = vpop.f32.mrf.mxu0
        %v3769 = vadd.f32 %v3656, %v3768
        %3770 = vmatmul.f32.gmra.mxu0 %v2861
        %v3771 = vpop.f32.mrf.mxu0
        %v3772 = vadd.f32 %v3659, %v3771
        %3773 = vmatmul.f32.gmra.mxu0 %v2870
        %v3774 = vpop.f32.mrf.mxu0
        %v3775 = vadd.f32 %v3662, %v3774
        %3776 = vmatmul.f32.gmra.mxu0 %v2879
        %v3777 = vpop.f32.mrf.mxu0
        %v3778 = vadd.f32 %v3665, %v3777
        %3779 = vmatmul.f32.gmra.mxu0 %v2888
        %v3780 = vpop.f32.mrf.mxu0
        %v3781 = vadd.f32 %v3668, %v3780
        %3782 = vmatmul.f32.gmra.mxu0 %v2897
        %v3783 = vpop.f32.mrf.mxu0
        %v3784 = vadd.f32 %v3671, %v3783
        %3785 = vmatmul.f32.gmra.mxu0 %v2906
        %v3786 = vpop.f32.mrf.mxu0
        %v3787 = vadd.f32 %v3674, %v3786
        %3788 = vmatmul.f32.gmra.mxu0 %v2915
        %v3789 = vpop.f32.mrf.mxu0
        %v3790 = vadd.f32 %v3677, %v3789
        %3791 = vmatmul.f32.gmra.mxu0 %v2924
        %v3792 = vpop.f32.mrf.mxu0
        %v3793 = vadd.f32 %v3680, %v3792
        %3794 = vmatmul.f32.gmra.mxu0 %v2933
        %v3795 = vpop.f32.mrf.mxu0
        %v3796 = vadd.f32 %v3683, %v3795
        %3797 = vmatmul.f32.gmra.mxu0 %v2942
        %v3798 = vpop.f32.mrf.mxu0
        %v3799 = vadd.f32 %v3686, %v3798
        %3800 = vmatmul.f32.gmra.mxu0 %v2951
        %v3801 = vpop.f32.mrf.mxu0
        %v3802 = vadd.f32 %v3689, %v3801
        %3803 = vmatmul.f32.gmra.mxu0 %v2960
        %v3804 = vpop.f32.mrf.mxu0
        %v3805 = vadd.f32 %v3692, %v3804
        %3806 = vmatmul.f32.gmra.mxu0 %v2969
        %v3807 = vpop.f32.mrf.mxu0
        %v3808 = vadd.f32 %v3695, %v3807
        %3809 = vmatmul.f32.gmra.mxu0 %v2978
        %v3810 = vpop.f32.mrf.mxu0
        %v3811 = vadd.f32 %v3698, %v3810
        %3812 = vmatmul.f32.gmra.mxu0 %v2987
        %v3813 = vpop.f32.mrf.mxu0
        %v3814 = vadd.f32 %v3701, %v3813
        %3815 = vdwg.mxu0
        %3816 = vmatpush.msra.mxu0 %v3103
        %3817 = vmatpush.msra.mxu0 %v3102
        %3818 = vmatpush.msra.mxu0 %v3101
        %3819 = vmatpush.msra.mxu0 %v3100
        %3820 = vmatpush.msra.mxu0 %v3099
        %3821 = vmatpush.msra.mxu0 %v3098
        %3822 = vmatpush.msra.mxu0 %v3097
        %3823 = vmatpush.msra.mxu0 %v3096
        %3824 = vmatpush.msra.mxu0 %v3095
        %3825 = vmatpush.msra.mxu0 %v3094
        %3826 = vmatpush.msra.mxu0 %v3093
        %3827 = vmatpush.msra.mxu0 %v3092
        %3828 = vmatpush.msra.mxu0 %v3091
        %3829 = vmatpush.msra.mxu0 %v3090
        %3830 = vmatpush.msra.mxu0 %v3089
        %3831 = vmatpush.msra.mxu0 %v3088
        %3832 = vmatmul.f32.gmra.mxu0 %v2709
        %v3833 = vpop.f32.mrf.mxu0
        %v3834 = vadd.f32 %v3721, %v3833
        %3835 = vmatmul.f32.gmra.mxu0 %v2718
        %v3836 = vpop.f32.mrf.mxu0
        %v3837 = vadd.f32 %v3724, %v3836
        %3838 = vmatmul.f32.gmra.mxu0 %v2727
        %v3839 = vpop.f32.mrf.mxu0
        %v3840 = vadd.f32 %v3727, %v3839
        %3841 = vmatmul.f32.gmra.mxu0 %v2736
        %v3842 = vpop.f32.mrf.mxu0
        %v3843 = vadd.f32 %v3730, %v3842
        %3844 = vmatmul.f32.gmra.mxu0 %v2745
        %v3845 = vpop.f32.mrf.mxu0
        %v3846 = vadd.f32 %v3733, %v3845
        %3847 = vmatmul.f32.gmra.mxu0 %v2754
        %v3848 = vpop.f32.mrf.mxu0
        %v3849 = vadd.f32 %v3736, %v3848
        %3850 = vmatmul.f32.gmra.mxu0 %v2763
        %v3851 = vpop.f32.mrf.mxu0
        %v3852 = vadd.f32 %v3739, %v3851
        %3853 = vmatmul.f32.gmra.mxu0 %v2772
        %v3854 = vpop.f32.mrf.mxu0
        %v3855 = vadd.f32 %v3742, %v3854
        %3856 = vmatmul.f32.gmra.mxu0 %v2781
        %v3857 = vpop.f32.mrf.mxu0
        %v3858 = vadd.f32 %v3745, %v3857
        %3859 = vmatmul.f32.gmra.mxu0 %v2790
        %v3860 = vpop.f32.mrf.mxu0
        %v3861 = vadd.f32 %v3748, %v3860
        %3862 = vmatmul.f32.gmra.mxu0 %v2799
        %v3863 = vpop.f32.mrf.mxu0
        %v3864 = vadd.f32 %v3751, %v3863
        %3865 = vmatmul.f32.gmra.mxu0 %v2808
        %v3866 = vpop.f32.mrf.mxu0
        %v3867 = vadd.f32 %v3754, %v3866
        %3868 = vmatmul.f32.gmra.mxu0 %v2817
        %v3869 = vpop.f32.mrf.mxu0
        %v3870 = vadd.f32 %v3757, %v3869
        %3871 = vmatmul.f32.gmra.mxu0 %v2826
        %v3872 = vpop.f32.mrf.mxu0
        %v3873 = vadd.f32 %v3760, %v3872
        %3874 = vmatmul.f32.gmra.mxu0 %v2835
        %v3875 = vpop.f32.mrf.mxu0
        %v3876 = vadd.f32 %v3763, %v3875
        %3877 = vmatmul.f32.gmra.mxu0 %v2844
        %v3878 = vpop.f32.mrf.mxu0
        %v3879 = vadd.f32 %v3766, %v3878
        %3880 = vmatmul.f32.gmra.mxu0 %v2853
        %v3881 = vpop.f32.mrf.mxu0
        %v3882 = vadd.f32 %v3769, %v3881
        %3883 = vmatmul.f32.gmra.mxu0 %v2862
        %v3884 = vpop.f32.mrf.mxu0
        %v3885 = vadd.f32 %v3772, %v3884
        %3886 = vmatmul.f32.gmra.mxu0 %v2871
        %v3887 = vpop.f32.mrf.mxu0
        %v3888 = vadd.f32 %v3775, %v3887
        %3889 = vmatmul.f32.gmra.mxu0 %v2880
        %v3890 = vpop.f32.mrf.mxu0
        %v3891 = vadd.f32 %v3778, %v3890
        %3892 = vmatmul.f32.gmra.mxu0 %v2889
        %v3893 = vpop.f32.mrf.mxu0
        %v3894 = vadd.f32 %v3781, %v3893
        %3895 = vmatmul.f32.gmra.mxu0 %v2898
        %v3896 = vpop.f32.mrf.mxu0
        %v3897 = vadd.f32 %v3784, %v3896
        %3898 = vmatmul.f32.gmra.mxu0 %v2907
        %v3899 = vpop.f32.mrf.mxu0
        %v3900 = vadd.f32 %v3787, %v3899
        %3901 = vmatmul.f32.gmra.mxu0 %v2916
        %v3902 = vpop.f32.mrf.mxu0
        %v3903 = vadd.f32 %v3790, %v3902
        %3904 = vmatmul.f32.gmra.mxu0 %v2925
        %v3905 = vpop.f32.mrf.mxu0
        %v3906 = vadd.f32 %v3793, %v3905
        %3907 = vmatmul.f32.gmra.mxu0 %v2934
        %v3908 = vpop.f32.mrf.mxu0
        %v3909 = vadd.f32 %v3796, %v3908
        %3910 = vmatmul.f32.gmra.mxu0 %v2943
        %v3911 = vpop.f32.mrf.mxu0
        %v3912 = vadd.f32 %v3799, %v3911
        %3913 = vmatmul.f32.gmra.mxu0 %v2952
        %v3914 = vpop.f32.mrf.mxu0
        %v3915 = vadd.f32 %v3802, %v3914
        %3916 = vmatmul.f32.gmra.mxu0 %v2961
        %v3917 = vpop.f32.mrf.mxu0
        %v3918 = vadd.f32 %v3805, %v3917
        %3919 = vmatmul.f32.gmra.mxu0 %v2970
        %v3920 = vpop.f32.mrf.mxu0
        %v3921 = vadd.f32 %v3808, %v3920
        %3922 = vmatmul.f32.gmra.mxu0 %v2979
        %v3923 = vpop.f32.mrf.mxu0
        %v3924 = vadd.f32 %v3811, %v3923
        %3925 = vmatmul.f32.gmra.mxu0 %v2988
        %v3926 = vpop.f32.mrf.mxu0
        %v3927 = vadd.f32 %v3814, %v3926
        %3928 = vdwg.mxu0
        %3929 = vmatpush.msra.mxu0 %v3119
        %3930 = vmatpush.msra.mxu0 %v3118
        %3931 = vmatpush.msra.mxu0 %v3117
        %3932 = vmatpush.msra.mxu0 %v3116
        %3933 = vmatpush.msra.mxu0 %v3115
        %3934 = vmatpush.msra.mxu0 %v3114
        %3935 = vmatpush.msra.mxu0 %v3113
        %3936 = vmatpush.msra.mxu0 %v3112
        %3937 = vmatpush.msra.mxu0 %v3111
        %3938 = vmatpush.msra.mxu0 %v3110
        %3939 = vmatpush.msra.mxu0 %v3109
        %3940 = vmatpush.msra.mxu0 %v3108
        %3941 = vmatpush.msra.mxu0 %v3107
        %3942 = vmatpush.msra.mxu0 %v3106
        %3943 = vmatpush.msra.mxu0 %v3105
        %3944 = vmatpush.msra.mxu0 %v3104
        %3945 = vmatmul.f32.gmra.mxu0 %v2710
        %v3946 = vpop.f32.mrf.mxu0
        %v3947 = vadd.f32 %v3834, %v3946
        %3948 = vmatmul.f32.gmra.mxu0 %v2719
        %v3949 = vpop.f32.mrf.mxu0
        %v3950 = vadd.f32 %v3837, %v3949
        %3951 = vmatmul.f32.gmra.mxu0 %v2728
        %v3952 = vpop.f32.mrf.mxu0
        %v3953 = vadd.f32 %v3840, %v3952
        %3954 = vmatmul.f32.gmra.mxu0 %v2737
        %v3955 = vpop.f32.mrf.mxu0
        %v3956 = vadd.f32 %v3843, %v3955
        %3957 = vmatmul.f32.gmra.mxu0 %v2746
        %v3958 = vpop.f32.mrf.mxu0
        %v3959 = vadd.f32 %v3846, %v3958
        %3960 = vmatmul.f32.gmra.mxu0 %v2755
        %v3961 = vpop.f32.mrf.mxu0
        %v3962 = vadd.f32 %v3849, %v3961
        %3963 = vmatmul.f32.gmra.mxu0 %v2764
        %v3964 = vpop.f32.mrf.mxu0
        %v3965 = vadd.f32 %v3852, %v3964
        %3966 = vmatmul.f32.gmra.mxu0 %v2773
        %v3967 = vpop.f32.mrf.mxu0
        %v3968 = vadd.f32 %v3855, %v3967
        %3969 = vmatmul.f32.gmra.mxu0 %v2782
        %v3970 = vpop.f32.mrf.mxu0
        %v3971 = vadd.f32 %v3858, %v3970
        %3972 = vmatmul.f32.gmra.mxu0 %v2791
        %v3973 = vpop.f32.mrf.mxu0
        %v3974 = vadd.f32 %v3861, %v3973
        %3975 = vmatmul.f32.gmra.mxu0 %v2800
        %v3976 = vpop.f32.mrf.mxu0
        %v3977 = vadd.f32 %v3864, %v3976
        %3978 = vmatmul.f32.gmra.mxu0 %v2809
        %v3979 = vpop.f32.mrf.mxu0
        %v3980 = vadd.f32 %v3867, %v3979
        %3981 = vmatmul.f32.gmra.mxu0 %v2818
        %v3982 = vpop.f32.mrf.mxu0
        %v3983 = vadd.f32 %v3870, %v3982
        %3984 = vmatmul.f32.gmra.mxu0 %v2827
        %v3985 = vpop.f32.mrf.mxu0
        %v3986 = vadd.f32 %v3873, %v3985
        %3987 = vmatmul.f32.gmra.mxu0 %v2836
        %v3988 = vpop.f32.mrf.mxu0
        %v3989 = vadd.f32 %v3876, %v3988
        %3990 = vmatmul.f32.gmra.mxu0 %v2845
        %v3991 = vpop.f32.mrf.mxu0
        %v3992 = vadd.f32 %v3879, %v3991
        %3993 = vmatmul.f32.gmra.mxu0 %v2854
        %v3994 = vpop.f32.mrf.mxu0
        %v3995 = vadd.f32 %v3882, %v3994
        %3996 = vmatmul.f32.gmra.mxu0 %v2863
        %v3997 = vpop.f32.mrf.mxu0
        %v3998 = vadd.f32 %v3885, %v3997
        %3999 = vmatmul.f32.gmra.mxu0 %v2872
        %v4000 = vpop.f32.mrf.mxu0
        %v4001 = vadd.f32 %v3888, %v4000
        %4002 = vmatmul.f32.gmra.mxu0 %v2881
        %v4003 = vpop.f32.mrf.mxu0
        %v4004 = vadd.f32 %v3891, %v4003
        %4005 = vmatmul.f32.gmra.mxu0 %v2890
        %v4006 = vpop.f32.mrf.mxu0
        %v4007 = vadd.f32 %v3894, %v4006
        %4008 = vmatmul.f32.gmra.mxu0 %v2899
        %v4009 = vpop.f32.mrf.mxu0
        %v4010 = vadd.f32 %v3897, %v4009
        %4011 = vmatmul.f32.gmra.mxu0 %v2908
        %v4012 = vpop.f32.mrf.mxu0
        %v4013 = vadd.f32 %v3900, %v4012
        %4014 = vmatmul.f32.gmra.mxu0 %v2917
        %v4015 = vpop.f32.mrf.mxu0
        %v4016 = vadd.f32 %v3903, %v4015
        %4017 = vmatmul.f32.gmra.mxu0 %v2926
        %v4018 = vpop.f32.mrf.mxu0
        %v4019 = vadd.f32 %v3906, %v4018
        %4020 = vmatmul.f32.gmra.mxu0 %v2935
        %v4021 = vpop.f32.mrf.mxu0
        %v4022 = vadd.f32 %v3909, %v4021
        %4023 = vmatmul.f32.gmra.mxu0 %v2944
        %v4024 = vpop.f32.mrf.mxu0
        %v4025 = vadd.f32 %v3912, %v4024
        %4026 = vmatmul.f32.gmra.mxu0 %v2953
        %v4027 = vpop.f32.mrf.mxu0
        %v4028 = vadd.f32 %v3915, %v4027
        %4029 = vmatmul.f32.gmra.mxu0 %v2962
        %v4030 = vpop.f32.mrf.mxu0
        %v4031 = vadd.f32 %v3918, %v4030
        %4032 = vmatmul.f32.gmra.mxu0 %v2971
        %v4033 = vpop.f32.mrf.mxu0
        %v4034 = vadd.f32 %v3921, %v4033
        %4035 = vmatmul.f32.gmra.mxu0 %v2980
        %v4036 = vpop.f32.mrf.mxu0
        %v4037 = vadd.f32 %v3924, %v4036
        %4038 = vmatmul.f32.gmra.mxu0 %v2989
        %v4039 = vpop.f32.mrf.mxu0
        %v4040 = vadd.f32 %v3927, %v4039
        %4041 = vdwg.mxu0
        %4042 = vmatpush.msra.mxu0 %v3135
        %4043 = vmatpush.msra.mxu0 %v3134
        %4044 = vmatpush.msra.mxu0 %v3133
        %4045 = vmatpush.msra.mxu0 %v3132
        %4046 = vmatpush.msra.mxu0 %v3131
        %4047 = vmatpush.msra.mxu0 %v3130
        %4048 = vmatpush.msra.mxu0 %v3129
        %4049 = vmatpush.msra.mxu0 %v3128
        %4050 = vmatpush.msra.mxu0 %v3127
        %4051 = vmatpush.msra.mxu0 %v3126
        %4052 = vmatpush.msra.mxu0 %v3125
        %4053 = vmatpush.msra.mxu0 %v3124
        %4054 = vmatpush.msra.mxu0 %v3123
        %4055 = vmatpush.msra.mxu0 %v3122
        %4056 = vmatpush.msra.mxu0 %v3121
        %4057 = vmatpush.msra.mxu0 %v3120
        %4058 = vmatmul.f32.gmra.mxu0 %v2711
        %v4059 = vpop.f32.mrf.mxu0
        %v4060 = vadd.f32 %v3947, %v4059
        %4061 = vmatmul.f32.gmra.mxu0 %v2720
        %v4062 = vpop.f32.mrf.mxu0
        %v4063 = vadd.f32 %v3950, %v4062
        %4064 = vmatmul.f32.gmra.mxu0 %v2729
        %v4065 = vpop.f32.mrf.mxu0
        %v4066 = vadd.f32 %v3953, %v4065
        %4067 = vmatmul.f32.gmra.mxu0 %v2738
        %v4068 = vpop.f32.mrf.mxu0
        %v4069 = vadd.f32 %v3956, %v4068
        %4070 = vmatmul.f32.gmra.mxu0 %v2747
        %v4071 = vpop.f32.mrf.mxu0
        %v4072 = vadd.f32 %v3959, %v4071
        %4073 = vmatmul.f32.gmra.mxu0 %v2756
        %v4074 = vpop.f32.mrf.mxu0
        %v4075 = vadd.f32 %v3962, %v4074
        %4076 = vmatmul.f32.gmra.mxu0 %v2765
        %v4077 = vpop.f32.mrf.mxu0
        %v4078 = vadd.f32 %v3965, %v4077
        %4079 = vmatmul.f32.gmra.mxu0 %v2774
        %v4080 = vpop.f32.mrf.mxu0
        %v4081 = vadd.f32 %v3968, %v4080
        %4082 = vmatmul.f32.gmra.mxu0 %v2783
        %v4083 = vpop.f32.mrf.mxu0
        %v4084 = vadd.f32 %v3971, %v4083
        %4085 = vmatmul.f32.gmra.mxu0 %v2792
        %v4086 = vpop.f32.mrf.mxu0
        %v4087 = vadd.f32 %v3974, %v4086
        %4088 = vmatmul.f32.gmra.mxu0 %v2801
        %v4089 = vpop.f32.mrf.mxu0
        %v4090 = vadd.f32 %v3977, %v4089
        %4091 = vmatmul.f32.gmra.mxu0 %v2810
        %v4092 = vpop.f32.mrf.mxu0
        %v4093 = vadd.f32 %v3980, %v4092
        %4094 = vmatmul.f32.gmra.mxu0 %v2819
        %v4095 = vpop.f32.mrf.mxu0
        %v4096 = vadd.f32 %v3983, %v4095
        %4097 = vmatmul.f32.gmra.mxu0 %v2828
        %v4098 = vpop.f32.mrf.mxu0
        %v4099 = vadd.f32 %v3986, %v4098
        %4100 = vmatmul.f32.gmra.mxu0 %v2837
        %v4101 = vpop.f32.mrf.mxu0
        %v4102 = vadd.f32 %v3989, %v4101
        %4103 = vmatmul.f32.gmra.mxu0 %v2846
        %v4104 = vpop.f32.mrf.mxu0
        %v4105 = vadd.f32 %v3992, %v4104
        %4106 = vmatmul.f32.gmra.mxu0 %v2855
        %v4107 = vpop.f32.mrf.mxu0
        %v4108 = vadd.f32 %v3995, %v4107
        %4109 = vmatmul.f32.gmra.mxu0 %v2864
        %v4110 = vpop.f32.mrf.mxu0
        %v4111 = vadd.f32 %v3998, %v4110
        %4112 = vmatmul.f32.gmra.mxu0 %v2873
        %v4113 = vpop.f32.mrf.mxu0
        %v4114 = vadd.f32 %v4001, %v4113
        %4115 = vmatmul.f32.gmra.mxu0 %v2882
        %v4116 = vpop.f32.mrf.mxu0
        %v4117 = vadd.f32 %v4004, %v4116
        %4118 = vmatmul.f32.gmra.mxu0 %v2891
        %v4119 = vpop.f32.mrf.mxu0
        %v4120 = vadd.f32 %v4007, %v4119
        %4121 = vmatmul.f32.gmra.mxu0 %v2900
        %v4122 = vpop.f32.mrf.mxu0
        %v4123 = vadd.f32 %v4010, %v4122
        %4124 = vmatmul.f32.gmra.mxu0 %v2909
        %v4125 = vpop.f32.mrf.mxu0
        %v4126 = vadd.f32 %v4013, %v4125
        %4127 = vmatmul.f32.gmra.mxu0 %v2918
        %v4128 = vpop.f32.mrf.mxu0
        %v4129 = vadd.f32 %v4016, %v4128
        %4130 = vmatmul.f32.gmra.mxu0 %v2927
        %v4131 = vpop.f32.mrf.mxu0
        %v4132 = vadd.f32 %v4019, %v4131
        %4133 = vmatmul.f32.gmra.mxu0 %v2936
        %v4134 = vpop.f32.mrf.mxu0
        %v4135 = vadd.f32 %v4022, %v4134
        %4136 = vmatmul.f32.gmra.mxu0 %v2945
        %v4137 = vpop.f32.mrf.mxu0
        %v4138 = vadd.f32 %v4025, %v4137
        %4139 = vmatmul.f32.gmra.mxu0 %v2954
        %v4140 = vpop.f32.mrf.mxu0
        %v4141 = vadd.f32 %v4028, %v4140
        %4142 = vmatmul.f32.gmra.mxu0 %v2963
        %v4143 = vpop.f32.mrf.mxu0
        %v4144 = vadd.f32 %v4031, %v4143
        %4145 = vmatmul.f32.gmra.mxu0 %v2972
        %v4146 = vpop.f32.mrf.mxu0
        %v4147 = vadd.f32 %v4034, %v4146
        %4148 = vmatmul.f32.gmra.mxu0 %v2981
        %v4149 = vpop.f32.mrf.mxu0
        %v4150 = vadd.f32 %v4037, %v4149
        %4151 = vmatmul.f32.gmra.mxu0 %v2990
        %v4152 = vpop.f32.mrf.mxu0
        %v4153 = vadd.f32 %v4040, %v4152
        %4154 = vdwg.mxu0
        %v4155 = vmax.f32 %v4060, 0.0
        %v4156 = vmax.f32 %v4063, 0.0
        %v4157 = vmax.f32 %v4066, 0.0
        %v4158 = vmax.f32 %v4069, 0.0
        %v4159 = vmax.f32 %v4072, 0.0
        %v4160 = vmax.f32 %v4075, 0.0
        %v4161 = vmax.f32 %v4078, 0.0
        %v4162 = vmax.f32 %v4081, 0.0
        %v4163 = vmax.f32 %v4084, 0.0
        %v4164 = vmax.f32 %v4087, 0.0
        %v4165 = vmax.f32 %v4090, 0.0
        %v4166 = vmax.f32 %v4093, 0.0
        %v4167 = vmax.f32 %v4096, 0.0
        %v4168 = vmax.f32 %v4099, 0.0
        %v4169 = vmax.f32 %v4102, 0.0
        %v4170 = vmax.f32 %v4105, 0.0
        %v4171 = vmax.f32 %v4108, 0.0
        %v4172 = vmax.f32 %v4111, 0.0
        %v4173 = vmax.f32 %v4114, 0.0
        %v4174 = vmax.f32 %v4117, 0.0
        %v4175 = vmax.f32 %v4120, 0.0
        %v4176 = vmax.f32 %v4123, 0.0
        %v4177 = vmax.f32 %v4126, 0.0
        %v4178 = vmax.f32 %v4129, 0.0
        %v4179 = vmax.f32 %v4132, 0.0
        %v4180 = vmax.f32 %v4135, 0.0
        %v4181 = vmax.f32 %v4138, 0.0
        %v4182 = vmax.f32 %v4141, 0.0
        %v4183 = vmax.f32 %v4144, 0.0
        %v4184 = vmax.f32 %v4147, 0.0
        %v4185 = vmax.f32 %v4150, 0.0
        %v4186 = vmax.f32 %v4153, 0.0
        %4187 = vst [vmem:[%s362 + $0x1] sm:$0xff] %v4155
        %4188 = vst [vmem:[%s362 + $0x9] sm:$0xff] %v4156
        %4189 = vst [vmem:[%s362 + $0x19] sm:$0xff] %v4157
        %4190 = vst [vmem:[%s362 + $0x21] sm:$0xff] %v4158
        %4191 = vst [vmem:[%s362 + $0x31] sm:$0xff] %v4159
        %4192 = vst [vmem:[%s362 + $0x39] sm:$0xff] %v4160
        %4193 = vst [vmem:[%s362 + $0x49] sm:$0xff] %v4161
        %4194 = vst [vmem:[%s362 + $0x51] sm:$0xff] %v4162
        %4195 = vst [vmem:[%s362 + $0x61] sm:$0xff] %v4163
        %4196 = vst [vmem:[%s362 + $0x69] sm:$0xff] %v4164
        %4197 = vst [vmem:[%s362 + $0x79] sm:$0xff] %v4165
        %4198 = vst [vmem:[%s362 + $0x81] sm:$0xff] %v4166
        %4199 = vst [vmem:[%s362 + $0x91] sm:$0xff] %v4167
        %4200 = vst [vmem:[%s362 + $0x99] sm:$0xff] %v4168
        %4201 = vst [vmem:[%s362 + $0xa9] sm:$0xff] %v4169
        %4202 = vst [vmem:[%s362 + $0xb1] sm:$0xff] %v4170
        %4203 = vst [vmem:[%s362 + $0xc1] sm:$0xff] %v4171
        %4204 = vst [vmem:[%s362 + $0xc9] sm:$0xff] %v4172
        %4205 = vst [vmem:[%s362 + $0xd9] sm:$0xff] %v4173
        %4206 = vst [vmem:[%s362 + $0xe1] sm:$0xff] %v4174
        %4207 = vst [vmem:[%s362 + $0xf1] sm:$0xff] %v4175
        %4208 = vst [vmem:[%s362 + $0xf9] sm:$0xff] %v4176
        %4209 = vst [vmem:[%s362 + $0x109] sm:$0xff] %v4177
        %4210 = vst [vmem:[%s362 + $0x111] sm:$0xff] %v4178
        %4211 = vst [vmem:[%s362 + $0x121] sm:$0xff] %v4179
        %4212 = vst [vmem:[%s362 + $0x129] sm:$0xff] %v4180
        %4213 = vst [vmem:[%s362 + $0x139] sm:$0xff] %v4181
        %4214 = vst [vmem:[%s362 + $0x141] sm:$0xff] %v4182
        %4215 = vst [vmem:[%s362 + $0x151] sm:$0xff] %v4183
        %4216 = vst [vmem:[%s362 + $0x159] sm:$0xff] %v4184
        %4217 = vst [vmem:[%s362 + $0x169] sm:$0xff] %v4185
        %4218 = vst [vmem:[%s362 + $0x171] sm:$0xff] %v4186
        %v4219 = vld [vmem:[#allocation2] sm:$0xff]
        %v4220 = vld [vmem:[#allocation2 + $0x8] sm:$0xff]
        %v4221 = vld [vmem:[#allocation2 + $0x18] sm:$0xff]
        %v4222 = vld [vmem:[#allocation2 + $0x20] sm:$0xff]
        %v4223 = vld [vmem:[#allocation2 + $0x30] sm:$0xff]
        %v4224 = vld [vmem:[#allocation2 + $0x38] sm:$0xff]
        %v4225 = vld [vmem:[#allocation2 + $0x48] sm:$0xff]
        %v4226 = vld [vmem:[#allocation2 + $0x50] sm:$0xff]
        %v4227 = vld [vmem:[#allocation2 + $0x60] sm:$0xff]
        %v4228 = vld [vmem:[#allocation2 + $0x68] sm:$0xff]
        %v4229 = vld [vmem:[#allocation2 + $0x78] sm:$0xff]
        %v4230 = vld [vmem:[#allocation2 + $0x80] sm:$0xff]
        %v4231 = vld [vmem:[#allocation2 + $0x90] sm:$0xff]
        %v4232 = vld [vmem:[#allocation2 + $0x98] sm:$0xff]
        %v4233 = vld [vmem:[#allocation2 + $0xa8] sm:$0xff]
        %v4234 = vld [vmem:[#allocation2 + $0xb0] sm:$0xff]
        %v4235 = vld [vmem:[#allocation2 + $0xc0] sm:$0xff]
        %v4236 = vld [vmem:[#allocation2 + $0xc8] sm:$0xff]
        %v4237 = vld [vmem:[#allocation2 + $0xd8] sm:$0xff]
        %v4238 = vld [vmem:[#allocation2 + $0xe0] sm:$0xff]
        %v4239 = vld [vmem:[#allocation2 + $0xf0] sm:$0xff]
        %v4240 = vld [vmem:[#allocation2 + $0xf8] sm:$0xff]
        %v4241 = vld [vmem:[#allocation2 + $0x108] sm:$0xff]
        %v4242 = vld [vmem:[#allocation2 + $0x110] sm:$0xff]
        %v4243 = vld [vmem:[#allocation2 + $0x120] sm:$0xff]
        %v4244 = vld [vmem:[#allocation2 + $0x128] sm:$0xff]
        %v4245 = vld [vmem:[#allocation2 + $0x138] sm:$0xff]
        %v4246 = vld [vmem:[#allocation2 + $0x140] sm:$0xff]
        %v4247 = vld [vmem:[#allocation2 + $0x150] sm:$0xff]
        %v4248 = vld [vmem:[#allocation2 + $0x158] sm:$0xff]
        %v4249 = vld [vmem:[#allocation2 + $0x168] sm:$0xff]
        %v4250 = vld [vmem:[#allocation2 + $0x170] sm:$0xff]
        %v4251 = vld [vmem:[#allocation2 + $0x180] sm:$0xff]
        %v4252 = vld [vmem:[#allocation2 + $0x188] sm:$0xff]
        %v4253 = vld [vmem:[#allocation2 + $0x198] sm:$0xff]
        %v4254 = vld [vmem:[#allocation2 + $0x1a0] sm:$0xff]
        %4255 = vst [vmem:[#allocation4] sm:$0xff] %v4219
        %4256 = vst [vmem:[#allocation4 + $0x48] sm:$0xff] %v4220
        %4257 = vst [vmem:[#allocation4 + $0x90] sm:$0xff] %v4221
        %4258 = vst [vmem:[#allocation4 + $0xd8] sm:$0xff] %v4222
        %4259 = vst [vmem:[#allocation4 + $0x120] sm:$0xff] %v4223
        %4260 = vst [vmem:[#allocation4 + $0x168] sm:$0xff] %v4224
        %4261 = vst [vmem:[#allocation4 + $0x1b0] sm:$0xff] %v4225
        %4262 = vst [vmem:[#allocation4 + $0x1f8] sm:$0xff] %v4226
        %4263 = vst [vmem:[#allocation4 + $0x240] sm:$0xff] %v4227
        %4264 = vst [vmem:[#allocation4 + $0x288] sm:$0xff] %v4228
        %4265 = vst [vmem:[#allocation4 + $0x2d0] sm:$0xff] %v4229
        %4266 = vst [vmem:[#allocation4 + $0x318] sm:$0xff] %v4230
        %4267 = vst [vmem:[#allocation4 + $0x360] sm:$0xff] %v4231
        %4268 = vst [vmem:[#allocation4 + $0x3a8] sm:$0xff] %v4232
        %4269 = vst [vmem:[#allocation4 + $0x3f0] sm:$0xff] %v4233
        %4270 = vst [vmem:[#allocation4 + $0x438] sm:$0xff] %v4234
        %4271 = vst [vmem:[#allocation4 + $0x480] sm:$0xff] %v4235
        %4272 = vst [vmem:[#allocation4 + $0x4c8] sm:$0xff] %v4236
        %4273 = vst [vmem:[#allocation4 + $0x510] sm:$0xff] %v4237
        %4274 = vst [vmem:[#allocation4 + $0x558] sm:$0xff] %v4238
        %4275 = vst [vmem:[#allocation4 + $0x5a0] sm:$0xff] %v4239
        %4276 = vst [vmem:[#allocation4 + $0x5e8] sm:$0xff] %v4240
        %4277 = vst [vmem:[#allocation4 + $0x630] sm:$0xff] %v4241
        %4278 = vst [vmem:[#allocation4 + $0x678] sm:$0xff] %v4242
        %4279 = vst [vmem:[#allocation4 + $0x6c0] sm:$0xff] %v4243
        %4280 = vst [vmem:[#allocation4 + $0x708] sm:$0xff] %v4244
        %4281 = vst [vmem:[#allocation4 + $0x750] sm:$0xff] %v4245
        %4282 = vst [vmem:[#allocation4 + $0x798] sm:$0xff] %v4246
        %4283 = vst [vmem:[#allocation4 + $0x7e0] sm:$0xff] %v4247
        %4284 = vst [vmem:[#allocation4 + $0x828] sm:$0xff] %v4248
        %4285 = vst [vmem:[#allocation4 + $0x870] sm:$0xff] %v4249
        %4286 = vst [vmem:[#allocation4 + $0x8b8] sm:$0xff] %v4250
        %4287 = vst [vmem:[#allocation4 + $0x8] sm:$0xff] %v4221
        %4288 = vst [vmem:[#allocation4 + $0x50] sm:$0xff] %v4222
        %4289 = vst [vmem:[#allocation4 + $0x98] sm:$0xff] %v4223
        %4290 = vst [vmem:[#allocation4 + $0xe0] sm:$0xff] %v4224
        %4291 = vst [vmem:[#allocation4 + $0x128] sm:$0xff] %v4225
        %4292 = vst [vmem:[#allocation4 + $0x170] sm:$0xff] %v4226
        %4293 = vst [vmem:[#allocation4 + $0x1b8] sm:$0xff] %v4227
        %4294 = vst [vmem:[#allocation4 + $0x200] sm:$0xff] %v4228
        %4295 = vst [vmem:[#allocation4 + $0x248] sm:$0xff] %v4229
        %4296 = vst [vmem:[#allocation4 + $0x290] sm:$0xff] %v4230
        %4297 = vst [vmem:[#allocation4 + $0x2d8] sm:$0xff] %v4231
        %4298 = vst [vmem:[#allocation4 + $0x320] sm:$0xff] %v4232
        %4299 = vst [vmem:[#allocation4 + $0x368] sm:$0xff] %v4233
        %4300 = vst [vmem:[#allocation4 + $0x3b0] sm:$0xff] %v4234
        %4301 = vst [vmem:[#allocation4 + $0x3f8] sm:$0xff] %v4235
        %4302 = vst [vmem:[#allocation4 + $0x440] sm:$0xff] %v4236
        %4303 = vst [vmem:[#allocation4 + $0x488] sm:$0xff] %v4237
        %4304 = vst [vmem:[#allocation4 + $0x4d0] sm:$0xff] %v4238
        %4305 = vst [vmem:[#allocation4 + $0x518] sm:$0xff] %v4239
        %4306 = vst [vmem:[#allocation4 + $0x560] sm:$0xff] %v4240
        %4307 = vst [vmem:[#allocation4 + $0x5a8] sm:$0xff] %v4241
        %4308 = vst [vmem:[#allocation4 + $0x5f0] sm:$0xff] %v4242
        %4309 = vst [vmem:[#allocation4 + $0x638] sm:$0xff] %v4243
        %4310 = vst [vmem:[#allocation4 + $0x680] sm:$0xff] %v4244
        %4311 = vst [vmem:[#allocation4 + $0x6c8] sm:$0xff] %v4245
        %4312 = vst [vmem:[#allocation4 + $0x710] sm:$0xff] %v4246
        %4313 = vst [vmem:[#allocation4 + $0x758] sm:$0xff] %v4247
        %4314 = vst [vmem:[#allocation4 + $0x7a0] sm:$0xff] %v4248
        %4315 = vst [vmem:[#allocation4 + $0x7e8] sm:$0xff] %v4249
        %4316 = vst [vmem:[#allocation4 + $0x830] sm:$0xff] %v4250
        %4317 = vst [vmem:[#allocation4 + $0x878] sm:$0xff] %v4251
        %4318 = vst [vmem:[#allocation4 + $0x8c0] sm:$0xff] %v4252
        %4319 = vst [vmem:[#allocation4 + $0x10] sm:$0xff] %v4223
        %4320 = vst [vmem:[#allocation4 + $0x58] sm:$0xff] %v4224
        %4321 = vst [vmem:[#allocation4 + $0xa0] sm:$0xff] %v4225
        %4322 = vst [vmem:[#allocation4 + $0xe8] sm:$0xff] %v4226
        %4323 = vst [vmem:[#allocation4 + $0x130] sm:$0xff] %v4227
        %4324 = vst [vmem:[#allocation4 + $0x178] sm:$0xff] %v4228
        %4325 = vst [vmem:[#allocation4 + $0x1c0] sm:$0xff] %v4229
        %4326 = vst [vmem:[#allocation4 + $0x208] sm:$0xff] %v4230
        %4327 = vst [vmem:[#allocation4 + $0x250] sm:$0xff] %v4231
        %4328 = vst [vmem:[#allocation4 + $0x298] sm:$0xff] %v4232
        %4329 = vst [vmem:[#allocation4 + $0x2e0] sm:$0xff] %v4233
        %4330 = vst [vmem:[#allocation4 + $0x328] sm:$0xff] %v4234
        %4331 = vst [vmem:[#allocation4 + $0x370] sm:$0xff] %v4235
        %4332 = vst [vmem:[#allocation4 + $0x3b8] sm:$0xff] %v4236
        %4333 = vst [vmem:[#allocation4 + $0x400] sm:$0xff] %v4237
        %4334 = vst [vmem:[#allocation4 + $0x448] sm:$0xff] %v4238
        %4335 = vst [vmem:[#allocation4 + $0x490] sm:$0xff] %v4239
        %4336 = vst [vmem:[#allocation4 + $0x4d8] sm:$0xff] %v4240
        %4337 = vst [vmem:[#allocation4 + $0x520] sm:$0xff] %v4241
        %4338 = vst [vmem:[#allocation4 + $0x568] sm:$0xff] %v4242
        %4339 = vst [vmem:[#allocation4 + $0x5b0] sm:$0xff] %v4243
        %4340 = vst [vmem:[#allocation4 + $0x5f8] sm:$0xff] %v4244
        %4341 = vst [vmem:[#allocation4 + $0x640] sm:$0xff] %v4245
        %4342 = vst [vmem:[#allocation4 + $0x688] sm:$0xff] %v4246
        %4343 = vst [vmem:[#allocation4 + $0x6d0] sm:$0xff] %v4247
        %4344 = vst [vmem:[#allocation4 + $0x718] sm:$0xff] %v4248
        %4345 = vst [vmem:[#allocation4 + $0x760] sm:$0xff] %v4249
        %4346 = vst [vmem:[#allocation4 + $0x7a8] sm:$0xff] %v4250
        %4347 = vst [vmem:[#allocation4 + $0x7f0] sm:$0xff] %v4251
        %4348 = vst [vmem:[#allocation4 + $0x838] sm:$0xff] %v4252
        %4349 = vst [vmem:[#allocation4 + $0x880] sm:$0xff] %v4253
        %4350 = vst [vmem:[#allocation4 + $0x8c8] sm:$0xff] %v4254
        %v4351 = vld [vmem:[#allocation2 + $0x1] sm:$0xff]
        %v4352 = vld [vmem:[#allocation2 + $0x9] sm:$0xff]
        %v4353 = vld [vmem:[#allocation2 + $0x19] sm:$0xff]
        %v4354 = vld [vmem:[#allocation2 + $0x21] sm:$0xff]
        %v4355 = vld [vmem:[#allocation2 + $0x31] sm:$0xff]
        %v4356 = vld [vmem:[#allocation2 + $0x39] sm:$0xff]
        %v4357 = vld [vmem:[#allocation2 + $0x49] sm:$0xff]
        %v4358 = vld [vmem:[#allocation2 + $0x51] sm:$0xff]
        %v4359 = vld [vmem:[#allocation2 + $0x61] sm:$0xff]
        %v4360 = vld [vmem:[#allocation2 + $0x69] sm:$0xff]
        %v4361 = vld [vmem:[#allocation2 + $0x79] sm:$0xff]
        %v4362 = vld [vmem:[#allocation2 + $0x81] sm:$0xff]
        %v4363 = vld [vmem:[#allocation2 + $0x91] sm:$0xff]
        %v4364 = vld [vmem:[#allocation2 + $0x99] sm:$0xff]
        %v4365 = vld [vmem:[#allocation2 + $0xa9] sm:$0xff]
        %v4366 = vld [vmem:[#allocation2 + $0xb1] sm:$0xff]
        %v4367 = vld [vmem:[#allocation2 + $0xc1] sm:$0xff]
        %v4368 = vld [vmem:[#allocation2 + $0xc9] sm:$0xff]
        %v4369 = vld [vmem:[#allocation2 + $0xd9] sm:$0xff]
        %v4370 = vld [vmem:[#allocation2 + $0xe1] sm:$0xff]
        %v4371 = vld [vmem:[#allocation2 + $0xf1] sm:$0xff]
        %v4372 = vld [vmem:[#allocation2 + $0xf9] sm:$0xff]
        %v4373 = vld [vmem:[#allocation2 + $0x109] sm:$0xff]
        %v4374 = vld [vmem:[#allocation2 + $0x111] sm:$0xff]
        %v4375 = vld [vmem:[#allocation2 + $0x121] sm:$0xff]
        %v4376 = vld [vmem:[#allocation2 + $0x129] sm:$0xff]
        %v4377 = vld [vmem:[#allocation2 + $0x139] sm:$0xff]
        %v4378 = vld [vmem:[#allocation2 + $0x141] sm:$0xff]
        %v4379 = vld [vmem:[#allocation2 + $0x151] sm:$0xff]
        %v4380 = vld [vmem:[#allocation2 + $0x159] sm:$0xff]
        %v4381 = vld [vmem:[#allocation2 + $0x169] sm:$0xff]
        %v4382 = vld [vmem:[#allocation2 + $0x171] sm:$0xff]
        %v4383 = vld [vmem:[#allocation2 + $0x181] sm:$0xff]
        %v4384 = vld [vmem:[#allocation2 + $0x189] sm:$0xff]
        %v4385 = vld [vmem:[#allocation2 + $0x199] sm:$0xff]
        %v4386 = vld [vmem:[#allocation2 + $0x1a1] sm:$0xff]
        %4387 = vst [vmem:[#allocation4 + $0x18] sm:$0xff] %v4351
        %4388 = vst [vmem:[#allocation4 + $0x60] sm:$0xff] %v4352
        %4389 = vst [vmem:[#allocation4 + $0xa8] sm:$0xff] %v4353
        %4390 = vst [vmem:[#allocation4 + $0xf0] sm:$0xff] %v4354
        %4391 = vst [vmem:[#allocation4 + $0x138] sm:$0xff] %v4355
        %4392 = vst [vmem:[#allocation4 + $0x180] sm:$0xff] %v4356
        %4393 = vst [vmem:[#allocation4 + $0x1c8] sm:$0xff] %v4357
        %4394 = vst [vmem:[#allocation4 + $0x210] sm:$0xff] %v4358
        %4395 = vst [vmem:[#allocation4 + $0x258] sm:$0xff] %v4359
        %4396 = vst [vmem:[#allocation4 + $0x2a0] sm:$0xff] %v4360
        %4397 = vst [vmem:[#allocation4 + $0x2e8] sm:$0xff] %v4361
        %4398 = vst [vmem:[#allocation4 + $0x330] sm:$0xff] %v4362
        %4399 = vst [vmem:[#allocation4 + $0x378] sm:$0xff] %v4363
        %4400 = vst [vmem:[#allocation4 + $0x3c0] sm:$0xff] %v4364
        %4401 = vst [vmem:[#allocation4 + $0x408] sm:$0xff] %v4365
        %4402 = vst [vmem:[#allocation4 + $0x450] sm:$0xff] %v4366
        %4403 = vst [vmem:[#allocation4 + $0x498] sm:$0xff] %v4367
        %4404 = vst [vmem:[#allocation4 + $0x4e0] sm:$0xff] %v4368
        %4405 = vst [vmem:[#allocation4 + $0x528] sm:$0xff] %v4369
        %4406 = vst [vmem:[#allocation4 + $0x570] sm:$0xff] %v4370
        %4407 = vst [vmem:[#allocation4 + $0x5b8] sm:$0xff] %v4371
        %4408 = vst [vmem:[#allocation4 + $0x600] sm:$0xff] %v4372
        %4409 = vst [vmem:[#allocation4 + $0x648] sm:$0xff] %v4373
        %4410 = vst [vmem:[#allocation4 + $0x690] sm:$0xff] %v4374
        %4411 = vst [vmem:[#allocation4 + $0x6d8] sm:$0xff] %v4375
        %4412 = vst [vmem:[#allocation4 + $0x720] sm:$0xff] %v4376
        %4413 = vst [vmem:[#allocation4 + $0x768] sm:$0xff] %v4377
        %4414 = vst [vmem:[#allocation4 + $0x7b0] sm:$0xff] %v4378
        %4415 = vst [vmem:[#allocation4 + $0x7f8] sm:$0xff] %v4379
        %4416 = vst [vmem:[#allocation4 + $0x840] sm:$0xff] %v4380
        %4417 = vst [vmem:[#allocation4 + $0x888] sm:$0xff] %v4381
        %4418 = vst [vmem:[#allocation4 + $0x8d0] sm:$0xff] %v4382
        %4419 = vst [vmem:[#allocation4 + $0x20] sm:$0xff] %v4353
        %4420 = vst [vmem:[#allocation4 + $0x68] sm:$0xff] %v4354
        %4421 = vst [vmem:[#allocation4 + $0xb0] sm:$0xff] %v4355
        %4422 = vst [vmem:[#allocation4 + $0xf8] sm:$0xff] %v4356
        %4423 = vst [vmem:[#allocation4 + $0x140] sm:$0xff] %v4357
        %4424 = vst [vmem:[#allocation4 + $0x188] sm:$0xff] %v4358
        %4425 = vst [vmem:[#allocation4 + $0x1d0] sm:$0xff] %v4359
        %4426 = vst [vmem:[#allocation4 + $0x218] sm:$0xff] %v4360
        %4427 = vst [vmem:[#allocation4 + $0x260] sm:$0xff] %v4361
        %4428 = vst [vmem:[#allocation4 + $0x2a8] sm:$0xff] %v4362
        %4429 = vst [vmem:[#allocation4 + $0x2f0] sm:$0xff] %v4363
        %4430 = vst [vmem:[#allocation4 + $0x338] sm:$0xff] %v4364
        %4431 = vst [vmem:[#allocation4 + $0x380] sm:$0xff] %v4365
        %4432 = vst [vmem:[#allocation4 + $0x3c8] sm:$0xff] %v4366
        %4433 = vst [vmem:[#allocation4 + $0x410] sm:$0xff] %v4367
        %4434 = vst [vmem:[#allocation4 + $0x458] sm:$0xff] %v4368
        %4435 = vst [vmem:[#allocation4 + $0x4a0] sm:$0xff] %v4369
        %4436 = vst [vmem:[#allocation4 + $0x4e8] sm:$0xff] %v4370
        %4437 = vst [vmem:[#allocation4 + $0x530] sm:$0xff] %v4371
        %4438 = vst [vmem:[#allocation4 + $0x578] sm:$0xff] %v4372
        %4439 = vst [vmem:[#allocation4 + $0x5c0] sm:$0xff] %v4373
        %4440 = vst [vmem:[#allocation4 + $0x608] sm:$0xff] %v4374
        %4441 = vst [vmem:[#allocation4 + $0x650] sm:$0xff] %v4375
        %4442 = vst [vmem:[#allocation4 + $0x698] sm:$0xff] %v4376
        %4443 = vst [vmem:[#allocation4 + $0x6e0] sm:$0xff] %v4377
        %4444 = vst [vmem:[#allocation4 + $0x728] sm:$0xff] %v4378
        %4445 = vst [vmem:[#allocation4 + $0x770] sm:$0xff] %v4379
        %4446 = vst [vmem:[#allocation4 + $0x7b8] sm:$0xff] %v4380
        %4447 = vst [vmem:[#allocation4 + $0x800] sm:$0xff] %v4381
        %4448 = vst [vmem:[#allocation4 + $0x848] sm:$0xff] %v4382
        %4449 = vst [vmem:[#allocation4 + $0x890] sm:$0xff] %v4383
        %4450 = vst [vmem:[#allocation4 + $0x8d8] sm:$0xff] %v4384
        %4451 = vst [vmem:[#allocation4 + $0x28] sm:$0xff] %v4355
        %4452 = vst [vmem:[#allocation4 + $0x70] sm:$0xff] %v4356
        %4453 = vst [vmem:[#allocation4 + $0xb8] sm:$0xff] %v4357
        %4454 = vst [vmem:[#allocation4 + $0x100] sm:$0xff] %v4358
        %4455 = vst [vmem:[#allocation4 + $0x148] sm:$0xff] %v4359
        %4456 = vst [vmem:[#allocation4 + $0x190] sm:$0xff] %v4360
        %4457 = vst [vmem:[#allocation4 + $0x1d8] sm:$0xff] %v4361
        %4458 = vst [vmem:[#allocation4 + $0x220] sm:$0xff] %v4362
        %4459 = vst [vmem:[#allocation4 + $0x268] sm:$0xff] %v4363
        %4460 = vst [vmem:[#allocation4 + $0x2b0] sm:$0xff] %v4364
        %4461 = vst [vmem:[#allocation4 + $0x2f8] sm:$0xff] %v4365
        %4462 = vst [vmem:[#allocation4 + $0x340] sm:$0xff] %v4366
        %4463 = vst [vmem:[#allocation4 + $0x388] sm:$0xff] %v4367
        %4464 = vst [vmem:[#allocation4 + $0x3d0] sm:$0xff] %v4368
        %4465 = vst [vmem:[#allocation4 + $0x418] sm:$0xff] %v4369
        %4466 = vst [vmem:[#allocation4 + $0x460] sm:$0xff] %v4370
        %4467 = vst [vmem:[#allocation4 + $0x4a8] sm:$0xff] %v4371
        %4468 = vst [vmem:[#allocation4 + $0x4f0] sm:$0xff] %v4372
        %4469 = vst [vmem:[#allocation4 + $0x538] sm:$0xff] %v4373
        %4470 = vst [vmem:[#allocation4 + $0x580] sm:$0xff] %v4374
        %4471 = vst [vmem:[#allocation4 + $0x5c8] sm:$0xff] %v4375
        %4472 = vst [vmem:[#allocation4 + $0x610] sm:$0xff] %v4376
        %4473 = vst [vmem:[#allocation4 + $0x658] sm:$0xff] %v4377
        %4474 = vst [vmem:[#allocation4 + $0x6a0] sm:$0xff] %v4378
        %4475 = vst [vmem:[#allocation4 + $0x6e8] sm:$0xff] %v4379
        %4476 = vst [vmem:[#allocation4 + $0x730] sm:$0xff] %v4380
        %4477 = vst [vmem:[#allocation4 + $0x778] sm:$0xff] %v4381
        %4478 = vst [vmem:[#allocation4 + $0x7c0] sm:$0xff] %v4382
        %4479 = vst [vmem:[#allocation4 + $0x808] sm:$0xff] %v4383
        %4480 = vst [vmem:[#allocation4 + $0x850] sm:$0xff] %v4384
        %4481 = vst [vmem:[#allocation4 + $0x898] sm:$0xff] %v4385
        %4482 = vst [vmem:[#allocation4 + $0x8e0] sm:$0xff] %v4386
        %v4483 = vld [vmem:[#allocation2 + $0x2] sm:$0xff]
        %v4484 = vld [vmem:[#allocation2 + $0xa] sm:$0xff]
        %v4485 = vld [vmem:[#allocation2 + $0x1a] sm:$0xff]
        %v4486 = vld [vmem:[#allocation2 + $0x22] sm:$0xff]
        %v4487 = vld [vmem:[#allocation2 + $0x32] sm:$0xff]
        %v4488 = vld [vmem:[#allocation2 + $0x3a] sm:$0xff]
        %v4489 = vld [vmem:[#allocation2 + $0x4a] sm:$0xff]
        %v4490 = vld [vmem:[#allocation2 + $0x52] sm:$0xff]
        %v4491 = vld [vmem:[#allocation2 + $0x62] sm:$0xff]
        %v4492 = vld [vmem:[#allocation2 + $0x6a] sm:$0xff]
        %v4493 = vld [vmem:[#allocation2 + $0x7a] sm:$0xff]
        %v4494 = vld [vmem:[#allocation2 + $0x82] sm:$0xff]
        %v4495 = vld [vmem:[#allocation2 + $0x92] sm:$0xff]
        %v4496 = vld [vmem:[#allocation2 + $0x9a] sm:$0xff]
        %v4497 = vld [vmem:[#allocation2 + $0xaa] sm:$0xff]
        %v4498 = vld [vmem:[#allocation2 + $0xb2] sm:$0xff]
        %v4499 = vld [vmem:[#allocation2 + $0xc2] sm:$0xff]
        %v4500 = vld [vmem:[#allocation2 + $0xca] sm:$0xff]
        %v4501 = vld [vmem:[#allocation2 + $0xda] sm:$0xff]
        %v4502 = vld [vmem:[#allocation2 + $0xe2] sm:$0xff]
        %v4503 = vld [vmem:[#allocation2 + $0xf2] sm:$0xff]
        %v4504 = vld [vmem:[#allocation2 + $0xfa] sm:$0xff]
        %v4505 = vld [vmem:[#allocation2 + $0x10a] sm:$0xff]
        %v4506 = vld [vmem:[#allocation2 + $0x112] sm:$0xff]
        %v4507 = vld [vmem:[#allocation2 + $0x122] sm:$0xff]
        %v4508 = vld [vmem:[#allocation2 + $0x12a] sm:$0xff]
        %v4509 = vld [vmem:[#allocation2 + $0x13a] sm:$0xff]
        %v4510 = vld [vmem:[#allocation2 + $0x142] sm:$0xff]
        %v4511 = vld [vmem:[#allocation2 + $0x152] sm:$0xff]
        %v4512 = vld [vmem:[#allocation2 + $0x15a] sm:$0xff]
        %v4513 = vld [vmem:[#allocation2 + $0x16a] sm:$0xff]
        %v4514 = vld [vmem:[#allocation2 + $0x172] sm:$0xff]
        %v4515 = vld [vmem:[#allocation2 + $0x182] sm:$0xff]
        %v4516 = vld [vmem:[#allocation2 + $0x18a] sm:$0xff]
        %v4517 = vld [vmem:[#allocation2 + $0x19a] sm:$0xff]
        %v4518 = vld [vmem:[#allocation2 + $0x1a2] sm:$0xff]
        %4519 = vst [vmem:[#allocation4 + $0x30] sm:$0xff] %v4483
        %4520 = vst [vmem:[#allocation4 + $0x78] sm:$0xff] %v4484
        %4521 = vst [vmem:[#allocation4 + $0xc0] sm:$0xff] %v4485
        %4522 = vst [vmem:[#allocation4 + $0x108] sm:$0xff] %v4486
        %4523 = vst [vmem:[#allocation4 + $0x150] sm:$0xff] %v4487
        %4524 = vst [vmem:[#allocation4 + $0x198] sm:$0xff] %v4488
        %4525 = vst [vmem:[#allocation4 + $0x1e0] sm:$0xff] %v4489
        %4526 = vst [vmem:[#allocation4 + $0x228] sm:$0xff] %v4490
        %4527 = vst [vmem:[#allocation4 + $0x270] sm:$0xff] %v4491
        %4528 = vst [vmem:[#allocation4 + $0x2b8] sm:$0xff] %v4492
        %4529 = vst [vmem:[#allocation4 + $0x300] sm:$0xff] %v4493
        %4530 = vst [vmem:[#allocation4 + $0x348] sm:$0xff] %v4494
        %4531 = vst [vmem:[#allocation4 + $0x390] sm:$0xff] %v4495
        %4532 = vst [vmem:[#allocation4 + $0x3d8] sm:$0xff] %v4496
        %4533 = vst [vmem:[#allocation4 + $0x420] sm:$0xff] %v4497
        %4534 = vst [vmem:[#allocation4 + $0x468] sm:$0xff] %v4498
        %4535 = vst [vmem:[#allocation4 + $0x4b0] sm:$0xff] %v4499
        %4536 = vst [vmem:[#allocation4 + $0x4f8] sm:$0xff] %v4500
        %4537 = vst [vmem:[#allocation4 + $0x540] sm:$0xff] %v4501
        %4538 = vst [vmem:[#allocation4 + $0x588] sm:$0xff] %v4502
        %4539 = vst [vmem:[#allocation4 + $0x5d0] sm:$0xff] %v4503
        %4540 = vst [vmem:[#allocation4 + $0x618] sm:$0xff] %v4504
        %4541 = vst [vmem:[#allocation4 + $0x660] sm:$0xff] %v4505
        %4542 = vst [vmem:[#allocation4 + $0x6a8] sm:$0xff] %v4506
        %4543 = vst [vmem:[#allocation4 + $0x6f0] sm:$0xff] %v4507
        %4544 = vst [vmem:[#allocation4 + $0x738] sm:$0xff] %v4508
        %4545 = vst [vmem:[#allocation4 + $0x780] sm:$0xff] %v4509
        %4546 = vst [vmem:[#allocation4 + $0x7c8] sm:$0xff] %v4510
        %4547 = vst [vmem:[#allocation4 + $0x810] sm:$0xff] %v4511
        %4548 = vst [vmem:[#allocation4 + $0x858] sm:$0xff] %v4512
        %4549 = vst [vmem:[#allocation4 + $0x8a0] sm:$0xff] %v4513
        %4550 = vst [vmem:[#allocation4 + $0x8e8] sm:$0xff] %v4514
        %4551 = vst [vmem:[#allocation4 + $0x38] sm:$0xff] %v4485
        %4552 = vst [vmem:[#allocation4 + $0x80] sm:$0xff] %v4486
        %4553 = vst [vmem:[#allocation4 + $0xc8] sm:$0xff] %v4487
        %4554 = vst [vmem:[#allocation4 + $0x110] sm:$0xff] %v4488
        %4555 = vst [vmem:[#allocation4 + $0x158] sm:$0xff] %v4489
        %4556 = vst [vmem:[#allocation4 + $0x1a0] sm:$0xff] %v4490
        %4557 = vst [vmem:[#allocation4 + $0x1e8] sm:$0xff] %v4491
        %4558 = vst [vmem:[#allocation4 + $0x230] sm:$0xff] %v4492
        %4559 = vst [vmem:[#allocation4 + $0x278] sm:$0xff] %v4493
        %4560 = vst [vmem:[#allocation4 + $0x2c0] sm:$0xff] %v4494
        %4561 = vst [vmem:[#allocation4 + $0x308] sm:$0xff] %v4495
        %4562 = vst [vmem:[#allocation4 + $0x350] sm:$0xff] %v4496
        %4563 = vst [vmem:[#allocation4 + $0x398] sm:$0xff] %v4497
        %4564 = vst [vmem:[#allocation4 + $0x3e0] sm:$0xff] %v4498
        %4565 = vst [vmem:[#allocation4 + $0x428] sm:$0xff] %v4499
        %4566 = vst [vmem:[#allocation4 + $0x470] sm:$0xff] %v4500
        %4567 = vst [vmem:[#allocation4 + $0x4b8] sm:$0xff] %v4501
        %4568 = vst [vmem:[#allocation4 + $0x500] sm:$0xff] %v4502
        %4569 = vst [vmem:[#allocation4 + $0x548] sm:$0xff] %v4503
        %4570 = vst [vmem:[#allocation4 + $0x590] sm:$0xff] %v4504
        %4571 = vst [vmem:[#allocation4 + $0x5d8] sm:$0xff] %v4505
        %4572 = vst [vmem:[#allocation4 + $0x620] sm:$0xff] %v4506
        %4573 = vst [vmem:[#allocation4 + $0x668] sm:$0xff] %v4507
        %4574 = vst [vmem:[#allocation4 + $0x6b0] sm:$0xff] %v4508
        %4575 = vst [vmem:[#allocation4 + $0x6f8] sm:$0xff] %v4509
        %4576 = vst [vmem:[#allocation4 + $0x740] sm:$0xff] %v4510
        %4577 = vst [vmem:[#allocation4 + $0x788] sm:$0xff] %v4511
        %4578 = vst [vmem:[#allocation4 + $0x7d0] sm:$0xff] %v4512
        %4579 = vst [vmem:[#allocation4 + $0x818] sm:$0xff] %v4513
        %4580 = vst [vmem:[#allocation4 + $0x860] sm:$0xff] %v4514
        %4581 = vst [vmem:[#allocation4 + $0x8a8] sm:$0xff] %v4515
        %4582 = vst [vmem:[#allocation4 + $0x8f0] sm:$0xff] %v4516
        %4583 = vst [vmem:[#allocation4 + $0x40] sm:$0xff] %v4487
        %4584 = vst [vmem:[#allocation4 + $0x88] sm:$0xff] %v4488
        %4585 = vst [vmem:[#allocation4 + $0xd0] sm:$0xff] %v4489
        %4586 = vst [vmem:[#allocation4 + $0x118] sm:$0xff] %v4490
        %4587 = vst [vmem:[#allocation4 + $0x160] sm:$0xff] %v4491
        %4588 = vst [vmem:[#allocation4 + $0x1a8] sm:$0xff] %v4492
        %4589 = vst [vmem:[#allocation4 + $0x1f0] sm:$0xff] %v4493
        %4590 = vst [vmem:[#allocation4 + $0x238] sm:$0xff] %v4494
        %4591 = vst [vmem:[#allocation4 + $0x280] sm:$0xff] %v4495
        %4592 = vst [vmem:[#allocation4 + $0x2c8] sm:$0xff] %v4496
        %4593 = vst [vmem:[#allocation4 + $0x310] sm:$0xff] %v4497
        %4594 = vst [vmem:[#allocation4 + $0x358] sm:$0xff] %v4498
        %4595 = vst [vmem:[#allocation4 + $0x3a0] sm:$0xff] %v4499
        %4596 = vst [vmem:[#allocation4 + $0x3e8] sm:$0xff] %v4500
        %4597 = vst [vmem:[#allocation4 + $0x430] sm:$0xff] %v4501
        %4598 = vst [vmem:[#allocation4 + $0x478] sm:$0xff] %v4502
        %4599 = vst [vmem:[#allocation4 + $0x4c0] sm:$0xff] %v4503
        %4600 = vst [vmem:[#allocation4 + $0x508] sm:$0xff] %v4504
        %4601 = vst [vmem:[#allocation4 + $0x550] sm:$0xff] %v4505
        %4602 = vst [vmem:[#allocation4 + $0x598] sm:$0xff] %v4506
        %4603 = vst [vmem:[#allocation4 + $0x5e0] sm:$0xff] %v4507
        %4604 = vst [vmem:[#allocation4 + $0x628] sm:$0xff] %v4508
        %4605 = vst [vmem:[#allocation4 + $0x670] sm:$0xff] %v4509
        %4606 = vst [vmem:[#allocation4 + $0x6b8] sm:$0xff] %v4510
        %4607 = vst [vmem:[#allocation4 + $0x700] sm:$0xff] %v4511
        %4608 = vst [vmem:[#allocation4 + $0x748] sm:$0xff] %v4512
        %4609 = vst [vmem:[#allocation4 + $0x790] sm:$0xff] %v4513
        %4610 = vst [vmem:[#allocation4 + $0x7d8] sm:$0xff] %v4514
        %4611 = vst [vmem:[#allocation4 + $0x820] sm:$0xff] %v4515
        %4612 = vst [vmem:[#allocation4 + $0x868] sm:$0xff] %v4516
        %4613 = vst [vmem:[#allocation4 + $0x8b0] sm:$0xff] %v4517
        %4614 = vst [vmem:[#allocation4 + $0x8f8] sm:$0xff] %v4518
        %v4615 = vld [vmem:[#allocation4] sm:$0xff]
        %v4616 = vld [vmem:[#allocation4 + $0x8] sm:$0xff]
        %v4617 = vld [vmem:[#allocation4 + $0x10] sm:$0xff]
        %v4618 = vld [vmem:[#allocation4 + $0x18] sm:$0xff]
        %v4619 = vld [vmem:[#allocation4 + $0x20] sm:$0xff]
        %v4620 = vld [vmem:[#allocation4 + $0x28] sm:$0xff]
        %v4621 = vld [vmem:[#allocation4 + $0x30] sm:$0xff]
        %v4622 = vld [vmem:[#allocation4 + $0x38] sm:$0xff]
        %v4623 = vld [vmem:[#allocation4 + $0x40] sm:$0xff]
        %v4624 = vld [vmem:[#allocation4 + $0x48] sm:$0xff]
        %v4625 = vld [vmem:[#allocation4 + $0x50] sm:$0xff]
        %v4626 = vld [vmem:[#allocation4 + $0x58] sm:$0xff]
        %v4627 = vld [vmem:[#allocation4 + $0x60] sm:$0xff]
        %v4628 = vld [vmem:[#allocation4 + $0x68] sm:$0xff]
        %v4629 = vld [vmem:[#allocation4 + $0x70] sm:$0xff]
        %v4630 = vld [vmem:[#allocation4 + $0x78] sm:$0xff]
        %v4631 = vld [vmem:[#allocation4 + $0x80] sm:$0xff]
        %v4632 = vld [vmem:[#allocation4 + $0x88] sm:$0xff]
        %v4633 = vld [vmem:[#allocation4 + $0x90] sm:$0xff]
        %v4634 = vld [vmem:[#allocation4 + $0x98] sm:$0xff]
        %v4635 = vld [vmem:[#allocation4 + $0xa0] sm:$0xff]
        %v4636 = vld [vmem:[#allocation4 + $0xa8] sm:$0xff]
        %v4637 = vld [vmem:[#allocation4 + $0xb0] sm:$0xff]
        %v4638 = vld [vmem:[#allocation4 + $0xb8] sm:$0xff]
        %v4639 = vld [vmem:[#allocation4 + $0xc0] sm:$0xff]
        %v4640 = vld [vmem:[#allocation4 + $0xc8] sm:$0xff]
        %v4641 = vld [vmem:[#allocation4 + $0xd0] sm:$0xff]
        %v4642 = vld [vmem:[#allocation4 + $0xd8] sm:$0xff]
        %v4643 = vld [vmem:[#allocation4 + $0xe0] sm:$0xff]
        %v4644 = vld [vmem:[#allocation4 + $0xe8] sm:$0xff]
        %v4645 = vld [vmem:[#allocation4 + $0xf0] sm:$0xff]
        %v4646 = vld [vmem:[#allocation4 + $0xf8] sm:$0xff]
        %v4647 = vld [vmem:[#allocation4 + $0x100] sm:$0xff]
        %v4648 = vld [vmem:[#allocation4 + $0x108] sm:$0xff]
        %v4649 = vld [vmem:[#allocation4 + $0x110] sm:$0xff]
        %v4650 = vld [vmem:[#allocation4 + $0x118] sm:$0xff]
        %v4651 = vld [vmem:[#allocation4 + $0x120] sm:$0xff]
        %v4652 = vld [vmem:[#allocation4 + $0x128] sm:$0xff]
        %v4653 = vld [vmem:[#allocation4 + $0x130] sm:$0xff]
        %v4654 = vld [vmem:[#allocation4 + $0x138] sm:$0xff]
        %v4655 = vld [vmem:[#allocation4 + $0x140] sm:$0xff]
        %v4656 = vld [vmem:[#allocation4 + $0x148] sm:$0xff]
        %v4657 = vld [vmem:[#allocation4 + $0x150] sm:$0xff]
        %v4658 = vld [vmem:[#allocation4 + $0x158] sm:$0xff]
        %v4659 = vld [vmem:[#allocation4 + $0x160] sm:$0xff]
        %v4660 = vld [vmem:[#allocation4 + $0x168] sm:$0xff]
        %v4661 = vld [vmem:[#allocation4 + $0x170] sm:$0xff]
        %v4662 = vld [vmem:[#allocation4 + $0x178] sm:$0xff]
        %v4663 = vld [vmem:[#allocation4 + $0x180] sm:$0xff]
        %v4664 = vld [vmem:[#allocation4 + $0x188] sm:$0xff]
        %v4665 = vld [vmem:[#allocation4 + $0x190] sm:$0xff]
        %v4666 = vld [vmem:[#allocation4 + $0x198] sm:$0xff]
        %v4667 = vld [vmem:[#allocation4 + $0x1a0] sm:$0xff]
        %v4668 = vld [vmem:[#allocation4 + $0x1a8] sm:$0xff]
        %v4669 = vld [vmem:[#allocation4 + $0x1b0] sm:$0xff]
        %v4670 = vld [vmem:[#allocation4 + $0x1b8] sm:$0xff]
        %v4671 = vld [vmem:[#allocation4 + $0x1c0] sm:$0xff]
        %v4672 = vld [vmem:[#allocation4 + $0x1c8] sm:$0xff]
        %v4673 = vld [vmem:[#allocation4 + $0x1d0] sm:$0xff]
        %v4674 = vld [vmem:[#allocation4 + $0x1d8] sm:$0xff]
        %v4675 = vld [vmem:[#allocation4 + $0x1e0] sm:$0xff]
        %v4676 = vld [vmem:[#allocation4 + $0x1e8] sm:$0xff]
        %v4677 = vld [vmem:[#allocation4 + $0x1f0] sm:$0xff]
        %v4678 = vld [vmem:[#allocation4 + $0x1f8] sm:$0xff]
        %v4679 = vld [vmem:[#allocation4 + $0x200] sm:$0xff]
        %v4680 = vld [vmem:[#allocation4 + $0x208] sm:$0xff]
        %v4681 = vld [vmem:[#allocation4 + $0x210] sm:$0xff]
        %v4682 = vld [vmem:[#allocation4 + $0x218] sm:$0xff]
        %v4683 = vld [vmem:[#allocation4 + $0x220] sm:$0xff]
        %v4684 = vld [vmem:[#allocation4 + $0x228] sm:$0xff]
        %v4685 = vld [vmem:[#allocation4 + $0x230] sm:$0xff]
        %v4686 = vld [vmem:[#allocation4 + $0x238] sm:$0xff]
        %v4687 = vld [vmem:[#allocation4 + $0x240] sm:$0xff]
        %v4688 = vld [vmem:[#allocation4 + $0x248] sm:$0xff]
        %v4689 = vld [vmem:[#allocation4 + $0x250] sm:$0xff]
        %v4690 = vld [vmem:[#allocation4 + $0x258] sm:$0xff]
        %v4691 = vld [vmem:[#allocation4 + $0x260] sm:$0xff]
        %v4692 = vld [vmem:[#allocation4 + $0x268] sm:$0xff]
        %v4693 = vld [vmem:[#allocation4 + $0x270] sm:$0xff]
        %v4694 = vld [vmem:[#allocation4 + $0x278] sm:$0xff]
        %v4695 = vld [vmem:[#allocation4 + $0x280] sm:$0xff]
        %v4696 = vld [vmem:[#allocation4 + $0x288] sm:$0xff]
        %v4697 = vld [vmem:[#allocation4 + $0x290] sm:$0xff]
        %v4698 = vld [vmem:[#allocation4 + $0x298] sm:$0xff]
        %v4699 = vld [vmem:[#allocation4 + $0x2a0] sm:$0xff]
        %v4700 = vld [vmem:[#allocation4 + $0x2a8] sm:$0xff]
        %v4701 = vld [vmem:[#allocation4 + $0x2b0] sm:$0xff]
        %v4702 = vld [vmem:[#allocation4 + $0x2b8] sm:$0xff]
        %v4703 = vld [vmem:[#allocation4 + $0x2c0] sm:$0xff]
        %v4704 = vld [vmem:[#allocation4 + $0x2c8] sm:$0xff]
        %v4705 = vld [vmem:[#allocation4 + $0x2d0] sm:$0xff]
        %v4706 = vld [vmem:[#allocation4 + $0x2d8] sm:$0xff]
        %v4707 = vld [vmem:[#allocation4 + $0x2e0] sm:$0xff]
        %v4708 = vld [vmem:[#allocation4 + $0x2e8] sm:$0xff]
        %v4709 = vld [vmem:[#allocation4 + $0x2f0] sm:$0xff]
        %v4710 = vld [vmem:[#allocation4 + $0x2f8] sm:$0xff]
        %v4711 = vld [vmem:[#allocation4 + $0x300] sm:$0xff]
        %v4712 = vld [vmem:[#allocation4 + $0x308] sm:$0xff]
        %v4713 = vld [vmem:[#allocation4 + $0x310] sm:$0xff]
        %v4714 = vld [vmem:[#allocation4 + $0x318] sm:$0xff]
        %v4715 = vld [vmem:[#allocation4 + $0x320] sm:$0xff]
        %v4716 = vld [vmem:[#allocation4 + $0x328] sm:$0xff]
        %v4717 = vld [vmem:[#allocation4 + $0x330] sm:$0xff]
        %v4718 = vld [vmem:[#allocation4 + $0x338] sm:$0xff]
        %v4719 = vld [vmem:[#allocation4 + $0x340] sm:$0xff]
        %v4720 = vld [vmem:[#allocation4 + $0x348] sm:$0xff]
        %v4721 = vld [vmem:[#allocation4 + $0x350] sm:$0xff]
        %v4722 = vld [vmem:[#allocation4 + $0x358] sm:$0xff]
        %v4723 = vld [vmem:[#allocation4 + $0x360] sm:$0xff]
        %v4724 = vld [vmem:[#allocation4 + $0x368] sm:$0xff]
        %v4725 = vld [vmem:[#allocation4 + $0x370] sm:$0xff]
        %v4726 = vld [vmem:[#allocation4 + $0x378] sm:$0xff]
        %v4727 = vld [vmem:[#allocation4 + $0x380] sm:$0xff]
        %v4728 = vld [vmem:[#allocation4 + $0x388] sm:$0xff]
        %v4729 = vld [vmem:[#allocation4 + $0x390] sm:$0xff]
        %v4730 = vld [vmem:[#allocation4 + $0x398] sm:$0xff]
        %v4731 = vld [vmem:[#allocation4 + $0x3a0] sm:$0xff]
        %v4732 = vld [vmem:[#allocation4 + $0x3a8] sm:$0xff]
        %v4733 = vld [vmem:[#allocation4 + $0x3b0] sm:$0xff]
        %v4734 = vld [vmem:[#allocation4 + $0x3b8] sm:$0xff]
        %v4735 = vld [vmem:[#allocation4 + $0x3c0] sm:$0xff]
        %v4736 = vld [vmem:[#allocation4 + $0x3c8] sm:$0xff]
        %v4737 = vld [vmem:[#allocation4 + $0x3d0] sm:$0xff]
        %v4738 = vld [vmem:[#allocation4 + $0x3d8] sm:$0xff]
        %v4739 = vld [vmem:[#allocation4 + $0x3e0] sm:$0xff]
        %v4740 = vld [vmem:[#allocation4 + $0x3e8] sm:$0xff]
        %v4741 = vld [vmem:[#allocation4 + $0x3f0] sm:$0xff]
        %v4742 = vld [vmem:[#allocation4 + $0x3f8] sm:$0xff]
        %v4743 = vld [vmem:[#allocation4 + $0x400] sm:$0xff]
        %v4744 = vld [vmem:[#allocation4 + $0x408] sm:$0xff]
        %v4745 = vld [vmem:[#allocation4 + $0x410] sm:$0xff]
        %v4746 = vld [vmem:[#allocation4 + $0x418] sm:$0xff]
        %v4747 = vld [vmem:[#allocation4 + $0x420] sm:$0xff]
        %v4748 = vld [vmem:[#allocation4 + $0x428] sm:$0xff]
        %v4749 = vld [vmem:[#allocation4 + $0x430] sm:$0xff]
        %v4750 = vld [vmem:[#allocation4 + $0x438] sm:$0xff]
        %v4751 = vld [vmem:[#allocation4 + $0x440] sm:$0xff]
        %v4752 = vld [vmem:[#allocation4 + $0x448] sm:$0xff]
        %v4753 = vld [vmem:[#allocation4 + $0x450] sm:$0xff]
        %v4754 = vld [vmem:[#allocation4 + $0x458] sm:$0xff]
        %v4755 = vld [vmem:[#allocation4 + $0x460] sm:$0xff]
        %v4756 = vld [vmem:[#allocation4 + $0x468] sm:$0xff]
        %v4757 = vld [vmem:[#allocation4 + $0x470] sm:$0xff]
        %v4758 = vld [vmem:[#allocation4 + $0x478] sm:$0xff]
        %v4759 = vld [vmem:[#allocation4 + $0x480] sm:$0xff]
        %v4760 = vld [vmem:[#allocation4 + $0x488] sm:$0xff]
        %v4761 = vld [vmem:[#allocation4 + $0x490] sm:$0xff]
        %v4762 = vld [vmem:[#allocation4 + $0x498] sm:$0xff]
        %v4763 = vld [vmem:[#allocation4 + $0x4a0] sm:$0xff]
        %v4764 = vld [vmem:[#allocation4 + $0x4a8] sm:$0xff]
        %v4765 = vld [vmem:[#allocation4 + $0x4b0] sm:$0xff]
        %v4766 = vld [vmem:[#allocation4 + $0x4b8] sm:$0xff]
        %v4767 = vld [vmem:[#allocation4 + $0x4c0] sm:$0xff]
        %v4768 = vld [vmem:[#allocation4 + $0x4c8] sm:$0xff]
        %v4769 = vld [vmem:[#allocation4 + $0x4d0] sm:$0xff]
        %v4770 = vld [vmem:[#allocation4 + $0x4d8] sm:$0xff]
        %v4771 = vld [vmem:[#allocation4 + $0x4e0] sm:$0xff]
        %v4772 = vld [vmem:[#allocation4 + $0x4e8] sm:$0xff]
        %v4773 = vld [vmem:[#allocation4 + $0x4f0] sm:$0xff]
        %v4774 = vld [vmem:[#allocation4 + $0x4f8] sm:$0xff]
        %v4775 = vld [vmem:[#allocation4 + $0x500] sm:$0xff]
        %v4776 = vld [vmem:[#allocation4 + $0x508] sm:$0xff]
        %v4777 = vld [vmem:[#allocation4 + $0x510] sm:$0xff]
        %v4778 = vld [vmem:[#allocation4 + $0x518] sm:$0xff]
        %v4779 = vld [vmem:[#allocation4 + $0x520] sm:$0xff]
        %v4780 = vld [vmem:[#allocation4 + $0x528] sm:$0xff]
        %v4781 = vld [vmem:[#allocation4 + $0x530] sm:$0xff]
        %v4782 = vld [vmem:[#allocation4 + $0x538] sm:$0xff]
        %v4783 = vld [vmem:[#allocation4 + $0x540] sm:$0xff]
        %v4784 = vld [vmem:[#allocation4 + $0x548] sm:$0xff]
        %v4785 = vld [vmem:[#allocation4 + $0x550] sm:$0xff]
        %v4786 = vld [vmem:[#allocation4 + $0x558] sm:$0xff]
        %v4787 = vld [vmem:[#allocation4 + $0x560] sm:$0xff]
        %v4788 = vld [vmem:[#allocation4 + $0x568] sm:$0xff]
        %v4789 = vld [vmem:[#allocation4 + $0x570] sm:$0xff]
        %v4790 = vld [vmem:[#allocation4 + $0x578] sm:$0xff]
        %v4791 = vld [vmem:[#allocation4 + $0x580] sm:$0xff]
        %v4792 = vld [vmem:[#allocation4 + $0x588] sm:$0xff]
        %v4793 = vld [vmem:[#allocation4 + $0x590] sm:$0xff]
        %v4794 = vld [vmem:[#allocation4 + $0x598] sm:$0xff]
        %v4795 = vld [vmem:[#allocation4 + $0x5a0] sm:$0xff]
        %v4796 = vld [vmem:[#allocation4 + $0x5a8] sm:$0xff]
        %v4797 = vld [vmem:[#allocation4 + $0x5b0] sm:$0xff]
        %v4798 = vld [vmem:[#allocation4 + $0x5b8] sm:$0xff]
        %v4799 = vld [vmem:[#allocation4 + $0x5c0] sm:$0xff]
        %v4800 = vld [vmem:[#allocation4 + $0x5c8] sm:$0xff]
        %v4801 = vld [vmem:[#allocation4 + $0x5d0] sm:$0xff]
        %v4802 = vld [vmem:[#allocation4 + $0x5d8] sm:$0xff]
        %v4803 = vld [vmem:[#allocation4 + $0x5e0] sm:$0xff]
        %v4804 = vld [vmem:[#allocation4 + $0x5e8] sm:$0xff]
        %v4805 = vld [vmem:[#allocation4 + $0x5f0] sm:$0xff]
        %v4806 = vld [vmem:[#allocation4 + $0x5f8] sm:$0xff]
        %v4807 = vld [vmem:[#allocation4 + $0x600] sm:$0xff]
        %v4808 = vld [vmem:[#allocation4 + $0x608] sm:$0xff]
        %v4809 = vld [vmem:[#allocation4 + $0x610] sm:$0xff]
        %v4810 = vld [vmem:[#allocation4 + $0x618] sm:$0xff]
        %v4811 = vld [vmem:[#allocation4 + $0x620] sm:$0xff]
        %v4812 = vld [vmem:[#allocation4 + $0x628] sm:$0xff]
        %v4813 = vld [vmem:[#allocation4 + $0x630] sm:$0xff]
        %v4814 = vld [vmem:[#allocation4 + $0x638] sm:$0xff]
        %v4815 = vld [vmem:[#allocation4 + $0x640] sm:$0xff]
        %v4816 = vld [vmem:[#allocation4 + $0x648] sm:$0xff]
        %v4817 = vld [vmem:[#allocation4 + $0x650] sm:$0xff]
        %v4818 = vld [vmem:[#allocation4 + $0x658] sm:$0xff]
        %v4819 = vld [vmem:[#allocation4 + $0x660] sm:$0xff]
        %v4820 = vld [vmem:[#allocation4 + $0x668] sm:$0xff]
        %v4821 = vld [vmem:[#allocation4 + $0x670] sm:$0xff]
        %v4822 = vld [vmem:[#allocation4 + $0x678] sm:$0xff]
        %v4823 = vld [vmem:[#allocation4 + $0x680] sm:$0xff]
        %v4824 = vld [vmem:[#allocation4 + $0x688] sm:$0xff]
        %v4825 = vld [vmem:[#allocation4 + $0x690] sm:$0xff]
        %v4826 = vld [vmem:[#allocation4 + $0x698] sm:$0xff]
        %v4827 = vld [vmem:[#allocation4 + $0x6a0] sm:$0xff]
        %v4828 = vld [vmem:[#allocation4 + $0x6a8] sm:$0xff]
        %v4829 = vld [vmem:[#allocation4 + $0x6b0] sm:$0xff]
        %v4830 = vld [vmem:[#allocation4 + $0x6b8] sm:$0xff]
        %v4831 = vld [vmem:[#allocation4 + $0x6c0] sm:$0xff]
        %v4832 = vld [vmem:[#allocation4 + $0x6c8] sm:$0xff]
        %v4833 = vld [vmem:[#allocation4 + $0x6d0] sm:$0xff]
        %v4834 = vld [vmem:[#allocation4 + $0x6d8] sm:$0xff]
        %v4835 = vld [vmem:[#allocation4 + $0x6e0] sm:$0xff]
        %v4836 = vld [vmem:[#allocation4 + $0x6e8] sm:$0xff]
        %v4837 = vld [vmem:[#allocation4 + $0x6f0] sm:$0xff]
        %v4838 = vld [vmem:[#allocation4 + $0x6f8] sm:$0xff]
        %v4839 = vld [vmem:[#allocation4 + $0x700] sm:$0xff]
        %v4840 = vld [vmem:[#allocation4 + $0x708] sm:$0xff]
        %v4841 = vld [vmem:[#allocation4 + $0x710] sm:$0xff]
        %v4842 = vld [vmem:[#allocation4 + $0x718] sm:$0xff]
        %v4843 = vld [vmem:[#allocation4 + $0x720] sm:$0xff]
        %v4844 = vld [vmem:[#allocation4 + $0x728] sm:$0xff]
        %v4845 = vld [vmem:[#allocation4 + $0x730] sm:$0xff]
        %v4846 = vld [vmem:[#allocation4 + $0x738] sm:$0xff]
        %v4847 = vld [vmem:[#allocation4 + $0x740] sm:$0xff]
        %v4848 = vld [vmem:[#allocation4 + $0x748] sm:$0xff]
        %v4849 = vld [vmem:[#allocation4 + $0x750] sm:$0xff]
        %v4850 = vld [vmem:[#allocation4 + $0x758] sm:$0xff]
        %v4851 = vld [vmem:[#allocation4 + $0x760] sm:$0xff]
        %v4852 = vld [vmem:[#allocation4 + $0x768] sm:$0xff]
        %v4853 = vld [vmem:[#allocation4 + $0x770] sm:$0xff]
        %v4854 = vld [vmem:[#allocation4 + $0x778] sm:$0xff]
        %v4855 = vld [vmem:[#allocation4 + $0x780] sm:$0xff]
        %v4856 = vld [vmem:[#allocation4 + $0x788] sm:$0xff]
        %v4857 = vld [vmem:[#allocation4 + $0x790] sm:$0xff]
        %v4858 = vld [vmem:[#allocation4 + $0x798] sm:$0xff]
        %v4859 = vld [vmem:[#allocation4 + $0x7a0] sm:$0xff]
        %v4860 = vld [vmem:[#allocation4 + $0x7a8] sm:$0xff]
        %v4861 = vld [vmem:[#allocation4 + $0x7b0] sm:$0xff]
        %v4862 = vld [vmem:[#allocation4 + $0x7b8] sm:$0xff]
        %v4863 = vld [vmem:[#allocation4 + $0x7c0] sm:$0xff]
        %v4864 = vld [vmem:[#allocation4 + $0x7c8] sm:$0xff]
        %v4865 = vld [vmem:[#allocation4 + $0x7d0] sm:$0xff]
        %v4866 = vld [vmem:[#allocation4 + $0x7d8] sm:$0xff]
        %v4867 = vld [vmem:[#allocation4 + $0x7e0] sm:$0xff]
        %v4868 = vld [vmem:[#allocation4 + $0x7e8] sm:$0xff]
        %v4869 = vld [vmem:[#allocation4 + $0x7f0] sm:$0xff]
        %v4870 = vld [vmem:[#allocation4 + $0x7f8] sm:$0xff]
        %v4871 = vld [vmem:[#allocation4 + $0x800] sm:$0xff]
        %v4872 = vld [vmem:[#allocation4 + $0x808] sm:$0xff]
        %v4873 = vld [vmem:[#allocation4 + $0x810] sm:$0xff]
        %v4874 = vld [vmem:[#allocation4 + $0x818] sm:$0xff]
        %v4875 = vld [vmem:[#allocation4 + $0x820] sm:$0xff]
        %v4876 = vld [vmem:[#allocation4 + $0x828] sm:$0xff]
        %v4877 = vld [vmem:[#allocation4 + $0x830] sm:$0xff]
        %v4878 = vld [vmem:[#allocation4 + $0x838] sm:$0xff]
        %v4879 = vld [vmem:[#allocation4 + $0x840] sm:$0xff]
        %v4880 = vld [vmem:[#allocation4 + $0x848] sm:$0xff]
        %v4881 = vld [vmem:[#allocation4 + $0x850] sm:$0xff]
        %v4882 = vld [vmem:[#allocation4 + $0x858] sm:$0xff]
        %v4883 = vld [vmem:[#allocation4 + $0x860] sm:$0xff]
        %v4884 = vld [vmem:[#allocation4 + $0x868] sm:$0xff]
        %v4885 = vld [vmem:[#allocation4 + $0x870] sm:$0xff]
        %v4886 = vld [vmem:[#allocation4 + $0x878] sm:$0xff]
        %v4887 = vld [vmem:[#allocation4 + $0x880] sm:$0xff]
        %v4888 = vld [vmem:[#allocation4 + $0x888] sm:$0xff]
        %v4889 = vld [vmem:[#allocation4 + $0x890] sm:$0xff]
        %v4890 = vld [vmem:[#allocation4 + $0x898] sm:$0xff]
        %v4891 = vld [vmem:[#allocation4 + $0x8a0] sm:$0xff]
        %v4892 = vld [vmem:[#allocation4 + $0x8a8] sm:$0xff]
        %v4893 = vld [vmem:[#allocation4 + $0x8b0] sm:$0xff]
        %v4894 = vld [vmem:[#allocation4 + $0x8b8] sm:$0xff]
        %v4895 = vld [vmem:[#allocation4 + $0x8c0] sm:$0xff]
        %v4896 = vld [vmem:[#allocation4 + $0x8c8] sm:$0xff]
        %v4897 = vld [vmem:[#allocation4 + $0x8d0] sm:$0xff]
        %v4898 = vld [vmem:[#allocation4 + $0x8d8] sm:$0xff]
        %v4899 = vld [vmem:[#allocation4 + $0x8e0] sm:$0xff]
        %v4900 = vld [vmem:[#allocation4 + $0x8e8] sm:$0xff]
        %v4901 = vld [vmem:[#allocation4 + $0x8f0] sm:$0xff]
        %v4902 = vld [vmem:[#allocation4 + $0x8f8] sm:$0xff]
        %s4903 = scalar_lea.vmem [#allocation8], 2304
        %v4904 = vld [vmem:[%s4903] sm:$0xff]
        %v4905 = vld [vmem:[%s4903 + $0x8] sm:$0xff]
        %v4906 = vld [vmem:[%s4903 + $0x10] sm:$0xff]
        %v4907 = vld [vmem:[%s4903 + $0x18] sm:$0xff]
        %v4908 = vld [vmem:[%s4903 + $0x20] sm:$0xff]
        %v4909 = vld [vmem:[%s4903 + $0x28] sm:$0xff]
        %v4910 = vld [vmem:[%s4903 + $0x30] sm:$0xff]
        %v4911 = vld [vmem:[%s4903 + $0x38] sm:$0xff]
        %v4912 = vld [vmem:[%s4903 + $0x40] sm:$0xff]
        %v4913 = vld [vmem:[%s4903 + $0x48] sm:$0xff]
        %v4914 = vld [vmem:[%s4903 + $0x50] sm:$0xff]
        %v4915 = vld [vmem:[%s4903 + $0x58] sm:$0xff]
        %v4916 = vld [vmem:[%s4903 + $0x60] sm:$0xff]
        %v4917 = vld [vmem:[%s4903 + $0x68] sm:$0xff]
        %v4918 = vld [vmem:[%s4903 + $0x70] sm:$0xff]
        %v4919 = vld [vmem:[%s4903 + $0x78] sm:$0xff]
        %v4920 = vld [vmem:[%s4903 + $0x80] sm:$0xff]
        %v4921 = vld [vmem:[%s4903 + $0x88] sm:$0xff]
        %v4922 = vld [vmem:[%s4903 + $0x90] sm:$0xff]
        %v4923 = vld [vmem:[%s4903 + $0x98] sm:$0xff]
        %v4924 = vld [vmem:[%s4903 + $0xa0] sm:$0xff]
        %v4925 = vld [vmem:[%s4903 + $0xa8] sm:$0xff]
        %v4926 = vld [vmem:[%s4903 + $0xb0] sm:$0xff]
        %v4927 = vld [vmem:[%s4903 + $0xb8] sm:$0xff]
        %v4928 = vld [vmem:[%s4903 + $0xc0] sm:$0xff]
        %v4929 = vld [vmem:[%s4903 + $0xc8] sm:$0xff]
        %v4930 = vld [vmem:[%s4903 + $0xd0] sm:$0xff]
        %v4931 = vld [vmem:[%s4903 + $0xd8] sm:$0xff]
        %v4932 = vld [vmem:[%s4903 + $0xe0] sm:$0xff]
        %v4933 = vld [vmem:[%s4903 + $0xe8] sm:$0xff]
        %v4934 = vld [vmem:[%s4903 + $0xf0] sm:$0xff]
        %v4935 = vld [vmem:[%s4903 + $0xf8] sm:$0xff]
        %v4936 = vld [vmem:[%s4903 + $0x100] sm:$0xff]
        %v4937 = vld [vmem:[%s4903 + $0x108] sm:$0xff]
        %v4938 = vld [vmem:[%s4903 + $0x110] sm:$0xff]
        %v4939 = vld [vmem:[%s4903 + $0x118] sm:$0xff]
        %v4940 = vld [vmem:[%s4903 + $0x120] sm:$0xff]
        %v4941 = vld [vmem:[%s4903 + $0x128] sm:$0xff]
        %v4942 = vld [vmem:[%s4903 + $0x130] sm:$0xff]
        %v4943 = vld [vmem:[%s4903 + $0x138] sm:$0xff]
        %v4944 = vld [vmem:[%s4903 + $0x140] sm:$0xff]
        %v4945 = vld [vmem:[%s4903 + $0x148] sm:$0xff]
        %v4946 = vld [vmem:[%s4903 + $0x150] sm:$0xff]
        %v4947 = vld [vmem:[%s4903 + $0x158] sm:$0xff]
        %v4948 = vld [vmem:[%s4903 + $0x160] sm:$0xff]
        %v4949 = vld [vmem:[%s4903 + $0x168] sm:$0xff]
        %v4950 = vld [vmem:[%s4903 + $0x170] sm:$0xff]
        %v4951 = vld [vmem:[%s4903 + $0x178] sm:$0xff]
        %v4952 = vld [vmem:[%s4903 + $0x180] sm:$0xff]
        %v4953 = vld [vmem:[%s4903 + $0x188] sm:$0xff]
        %v4954 = vld [vmem:[%s4903 + $0x190] sm:$0xff]
        %v4955 = vld [vmem:[%s4903 + $0x198] sm:$0xff]
        %v4956 = vld [vmem:[%s4903 + $0x1a0] sm:$0xff]
        %v4957 = vld [vmem:[%s4903 + $0x1a8] sm:$0xff]
        %v4958 = vld [vmem:[%s4903 + $0x1b0] sm:$0xff]
        %v4959 = vld [vmem:[%s4903 + $0x1b8] sm:$0xff]
        %v4960 = vld [vmem:[%s4903 + $0x1c0] sm:$0xff]
        %v4961 = vld [vmem:[%s4903 + $0x1c8] sm:$0xff]
        %v4962 = vld [vmem:[%s4903 + $0x1d0] sm:$0xff]
        %v4963 = vld [vmem:[%s4903 + $0x1d8] sm:$0xff]
        %v4964 = vld [vmem:[%s4903 + $0x1e0] sm:$0xff]
        %v4965 = vld [vmem:[%s4903 + $0x1e8] sm:$0xff]
        %v4966 = vld [vmem:[%s4903 + $0x1f0] sm:$0xff]
        %v4967 = vld [vmem:[%s4903 + $0x1f8] sm:$0xff]
        %v4968 = vld [vmem:[%s4903 + $0x200] sm:$0xff]
        %v4969 = vld [vmem:[%s4903 + $0x208] sm:$0xff]
        %v4970 = vld [vmem:[%s4903 + $0x210] sm:$0xff]
        %v4971 = vld [vmem:[%s4903 + $0x218] sm:$0xff]
        %v4972 = vld [vmem:[%s4903 + $0x220] sm:$0xff]
        %v4973 = vld [vmem:[%s4903 + $0x228] sm:$0xff]
        %v4974 = vld [vmem:[%s4903 + $0x230] sm:$0xff]
        %v4975 = vld [vmem:[%s4903 + $0x238] sm:$0xff]
        %v4976 = vld [vmem:[%s4903 + $0x240] sm:$0xff]
        %v4977 = vld [vmem:[%s4903 + $0x248] sm:$0xff]
        %v4978 = vld [vmem:[%s4903 + $0x250] sm:$0xff]
        %v4979 = vld [vmem:[%s4903 + $0x258] sm:$0xff]
        %v4980 = vld [vmem:[%s4903 + $0x260] sm:$0xff]
        %v4981 = vld [vmem:[%s4903 + $0x268] sm:$0xff]
        %v4982 = vld [vmem:[%s4903 + $0x270] sm:$0xff]
        %v4983 = vld [vmem:[%s4903 + $0x278] sm:$0xff]
        %v4984 = vld [vmem:[%s4903 + $0x280] sm:$0xff]
        %v4985 = vld [vmem:[%s4903 + $0x288] sm:$0xff]
        %v4986 = vld [vmem:[%s4903 + $0x290] sm:$0xff]
        %v4987 = vld [vmem:[%s4903 + $0x298] sm:$0xff]
        %v4988 = vld [vmem:[%s4903 + $0x2a0] sm:$0xff]
        %v4989 = vld [vmem:[%s4903 + $0x2a8] sm:$0xff]
        %v4990 = vld [vmem:[%s4903 + $0x2b0] sm:$0xff]
        %v4991 = vld [vmem:[%s4903 + $0x2b8] sm:$0xff]
        %v4992 = vld [vmem:[%s4903 + $0x2c0] sm:$0xff]
        %v4993 = vld [vmem:[%s4903 + $0x2c8] sm:$0xff]
        %v4994 = vld [vmem:[%s4903 + $0x2d0] sm:$0xff]
        %v4995 = vld [vmem:[%s4903 + $0x2d8] sm:$0xff]
        %v4996 = vld [vmem:[%s4903 + $0x2e0] sm:$0xff]
        %v4997 = vld [vmem:[%s4903 + $0x2e8] sm:$0xff]
        %v4998 = vld [vmem:[%s4903 + $0x2f0] sm:$0xff]
        %v4999 = vld [vmem:[%s4903 + $0x2f8] sm:$0xff]
        %v5000 = vld [vmem:[%s4903 + $0x300] sm:$0xff]
        %v5001 = vld [vmem:[%s4903 + $0x308] sm:$0xff]
        %v5002 = vld [vmem:[%s4903 + $0x310] sm:$0xff]
        %v5003 = vld [vmem:[%s4903 + $0x318] sm:$0xff]
        %v5004 = vld [vmem:[%s4903 + $0x320] sm:$0xff]
        %v5005 = vld [vmem:[%s4903 + $0x328] sm:$0xff]
        %v5006 = vld [vmem:[%s4903 + $0x330] sm:$0xff]
        %v5007 = vld [vmem:[%s4903 + $0x338] sm:$0xff]
        %v5008 = vld [vmem:[%s4903 + $0x340] sm:$0xff]
        %v5009 = vld [vmem:[%s4903 + $0x348] sm:$0xff]
        %v5010 = vld [vmem:[%s4903 + $0x350] sm:$0xff]
        %v5011 = vld [vmem:[%s4903 + $0x358] sm:$0xff]
        %v5012 = vld [vmem:[%s4903 + $0x360] sm:$0xff]
        %v5013 = vld [vmem:[%s4903 + $0x368] sm:$0xff]
        %v5014 = vld [vmem:[%s4903 + $0x370] sm:$0xff]
        %v5015 = vld [vmem:[%s4903 + $0x378] sm:$0xff]
        %v5016 = vld [vmem:[%s4903 + $0x380] sm:$0xff]
        %v5017 = vld [vmem:[%s4903 + $0x388] sm:$0xff]
        %v5018 = vld [vmem:[%s4903 + $0x390] sm:$0xff]
        %v5019 = vld [vmem:[%s4903 + $0x398] sm:$0xff]
        %v5020 = vld [vmem:[%s4903 + $0x3a0] sm:$0xff]
        %v5021 = vld [vmem:[%s4903 + $0x3a8] sm:$0xff]
        %v5022 = vld [vmem:[%s4903 + $0x3b0] sm:$0xff]
        %v5023 = vld [vmem:[%s4903 + $0x3b8] sm:$0xff]
        %v5024 = vld [vmem:[%s4903 + $0x3c0] sm:$0xff]
        %v5025 = vld [vmem:[%s4903 + $0x3c8] sm:$0xff]
        %v5026 = vld [vmem:[%s4903 + $0x3d0] sm:$0xff]
        %v5027 = vld [vmem:[%s4903 + $0x3d8] sm:$0xff]
        %v5028 = vld [vmem:[%s4903 + $0x3e0] sm:$0xff]
        %v5029 = vld [vmem:[%s4903 + $0x3e8] sm:$0xff]
        %v5030 = vld [vmem:[%s4903 + $0x3f0] sm:$0xff]
        %v5031 = vld [vmem:[%s4903 + $0x3f8] sm:$0xff]
        %v5032 = vld [vmem:[%s4903 + $0x400] sm:$0xff]
        %v5033 = vld [vmem:[%s4903 + $0x408] sm:$0xff]
        %v5034 = vld [vmem:[%s4903 + $0x410] sm:$0xff]
        %v5035 = vld [vmem:[%s4903 + $0x418] sm:$0xff]
        %v5036 = vld [vmem:[%s4903 + $0x420] sm:$0xff]
        %v5037 = vld [vmem:[%s4903 + $0x428] sm:$0xff]
        %v5038 = vld [vmem:[%s4903 + $0x430] sm:$0xff]
        %v5039 = vld [vmem:[%s4903 + $0x438] sm:$0xff]
        %v5040 = vld [vmem:[%s4903 + $0x440] sm:$0xff]
        %v5041 = vld [vmem:[%s4903 + $0x448] sm:$0xff]
        %v5042 = vld [vmem:[%s4903 + $0x450] sm:$0xff]
        %v5043 = vld [vmem:[%s4903 + $0x458] sm:$0xff]
        %v5044 = vld [vmem:[%s4903 + $0x460] sm:$0xff]
        %v5045 = vld [vmem:[%s4903 + $0x468] sm:$0xff]
        %v5046 = vld [vmem:[%s4903 + $0x470] sm:$0xff]
        %v5047 = vld [vmem:[%s4903 + $0x478] sm:$0xff]
        %v5048 = vld [vmem:[#allocation10 + $0x2] sm:$0x1]
        %v5049 = vperm.slane %v5048, 0
        %5050 = vmatpush.msra.mxu0 %v4919
        %5051 = vmatpush.msra.mxu0 %v4918
        %5052 = vmatpush.msra.mxu0 %v4917
        %5053 = vmatpush.msra.mxu0 %v4916
        %5054 = vmatpush.msra.mxu0 %v4915
        %5055 = vmatpush.msra.mxu0 %v4914
        %5056 = vmatpush.msra.mxu0 %v4913
        %5057 = vmatpush.msra.mxu0 %v4912
        %5058 = vmatpush.msra.mxu0 %v4911
        %5059 = vmatpush.msra.mxu0 %v4910
        %5060 = vmatpush.msra.mxu0 %v4909
        %5061 = vmatpush.msra.mxu0 %v4908
        %5062 = vmatpush.msra.mxu0 %v4907
        %5063 = vmatpush.msra.mxu0 %v4906
        %5064 = vmatpush.msra.mxu0 %v4905
        %5065 = vmatpush.msra.mxu0 %v4904
        %5066 = vmatmul.f32.gmra.mxu0 %v4615
        %v5067 = vpop.f32.mrf.mxu0
        %v5068 = vadd.f32 %v5049, %v5067
        %5069 = vmatmul.f32.gmra.mxu0 %v4624
        %v5070 = vpop.f32.mrf.mxu0
        %v5071 = vadd.f32 %v5049, %v5070
        %5072 = vmatmul.f32.gmra.mxu0 %v4633
        %v5073 = vpop.f32.mrf.mxu0
        %v5074 = vadd.f32 %v5049, %v5073
        %5075 = vmatmul.f32.gmra.mxu0 %v4642
        %v5076 = vpop.f32.mrf.mxu0
        %v5077 = vadd.f32 %v5049, %v5076
        %5078 = vmatmul.f32.gmra.mxu0 %v4651
        %v5079 = vpop.f32.mrf.mxu0
        %v5080 = vadd.f32 %v5049, %v5079
        %5081 = vmatmul.f32.gmra.mxu0 %v4660
        %v5082 = vpop.f32.mrf.mxu0
        %v5083 = vadd.f32 %v5049, %v5082
        %5084 = vmatmul.f32.gmra.mxu0 %v4669
        %v5085 = vpop.f32.mrf.mxu0
        %v5086 = vadd.f32 %v5049, %v5085
        %5087 = vmatmul.f32.gmra.mxu0 %v4678
        %v5088 = vpop.f32.mrf.mxu0
        %v5089 = vadd.f32 %v5049, %v5088
        %5090 = vmatmul.f32.gmra.mxu0 %v4687
        %v5091 = vpop.f32.mrf.mxu0
        %v5092 = vadd.f32 %v5049, %v5091
        %5093 = vmatmul.f32.gmra.mxu0 %v4696
        %v5094 = vpop.f32.mrf.mxu0
        %v5095 = vadd.f32 %v5049, %v5094
        %5096 = vmatmul.f32.gmra.mxu0 %v4705
        %v5097 = vpop.f32.mrf.mxu0
        %v5098 = vadd.f32 %v5049, %v5097
        %5099 = vmatmul.f32.gmra.mxu0 %v4714
        %v5100 = vpop.f32.mrf.mxu0
        %v5101 = vadd.f32 %v5049, %v5100
        %5102 = vmatmul.f32.gmra.mxu0 %v4723
        %v5103 = vpop.f32.mrf.mxu0
        %v5104 = vadd.f32 %v5049, %v5103
        %5105 = vmatmul.f32.gmra.mxu0 %v4732
        %v5106 = vpop.f32.mrf.mxu0
        %v5107 = vadd.f32 %v5049, %v5106
        %5108 = vmatmul.f32.gmra.mxu0 %v4741
        %v5109 = vpop.f32.mrf.mxu0
        %v5110 = vadd.f32 %v5049, %v5109
        %5111 = vmatmul.f32.gmra.mxu0 %v4750
        %v5112 = vpop.f32.mrf.mxu0
        %v5113 = vadd.f32 %v5049, %v5112
        %5114 = vmatmul.f32.gmra.mxu0 %v4759
        %v5115 = vpop.f32.mrf.mxu0
        %v5116 = vadd.f32 %v5049, %v5115
        %5117 = vmatmul.f32.gmra.mxu0 %v4768
        %v5118 = vpop.f32.mrf.mxu0
        %v5119 = vadd.f32 %v5049, %v5118
        %5120 = vmatmul.f32.gmra.mxu0 %v4777
        %v5121 = vpop.f32.mrf.mxu0
        %v5122 = vadd.f32 %v5049, %v5121
        %5123 = vmatmul.f32.gmra.mxu0 %v4786
        %v5124 = vpop.f32.mrf.mxu0
        %v5125 = vadd.f32 %v5049, %v5124
        %5126 = vmatmul.f32.gmra.mxu0 %v4795
        %v5127 = vpop.f32.mrf.mxu0
        %v5128 = vadd.f32 %v5049, %v5127
        %5129 = vmatmul.f32.gmra.mxu0 %v4804
        %v5130 = vpop.f32.mrf.mxu0
        %v5131 = vadd.f32 %v5049, %v5130
        %5132 = vmatmul.f32.gmra.mxu0 %v4813
        %v5133 = vpop.f32.mrf.mxu0
        %v5134 = vadd.f32 %v5049, %v5133
        %5135 = vmatmul.f32.gmra.mxu0 %v4822
        %v5136 = vpop.f32.mrf.mxu0
        %v5137 = vadd.f32 %v5049, %v5136
        %5138 = vmatmul.f32.gmra.mxu0 %v4831
        %v5139 = vpop.f32.mrf.mxu0
        %v5140 = vadd.f32 %v5049, %v5139
        %5141 = vmatmul.f32.gmra.mxu0 %v4840
        %v5142 = vpop.f32.mrf.mxu0
        %v5143 = vadd.f32 %v5049, %v5142
        %5144 = vmatmul.f32.gmra.mxu0 %v4849
        %v5145 = vpop.f32.mrf.mxu0
        %v5146 = vadd.f32 %v5049, %v5145
        %5147 = vmatmul.f32.gmra.mxu0 %v4858
        %v5148 = vpop.f32.mrf.mxu0
        %v5149 = vadd.f32 %v5049, %v5148
        %5150 = vmatmul.f32.gmra.mxu0 %v4867
        %v5151 = vpop.f32.mrf.mxu0
        %v5152 = vadd.f32 %v5049, %v5151
        %5153 = vmatmul.f32.gmra.mxu0 %v4876
        %v5154 = vpop.f32.mrf.mxu0
        %v5155 = vadd.f32 %v5049, %v5154
        %5156 = vmatmul.f32.gmra.mxu0 %v4885
        %v5157 = vpop.f32.mrf.mxu0
        %v5158 = vadd.f32 %v5049, %v5157
        %5159 = vmatmul.f32.gmra.mxu0 %v4894
        %v5160 = vpop.f32.mrf.mxu0
        %v5161 = vadd.f32 %v5049, %v5160
        %5162 = vdwg.mxu0
        %5163 = vmatpush.msra.mxu0 %v4935
        %5164 = vmatpush.msra.mxu0 %v4934
        %5165 = vmatpush.msra.mxu0 %v4933
        %5166 = vmatpush.msra.mxu0 %v4932
        %5167 = vmatpush.msra.mxu0 %v4931
        %5168 = vmatpush.msra.mxu0 %v4930
        %5169 = vmatpush.msra.mxu0 %v4929
        %5170 = vmatpush.msra.mxu0 %v4928
        %5171 = vmatpush.msra.mxu0 %v4927
        %5172 = vmatpush.msra.mxu0 %v4926
        %5173 = vmatpush.msra.mxu0 %v4925
        %5174 = vmatpush.msra.mxu0 %v4924
        %5175 = vmatpush.msra.mxu0 %v4923
        %5176 = vmatpush.msra.mxu0 %v4922
        %5177 = vmatpush.msra.mxu0 %v4921
        %5178 = vmatpush.msra.mxu0 %v4920
        %5179 = vmatmul.f32.gmra.mxu0 %v4616
        %v5180 = vpop.f32.mrf.mxu0
        %v5181 = vadd.f32 %v5068, %v5180
        %5182 = vmatmul.f32.gmra.mxu0 %v4625
        %v5183 = vpop.f32.mrf.mxu0
        %v5184 = vadd.f32 %v5071, %v5183
        %5185 = vmatmul.f32.gmra.mxu0 %v4634
        %v5186 = vpop.f32.mrf.mxu0
        %v5187 = vadd.f32 %v5074, %v5186
        %5188 = vmatmul.f32.gmra.mxu0 %v4643
        %v5189 = vpop.f32.mrf.mxu0
        %v5190 = vadd.f32 %v5077, %v5189
        %5191 = vmatmul.f32.gmra.mxu0 %v4652
        %v5192 = vpop.f32.mrf.mxu0
        %v5193 = vadd.f32 %v5080, %v5192
        %5194 = vmatmul.f32.gmra.mxu0 %v4661
        %v5195 = vpop.f32.mrf.mxu0
        %v5196 = vadd.f32 %v5083, %v5195
        %5197 = vmatmul.f32.gmra.mxu0 %v4670
        %v5198 = vpop.f32.mrf.mxu0
        %v5199 = vadd.f32 %v5086, %v5198
        %5200 = vmatmul.f32.gmra.mxu0 %v4679
        %v5201 = vpop.f32.mrf.mxu0
        %v5202 = vadd.f32 %v5089, %v5201
        %5203 = vmatmul.f32.gmra.mxu0 %v4688
        %v5204 = vpop.f32.mrf.mxu0
        %v5205 = vadd.f32 %v5092, %v5204
        %5206 = vmatmul.f32.gmra.mxu0 %v4697
        %v5207 = vpop.f32.mrf.mxu0
        %v5208 = vadd.f32 %v5095, %v5207
        %5209 = vmatmul.f32.gmra.mxu0 %v4706
        %v5210 = vpop.f32.mrf.mxu0
        %v5211 = vadd.f32 %v5098, %v5210
        %5212 = vmatmul.f32.gmra.mxu0 %v4715
        %v5213 = vpop.f32.mrf.mxu0
        %v5214 = vadd.f32 %v5101, %v5213
        %5215 = vmatmul.f32.gmra.mxu0 %v4724
        %v5216 = vpop.f32.mrf.mxu0
        %v5217 = vadd.f32 %v5104, %v5216
        %5218 = vmatmul.f32.gmra.mxu0 %v4733
        %v5219 = vpop.f32.mrf.mxu0
        %v5220 = vadd.f32 %v5107, %v5219
        %5221 = vmatmul.f32.gmra.mxu0 %v4742
        %v5222 = vpop.f32.mrf.mxu0
        %v5223 = vadd.f32 %v5110, %v5222
        %5224 = vmatmul.f32.gmra.mxu0 %v4751
        %v5225 = vpop.f32.mrf.mxu0
        %v5226 = vadd.f32 %v5113, %v5225
        %5227 = vmatmul.f32.gmra.mxu0 %v4760
        %v5228 = vpop.f32.mrf.mxu0
        %v5229 = vadd.f32 %v5116, %v5228
        %5230 = vmatmul.f32.gmra.mxu0 %v4769
        %v5231 = vpop.f32.mrf.mxu0
        %v5232 = vadd.f32 %v5119, %v5231
        %5233 = vmatmul.f32.gmra.mxu0 %v4778
        %v5234 = vpop.f32.mrf.mxu0
        %v5235 = vadd.f32 %v5122, %v5234
        %5236 = vmatmul.f32.gmra.mxu0 %v4787
        %v5237 = vpop.f32.mrf.mxu0
        %v5238 = vadd.f32 %v5125, %v5237
        %5239 = vmatmul.f32.gmra.mxu0 %v4796
        %v5240 = vpop.f32.mrf.mxu0
        %v5241 = vadd.f32 %v5128, %v5240
        %5242 = vmatmul.f32.gmra.mxu0 %v4805
        %v5243 = vpop.f32.mrf.mxu0
        %v5244 = vadd.f32 %v5131, %v5243
        %5245 = vmatmul.f32.gmra.mxu0 %v4814
        %v5246 = vpop.f32.mrf.mxu0
        %v5247 = vadd.f32 %v5134, %v5246
        %5248 = vmatmul.f32.gmra.mxu0 %v4823
        %v5249 = vpop.f32.mrf.mxu0
        %v5250 = vadd.f32 %v5137, %v5249
        %5251 = vmatmul.f32.gmra.mxu0 %v4832
        %v5252 = vpop.f32.mrf.mxu0
        %v5253 = vadd.f32 %v5140, %v5252
        %5254 = vmatmul.f32.gmra.mxu0 %v4841
        %v5255 = vpop.f32.mrf.mxu0
        %v5256 = vadd.f32 %v5143, %v5255
        %5257 = vmatmul.f32.gmra.mxu0 %v4850
        %v5258 = vpop.f32.mrf.mxu0
        %v5259 = vadd.f32 %v5146, %v5258
        %5260 = vmatmul.f32.gmra.mxu0 %v4859
        %v5261 = vpop.f32.mrf.mxu0
        %v5262 = vadd.f32 %v5149, %v5261
        %5263 = vmatmul.f32.gmra.mxu0 %v4868
        %v5264 = vpop.f32.mrf.mxu0
        %v5265 = vadd.f32 %v5152, %v5264
        %5266 = vmatmul.f32.gmra.mxu0 %v4877
        %v5267 = vpop.f32.mrf.mxu0
        %v5268 = vadd.f32 %v5155, %v5267
        %5269 = vmatmul.f32.gmra.mxu0 %v4886
        %v5270 = vpop.f32.mrf.mxu0
        %v5271 = vadd.f32 %v5158, %v5270
        %5272 = vmatmul.f32.gmra.mxu0 %v4895
        %v5273 = vpop.f32.mrf.mxu0
        %v5274 = vadd.f32 %v5161, %v5273
        %5275 = vdwg.mxu0
        %5276 = vmatpush.msra.mxu0 %v4951
        %5277 = vmatpush.msra.mxu0 %v4950
        %5278 = vmatpush.msra.mxu0 %v4949
        %5279 = vmatpush.msra.mxu0 %v4948
        %5280 = vmatpush.msra.mxu0 %v4947
        %5281 = vmatpush.msra.mxu0 %v4946
        %5282 = vmatpush.msra.mxu0 %v4945
        %5283 = vmatpush.msra.mxu0 %v4944
        %5284 = vmatpush.msra.mxu0 %v4943
        %5285 = vmatpush.msra.mxu0 %v4942
        %5286 = vmatpush.msra.mxu0 %v4941
        %5287 = vmatpush.msra.mxu0 %v4940
        %5288 = vmatpush.msra.mxu0 %v4939
        %5289 = vmatpush.msra.mxu0 %v4938
        %5290 = vmatpush.msra.mxu0 %v4937
        %5291 = vmatpush.msra.mxu0 %v4936
        %5292 = vmatmul.f32.gmra.mxu0 %v4617
        %v5293 = vpop.f32.mrf.mxu0
        %v5294 = vadd.f32 %v5181, %v5293
        %5295 = vmatmul.f32.gmra.mxu0 %v4626
        %v5296 = vpop.f32.mrf.mxu0
        %v5297 = vadd.f32 %v5184, %v5296
        %5298 = vmatmul.f32.gmra.mxu0 %v4635
        %v5299 = vpop.f32.mrf.mxu0
        %v5300 = vadd.f32 %v5187, %v5299
        %5301 = vmatmul.f32.gmra.mxu0 %v4644
        %v5302 = vpop.f32.mrf.mxu0
        %v5303 = vadd.f32 %v5190, %v5302
        %5304 = vmatmul.f32.gmra.mxu0 %v4653
        %v5305 = vpop.f32.mrf.mxu0
        %v5306 = vadd.f32 %v5193, %v5305
        %5307 = vmatmul.f32.gmra.mxu0 %v4662
        %v5308 = vpop.f32.mrf.mxu0
        %v5309 = vadd.f32 %v5196, %v5308
        %5310 = vmatmul.f32.gmra.mxu0 %v4671
        %v5311 = vpop.f32.mrf.mxu0
        %v5312 = vadd.f32 %v5199, %v5311
        %5313 = vmatmul.f32.gmra.mxu0 %v4680
        %v5314 = vpop.f32.mrf.mxu0
        %v5315 = vadd.f32 %v5202, %v5314
        %5316 = vmatmul.f32.gmra.mxu0 %v4689
        %v5317 = vpop.f32.mrf.mxu0
        %v5318 = vadd.f32 %v5205, %v5317
        %5319 = vmatmul.f32.gmra.mxu0 %v4698
        %v5320 = vpop.f32.mrf.mxu0
        %v5321 = vadd.f32 %v5208, %v5320
        %5322 = vmatmul.f32.gmra.mxu0 %v4707
        %v5323 = vpop.f32.mrf.mxu0
        %v5324 = vadd.f32 %v5211, %v5323
        %5325 = vmatmul.f32.gmra.mxu0 %v4716
        %v5326 = vpop.f32.mrf.mxu0
        %v5327 = vadd.f32 %v5214, %v5326
        %5328 = vmatmul.f32.gmra.mxu0 %v4725
        %v5329 = vpop.f32.mrf.mxu0
        %v5330 = vadd.f32 %v5217, %v5329
        %5331 = vmatmul.f32.gmra.mxu0 %v4734
        %v5332 = vpop.f32.mrf.mxu0
        %v5333 = vadd.f32 %v5220, %v5332
        %5334 = vmatmul.f32.gmra.mxu0 %v4743
        %v5335 = vpop.f32.mrf.mxu0
        %v5336 = vadd.f32 %v5223, %v5335
        %5337 = vmatmul.f32.gmra.mxu0 %v4752
        %v5338 = vpop.f32.mrf.mxu0
        %v5339 = vadd.f32 %v5226, %v5338
        %5340 = vmatmul.f32.gmra.mxu0 %v4761
        %v5341 = vpop.f32.mrf.mxu0
        %v5342 = vadd.f32 %v5229, %v5341
        %5343 = vmatmul.f32.gmra.mxu0 %v4770
        %v5344 = vpop.f32.mrf.mxu0
        %v5345 = vadd.f32 %v5232, %v5344
        %5346 = vmatmul.f32.gmra.mxu0 %v4779
        %v5347 = vpop.f32.mrf.mxu0
        %v5348 = vadd.f32 %v5235, %v5347
        %5349 = vmatmul.f32.gmra.mxu0 %v4788
        %v5350 = vpop.f32.mrf.mxu0
        %v5351 = vadd.f32 %v5238, %v5350
        %5352 = vmatmul.f32.gmra.mxu0 %v4797
        %v5353 = vpop.f32.mrf.mxu0
        %v5354 = vadd.f32 %v5241, %v5353
        %5355 = vmatmul.f32.gmra.mxu0 %v4806
        %v5356 = vpop.f32.mrf.mxu0
        %v5357 = vadd.f32 %v5244, %v5356
        %5358 = vmatmul.f32.gmra.mxu0 %v4815
        %v5359 = vpop.f32.mrf.mxu0
        %v5360 = vadd.f32 %v5247, %v5359
        %5361 = vmatmul.f32.gmra.mxu0 %v4824
        %v5362 = vpop.f32.mrf.mxu0
        %v5363 = vadd.f32 %v5250, %v5362
        %5364 = vmatmul.f32.gmra.mxu0 %v4833
        %v5365 = vpop.f32.mrf.mxu0
        %v5366 = vadd.f32 %v5253, %v5365
        %5367 = vmatmul.f32.gmra.mxu0 %v4842
        %v5368 = vpop.f32.mrf.mxu0
        %v5369 = vadd.f32 %v5256, %v5368
        %5370 = vmatmul.f32.gmra.mxu0 %v4851
        %v5371 = vpop.f32.mrf.mxu0
        %v5372 = vadd.f32 %v5259, %v5371
        %5373 = vmatmul.f32.gmra.mxu0 %v4860
        %v5374 = vpop.f32.mrf.mxu0
        %v5375 = vadd.f32 %v5262, %v5374
        %5376 = vmatmul.f32.gmra.mxu0 %v4869
        %v5377 = vpop.f32.mrf.mxu0
        %v5378 = vadd.f32 %v5265, %v5377
        %5379 = vmatmul.f32.gmra.mxu0 %v4878
        %v5380 = vpop.f32.mrf.mxu0
        %v5381 = vadd.f32 %v5268, %v5380
        %5382 = vmatmul.f32.gmra.mxu0 %v4887
        %v5383 = vpop.f32.mrf.mxu0
        %v5384 = vadd.f32 %v5271, %v5383
        %5385 = vmatmul.f32.gmra.mxu0 %v4896
        %v5386 = vpop.f32.mrf.mxu0
        %v5387 = vadd.f32 %v5274, %v5386
        %5388 = vdwg.mxu0
        %5389 = vmatpush.msra.mxu0 %v4967
        %5390 = vmatpush.msra.mxu0 %v4966
        %5391 = vmatpush.msra.mxu0 %v4965
        %5392 = vmatpush.msra.mxu0 %v4964
        %5393 = vmatpush.msra.mxu0 %v4963
        %5394 = vmatpush.msra.mxu0 %v4962
        %5395 = vmatpush.msra.mxu0 %v4961
        %5396 = vmatpush.msra.mxu0 %v4960
        %5397 = vmatpush.msra.mxu0 %v4959
        %5398 = vmatpush.msra.mxu0 %v4958
        %5399 = vmatpush.msra.mxu0 %v4957
        %5400 = vmatpush.msra.mxu0 %v4956
        %5401 = vmatpush.msra.mxu0 %v4955
        %5402 = vmatpush.msra.mxu0 %v4954
        %5403 = vmatpush.msra.mxu0 %v4953
        %5404 = vmatpush.msra.mxu0 %v4952
        %5405 = vmatmul.f32.gmra.mxu0 %v4618
        %v5406 = vpop.f32.mrf.mxu0
        %v5407 = vadd.f32 %v5294, %v5406
        %5408 = vmatmul.f32.gmra.mxu0 %v4627
        %v5409 = vpop.f32.mrf.mxu0
        %v5410 = vadd.f32 %v5297, %v5409
        %5411 = vmatmul.f32.gmra.mxu0 %v4636
        %v5412 = vpop.f32.mrf.mxu0
        %v5413 = vadd.f32 %v5300, %v5412
        %5414 = vmatmul.f32.gmra.mxu0 %v4645
        %v5415 = vpop.f32.mrf.mxu0
        %v5416 = vadd.f32 %v5303, %v5415
        %5417 = vmatmul.f32.gmra.mxu0 %v4654
        %v5418 = vpop.f32.mrf.mxu0
        %v5419 = vadd.f32 %v5306, %v5418
        %5420 = vmatmul.f32.gmra.mxu0 %v4663
        %v5421 = vpop.f32.mrf.mxu0
        %v5422 = vadd.f32 %v5309, %v5421
        %5423 = vmatmul.f32.gmra.mxu0 %v4672
        %v5424 = vpop.f32.mrf.mxu0
        %v5425 = vadd.f32 %v5312, %v5424
        %5426 = vmatmul.f32.gmra.mxu0 %v4681
        %v5427 = vpop.f32.mrf.mxu0
        %v5428 = vadd.f32 %v5315, %v5427
        %5429 = vmatmul.f32.gmra.mxu0 %v4690
        %v5430 = vpop.f32.mrf.mxu0
        %v5431 = vadd.f32 %v5318, %v5430
        %5432 = vmatmul.f32.gmra.mxu0 %v4699
        %v5433 = vpop.f32.mrf.mxu0
        %v5434 = vadd.f32 %v5321, %v5433
        %5435 = vmatmul.f32.gmra.mxu0 %v4708
        %v5436 = vpop.f32.mrf.mxu0
        %v5437 = vadd.f32 %v5324, %v5436
        %5438 = vmatmul.f32.gmra.mxu0 %v4717
        %v5439 = vpop.f32.mrf.mxu0
        %v5440 = vadd.f32 %v5327, %v5439
        %5441 = vmatmul.f32.gmra.mxu0 %v4726
        %v5442 = vpop.f32.mrf.mxu0
        %v5443 = vadd.f32 %v5330, %v5442
        %5444 = vmatmul.f32.gmra.mxu0 %v4735
        %v5445 = vpop.f32.mrf.mxu0
        %v5446 = vadd.f32 %v5333, %v5445
        %5447 = vmatmul.f32.gmra.mxu0 %v4744
        %v5448 = vpop.f32.mrf.mxu0
        %v5449 = vadd.f32 %v5336, %v5448
        %5450 = vmatmul.f32.gmra.mxu0 %v4753
        %v5451 = vpop.f32.mrf.mxu0
        %v5452 = vadd.f32 %v5339, %v5451
        %5453 = vmatmul.f32.gmra.mxu0 %v4762
        %v5454 = vpop.f32.mrf.mxu0
        %v5455 = vadd.f32 %v5342, %v5454
        %5456 = vmatmul.f32.gmra.mxu0 %v4771
        %v5457 = vpop.f32.mrf.mxu0
        %v5458 = vadd.f32 %v5345, %v5457
        %5459 = vmatmul.f32.gmra.mxu0 %v4780
        %v5460 = vpop.f32.mrf.mxu0
        %v5461 = vadd.f32 %v5348, %v5460
        %5462 = vmatmul.f32.gmra.mxu0 %v4789
        %v5463 = vpop.f32.mrf.mxu0
        %v5464 = vadd.f32 %v5351, %v5463
        %5465 = vmatmul.f32.gmra.mxu0 %v4798
        %v5466 = vpop.f32.mrf.mxu0
        %v5467 = vadd.f32 %v5354, %v5466
        %5468 = vmatmul.f32.gmra.mxu0 %v4807
        %v5469 = vpop.f32.mrf.mxu0
        %v5470 = vadd.f32 %v5357, %v5469
        %5471 = vmatmul.f32.gmra.mxu0 %v4816
        %v5472 = vpop.f32.mrf.mxu0
        %v5473 = vadd.f32 %v5360, %v5472
        %5474 = vmatmul.f32.gmra.mxu0 %v4825
        %v5475 = vpop.f32.mrf.mxu0
        %v5476 = vadd.f32 %v5363, %v5475
        %5477 = vmatmul.f32.gmra.mxu0 %v4834
        %v5478 = vpop.f32.mrf.mxu0
        %v5479 = vadd.f32 %v5366, %v5478
        %5480 = vmatmul.f32.gmra.mxu0 %v4843
        %v5481 = vpop.f32.mrf.mxu0
        %v5482 = vadd.f32 %v5369, %v5481
        %5483 = vmatmul.f32.gmra.mxu0 %v4852
        %v5484 = vpop.f32.mrf.mxu0
        %v5485 = vadd.f32 %v5372, %v5484
        %5486 = vmatmul.f32.gmra.mxu0 %v4861
        %v5487 = vpop.f32.mrf.mxu0
        %v5488 = vadd.f32 %v5375, %v5487
        %5489 = vmatmul.f32.gmra.mxu0 %v4870
        %v5490 = vpop.f32.mrf.mxu0
        %v5491 = vadd.f32 %v5378, %v5490
        %5492 = vmatmul.f32.gmra.mxu0 %v4879
        %v5493 = vpop.f32.mrf.mxu0
        %v5494 = vadd.f32 %v5381, %v5493
        %5495 = vmatmul.f32.gmra.mxu0 %v4888
        %v5496 = vpop.f32.mrf.mxu0
        %v5497 = vadd.f32 %v5384, %v5496
        %5498 = vmatmul.f32.gmra.mxu0 %v4897
        %v5499 = vpop.f32.mrf.mxu0
        %v5500 = vadd.f32 %v5387, %v5499
        %5501 = vdwg.mxu0
        %5502 = vmatpush.msra.mxu0 %v4983
        %5503 = vmatpush.msra.mxu0 %v4982
        %5504 = vmatpush.msra.mxu0 %v4981
        %5505 = vmatpush.msra.mxu0 %v4980
        %5506 = vmatpush.msra.mxu0 %v4979
        %5507 = vmatpush.msra.mxu0 %v4978
        %5508 = vmatpush.msra.mxu0 %v4977
        %5509 = vmatpush.msra.mxu0 %v4976
        %5510 = vmatpush.msra.mxu0 %v4975
        %5511 = vmatpush.msra.mxu0 %v4974
        %5512 = vmatpush.msra.mxu0 %v4973
        %5513 = vmatpush.msra.mxu0 %v4972
        %5514 = vmatpush.msra.mxu0 %v4971
        %5515 = vmatpush.msra.mxu0 %v4970
        %5516 = vmatpush.msra.mxu0 %v4969
        %5517 = vmatpush.msra.mxu0 %v4968
        %5518 = vmatmul.f32.gmra.mxu0 %v4619
        %v5519 = vpop.f32.mrf.mxu0
        %v5520 = vadd.f32 %v5407, %v5519
        %5521 = vmatmul.f32.gmra.mxu0 %v4628
        %v5522 = vpop.f32.mrf.mxu0
        %v5523 = vadd.f32 %v5410, %v5522
        %5524 = vmatmul.f32.gmra.mxu0 %v4637
        %v5525 = vpop.f32.mrf.mxu0
        %v5526 = vadd.f32 %v5413, %v5525
        %5527 = vmatmul.f32.gmra.mxu0 %v4646
        %v5528 = vpop.f32.mrf.mxu0
        %v5529 = vadd.f32 %v5416, %v5528
        %5530 = vmatmul.f32.gmra.mxu0 %v4655
        %v5531 = vpop.f32.mrf.mxu0
        %v5532 = vadd.f32 %v5419, %v5531
        %5533 = vmatmul.f32.gmra.mxu0 %v4664
        %v5534 = vpop.f32.mrf.mxu0
        %v5535 = vadd.f32 %v5422, %v5534
        %5536 = vmatmul.f32.gmra.mxu0 %v4673
        %v5537 = vpop.f32.mrf.mxu0
        %v5538 = vadd.f32 %v5425, %v5537
        %5539 = vmatmul.f32.gmra.mxu0 %v4682
        %v5540 = vpop.f32.mrf.mxu0
        %v5541 = vadd.f32 %v5428, %v5540
        %5542 = vmatmul.f32.gmra.mxu0 %v4691
        %v5543 = vpop.f32.mrf.mxu0
        %v5544 = vadd.f32 %v5431, %v5543
        %5545 = vmatmul.f32.gmra.mxu0 %v4700
        %v5546 = vpop.f32.mrf.mxu0
        %v5547 = vadd.f32 %v5434, %v5546
        %5548 = vmatmul.f32.gmra.mxu0 %v4709
        %v5549 = vpop.f32.mrf.mxu0
        %v5550 = vadd.f32 %v5437, %v5549
        %5551 = vmatmul.f32.gmra.mxu0 %v4718
        %v5552 = vpop.f32.mrf.mxu0
        %v5553 = vadd.f32 %v5440, %v5552
        %5554 = vmatmul.f32.gmra.mxu0 %v4727
        %v5555 = vpop.f32.mrf.mxu0
        %v5556 = vadd.f32 %v5443, %v5555
        %5557 = vmatmul.f32.gmra.mxu0 %v4736
        %v5558 = vpop.f32.mrf.mxu0
        %v5559 = vadd.f32 %v5446, %v5558
        %5560 = vmatmul.f32.gmra.mxu0 %v4745
        %v5561 = vpop.f32.mrf.mxu0
        %v5562 = vadd.f32 %v5449, %v5561
        %5563 = vmatmul.f32.gmra.mxu0 %v4754
        %v5564 = vpop.f32.mrf.mxu0
        %v5565 = vadd.f32 %v5452, %v5564
        %5566 = vmatmul.f32.gmra.mxu0 %v4763
        %v5567 = vpop.f32.mrf.mxu0
        %v5568 = vadd.f32 %v5455, %v5567
        %5569 = vmatmul.f32.gmra.mxu0 %v4772
        %v5570 = vpop.f32.mrf.mxu0
        %v5571 = vadd.f32 %v5458, %v5570
        %5572 = vmatmul.f32.gmra.mxu0 %v4781
        %v5573 = vpop.f32.mrf.mxu0
        %v5574 = vadd.f32 %v5461, %v5573
        %5575 = vmatmul.f32.gmra.mxu0 %v4790
        %v5576 = vpop.f32.mrf.mxu0
        %v5577 = vadd.f32 %v5464, %v5576
        %5578 = vmatmul.f32.gmra.mxu0 %v4799
        %v5579 = vpop.f32.mrf.mxu0
        %v5580 = vadd.f32 %v5467, %v5579
        %5581 = vmatmul.f32.gmra.mxu0 %v4808
        %v5582 = vpop.f32.mrf.mxu0
        %v5583 = vadd.f32 %v5470, %v5582
        %5584 = vmatmul.f32.gmra.mxu0 %v4817
        %v5585 = vpop.f32.mrf.mxu0
        %v5586 = vadd.f32 %v5473, %v5585
        %5587 = vmatmul.f32.gmra.mxu0 %v4826
        %v5588 = vpop.f32.mrf.mxu0
        %v5589 = vadd.f32 %v5476, %v5588
        %5590 = vmatmul.f32.gmra.mxu0 %v4835
        %v5591 = vpop.f32.mrf.mxu0
        %v5592 = vadd.f32 %v5479, %v5591
        %5593 = vmatmul.f32.gmra.mxu0 %v4844
        %v5594 = vpop.f32.mrf.mxu0
        %v5595 = vadd.f32 %v5482, %v5594
        %5596 = vmatmul.f32.gmra.mxu0 %v4853
        %v5597 = vpop.f32.mrf.mxu0
        %v5598 = vadd.f32 %v5485, %v5597
        %5599 = vmatmul.f32.gmra.mxu0 %v4862
        %v5600 = vpop.f32.mrf.mxu0
        %v5601 = vadd.f32 %v5488, %v5600
        %5602 = vmatmul.f32.gmra.mxu0 %v4871
        %v5603 = vpop.f32.mrf.mxu0
        %v5604 = vadd.f32 %v5491, %v5603
        %5605 = vmatmul.f32.gmra.mxu0 %v4880
        %v5606 = vpop.f32.mrf.mxu0
        %v5607 = vadd.f32 %v5494, %v5606
        %5608 = vmatmul.f32.gmra.mxu0 %v4889
        %v5609 = vpop.f32.mrf.mxu0
        %v5610 = vadd.f32 %v5497, %v5609
        %5611 = vmatmul.f32.gmra.mxu0 %v4898
        %v5612 = vpop.f32.mrf.mxu0
        %v5613 = vadd.f32 %v5500, %v5612
        %5614 = vdwg.mxu0
        %5615 = vmatpush.msra.mxu0 %v4999
        %5616 = vmatpush.msra.mxu0 %v4998
        %5617 = vmatpush.msra.mxu0 %v4997
        %5618 = vmatpush.msra.mxu0 %v4996
        %5619 = vmatpush.msra.mxu0 %v4995
        %5620 = vmatpush.msra.mxu0 %v4994
        %5621 = vmatpush.msra.mxu0 %v4993
        %5622 = vmatpush.msra.mxu0 %v4992
        %5623 = vmatpush.msra.mxu0 %v4991
        %5624 = vmatpush.msra.mxu0 %v4990
        %5625 = vmatpush.msra.mxu0 %v4989
        %5626 = vmatpush.msra.mxu0 %v4988
        %5627 = vmatpush.msra.mxu0 %v4987
        %5628 = vmatpush.msra.mxu0 %v4986
        %5629 = vmatpush.msra.mxu0 %v4985
        %5630 = vmatpush.msra.mxu0 %v4984
        %5631 = vmatmul.f32.gmra.mxu0 %v4620
        %v5632 = vpop.f32.mrf.mxu0
        %v5633 = vadd.f32 %v5520, %v5632
        %5634 = vmatmul.f32.gmra.mxu0 %v4629
        %v5635 = vpop.f32.mrf.mxu0
        %v5636 = vadd.f32 %v5523, %v5635
        %5637 = vmatmul.f32.gmra.mxu0 %v4638
        %v5638 = vpop.f32.mrf.mxu0
        %v5639 = vadd.f32 %v5526, %v5638
        %5640 = vmatmul.f32.gmra.mxu0 %v4647
        %v5641 = vpop.f32.mrf.mxu0
        %v5642 = vadd.f32 %v5529, %v5641
        %5643 = vmatmul.f32.gmra.mxu0 %v4656
        %v5644 = vpop.f32.mrf.mxu0
        %v5645 = vadd.f32 %v5532, %v5644
        %5646 = vmatmul.f32.gmra.mxu0 %v4665
        %v5647 = vpop.f32.mrf.mxu0
        %v5648 = vadd.f32 %v5535, %v5647
        %5649 = vmatmul.f32.gmra.mxu0 %v4674
        %v5650 = vpop.f32.mrf.mxu0
        %v5651 = vadd.f32 %v5538, %v5650
        %5652 = vmatmul.f32.gmra.mxu0 %v4683
        %v5653 = vpop.f32.mrf.mxu0
        %v5654 = vadd.f32 %v5541, %v5653
        %5655 = vmatmul.f32.gmra.mxu0 %v4692
        %v5656 = vpop.f32.mrf.mxu0
        %v5657 = vadd.f32 %v5544, %v5656
        %5658 = vmatmul.f32.gmra.mxu0 %v4701
        %v5659 = vpop.f32.mrf.mxu0
        %v5660 = vadd.f32 %v5547, %v5659
        %5661 = vmatmul.f32.gmra.mxu0 %v4710
        %v5662 = vpop.f32.mrf.mxu0
        %v5663 = vadd.f32 %v5550, %v5662
        %5664 = vmatmul.f32.gmra.mxu0 %v4719
        %v5665 = vpop.f32.mrf.mxu0
        %v5666 = vadd.f32 %v5553, %v5665
        %5667 = vmatmul.f32.gmra.mxu0 %v4728
        %v5668 = vpop.f32.mrf.mxu0
        %v5669 = vadd.f32 %v5556, %v5668
        %5670 = vmatmul.f32.gmra.mxu0 %v4737
        %v5671 = vpop.f32.mrf.mxu0
        %v5672 = vadd.f32 %v5559, %v5671
        %5673 = vmatmul.f32.gmra.mxu0 %v4746
        %v5674 = vpop.f32.mrf.mxu0
        %v5675 = vadd.f32 %v5562, %v5674
        %5676 = vmatmul.f32.gmra.mxu0 %v4755
        %v5677 = vpop.f32.mrf.mxu0
        %v5678 = vadd.f32 %v5565, %v5677
        %5679 = vmatmul.f32.gmra.mxu0 %v4764
        %v5680 = vpop.f32.mrf.mxu0
        %v5681 = vadd.f32 %v5568, %v5680
        %5682 = vmatmul.f32.gmra.mxu0 %v4773
        %v5683 = vpop.f32.mrf.mxu0
        %v5684 = vadd.f32 %v5571, %v5683
        %5685 = vmatmul.f32.gmra.mxu0 %v4782
        %v5686 = vpop.f32.mrf.mxu0
        %v5687 = vadd.f32 %v5574, %v5686
        %5688 = vmatmul.f32.gmra.mxu0 %v4791
        %v5689 = vpop.f32.mrf.mxu0
        %v5690 = vadd.f32 %v5577, %v5689
        %5691 = vmatmul.f32.gmra.mxu0 %v4800
        %v5692 = vpop.f32.mrf.mxu0
        %v5693 = vadd.f32 %v5580, %v5692
        %5694 = vmatmul.f32.gmra.mxu0 %v4809
        %v5695 = vpop.f32.mrf.mxu0
        %v5696 = vadd.f32 %v5583, %v5695
        %5697 = vmatmul.f32.gmra.mxu0 %v4818
        %v5698 = vpop.f32.mrf.mxu0
        %v5699 = vadd.f32 %v5586, %v5698
        %5700 = vmatmul.f32.gmra.mxu0 %v4827
        %v5701 = vpop.f32.mrf.mxu0
        %v5702 = vadd.f32 %v5589, %v5701
        %5703 = vmatmul.f32.gmra.mxu0 %v4836
        %v5704 = vpop.f32.mrf.mxu0
        %v5705 = vadd.f32 %v5592, %v5704
        %5706 = vmatmul.f32.gmra.mxu0 %v4845
        %v5707 = vpop.f32.mrf.mxu0
        %v5708 = vadd.f32 %v5595, %v5707
        %5709 = vmatmul.f32.gmra.mxu0 %v4854
        %v5710 = vpop.f32.mrf.mxu0
        %v5711 = vadd.f32 %v5598, %v5710
        %5712 = vmatmul.f32.gmra.mxu0 %v4863
        %v5713 = vpop.f32.mrf.mxu0
        %v5714 = vadd.f32 %v5601, %v5713
        %5715 = vmatmul.f32.gmra.mxu0 %v4872
        %v5716 = vpop.f32.mrf.mxu0
        %v5717 = vadd.f32 %v5604, %v5716
        %5718 = vmatmul.f32.gmra.mxu0 %v4881
        %v5719 = vpop.f32.mrf.mxu0
        %v5720 = vadd.f32 %v5607, %v5719
        %5721 = vmatmul.f32.gmra.mxu0 %v4890
        %v5722 = vpop.f32.mrf.mxu0
        %v5723 = vadd.f32 %v5610, %v5722
        %5724 = vmatmul.f32.gmra.mxu0 %v4899
        %v5725 = vpop.f32.mrf.mxu0
        %v5726 = vadd.f32 %v5613, %v5725
        %5727 = vdwg.mxu0
        %5728 = vmatpush.msra.mxu0 %v5015
        %5729 = vmatpush.msra.mxu0 %v5014
        %5730 = vmatpush.msra.mxu0 %v5013
        %5731 = vmatpush.msra.mxu0 %v5012
        %5732 = vmatpush.msra.mxu0 %v5011
        %5733 = vmatpush.msra.mxu0 %v5010
        %5734 = vmatpush.msra.mxu0 %v5009
        %5735 = vmatpush.msra.mxu0 %v5008
        %5736 = vmatpush.msra.mxu0 %v5007
        %5737 = vmatpush.msra.mxu0 %v5006
        %5738 = vmatpush.msra.mxu0 %v5005
        %5739 = vmatpush.msra.mxu0 %v5004
        %5740 = vmatpush.msra.mxu0 %v5003
        %5741 = vmatpush.msra.mxu0 %v5002
        %5742 = vmatpush.msra.mxu0 %v5001
        %5743 = vmatpush.msra.mxu0 %v5000
        %5744 = vmatmul.f32.gmra.mxu0 %v4621
        %v5745 = vpop.f32.mrf.mxu0
        %v5746 = vadd.f32 %v5633, %v5745
        %5747 = vmatmul.f32.gmra.mxu0 %v4630
        %v5748 = vpop.f32.mrf.mxu0
        %v5749 = vadd.f32 %v5636, %v5748
        %5750 = vmatmul.f32.gmra.mxu0 %v4639
        %v5751 = vpop.f32.mrf.mxu0
        %v5752 = vadd.f32 %v5639, %v5751
        %5753 = vmatmul.f32.gmra.mxu0 %v4648
        %v5754 = vpop.f32.mrf.mxu0
        %v5755 = vadd.f32 %v5642, %v5754
        %5756 = vmatmul.f32.gmra.mxu0 %v4657
        %v5757 = vpop.f32.mrf.mxu0
        %v5758 = vadd.f32 %v5645, %v5757
        %5759 = vmatmul.f32.gmra.mxu0 %v4666
        %v5760 = vpop.f32.mrf.mxu0
        %v5761 = vadd.f32 %v5648, %v5760
        %5762 = vmatmul.f32.gmra.mxu0 %v4675
        %v5763 = vpop.f32.mrf.mxu0
        %v5764 = vadd.f32 %v5651, %v5763
        %5765 = vmatmul.f32.gmra.mxu0 %v4684
        %v5766 = vpop.f32.mrf.mxu0
        %v5767 = vadd.f32 %v5654, %v5766
        %5768 = vmatmul.f32.gmra.mxu0 %v4693
        %v5769 = vpop.f32.mrf.mxu0
        %v5770 = vadd.f32 %v5657, %v5769
        %5771 = vmatmul.f32.gmra.mxu0 %v4702
        %v5772 = vpop.f32.mrf.mxu0
        %v5773 = vadd.f32 %v5660, %v5772
        %5774 = vmatmul.f32.gmra.mxu0 %v4711
        %v5775 = vpop.f32.mrf.mxu0
        %v5776 = vadd.f32 %v5663, %v5775
        %5777 = vmatmul.f32.gmra.mxu0 %v4720
        %v5778 = vpop.f32.mrf.mxu0
        %v5779 = vadd.f32 %v5666, %v5778
        %5780 = vmatmul.f32.gmra.mxu0 %v4729
        %v5781 = vpop.f32.mrf.mxu0
        %v5782 = vadd.f32 %v5669, %v5781
        %5783 = vmatmul.f32.gmra.mxu0 %v4738
        %v5784 = vpop.f32.mrf.mxu0
        %v5785 = vadd.f32 %v5672, %v5784
        %5786 = vmatmul.f32.gmra.mxu0 %v4747
        %v5787 = vpop.f32.mrf.mxu0
        %v5788 = vadd.f32 %v5675, %v5787
        %5789 = vmatmul.f32.gmra.mxu0 %v4756
        %v5790 = vpop.f32.mrf.mxu0
        %v5791 = vadd.f32 %v5678, %v5790
        %5792 = vmatmul.f32.gmra.mxu0 %v4765
        %v5793 = vpop.f32.mrf.mxu0
        %v5794 = vadd.f32 %v5681, %v5793
        %5795 = vmatmul.f32.gmra.mxu0 %v4774
        %v5796 = vpop.f32.mrf.mxu0
        %v5797 = vadd.f32 %v5684, %v5796
        %5798 = vmatmul.f32.gmra.mxu0 %v4783
        %v5799 = vpop.f32.mrf.mxu0
        %v5800 = vadd.f32 %v5687, %v5799
        %5801 = vmatmul.f32.gmra.mxu0 %v4792
        %v5802 = vpop.f32.mrf.mxu0
        %v5803 = vadd.f32 %v5690, %v5802
        %5804 = vmatmul.f32.gmra.mxu0 %v4801
        %v5805 = vpop.f32.mrf.mxu0
        %v5806 = vadd.f32 %v5693, %v5805
        %5807 = vmatmul.f32.gmra.mxu0 %v4810
        %v5808 = vpop.f32.mrf.mxu0
        %v5809 = vadd.f32 %v5696, %v5808
        %5810 = vmatmul.f32.gmra.mxu0 %v4819
        %v5811 = vpop.f32.mrf.mxu0
        %v5812 = vadd.f32 %v5699, %v5811
        %5813 = vmatmul.f32.gmra.mxu0 %v4828
        %v5814 = vpop.f32.mrf.mxu0
        %v5815 = vadd.f32 %v5702, %v5814
        %5816 = vmatmul.f32.gmra.mxu0 %v4837
        %v5817 = vpop.f32.mrf.mxu0
        %v5818 = vadd.f32 %v5705, %v5817
        %5819 = vmatmul.f32.gmra.mxu0 %v4846
        %v5820 = vpop.f32.mrf.mxu0
        %v5821 = vadd.f32 %v5708, %v5820
        %5822 = vmatmul.f32.gmra.mxu0 %v4855
        %v5823 = vpop.f32.mrf.mxu0
        %v5824 = vadd.f32 %v5711, %v5823
        %5825 = vmatmul.f32.gmra.mxu0 %v4864
        %v5826 = vpop.f32.mrf.mxu0
        %v5827 = vadd.f32 %v5714, %v5826
        %5828 = vmatmul.f32.gmra.mxu0 %v4873
        %v5829 = vpop.f32.mrf.mxu0
        %v5830 = vadd.f32 %v5717, %v5829
        %5831 = vmatmul.f32.gmra.mxu0 %v4882
        %v5832 = vpop.f32.mrf.mxu0
        %v5833 = vadd.f32 %v5720, %v5832
        %5834 = vmatmul.f32.gmra.mxu0 %v4891
        %v5835 = vpop.f32.mrf.mxu0
        %v5836 = vadd.f32 %v5723, %v5835
        %5837 = vmatmul.f32.gmra.mxu0 %v4900
        %v5838 = vpop.f32.mrf.mxu0
        %v5839 = vadd.f32 %v5726, %v5838
        %5840 = vdwg.mxu0
        %5841 = vmatpush.msra.mxu0 %v5031
        %5842 = vmatpush.msra.mxu0 %v5030
        %5843 = vmatpush.msra.mxu0 %v5029
        %5844 = vmatpush.msra.mxu0 %v5028
        %5845 = vmatpush.msra.mxu0 %v5027
        %5846 = vmatpush.msra.mxu0 %v5026
        %5847 = vmatpush.msra.mxu0 %v5025
        %5848 = vmatpush.msra.mxu0 %v5024
        %5849 = vmatpush.msra.mxu0 %v5023
        %5850 = vmatpush.msra.mxu0 %v5022
        %5851 = vmatpush.msra.mxu0 %v5021
        %5852 = vmatpush.msra.mxu0 %v5020
        %5853 = vmatpush.msra.mxu0 %v5019
        %5854 = vmatpush.msra.mxu0 %v5018
        %5855 = vmatpush.msra.mxu0 %v5017
        %5856 = vmatpush.msra.mxu0 %v5016
        %5857 = vmatmul.f32.gmra.mxu0 %v4622
        %v5858 = vpop.f32.mrf.mxu0
        %v5859 = vadd.f32 %v5746, %v5858
        %5860 = vmatmul.f32.gmra.mxu0 %v4631
        %v5861 = vpop.f32.mrf.mxu0
        %v5862 = vadd.f32 %v5749, %v5861
        %5863 = vmatmul.f32.gmra.mxu0 %v4640
        %v5864 = vpop.f32.mrf.mxu0
        %v5865 = vadd.f32 %v5752, %v5864
        %5866 = vmatmul.f32.gmra.mxu0 %v4649
        %v5867 = vpop.f32.mrf.mxu0
        %v5868 = vadd.f32 %v5755, %v5867
        %5869 = vmatmul.f32.gmra.mxu0 %v4658
        %v5870 = vpop.f32.mrf.mxu0
        %v5871 = vadd.f32 %v5758, %v5870
        %5872 = vmatmul.f32.gmra.mxu0 %v4667
        %v5873 = vpop.f32.mrf.mxu0
        %v5874 = vadd.f32 %v5761, %v5873
        %5875 = vmatmul.f32.gmra.mxu0 %v4676
        %v5876 = vpop.f32.mrf.mxu0
        %v5877 = vadd.f32 %v5764, %v5876
        %5878 = vmatmul.f32.gmra.mxu0 %v4685
        %v5879 = vpop.f32.mrf.mxu0
        %v5880 = vadd.f32 %v5767, %v5879
        %5881 = vmatmul.f32.gmra.mxu0 %v4694
        %v5882 = vpop.f32.mrf.mxu0
        %v5883 = vadd.f32 %v5770, %v5882
        %5884 = vmatmul.f32.gmra.mxu0 %v4703
        %v5885 = vpop.f32.mrf.mxu0
        %v5886 = vadd.f32 %v5773, %v5885
        %5887 = vmatmul.f32.gmra.mxu0 %v4712
        %v5888 = vpop.f32.mrf.mxu0
        %v5889 = vadd.f32 %v5776, %v5888
        %5890 = vmatmul.f32.gmra.mxu0 %v4721
        %v5891 = vpop.f32.mrf.mxu0
        %v5892 = vadd.f32 %v5779, %v5891
        %5893 = vmatmul.f32.gmra.mxu0 %v4730
        %v5894 = vpop.f32.mrf.mxu0
        %v5895 = vadd.f32 %v5782, %v5894
        %5896 = vmatmul.f32.gmra.mxu0 %v4739
        %v5897 = vpop.f32.mrf.mxu0
        %v5898 = vadd.f32 %v5785, %v5897
        %5899 = vmatmul.f32.gmra.mxu0 %v4748
        %v5900 = vpop.f32.mrf.mxu0
        %v5901 = vadd.f32 %v5788, %v5900
        %5902 = vmatmul.f32.gmra.mxu0 %v4757
        %v5903 = vpop.f32.mrf.mxu0
        %v5904 = vadd.f32 %v5791, %v5903
        %5905 = vmatmul.f32.gmra.mxu0 %v4766
        %v5906 = vpop.f32.mrf.mxu0
        %v5907 = vadd.f32 %v5794, %v5906
        %5908 = vmatmul.f32.gmra.mxu0 %v4775
        %v5909 = vpop.f32.mrf.mxu0
        %v5910 = vadd.f32 %v5797, %v5909
        %5911 = vmatmul.f32.gmra.mxu0 %v4784
        %v5912 = vpop.f32.mrf.mxu0
        %v5913 = vadd.f32 %v5800, %v5912
        %5914 = vmatmul.f32.gmra.mxu0 %v4793
        %v5915 = vpop.f32.mrf.mxu0
        %v5916 = vadd.f32 %v5803, %v5915
        %5917 = vmatmul.f32.gmra.mxu0 %v4802
        %v5918 = vpop.f32.mrf.mxu0
        %v5919 = vadd.f32 %v5806, %v5918
        %5920 = vmatmul.f32.gmra.mxu0 %v4811
        %v5921 = vpop.f32.mrf.mxu0
        %v5922 = vadd.f32 %v5809, %v5921
        %5923 = vmatmul.f32.gmra.mxu0 %v4820
        %v5924 = vpop.f32.mrf.mxu0
        %v5925 = vadd.f32 %v5812, %v5924
        %5926 = vmatmul.f32.gmra.mxu0 %v4829
        %v5927 = vpop.f32.mrf.mxu0
        %v5928 = vadd.f32 %v5815, %v5927
        %5929 = vmatmul.f32.gmra.mxu0 %v4838
        %v5930 = vpop.f32.mrf.mxu0
        %v5931 = vadd.f32 %v5818, %v5930
        %5932 = vmatmul.f32.gmra.mxu0 %v4847
        %v5933 = vpop.f32.mrf.mxu0
        %v5934 = vadd.f32 %v5821, %v5933
        %5935 = vmatmul.f32.gmra.mxu0 %v4856
        %v5936 = vpop.f32.mrf.mxu0
        %v5937 = vadd.f32 %v5824, %v5936
        %5938 = vmatmul.f32.gmra.mxu0 %v4865
        %v5939 = vpop.f32.mrf.mxu0
        %v5940 = vadd.f32 %v5827, %v5939
        %5941 = vmatmul.f32.gmra.mxu0 %v4874
        %v5942 = vpop.f32.mrf.mxu0
        %v5943 = vadd.f32 %v5830, %v5942
        %5944 = vmatmul.f32.gmra.mxu0 %v4883
        %v5945 = vpop.f32.mrf.mxu0
        %v5946 = vadd.f32 %v5833, %v5945
        %5947 = vmatmul.f32.gmra.mxu0 %v4892
        %v5948 = vpop.f32.mrf.mxu0
        %v5949 = vadd.f32 %v5836, %v5948
        %5950 = vmatmul.f32.gmra.mxu0 %v4901
        %v5951 = vpop.f32.mrf.mxu0
        %v5952 = vadd.f32 %v5839, %v5951
        %5953 = vdwg.mxu0
        %5954 = vmatpush.msra.mxu0 %v5047
        %5955 = vmatpush.msra.mxu0 %v5046
        %5956 = vmatpush.msra.mxu0 %v5045
        %5957 = vmatpush.msra.mxu0 %v5044
        %5958 = vmatpush.msra.mxu0 %v5043
        %5959 = vmatpush.msra.mxu0 %v5042
        %5960 = vmatpush.msra.mxu0 %v5041
        %5961 = vmatpush.msra.mxu0 %v5040
        %5962 = vmatpush.msra.mxu0 %v5039
        %5963 = vmatpush.msra.mxu0 %v5038
        %5964 = vmatpush.msra.mxu0 %v5037
        %5965 = vmatpush.msra.mxu0 %v5036
        %5966 = vmatpush.msra.mxu0 %v5035
        %5967 = vmatpush.msra.mxu0 %v5034
        %5968 = vmatpush.msra.mxu0 %v5033
        %5969 = vmatpush.msra.mxu0 %v5032
        %5970 = vmatmul.f32.gmra.mxu0 %v4623
        %v5971 = vpop.f32.mrf.mxu0
        %v5972 = vadd.f32 %v5859, %v5971
        %5973 = vmatmul.f32.gmra.mxu0 %v4632
        %v5974 = vpop.f32.mrf.mxu0
        %v5975 = vadd.f32 %v5862, %v5974
        %5976 = vmatmul.f32.gmra.mxu0 %v4641
        %v5977 = vpop.f32.mrf.mxu0
        %v5978 = vadd.f32 %v5865, %v5977
        %5979 = vmatmul.f32.gmra.mxu0 %v4650
        %v5980 = vpop.f32.mrf.mxu0
        %v5981 = vadd.f32 %v5868, %v5980
        %5982 = vmatmul.f32.gmra.mxu0 %v4659
        %v5983 = vpop.f32.mrf.mxu0
        %v5984 = vadd.f32 %v5871, %v5983
        %5985 = vmatmul.f32.gmra.mxu0 %v4668
        %v5986 = vpop.f32.mrf.mxu0
        %v5987 = vadd.f32 %v5874, %v5986
        %5988 = vmatmul.f32.gmra.mxu0 %v4677
        %v5989 = vpop.f32.mrf.mxu0
        %v5990 = vadd.f32 %v5877, %v5989
        %5991 = vmatmul.f32.gmra.mxu0 %v4686
        %v5992 = vpop.f32.mrf.mxu0
        %v5993 = vadd.f32 %v5880, %v5992
        %5994 = vmatmul.f32.gmra.mxu0 %v4695
        %v5995 = vpop.f32.mrf.mxu0
        %v5996 = vadd.f32 %v5883, %v5995
        %5997 = vmatmul.f32.gmra.mxu0 %v4704
        %v5998 = vpop.f32.mrf.mxu0
        %v5999 = vadd.f32 %v5886, %v5998
        %6000 = vmatmul.f32.gmra.mxu0 %v4713
        %v6001 = vpop.f32.mrf.mxu0
        %v6002 = vadd.f32 %v5889, %v6001
        %6003 = vmatmul.f32.gmra.mxu0 %v4722
        %v6004 = vpop.f32.mrf.mxu0
        %v6005 = vadd.f32 %v5892, %v6004
        %6006 = vmatmul.f32.gmra.mxu0 %v4731
        %v6007 = vpop.f32.mrf.mxu0
        %v6008 = vadd.f32 %v5895, %v6007
        %6009 = vmatmul.f32.gmra.mxu0 %v4740
        %v6010 = vpop.f32.mrf.mxu0
        %v6011 = vadd.f32 %v5898, %v6010
        %6012 = vmatmul.f32.gmra.mxu0 %v4749
        %v6013 = vpop.f32.mrf.mxu0
        %v6014 = vadd.f32 %v5901, %v6013
        %6015 = vmatmul.f32.gmra.mxu0 %v4758
        %v6016 = vpop.f32.mrf.mxu0
        %v6017 = vadd.f32 %v5904, %v6016
        %6018 = vmatmul.f32.gmra.mxu0 %v4767
        %v6019 = vpop.f32.mrf.mxu0
        %v6020 = vadd.f32 %v5907, %v6019
        %6021 = vmatmul.f32.gmra.mxu0 %v4776
        %v6022 = vpop.f32.mrf.mxu0
        %v6023 = vadd.f32 %v5910, %v6022
        %6024 = vmatmul.f32.gmra.mxu0 %v4785
        %v6025 = vpop.f32.mrf.mxu0
        %v6026 = vadd.f32 %v5913, %v6025
        %6027 = vmatmul.f32.gmra.mxu0 %v4794
        %v6028 = vpop.f32.mrf.mxu0
        %v6029 = vadd.f32 %v5916, %v6028
        %6030 = vmatmul.f32.gmra.mxu0 %v4803
        %v6031 = vpop.f32.mrf.mxu0
        %v6032 = vadd.f32 %v5919, %v6031
        %6033 = vmatmul.f32.gmra.mxu0 %v4812
        %v6034 = vpop.f32.mrf.mxu0
        %v6035 = vadd.f32 %v5922, %v6034
        %6036 = vmatmul.f32.gmra.mxu0 %v4821
        %v6037 = vpop.f32.mrf.mxu0
        %v6038 = vadd.f32 %v5925, %v6037
        %6039 = vmatmul.f32.gmra.mxu0 %v4830
        %v6040 = vpop.f32.mrf.mxu0
        %v6041 = vadd.f32 %v5928, %v6040
        %6042 = vmatmul.f32.gmra.mxu0 %v4839
        %v6043 = vpop.f32.mrf.mxu0
        %v6044 = vadd.f32 %v5931, %v6043
        %6045 = vmatmul.f32.gmra.mxu0 %v4848
        %v6046 = vpop.f32.mrf.mxu0
        %v6047 = vadd.f32 %v5934, %v6046
        %6048 = vmatmul.f32.gmra.mxu0 %v4857
        %v6049 = vpop.f32.mrf.mxu0
        %v6050 = vadd.f32 %v5937, %v6049
        %6051 = vmatmul.f32.gmra.mxu0 %v4866
        %v6052 = vpop.f32.mrf.mxu0
        %v6053 = vadd.f32 %v5940, %v6052
        %6054 = vmatmul.f32.gmra.mxu0 %v4875
        %v6055 = vpop.f32.mrf.mxu0
        %v6056 = vadd.f32 %v5943, %v6055
        %6057 = vmatmul.f32.gmra.mxu0 %v4884
        %v6058 = vpop.f32.mrf.mxu0
        %v6059 = vadd.f32 %v5946, %v6058
        %6060 = vmatmul.f32.gmra.mxu0 %v4893
        %v6061 = vpop.f32.mrf.mxu0
        %v6062 = vadd.f32 %v5949, %v6061
        %6063 = vmatmul.f32.gmra.mxu0 %v4902
        %v6064 = vpop.f32.mrf.mxu0
        %v6065 = vadd.f32 %v5952, %v6064
        %6066 = vdwg.mxu0
        %v6067 = vmax.f32 %v5972, 0.0
        %v6068 = vmax.f32 %v5975, 0.0
        %v6069 = vmax.f32 %v5978, 0.0
        %v6070 = vmax.f32 %v5981, 0.0
        %v6071 = vmax.f32 %v5984, 0.0
        %v6072 = vmax.f32 %v5987, 0.0
        %v6073 = vmax.f32 %v5990, 0.0
        %v6074 = vmax.f32 %v5993, 0.0
        %v6075 = vmax.f32 %v5996, 0.0
        %v6076 = vmax.f32 %v5999, 0.0
        %v6077 = vmax.f32 %v6002, 0.0
        %v6078 = vmax.f32 %v6005, 0.0
        %v6079 = vmax.f32 %v6008, 0.0
        %v6080 = vmax.f32 %v6011, 0.0
        %v6081 = vmax.f32 %v6014, 0.0
        %v6082 = vmax.f32 %v6017, 0.0
        %v6083 = vmax.f32 %v6020, 0.0
        %v6084 = vmax.f32 %v6023, 0.0
        %v6085 = vmax.f32 %v6026, 0.0
        %v6086 = vmax.f32 %v6029, 0.0
        %v6087 = vmax.f32 %v6032, 0.0
        %v6088 = vmax.f32 %v6035, 0.0
        %v6089 = vmax.f32 %v6038, 0.0
        %v6090 = vmax.f32 %v6041, 0.0
        %v6091 = vmax.f32 %v6044, 0.0
        %v6092 = vmax.f32 %v6047, 0.0
        %v6093 = vmax.f32 %v6050, 0.0
        %v6094 = vmax.f32 %v6053, 0.0
        %v6095 = vmax.f32 %v6056, 0.0
        %v6096 = vmax.f32 %v6059, 0.0
        %v6097 = vmax.f32 %v6062, 0.0
        %v6098 = vmax.f32 %v6065, 0.0
        %6099 = vst [vmem:[%s2274 + $0x1] sm:$0xff] %v6067
        %6100 = vst [vmem:[%s2274 + $0x9] sm:$0xff] %v6068
        %6101 = vst [vmem:[%s2274 + $0x19] sm:$0xff] %v6069
        %6102 = vst [vmem:[%s2274 + $0x21] sm:$0xff] %v6070
        %6103 = vst [vmem:[%s2274 + $0x31] sm:$0xff] %v6071
        %6104 = vst [vmem:[%s2274 + $0x39] sm:$0xff] %v6072
        %6105 = vst [vmem:[%s2274 + $0x49] sm:$0xff] %v6073
        %6106 = vst [vmem:[%s2274 + $0x51] sm:$0xff] %v6074
        %6107 = vst [vmem:[%s2274 + $0x61] sm:$0xff] %v6075
        %6108 = vst [vmem:[%s2274 + $0x69] sm:$0xff] %v6076
        %6109 = vst [vmem:[%s2274 + $0x79] sm:$0xff] %v6077
        %6110 = vst [vmem:[%s2274 + $0x81] sm:$0xff] %v6078
        %6111 = vst [vmem:[%s2274 + $0x91] sm:$0xff] %v6079
        %6112 = vst [vmem:[%s2274 + $0x99] sm:$0xff] %v6080
        %6113 = vst [vmem:[%s2274 + $0xa9] sm:$0xff] %v6081
        %6114 = vst [vmem:[%s2274 + $0xb1] sm:$0xff] %v6082
        %6115 = vst [vmem:[%s2274 + $0xc1] sm:$0xff] %v6083
        %6116 = vst [vmem:[%s2274 + $0xc9] sm:$0xff] %v6084
        %6117 = vst [vmem:[%s2274 + $0xd9] sm:$0xff] %v6085
        %6118 = vst [vmem:[%s2274 + $0xe1] sm:$0xff] %v6086
        %6119 = vst [vmem:[%s2274 + $0xf1] sm:$0xff] %v6087
        %6120 = vst [vmem:[%s2274 + $0xf9] sm:$0xff] %v6088
        %6121 = vst [vmem:[%s2274 + $0x109] sm:$0xff] %v6089
        %6122 = vst [vmem:[%s2274 + $0x111] sm:$0xff] %v6090
        %6123 = vst [vmem:[%s2274 + $0x121] sm:$0xff] %v6091
        %6124 = vst [vmem:[%s2274 + $0x129] sm:$0xff] %v6092
        %6125 = vst [vmem:[%s2274 + $0x139] sm:$0xff] %v6093
        %6126 = vst [vmem:[%s2274 + $0x141] sm:$0xff] %v6094
        %6127 = vst [vmem:[%s2274 + $0x151] sm:$0xff] %v6095
        %6128 = vst [vmem:[%s2274 + $0x159] sm:$0xff] %v6096
        %6129 = vst [vmem:[%s2274 + $0x169] sm:$0xff] %v6097
        %6130 = vst [vmem:[%s2274 + $0x171] sm:$0xff] %v6098
        %v6131 = vld [vmem:[#allocation3] sm:$0xff]
        %v6132 = vld [vmem:[#allocation3 + $0x8] sm:$0xff]
        %v6133 = vld [vmem:[#allocation3 + $0x18] sm:$0xff]
        %v6134 = vld [vmem:[#allocation3 + $0x20] sm:$0xff]
        %v6135 = vld [vmem:[#allocation3 + $0x30] sm:$0xff]
        %v6136 = vld [vmem:[#allocation3 + $0x38] sm:$0xff]
        %v6137 = vld [vmem:[#allocation3 + $0x48] sm:$0xff]
        %v6138 = vld [vmem:[#allocation3 + $0x50] sm:$0xff]
        %v6139 = vld [vmem:[#allocation3 + $0x60] sm:$0xff]
        %v6140 = vld [vmem:[#allocation3 + $0x68] sm:$0xff]
        %v6141 = vld [vmem:[#allocation3 + $0x78] sm:$0xff]
        %v6142 = vld [vmem:[#allocation3 + $0x80] sm:$0xff]
        %v6143 = vld [vmem:[#allocation3 + $0x90] sm:$0xff]
        %v6144 = vld [vmem:[#allocation3 + $0x98] sm:$0xff]
        %v6145 = vld [vmem:[#allocation3 + $0xa8] sm:$0xff]
        %v6146 = vld [vmem:[#allocation3 + $0xb0] sm:$0xff]
        %v6147 = vld [vmem:[#allocation3 + $0xc0] sm:$0xff]
        %v6148 = vld [vmem:[#allocation3 + $0xc8] sm:$0xff]
        %v6149 = vld [vmem:[#allocation3 + $0xd8] sm:$0xff]
        %v6150 = vld [vmem:[#allocation3 + $0xe0] sm:$0xff]
        %v6151 = vld [vmem:[#allocation3 + $0xf0] sm:$0xff]
        %v6152 = vld [vmem:[#allocation3 + $0xf8] sm:$0xff]
        %v6153 = vld [vmem:[#allocation3 + $0x108] sm:$0xff]
        %v6154 = vld [vmem:[#allocation3 + $0x110] sm:$0xff]
        %v6155 = vld [vmem:[#allocation3 + $0x120] sm:$0xff]
        %v6156 = vld [vmem:[#allocation3 + $0x128] sm:$0xff]
        %v6157 = vld [vmem:[#allocation3 + $0x138] sm:$0xff]
        %v6158 = vld [vmem:[#allocation3 + $0x140] sm:$0xff]
        %v6159 = vld [vmem:[#allocation3 + $0x150] sm:$0xff]
        %v6160 = vld [vmem:[#allocation3 + $0x158] sm:$0xff]
        %v6161 = vld [vmem:[#allocation3 + $0x168] sm:$0xff]
        %v6162 = vld [vmem:[#allocation3 + $0x170] sm:$0xff]
        %v6163 = vld [vmem:[#allocation3 + $0x180] sm:$0xff]
        %v6164 = vld [vmem:[#allocation3 + $0x188] sm:$0xff]
        %v6165 = vld [vmem:[#allocation3 + $0x198] sm:$0xff]
        %v6166 = vld [vmem:[#allocation3 + $0x1a0] sm:$0xff]
        %6167 = vst [vmem:[#allocation4] sm:$0xff] %v6131
        %6168 = vst [vmem:[#allocation4 + $0x48] sm:$0xff] %v6132
        %6169 = vst [vmem:[#allocation4 + $0x90] sm:$0xff] %v6133
        %6170 = vst [vmem:[#allocation4 + $0xd8] sm:$0xff] %v6134
        %6171 = vst [vmem:[#allocation4 + $0x120] sm:$0xff] %v6135
        %6172 = vst [vmem:[#allocation4 + $0x168] sm:$0xff] %v6136
        %6173 = vst [vmem:[#allocation4 + $0x1b0] sm:$0xff] %v6137
        %6174 = vst [vmem:[#allocation4 + $0x1f8] sm:$0xff] %v6138
        %6175 = vst [vmem:[#allocation4 + $0x240] sm:$0xff] %v6139
        %6176 = vst [vmem:[#allocation4 + $0x288] sm:$0xff] %v6140
        %6177 = vst [vmem:[#allocation4 + $0x2d0] sm:$0xff] %v6141
        %6178 = vst [vmem:[#allocation4 + $0x318] sm:$0xff] %v6142
        %6179 = vst [vmem:[#allocation4 + $0x360] sm:$0xff] %v6143
        %6180 = vst [vmem:[#allocation4 + $0x3a8] sm:$0xff] %v6144
        %6181 = vst [vmem:[#allocation4 + $0x3f0] sm:$0xff] %v6145
        %6182 = vst [vmem:[#allocation4 + $0x438] sm:$0xff] %v6146
        %6183 = vst [vmem:[#allocation4 + $0x480] sm:$0xff] %v6147
        %6184 = vst [vmem:[#allocation4 + $0x4c8] sm:$0xff] %v6148
        %6185 = vst [vmem:[#allocation4 + $0x510] sm:$0xff] %v6149
        %6186 = vst [vmem:[#allocation4 + $0x558] sm:$0xff] %v6150
        %6187 = vst [vmem:[#allocation4 + $0x5a0] sm:$0xff] %v6151
        %6188 = vst [vmem:[#allocation4 + $0x5e8] sm:$0xff] %v6152
        %6189 = vst [vmem:[#allocation4 + $0x630] sm:$0xff] %v6153
        %6190 = vst [vmem:[#allocation4 + $0x678] sm:$0xff] %v6154
        %6191 = vst [vmem:[#allocation4 + $0x6c0] sm:$0xff] %v6155
        %6192 = vst [vmem:[#allocation4 + $0x708] sm:$0xff] %v6156
        %6193 = vst [vmem:[#allocation4 + $0x750] sm:$0xff] %v6157
        %6194 = vst [vmem:[#allocation4 + $0x798] sm:$0xff] %v6158
        %6195 = vst [vmem:[#allocation4 + $0x7e0] sm:$0xff] %v6159
        %6196 = vst [vmem:[#allocation4 + $0x828] sm:$0xff] %v6160
        %6197 = vst [vmem:[#allocation4 + $0x870] sm:$0xff] %v6161
        %6198 = vst [vmem:[#allocation4 + $0x8b8] sm:$0xff] %v6162
        %6199 = vst [vmem:[#allocation4 + $0x8] sm:$0xff] %v6133
        %6200 = vst [vmem:[#allocation4 + $0x50] sm:$0xff] %v6134
        %6201 = vst [vmem:[#allocation4 + $0x98] sm:$0xff] %v6135
        %6202 = vst [vmem:[#allocation4 + $0xe0] sm:$0xff] %v6136
        %6203 = vst [vmem:[#allocation4 + $0x128] sm:$0xff] %v6137
        %6204 = vst [vmem:[#allocation4 + $0x170] sm:$0xff] %v6138
        %6205 = vst [vmem:[#allocation4 + $0x1b8] sm:$0xff] %v6139
        %6206 = vst [vmem:[#allocation4 + $0x200] sm:$0xff] %v6140
        %6207 = vst [vmem:[#allocation4 + $0x248] sm:$0xff] %v6141
        %6208 = vst [vmem:[#allocation4 + $0x290] sm:$0xff] %v6142
        %6209 = vst [vmem:[#allocation4 + $0x2d8] sm:$0xff] %v6143
        %6210 = vst [vmem:[#allocation4 + $0x320] sm:$0xff] %v6144
        %6211 = vst [vmem:[#allocation4 + $0x368] sm:$0xff] %v6145
        %6212 = vst [vmem:[#allocation4 + $0x3b0] sm:$0xff] %v6146
        %6213 = vst [vmem:[#allocation4 + $0x3f8] sm:$0xff] %v6147
        %6214 = vst [vmem:[#allocation4 + $0x440] sm:$0xff] %v6148
        %6215 = vst [vmem:[#allocation4 + $0x488] sm:$0xff] %v6149
        %6216 = vst [vmem:[#allocation4 + $0x4d0] sm:$0xff] %v6150
        %6217 = vst [vmem:[#allocation4 + $0x518] sm:$0xff] %v6151
        %6218 = vst [vmem:[#allocation4 + $0x560] sm:$0xff] %v6152
        %6219 = vst [vmem:[#allocation4 + $0x5a8] sm:$0xff] %v6153
        %6220 = vst [vmem:[#allocation4 + $0x5f0] sm:$0xff] %v6154
        %6221 = vst [vmem:[#allocation4 + $0x638] sm:$0xff] %v6155
        %6222 = vst [vmem:[#allocation4 + $0x680] sm:$0xff] %v6156
        %6223 = vst [vmem:[#allocation4 + $0x6c8] sm:$0xff] %v6157
        %6224 = vst [vmem:[#allocation4 + $0x710] sm:$0xff] %v6158
        %6225 = vst [vmem:[#allocation4 + $0x758] sm:$0xff] %v6159
        %6226 = vst [vmem:[#allocation4 + $0x7a0] sm:$0xff] %v6160
        %6227 = vst [vmem:[#allocation4 + $0x7e8] sm:$0xff] %v6161
        %6228 = vst [vmem:[#allocation4 + $0x830] sm:$0xff] %v6162
        %6229 = vst [vmem:[#allocation4 + $0x878] sm:$0xff] %v6163
        %6230 = vst [vmem:[#allocation4 + $0x8c0] sm:$0xff] %v6164
        %6231 = vst [vmem:[#allocation4 + $0x10] sm:$0xff] %v6135
        %6232 = vst [vmem:[#allocation4 + $0x58] sm:$0xff] %v6136
        %6233 = vst [vmem:[#allocation4 + $0xa0] sm:$0xff] %v6137
        %6234 = vst [vmem:[#allocation4 + $0xe8] sm:$0xff] %v6138
        %6235 = vst [vmem:[#allocation4 + $0x130] sm:$0xff] %v6139
        %6236 = vst [vmem:[#allocation4 + $0x178] sm:$0xff] %v6140
        %6237 = vst [vmem:[#allocation4 + $0x1c0] sm:$0xff] %v6141
        %6238 = vst [vmem:[#allocation4 + $0x208] sm:$0xff] %v6142
        %6239 = vst [vmem:[#allocation4 + $0x250] sm:$0xff] %v6143
        %6240 = vst [vmem:[#allocation4 + $0x298] sm:$0xff] %v6144
        %6241 = vst [vmem:[#allocation4 + $0x2e0] sm:$0xff] %v6145
        %6242 = vst [vmem:[#allocation4 + $0x328] sm:$0xff] %v6146
        %6243 = vst [vmem:[#allocation4 + $0x370] sm:$0xff] %v6147
        %6244 = vst [vmem:[#allocation4 + $0x3b8] sm:$0xff] %v6148
        %6245 = vst [vmem:[#allocation4 + $0x400] sm:$0xff] %v6149
        %6246 = vst [vmem:[#allocation4 + $0x448] sm:$0xff] %v6150
        %6247 = vst [vmem:[#allocation4 + $0x490] sm:$0xff] %v6151
        %6248 = vst [vmem:[#allocation4 + $0x4d8] sm:$0xff] %v6152
        %6249 = vst [vmem:[#allocation4 + $0x520] sm:$0xff] %v6153
        %6250 = vst [vmem:[#allocation4 + $0x568] sm:$0xff] %v6154
        %6251 = vst [vmem:[#allocation4 + $0x5b0] sm:$0xff] %v6155
        %6252 = vst [vmem:[#allocation4 + $0x5f8] sm:$0xff] %v6156
        %6253 = vst [vmem:[#allocation4 + $0x640] sm:$0xff] %v6157
        %6254 = vst [vmem:[#allocation4 + $0x688] sm:$0xff] %v6158
        %6255 = vst [vmem:[#allocation4 + $0x6d0] sm:$0xff] %v6159
        %6256 = vst [vmem:[#allocation4 + $0x718] sm:$0xff] %v6160
        %6257 = vst [vmem:[#allocation4 + $0x760] sm:$0xff] %v6161
        %6258 = vst [vmem:[#allocation4 + $0x7a8] sm:$0xff] %v6162
        %6259 = vst [vmem:[#allocation4 + $0x7f0] sm:$0xff] %v6163
        %6260 = vst [vmem:[#allocation4 + $0x838] sm:$0xff] %v6164
        %6261 = vst [vmem:[#allocation4 + $0x880] sm:$0xff] %v6165
        %6262 = vst [vmem:[#allocation4 + $0x8c8] sm:$0xff] %v6166
        %v6263 = vld [vmem:[#allocation3 + $0x1] sm:$0xff]
        %v6264 = vld [vmem:[#allocation3 + $0x9] sm:$0xff]
        %v6265 = vld [vmem:[#allocation3 + $0x19] sm:$0xff]
        %v6266 = vld [vmem:[#allocation3 + $0x21] sm:$0xff]
        %v6267 = vld [vmem:[#allocation3 + $0x31] sm:$0xff]
        %v6268 = vld [vmem:[#allocation3 + $0x39] sm:$0xff]
        %v6269 = vld [vmem:[#allocation3 + $0x49] sm:$0xff]
        %v6270 = vld [vmem:[#allocation3 + $0x51] sm:$0xff]
        %v6271 = vld [vmem:[#allocation3 + $0x61] sm:$0xff]
        %v6272 = vld [vmem:[#allocation3 + $0x69] sm:$0xff]
        %v6273 = vld [vmem:[#allocation3 + $0x79] sm:$0xff]
        %v6274 = vld [vmem:[#allocation3 + $0x81] sm:$0xff]
        %v6275 = vld [vmem:[#allocation3 + $0x91] sm:$0xff]
        %v6276 = vld [vmem:[#allocation3 + $0x99] sm:$0xff]
        %v6277 = vld [vmem:[#allocation3 + $0xa9] sm:$0xff]
        %v6278 = vld [vmem:[#allocation3 + $0xb1] sm:$0xff]
        %v6279 = vld [vmem:[#allocation3 + $0xc1] sm:$0xff]
        %v6280 = vld [vmem:[#allocation3 + $0xc9] sm:$0xff]
        %v6281 = vld [vmem:[#allocation3 + $0xd9] sm:$0xff]
        %v6282 = vld [vmem:[#allocation3 + $0xe1] sm:$0xff]
        %v6283 = vld [vmem:[#allocation3 + $0xf1] sm:$0xff]
        %v6284 = vld [vmem:[#allocation3 + $0xf9] sm:$0xff]
        %v6285 = vld [vmem:[#allocation3 + $0x109] sm:$0xff]
        %v6286 = vld [vmem:[#allocation3 + $0x111] sm:$0xff]
        %v6287 = vld [vmem:[#allocation3 + $0x121] sm:$0xff]
        %v6288 = vld [vmem:[#allocation3 + $0x129] sm:$0xff]
        %v6289 = vld [vmem:[#allocation3 + $0x139] sm:$0xff]
        %v6290 = vld [vmem:[#allocation3 + $0x141] sm:$0xff]
        %v6291 = vld [vmem:[#allocation3 + $0x151] sm:$0xff]
        %v6292 = vld [vmem:[#allocation3 + $0x159] sm:$0xff]
        %v6293 = vld [vmem:[#allocation3 + $0x169] sm:$0xff]
        %v6294 = vld [vmem:[#allocation3 + $0x171] sm:$0xff]
        %v6295 = vld [vmem:[#allocation3 + $0x181] sm:$0xff]
        %v6296 = vld [vmem:[#allocation3 + $0x189] sm:$0xff]
        %v6297 = vld [vmem:[#allocation3 + $0x199] sm:$0xff]
        %v6298 = vld [vmem:[#allocation3 + $0x1a1] sm:$0xff]
        %6299 = vst [vmem:[#allocation4 + $0x18] sm:$0xff] %v6263
        %6300 = vst [vmem:[#allocation4 + $0x60] sm:$0xff] %v6264
        %6301 = vst [vmem:[#allocation4 + $0xa8] sm:$0xff] %v6265
        %6302 = vst [vmem:[#allocation4 + $0xf0] sm:$0xff] %v6266
        %6303 = vst [vmem:[#allocation4 + $0x138] sm:$0xff] %v6267
        %6304 = vst [vmem:[#allocation4 + $0x180] sm:$0xff] %v6268
        %6305 = vst [vmem:[#allocation4 + $0x1c8] sm:$0xff] %v6269
        %6306 = vst [vmem:[#allocation4 + $0x210] sm:$0xff] %v6270
        %6307 = vst [vmem:[#allocation4 + $0x258] sm:$0xff] %v6271
        %6308 = vst [vmem:[#allocation4 + $0x2a0] sm:$0xff] %v6272
        %6309 = vst [vmem:[#allocation4 + $0x2e8] sm:$0xff] %v6273
        %6310 = vst [vmem:[#allocation4 + $0x330] sm:$0xff] %v6274
        %6311 = vst [vmem:[#allocation4 + $0x378] sm:$0xff] %v6275
        %6312 = vst [vmem:[#allocation4 + $0x3c0] sm:$0xff] %v6276
        %6313 = vst [vmem:[#allocation4 + $0x408] sm:$0xff] %v6277
        %6314 = vst [vmem:[#allocation4 + $0x450] sm:$0xff] %v6278
        %6315 = vst [vmem:[#allocation4 + $0x498] sm:$0xff] %v6279
        %6316 = vst [vmem:[#allocation4 + $0x4e0] sm:$0xff] %v6280
        %6317 = vst [vmem:[#allocation4 + $0x528] sm:$0xff] %v6281
        %6318 = vst [vmem:[#allocation4 + $0x570] sm:$0xff] %v6282
        %6319 = vst [vmem:[#allocation4 + $0x5b8] sm:$0xff] %v6283
        %6320 = vst [vmem:[#allocation4 + $0x600] sm:$0xff] %v6284
        %6321 = vst [vmem:[#allocation4 + $0x648] sm:$0xff] %v6285
        %6322 = vst [vmem:[#allocation4 + $0x690] sm:$0xff] %v6286
        %6323 = vst [vmem:[#allocation4 + $0x6d8] sm:$0xff] %v6287
        %6324 = vst [vmem:[#allocation4 + $0x720] sm:$0xff] %v6288
        %6325 = vst [vmem:[#allocation4 + $0x768] sm:$0xff] %v6289
        %6326 = vst [vmem:[#allocation4 + $0x7b0] sm:$0xff] %v6290
        %6327 = vst [vmem:[#allocation4 + $0x7f8] sm:$0xff] %v6291
        %6328 = vst [vmem:[#allocation4 + $0x840] sm:$0xff] %v6292
        %6329 = vst [vmem:[#allocation4 + $0x888] sm:$0xff] %v6293
        %6330 = vst [vmem:[#allocation4 + $0x8d0] sm:$0xff] %v6294
        %6331 = vst [vmem:[#allocation4 + $0x20] sm:$0xff] %v6265
        %6332 = vst [vmem:[#allocation4 + $0x68] sm:$0xff] %v6266
        %6333 = vst [vmem:[#allocation4 + $0xb0] sm:$0xff] %v6267
        %6334 = vst [vmem:[#allocation4 + $0xf8] sm:$0xff] %v6268
        %6335 = vst [vmem:[#allocation4 + $0x140] sm:$0xff] %v6269
        %6336 = vst [vmem:[#allocation4 + $0x188] sm:$0xff] %v6270
        %6337 = vst [vmem:[#allocation4 + $0x1d0] sm:$0xff] %v6271
        %6338 = vst [vmem:[#allocation4 + $0x218] sm:$0xff] %v6272
        %6339 = vst [vmem:[#allocation4 + $0x260] sm:$0xff] %v6273
        %6340 = vst [vmem:[#allocation4 + $0x2a8] sm:$0xff] %v6274
        %6341 = vst [vmem:[#allocation4 + $0x2f0] sm:$0xff] %v6275
        %6342 = vst [vmem:[#allocation4 + $0x338] sm:$0xff] %v6276
        %6343 = vst [vmem:[#allocation4 + $0x380] sm:$0xff] %v6277
        %6344 = vst [vmem:[#allocation4 + $0x3c8] sm:$0xff] %v6278
        %6345 = vst [vmem:[#allocation4 + $0x410] sm:$0xff] %v6279
        %6346 = vst [vmem:[#allocation4 + $0x458] sm:$0xff] %v6280
        %6347 = vst [vmem:[#allocation4 + $0x4a0] sm:$0xff] %v6281
        %6348 = vst [vmem:[#allocation4 + $0x4e8] sm:$0xff] %v6282
        %6349 = vst [vmem:[#allocation4 + $0x530] sm:$0xff] %v6283
        %6350 = vst [vmem:[#allocation4 + $0x578] sm:$0xff] %v6284
        %6351 = vst [vmem:[#allocation4 + $0x5c0] sm:$0xff] %v6285
        %6352 = vst [vmem:[#allocation4 + $0x608] sm:$0xff] %v6286
        %6353 = vst [vmem:[#allocation4 + $0x650] sm:$0xff] %v6287
        %6354 = vst [vmem:[#allocation4 + $0x698] sm:$0xff] %v6288
        %6355 = vst [vmem:[#allocation4 + $0x6e0] sm:$0xff] %v6289
        %6356 = vst [vmem:[#allocation4 + $0x728] sm:$0xff] %v6290
        %6357 = vst [vmem:[#allocation4 + $0x770] sm:$0xff] %v6291
        %6358 = vst [vmem:[#allocation4 + $0x7b8] sm:$0xff] %v6292
        %6359 = vst [vmem:[#allocation4 + $0x800] sm:$0xff] %v6293
        %6360 = vst [vmem:[#allocation4 + $0x848] sm:$0xff] %v6294
        %6361 = vst [vmem:[#allocation4 + $0x890] sm:$0xff] %v6295
        %6362 = vst [vmem:[#allocation4 + $0x8d8] sm:$0xff] %v6296
        %6363 = vst [vmem:[#allocation4 + $0x28] sm:$0xff] %v6267
        %6364 = vst [vmem:[#allocation4 + $0x70] sm:$0xff] %v6268
        %6365 = vst [vmem:[#allocation4 + $0xb8] sm:$0xff] %v6269
        %6366 = vst [vmem:[#allocation4 + $0x100] sm:$0xff] %v6270
        %6367 = vst [vmem:[#allocation4 + $0x148] sm:$0xff] %v6271
        %6368 = vst [vmem:[#allocation4 + $0x190] sm:$0xff] %v6272
        %6369 = vst [vmem:[#allocation4 + $0x1d8] sm:$0xff] %v6273
        %6370 = vst [vmem:[#allocation4 + $0x220] sm:$0xff] %v6274
        %6371 = vst [vmem:[#allocation4 + $0x268] sm:$0xff] %v6275
        %6372 = vst [vmem:[#allocation4 + $0x2b0] sm:$0xff] %v6276
        %6373 = vst [vmem:[#allocation4 + $0x2f8] sm:$0xff] %v6277
        %6374 = vst [vmem:[#allocation4 + $0x340] sm:$0xff] %v6278
        %6375 = vst [vmem:[#allocation4 + $0x388] sm:$0xff] %v6279
        %6376 = vst [vmem:[#allocation4 + $0x3d0] sm:$0xff] %v6280
        %6377 = vst [vmem:[#allocation4 + $0x418] sm:$0xff] %v6281
        %6378 = vst [vmem:[#allocation4 + $0x460] sm:$0xff] %v6282
        %6379 = vst [vmem:[#allocation4 + $0x4a8] sm:$0xff] %v6283
        %6380 = vst [vmem:[#allocation4 + $0x4f0] sm:$0xff] %v6284
        %6381 = vst [vmem:[#allocation4 + $0x538] sm:$0xff] %v6285
        %6382 = vst [vmem:[#allocation4 + $0x580] sm:$0xff] %v6286
        %6383 = vst [vmem:[#allocation4 + $0x5c8] sm:$0xff] %v6287
        %6384 = vst [vmem:[#allocation4 + $0x610] sm:$0xff] %v6288
        %6385 = vst [vmem:[#allocation4 + $0x658] sm:$0xff] %v6289
        %6386 = vst [vmem:[#allocation4 + $0x6a0] sm:$0xff] %v6290
        %6387 = vst [vmem:[#allocation4 + $0x6e8] sm:$0xff] %v6291
        %6388 = vst [vmem:[#allocation4 + $0x730] sm:$0xff] %v6292
        %6389 = vst [vmem:[#allocation4 + $0x778] sm:$0xff] %v6293
        %6390 = vst [vmem:[#allocation4 + $0x7c0] sm:$0xff] %v6294
        %6391 = vst [vmem:[#allocation4 + $0x808] sm:$0xff] %v6295
        %6392 = vst [vmem:[#allocation4 + $0x850] sm:$0xff] %v6296
        %6393 = vst [vmem:[#allocation4 + $0x898] sm:$0xff] %v6297
        %6394 = vst [vmem:[#allocation4 + $0x8e0] sm:$0xff] %v6298
        %v6395 = vld [vmem:[#allocation3 + $0x2] sm:$0xff]
        %v6396 = vld [vmem:[#allocation3 + $0xa] sm:$0xff]
        %v6397 = vld [vmem:[#allocation3 + $0x1a] sm:$0xff]
        %v6398 = vld [vmem:[#allocation3 + $0x22] sm:$0xff]
        %v6399 = vld [vmem:[#allocation3 + $0x32] sm:$0xff]
        %v6400 = vld [vmem:[#allocation3 + $0x3a] sm:$0xff]
        %v6401 = vld [vmem:[#allocation3 + $0x4a] sm:$0xff]
        %v6402 = vld [vmem:[#allocation3 + $0x52] sm:$0xff]
        %v6403 = vld [vmem:[#allocation3 + $0x62] sm:$0xff]
        %v6404 = vld [vmem:[#allocation3 + $0x6a] sm:$0xff]
        %v6405 = vld [vmem:[#allocation3 + $0x7a] sm:$0xff]
        %v6406 = vld [vmem:[#allocation3 + $0x82] sm:$0xff]
        %v6407 = vld [vmem:[#allocation3 + $0x92] sm:$0xff]
        %v6408 = vld [vmem:[#allocation3 + $0x9a] sm:$0xff]
        %v6409 = vld [vmem:[#allocation3 + $0xaa] sm:$0xff]
        %v6410 = vld [vmem:[#allocation3 + $0xb2] sm:$0xff]
        %v6411 = vld [vmem:[#allocation3 + $0xc2] sm:$0xff]
        %v6412 = vld [vmem:[#allocation3 + $0xca] sm:$0xff]
        %v6413 = vld [vmem:[#allocation3 + $0xda] sm:$0xff]
        %v6414 = vld [vmem:[#allocation3 + $0xe2] sm:$0xff]
        %v6415 = vld [vmem:[#allocation3 + $0xf2] sm:$0xff]
        %v6416 = vld [vmem:[#allocation3 + $0xfa] sm:$0xff]
        %v6417 = vld [vmem:[#allocation3 + $0x10a] sm:$0xff]
        %v6418 = vld [vmem:[#allocation3 + $0x112] sm:$0xff]
        %v6419 = vld [vmem:[#allocation3 + $0x122] sm:$0xff]
        %v6420 = vld [vmem:[#allocation3 + $0x12a] sm:$0xff]
        %v6421 = vld [vmem:[#allocation3 + $0x13a] sm:$0xff]
        %v6422 = vld [vmem:[#allocation3 + $0x142] sm:$0xff]
        %v6423 = vld [vmem:[#allocation3 + $0x152] sm:$0xff]
        %v6424 = vld [vmem:[#allocation3 + $0x15a] sm:$0xff]
        %v6425 = vld [vmem:[#allocation3 + $0x16a] sm:$0xff]
        %v6426 = vld [vmem:[#allocation3 + $0x172] sm:$0xff]
        %v6427 = vld [vmem:[#allocation3 + $0x182] sm:$0xff]
        %v6428 = vld [vmem:[#allocation3 + $0x18a] sm:$0xff]
        %v6429 = vld [vmem:[#allocation3 + $0x19a] sm:$0xff]
        %v6430 = vld [vmem:[#allocation3 + $0x1a2] sm:$0xff]
        %6431 = vst [vmem:[#allocation4 + $0x30] sm:$0xff] %v6395
        %6432 = vst [vmem:[#allocation4 + $0x78] sm:$0xff] %v6396
        %6433 = vst [vmem:[#allocation4 + $0xc0] sm:$0xff] %v6397
        %6434 = vst [vmem:[#allocation4 + $0x108] sm:$0xff] %v6398
        %6435 = vst [vmem:[#allocation4 + $0x150] sm:$0xff] %v6399
        %6436 = vst [vmem:[#allocation4 + $0x198] sm:$0xff] %v6400
        %6437 = vst [vmem:[#allocation4 + $0x1e0] sm:$0xff] %v6401
        %6438 = vst [vmem:[#allocation4 + $0x228] sm:$0xff] %v6402
        %6439 = vst [vmem:[#allocation4 + $0x270] sm:$0xff] %v6403
        %6440 = vst [vmem:[#allocation4 + $0x2b8] sm:$0xff] %v6404
        %6441 = vst [vmem:[#allocation4 + $0x300] sm:$0xff] %v6405
        %6442 = vst [vmem:[#allocation4 + $0x348] sm:$0xff] %v6406
        %6443 = vst [vmem:[#allocation4 + $0x390] sm:$0xff] %v6407
        %6444 = vst [vmem:[#allocation4 + $0x3d8] sm:$0xff] %v6408
        %6445 = vst [vmem:[#allocation4 + $0x420] sm:$0xff] %v6409
        %6446 = vst [vmem:[#allocation4 + $0x468] sm:$0xff] %v6410
        %6447 = vst [vmem:[#allocation4 + $0x4b0] sm:$0xff] %v6411
        %6448 = vst [vmem:[#allocation4 + $0x4f8] sm:$0xff] %v6412
        %6449 = vst [vmem:[#allocation4 + $0x540] sm:$0xff] %v6413
        %6450 = vst [vmem:[#allocation4 + $0x588] sm:$0xff] %v6414
        %6451 = vst [vmem:[#allocation4 + $0x5d0] sm:$0xff] %v6415
        %6452 = vst [vmem:[#allocation4 + $0x618] sm:$0xff] %v6416
        %6453 = vst [vmem:[#allocation4 + $0x660] sm:$0xff] %v6417
        %6454 = vst [vmem:[#allocation4 + $0x6a8] sm:$0xff] %v6418
        %6455 = vst [vmem:[#allocation4 + $0x6f0] sm:$0xff] %v6419
        %6456 = vst [vmem:[#allocation4 + $0x738] sm:$0xff] %v6420
        %6457 = vst [vmem:[#allocation4 + $0x780] sm:$0xff] %v6421
        %6458 = vst [vmem:[#allocation4 + $0x7c8] sm:$0xff] %v6422
        %6459 = vst [vmem:[#allocation4 + $0x810] sm:$0xff] %v6423
        %6460 = vst [vmem:[#allocation4 + $0x858] sm:$0xff] %v6424
        %6461 = vst [vmem:[#allocation4 + $0x8a0] sm:$0xff] %v6425
        %6462 = vst [vmem:[#allocation4 + $0x8e8] sm:$0xff] %v6426
        %6463 = vst [vmem:[#allocation4 + $0x38] sm:$0xff] %v6397
        %6464 = vst [vmem:[#allocation4 + $0x80] sm:$0xff] %v6398
        %6465 = vst [vmem:[#allocation4 + $0xc8] sm:$0xff] %v6399
        %6466 = vst [vmem:[#allocation4 + $0x110] sm:$0xff] %v6400
        %6467 = vst [vmem:[#allocation4 + $0x158] sm:$0xff] %v6401
        %6468 = vst [vmem:[#allocation4 + $0x1a0] sm:$0xff] %v6402
        %6469 = vst [vmem:[#allocation4 + $0x1e8] sm:$0xff] %v6403
        %6470 = vst [vmem:[#allocation4 + $0x230] sm:$0xff] %v6404
        %6471 = vst [vmem:[#allocation4 + $0x278] sm:$0xff] %v6405
        %6472 = vst [vmem:[#allocation4 + $0x2c0] sm:$0xff] %v6406
        %6473 = vst [vmem:[#allocation4 + $0x308] sm:$0xff] %v6407
        %6474 = vst [vmem:[#allocation4 + $0x350] sm:$0xff] %v6408
        %6475 = vst [vmem:[#allocation4 + $0x398] sm:$0xff] %v6409
        %6476 = vst [vmem:[#allocation4 + $0x3e0] sm:$0xff] %v6410
        %6477 = vst [vmem:[#allocation4 + $0x428] sm:$0xff] %v6411
        %6478 = vst [vmem:[#allocation4 + $0x470] sm:$0xff] %v6412
        %6479 = vst [vmem:[#allocation4 + $0x4b8] sm:$0xff] %v6413
        %6480 = vst [vmem:[#allocation4 + $0x500] sm:$0xff] %v6414
        %6481 = vst [vmem:[#allocation4 + $0x548] sm:$0xff] %v6415
        %6482 = vst [vmem:[#allocation4 + $0x590] sm:$0xff] %v6416
        %6483 = vst [vmem:[#allocation4 + $0x5d8] sm:$0xff] %v6417
        %6484 = vst [vmem:[#allocation4 + $0x620] sm:$0xff] %v6418
        %6485 = vst [vmem:[#allocation4 + $0x668] sm:$0xff] %v6419
        %6486 = vst [vmem:[#allocation4 + $0x6b0] sm:$0xff] %v6420
        %6487 = vst [vmem:[#allocation4 + $0x6f8] sm:$0xff] %v6421
        %6488 = vst [vmem:[#allocation4 + $0x740] sm:$0xff] %v6422
        %6489 = vst [vmem:[#allocation4 + $0x788] sm:$0xff] %v6423
        %6490 = vst [vmem:[#allocation4 + $0x7d0] sm:$0xff] %v6424
        %6491 = vst [vmem:[#allocation4 + $0x818] sm:$0xff] %v6425
        %6492 = vst [vmem:[#allocation4 + $0x860] sm:$0xff] %v6426
        %6493 = vst [vmem:[#allocation4 + $0x8a8] sm:$0xff] %v6427
        %6494 = vst [vmem:[#allocation4 + $0x8f0] sm:$0xff] %v6428
        %6495 = vst [vmem:[#allocation4 + $0x40] sm:$0xff] %v6399
        %6496 = vst [vmem:[#allocation4 + $0x88] sm:$0xff] %v6400
        %6497 = vst [vmem:[#allocation4 + $0xd0] sm:$0xff] %v6401
        %6498 = vst [vmem:[#allocation4 + $0x118] sm:$0xff] %v6402
        %6499 = vst [vmem:[#allocation4 + $0x160] sm:$0xff] %v6403
        %6500 = vst [vmem:[#allocation4 + $0x1a8] sm:$0xff] %v6404
        %6501 = vst [vmem:[#allocation4 + $0x1f0] sm:$0xff] %v6405
        %6502 = vst [vmem:[#allocation4 + $0x238] sm:$0xff] %v6406
        %6503 = vst [vmem:[#allocation4 + $0x280] sm:$0xff] %v6407
        %6504 = vst [vmem:[#allocation4 + $0x2c8] sm:$0xff] %v6408
        %6505 = vst [vmem:[#allocation4 + $0x310] sm:$0xff] %v6409
        %6506 = vst [vmem:[#allocation4 + $0x358] sm:$0xff] %v6410
        %6507 = vst [vmem:[#allocation4 + $0x3a0] sm:$0xff] %v6411
        %6508 = vst [vmem:[#allocation4 + $0x3e8] sm:$0xff] %v6412
        %6509 = vst [vmem:[#allocation4 + $0x430] sm:$0xff] %v6413
        %6510 = vst [vmem:[#allocation4 + $0x478] sm:$0xff] %v6414
        %6511 = vst [vmem:[#allocation4 + $0x4c0] sm:$0xff] %v6415
        %6512 = vst [vmem:[#allocation4 + $0x508] sm:$0xff] %v6416
        %6513 = vst [vmem:[#allocation4 + $0x550] sm:$0xff] %v6417
        %6514 = vst [vmem:[#allocation4 + $0x598] sm:$0xff] %v6418
        %6515 = vst [vmem:[#allocation4 + $0x5e0] sm:$0xff] %v6419
        %6516 = vst [vmem:[#allocation4 + $0x628] sm:$0xff] %v6420
        %6517 = vst [vmem:[#allocation4 + $0x670] sm:$0xff] %v6421
        %6518 = vst [vmem:[#allocation4 + $0x6b8] sm:$0xff] %v6422
        %6519 = vst [vmem:[#allocation4 + $0x700] sm:$0xff] %v6423
        %6520 = vst [vmem:[#allocation4 + $0x748] sm:$0xff] %v6424
        %6521 = vst [vmem:[#allocation4 + $0x790] sm:$0xff] %v6425
        %6522 = vst [vmem:[#allocation4 + $0x7d8] sm:$0xff] %v6426
        %6523 = vst [vmem:[#allocation4 + $0x820] sm:$0xff] %v6427
        %6524 = vst [vmem:[#allocation4 + $0x868] sm:$0xff] %v6428
        %6525 = vst [vmem:[#allocation4 + $0x8b0] sm:$0xff] %v6429
        %6526 = vst [vmem:[#allocation4 + $0x8f8] sm:$0xff] %v6430
        %v6527 = vld [vmem:[#allocation4] sm:$0xff]
        %v6528 = vld [vmem:[#allocation4 + $0x8] sm:$0xff]
        %v6529 = vld [vmem:[#allocation4 + $0x10] sm:$0xff]
        %v6530 = vld [vmem:[#allocation4 + $0x18] sm:$0xff]
        %v6531 = vld [vmem:[#allocation4 + $0x20] sm:$0xff]
        %v6532 = vld [vmem:[#allocation4 + $0x28] sm:$0xff]
        %v6533 = vld [vmem:[#allocation4 + $0x30] sm:$0xff]
        %v6534 = vld [vmem:[#allocation4 + $0x38] sm:$0xff]
        %v6535 = vld [vmem:[#allocation4 + $0x40] sm:$0xff]
        %v6536 = vld [vmem:[#allocation4 + $0x48] sm:$0xff]
        %v6537 = vld [vmem:[#allocation4 + $0x50] sm:$0xff]
        %v6538 = vld [vmem:[#allocation4 + $0x58] sm:$0xff]
        %v6539 = vld [vmem:[#allocation4 + $0x60] sm:$0xff]
        %v6540 = vld [vmem:[#allocation4 + $0x68] sm:$0xff]
        %v6541 = vld [vmem:[#allocation4 + $0x70] sm:$0xff]
        %v6542 = vld [vmem:[#allocation4 + $0x78] sm:$0xff]
        %v6543 = vld [vmem:[#allocation4 + $0x80] sm:$0xff]
        %v6544 = vld [vmem:[#allocation4 + $0x88] sm:$0xff]
        %v6545 = vld [vmem:[#allocation4 + $0x90] sm:$0xff]
        %v6546 = vld [vmem:[#allocation4 + $0x98] sm:$0xff]
        %v6547 = vld [vmem:[#allocation4 + $0xa0] sm:$0xff]
        %v6548 = vld [vmem:[#allocation4 + $0xa8] sm:$0xff]
        %v6549 = vld [vmem:[#allocation4 + $0xb0] sm:$0xff]
        %v6550 = vld [vmem:[#allocation4 + $0xb8] sm:$0xff]
        %v6551 = vld [vmem:[#allocation4 + $0xc0] sm:$0xff]
        %v6552 = vld [vmem:[#allocation4 + $0xc8] sm:$0xff]
        %v6553 = vld [vmem:[#allocation4 + $0xd0] sm:$0xff]
        %v6554 = vld [vmem:[#allocation4 + $0xd8] sm:$0xff]
        %v6555 = vld [vmem:[#allocation4 + $0xe0] sm:$0xff]
        %v6556 = vld [vmem:[#allocation4 + $0xe8] sm:$0xff]
        %v6557 = vld [vmem:[#allocation4 + $0xf0] sm:$0xff]
        %v6558 = vld [vmem:[#allocation4 + $0xf8] sm:$0xff]
        %v6559 = vld [vmem:[#allocation4 + $0x100] sm:$0xff]
        %v6560 = vld [vmem:[#allocation4 + $0x108] sm:$0xff]
        %v6561 = vld [vmem:[#allocation4 + $0x110] sm:$0xff]
        %v6562 = vld [vmem:[#allocation4 + $0x118] sm:$0xff]
        %v6563 = vld [vmem:[#allocation4 + $0x120] sm:$0xff]
        %v6564 = vld [vmem:[#allocation4 + $0x128] sm:$0xff]
        %v6565 = vld [vmem:[#allocation4 + $0x130] sm:$0xff]
        %v6566 = vld [vmem:[#allocation4 + $0x138] sm:$0xff]
        %v6567 = vld [vmem:[#allocation4 + $0x140] sm:$0xff]
        %v6568 = vld [vmem:[#allocation4 + $0x148] sm:$0xff]
        %v6569 = vld [vmem:[#allocation4 + $0x150] sm:$0xff]
        %v6570 = vld [vmem:[#allocation4 + $0x158] sm:$0xff]
        %v6571 = vld [vmem:[#allocation4 + $0x160] sm:$0xff]
        %v6572 = vld [vmem:[#allocation4 + $0x168] sm:$0xff]
        %v6573 = vld [vmem:[#allocation4 + $0x170] sm:$0xff]
        %v6574 = vld [vmem:[#allocation4 + $0x178] sm:$0xff]
        %v6575 = vld [vmem:[#allocation4 + $0x180] sm:$0xff]
        %v6576 = vld [vmem:[#allocation4 + $0x188] sm:$0xff]
        %v6577 = vld [vmem:[#allocation4 + $0x190] sm:$0xff]
        %v6578 = vld [vmem:[#allocation4 + $0x198] sm:$0xff]
        %v6579 = vld [vmem:[#allocation4 + $0x1a0] sm:$0xff]
        %v6580 = vld [vmem:[#allocation4 + $0x1a8] sm:$0xff]
        %v6581 = vld [vmem:[#allocation4 + $0x1b0] sm:$0xff]
        %v6582 = vld [vmem:[#allocation4 + $0x1b8] sm:$0xff]
        %v6583 = vld [vmem:[#allocation4 + $0x1c0] sm:$0xff]
        %v6584 = vld [vmem:[#allocation4 + $0x1c8] sm:$0xff]
        %v6585 = vld [vmem:[#allocation4 + $0x1d0] sm:$0xff]
        %v6586 = vld [vmem:[#allocation4 + $0x1d8] sm:$0xff]
        %v6587 = vld [vmem:[#allocation4 + $0x1e0] sm:$0xff]
        %v6588 = vld [vmem:[#allocation4 + $0x1e8] sm:$0xff]
        %v6589 = vld [vmem:[#allocation4 + $0x1f0] sm:$0xff]
        %v6590 = vld [vmem:[#allocation4 + $0x1f8] sm:$0xff]
        %v6591 = vld [vmem:[#allocation4 + $0x200] sm:$0xff]
        %v6592 = vld [vmem:[#allocation4 + $0x208] sm:$0xff]
        %v6593 = vld [vmem:[#allocation4 + $0x210] sm:$0xff]
        %v6594 = vld [vmem:[#allocation4 + $0x218] sm:$0xff]
        %v6595 = vld [vmem:[#allocation4 + $0x220] sm:$0xff]
        %v6596 = vld [vmem:[#allocation4 + $0x228] sm:$0xff]
        %v6597 = vld [vmem:[#allocation4 + $0x230] sm:$0xff]
        %v6598 = vld [vmem:[#allocation4 + $0x238] sm:$0xff]
        %v6599 = vld [vmem:[#allocation4 + $0x240] sm:$0xff]
        %v6600 = vld [vmem:[#allocation4 + $0x248] sm:$0xff]
        %v6601 = vld [vmem:[#allocation4 + $0x250] sm:$0xff]
        %v6602 = vld [vmem:[#allocation4 + $0x258] sm:$0xff]
        %v6603 = vld [vmem:[#allocation4 + $0x260] sm:$0xff]
        %v6604 = vld [vmem:[#allocation4 + $0x268] sm:$0xff]
        %v6605 = vld [vmem:[#allocation4 + $0x270] sm:$0xff]
        %v6606 = vld [vmem:[#allocation4 + $0x278] sm:$0xff]
        %v6607 = vld [vmem:[#allocation4 + $0x280] sm:$0xff]
        %v6608 = vld [vmem:[#allocation4 + $0x288] sm:$0xff]
        %v6609 = vld [vmem:[#allocation4 + $0x290] sm:$0xff]
        %v6610 = vld [vmem:[#allocation4 + $0x298] sm:$0xff]
        %v6611 = vld [vmem:[#allocation4 + $0x2a0] sm:$0xff]
        %v6612 = vld [vmem:[#allocation4 + $0x2a8] sm:$0xff]
        %v6613 = vld [vmem:[#allocation4 + $0x2b0] sm:$0xff]
        %v6614 = vld [vmem:[#allocation4 + $0x2b8] sm:$0xff]
        %v6615 = vld [vmem:[#allocation4 + $0x2c0] sm:$0xff]
        %v6616 = vld [vmem:[#allocation4 + $0x2c8] sm:$0xff]
        %v6617 = vld [vmem:[#allocation4 + $0x2d0] sm:$0xff]
        %v6618 = vld [vmem:[#allocation4 + $0x2d8] sm:$0xff]
        %v6619 = vld [vmem:[#allocation4 + $0x2e0] sm:$0xff]
        %v6620 = vld [vmem:[#allocation4 + $0x2e8] sm:$0xff]
        %v6621 = vld [vmem:[#allocation4 + $0x2f0] sm:$0xff]
        %v6622 = vld [vmem:[#allocation4 + $0x2f8] sm:$0xff]
        %v6623 = vld [vmem:[#allocation4 + $0x300] sm:$0xff]
        %v6624 = vld [vmem:[#allocation4 + $0x308] sm:$0xff]
        %v6625 = vld [vmem:[#allocation4 + $0x310] sm:$0xff]
        %v6626 = vld [vmem:[#allocation4 + $0x318] sm:$0xff]
        %v6627 = vld [vmem:[#allocation4 + $0x320] sm:$0xff]
        %v6628 = vld [vmem:[#allocation4 + $0x328] sm:$0xff]
        %v6629 = vld [vmem:[#allocation4 + $0x330] sm:$0xff]
        %v6630 = vld [vmem:[#allocation4 + $0x338] sm:$0xff]
        %v6631 = vld [vmem:[#allocation4 + $0x340] sm:$0xff]
        %v6632 = vld [vmem:[#allocation4 + $0x348] sm:$0xff]
        %v6633 = vld [vmem:[#allocation4 + $0x350] sm:$0xff]
        %v6634 = vld [vmem:[#allocation4 + $0x358] sm:$0xff]
        %v6635 = vld [vmem:[#allocation4 + $0x360] sm:$0xff]
        %v6636 = vld [vmem:[#allocation4 + $0x368] sm:$0xff]
        %v6637 = vld [vmem:[#allocation4 + $0x370] sm:$0xff]
        %v6638 = vld [vmem:[#allocation4 + $0x378] sm:$0xff]
        %v6639 = vld [vmem:[#allocation4 + $0x380] sm:$0xff]
        %v6640 = vld [vmem:[#allocation4 + $0x388] sm:$0xff]
        %v6641 = vld [vmem:[#allocation4 + $0x390] sm:$0xff]
        %v6642 = vld [vmem:[#allocation4 + $0x398] sm:$0xff]
        %v6643 = vld [vmem:[#allocation4 + $0x3a0] sm:$0xff]
        %v6644 = vld [vmem:[#allocation4 + $0x3a8] sm:$0xff]
        %v6645 = vld [vmem:[#allocation4 + $0x3b0] sm:$0xff]
        %v6646 = vld [vmem:[#allocation4 + $0x3b8] sm:$0xff]
        %v6647 = vld [vmem:[#allocation4 + $0x3c0] sm:$0xff]
        %v6648 = vld [vmem:[#allocation4 + $0x3c8] sm:$0xff]
        %v6649 = vld [vmem:[#allocation4 + $0x3d0] sm:$0xff]
        %v6650 = vld [vmem:[#allocation4 + $0x3d8] sm:$0xff]
        %v6651 = vld [vmem:[#allocation4 + $0x3e0] sm:$0xff]
        %v6652 = vld [vmem:[#allocation4 + $0x3e8] sm:$0xff]
        %v6653 = vld [vmem:[#allocation4 + $0x3f0] sm:$0xff]
        %v6654 = vld [vmem:[#allocation4 + $0x3f8] sm:$0xff]
        %v6655 = vld [vmem:[#allocation4 + $0x400] sm:$0xff]
        %v6656 = vld [vmem:[#allocation4 + $0x408] sm:$0xff]
        %v6657 = vld [vmem:[#allocation4 + $0x410] sm:$0xff]
        %v6658 = vld [vmem:[#allocation4 + $0x418] sm:$0xff]
        %v6659 = vld [vmem:[#allocation4 + $0x420] sm:$0xff]
        %v6660 = vld [vmem:[#allocation4 + $0x428] sm:$0xff]
        %v6661 = vld [vmem:[#allocation4 + $0x430] sm:$0xff]
        %v6662 = vld [vmem:[#allocation4 + $0x438] sm:$0xff]
        %v6663 = vld [vmem:[#allocation4 + $0x440] sm:$0xff]
        %v6664 = vld [vmem:[#allocation4 + $0x448] sm:$0xff]
        %v6665 = vld [vmem:[#allocation4 + $0x450] sm:$0xff]
        %v6666 = vld [vmem:[#allocation4 + $0x458] sm:$0xff]
        %v6667 = vld [vmem:[#allocation4 + $0x460] sm:$0xff]
        %v6668 = vld [vmem:[#allocation4 + $0x468] sm:$0xff]
        %v6669 = vld [vmem:[#allocation4 + $0x470] sm:$0xff]
        %v6670 = vld [vmem:[#allocation4 + $0x478] sm:$0xff]
        %v6671 = vld [vmem:[#allocation4 + $0x480] sm:$0xff]
        %v6672 = vld [vmem:[#allocation4 + $0x488] sm:$0xff]
        %v6673 = vld [vmem:[#allocation4 + $0x490] sm:$0xff]
        %v6674 = vld [vmem:[#allocation4 + $0x498] sm:$0xff]
        %v6675 = vld [vmem:[#allocation4 + $0x4a0] sm:$0xff]
        %v6676 = vld [vmem:[#allocation4 + $0x4a8] sm:$0xff]
        %v6677 = vld [vmem:[#allocation4 + $0x4b0] sm:$0xff]
        %v6678 = vld [vmem:[#allocation4 + $0x4b8] sm:$0xff]
        %v6679 = vld [vmem:[#allocation4 + $0x4c0] sm:$0xff]
        %v6680 = vld [vmem:[#allocation4 + $0x4c8] sm:$0xff]
        %v6681 = vld [vmem:[#allocation4 + $0x4d0] sm:$0xff]
        %v6682 = vld [vmem:[#allocation4 + $0x4d8] sm:$0xff]
        %v6683 = vld [vmem:[#allocation4 + $0x4e0] sm:$0xff]
        %v6684 = vld [vmem:[#allocation4 + $0x4e8] sm:$0xff]
        %v6685 = vld [vmem:[#allocation4 + $0x4f0] sm:$0xff]
        %v6686 = vld [vmem:[#allocation4 + $0x4f8] sm:$0xff]
        %v6687 = vld [vmem:[#allocation4 + $0x500] sm:$0xff]
        %v6688 = vld [vmem:[#allocation4 + $0x508] sm:$0xff]
        %v6689 = vld [vmem:[#allocation4 + $0x510] sm:$0xff]
        %v6690 = vld [vmem:[#allocation4 + $0x518] sm:$0xff]
        %v6691 = vld [vmem:[#allocation4 + $0x520] sm:$0xff]
        %v6692 = vld [vmem:[#allocation4 + $0x528] sm:$0xff]
        %v6693 = vld [vmem:[#allocation4 + $0x530] sm:$0xff]
        %v6694 = vld [vmem:[#allocation4 + $0x538] sm:$0xff]
        %v6695 = vld [vmem:[#allocation4 + $0x540] sm:$0xff]
        %v6696 = vld [vmem:[#allocation4 + $0x548] sm:$0xff]
        %v6697 = vld [vmem:[#allocation4 + $0x550] sm:$0xff]
        %v6698 = vld [vmem:[#allocation4 + $0x558] sm:$0xff]
        %v6699 = vld [vmem:[#allocation4 + $0x560] sm:$0xff]
        %v6700 = vld [vmem:[#allocation4 + $0x568] sm:$0xff]
        %v6701 = vld [vmem:[#allocation4 + $0x570] sm:$0xff]
        %v6702 = vld [vmem:[#allocation4 + $0x578] sm:$0xff]
        %v6703 = vld [vmem:[#allocation4 + $0x580] sm:$0xff]
        %v6704 = vld [vmem:[#allocation4 + $0x588] sm:$0xff]
        %v6705 = vld [vmem:[#allocation4 + $0x590] sm:$0xff]
        %v6706 = vld [vmem:[#allocation4 + $0x598] sm:$0xff]
        %v6707 = vld [vmem:[#allocation4 + $0x5a0] sm:$0xff]
        %v6708 = vld [vmem:[#allocation4 + $0x5a8] sm:$0xff]
        %v6709 = vld [vmem:[#allocation4 + $0x5b0] sm:$0xff]
        %v6710 = vld [vmem:[#allocation4 + $0x5b8] sm:$0xff]
        %v6711 = vld [vmem:[#allocation4 + $0x5c0] sm:$0xff]
        %v6712 = vld [vmem:[#allocation4 + $0x5c8] sm:$0xff]
        %v6713 = vld [vmem:[#allocation4 + $0x5d0] sm:$0xff]
        %v6714 = vld [vmem:[#allocation4 + $0x5d8] sm:$0xff]
        %v6715 = vld [vmem:[#allocation4 + $0x5e0] sm:$0xff]
        %v6716 = vld [vmem:[#allocation4 + $0x5e8] sm:$0xff]
        %v6717 = vld [vmem:[#allocation4 + $0x5f0] sm:$0xff]
        %v6718 = vld [vmem:[#allocation4 + $0x5f8] sm:$0xff]
        %v6719 = vld [vmem:[#allocation4 + $0x600] sm:$0xff]
        %v6720 = vld [vmem:[#allocation4 + $0x608] sm:$0xff]
        %v6721 = vld [vmem:[#allocation4 + $0x610] sm:$0xff]
        %v6722 = vld [vmem:[#allocation4 + $0x618] sm:$0xff]
        %v6723 = vld [vmem:[#allocation4 + $0x620] sm:$0xff]
        %v6724 = vld [vmem:[#allocation4 + $0x628] sm:$0xff]
        %v6725 = vld [vmem:[#allocation4 + $0x630] sm:$0xff]
        %v6726 = vld [vmem:[#allocation4 + $0x638] sm:$0xff]
        %v6727 = vld [vmem:[#allocation4 + $0x640] sm:$0xff]
        %v6728 = vld [vmem:[#allocation4 + $0x648] sm:$0xff]
        %v6729 = vld [vmem:[#allocation4 + $0x650] sm:$0xff]
        %v6730 = vld [vmem:[#allocation4 + $0x658] sm:$0xff]
        %v6731 = vld [vmem:[#allocation4 + $0x660] sm:$0xff]
        %v6732 = vld [vmem:[#allocation4 + $0x668] sm:$0xff]
        %v6733 = vld [vmem:[#allocation4 + $0x670] sm:$0xff]
        %v6734 = vld [vmem:[#allocation4 + $0x678] sm:$0xff]
        %v6735 = vld [vmem:[#allocation4 + $0x680] sm:$0xff]
        %v6736 = vld [vmem:[#allocation4 + $0x688] sm:$0xff]
        %v6737 = vld [vmem:[#allocation4 + $0x690] sm:$0xff]
        %v6738 = vld [vmem:[#allocation4 + $0x698] sm:$0xff]
        %v6739 = vld [vmem:[#allocation4 + $0x6a0] sm:$0xff]
        %v6740 = vld [vmem:[#allocation4 + $0x6a8] sm:$0xff]
        %v6741 = vld [vmem:[#allocation4 + $0x6b0] sm:$0xff]
        %v6742 = vld [vmem:[#allocation4 + $0x6b8] sm:$0xff]
        %v6743 = vld [vmem:[#allocation4 + $0x6c0] sm:$0xff]
        %v6744 = vld [vmem:[#allocation4 + $0x6c8] sm:$0xff]
        %v6745 = vld [vmem:[#allocation4 + $0x6d0] sm:$0xff]
        %v6746 = vld [vmem:[#allocation4 + $0x6d8] sm:$0xff]
        %v6747 = vld [vmem:[#allocation4 + $0x6e0] sm:$0xff]
        %v6748 = vld [vmem:[#allocation4 + $0x6e8] sm:$0xff]
        %v6749 = vld [vmem:[#allocation4 + $0x6f0] sm:$0xff]
        %v6750 = vld [vmem:[#allocation4 + $0x6f8] sm:$0xff]
        %v6751 = vld [vmem:[#allocation4 + $0x700] sm:$0xff]
        %v6752 = vld [vmem:[#allocation4 + $0x708] sm:$0xff]
        %v6753 = vld [vmem:[#allocation4 + $0x710] sm:$0xff]
        %v6754 = vld [vmem:[#allocation4 + $0x718] sm:$0xff]
        %v6755 = vld [vmem:[#allocation4 + $0x720] sm:$0xff]
        %v6756 = vld [vmem:[#allocation4 + $0x728] sm:$0xff]
        %v6757 = vld [vmem:[#allocation4 + $0x730] sm:$0xff]
        %v6758 = vld [vmem:[#allocation4 + $0x738] sm:$0xff]
        %v6759 = vld [vmem:[#allocation4 + $0x740] sm:$0xff]
        %v6760 = vld [vmem:[#allocation4 + $0x748] sm:$0xff]
        %v6761 = vld [vmem:[#allocation4 + $0x750] sm:$0xff]
        %v6762 = vld [vmem:[#allocation4 + $0x758] sm:$0xff]
        %v6763 = vld [vmem:[#allocation4 + $0x760] sm:$0xff]
        %v6764 = vld [vmem:[#allocation4 + $0x768] sm:$0xff]
        %v6765 = vld [vmem:[#allocation4 + $0x770] sm:$0xff]
        %v6766 = vld [vmem:[#allocation4 + $0x778] sm:$0xff]
        %v6767 = vld [vmem:[#allocation4 + $0x780] sm:$0xff]
        %v6768 = vld [vmem:[#allocation4 + $0x788] sm:$0xff]
        %v6769 = vld [vmem:[#allocation4 + $0x790] sm:$0xff]
        %v6770 = vld [vmem:[#allocation4 + $0x798] sm:$0xff]
        %v6771 = vld [vmem:[#allocation4 + $0x7a0] sm:$0xff]
        %v6772 = vld [vmem:[#allocation4 + $0x7a8] sm:$0xff]
        %v6773 = vld [vmem:[#allocation4 + $0x7b0] sm:$0xff]
        %v6774 = vld [vmem:[#allocation4 + $0x7b8] sm:$0xff]
        %v6775 = vld [vmem:[#allocation4 + $0x7c0] sm:$0xff]
        %v6776 = vld [vmem:[#allocation4 + $0x7c8] sm:$0xff]
        %v6777 = vld [vmem:[#allocation4 + $0x7d0] sm:$0xff]
        %v6778 = vld [vmem:[#allocation4 + $0x7d8] sm:$0xff]
        %v6779 = vld [vmem:[#allocation4 + $0x7e0] sm:$0xff]
        %v6780 = vld [vmem:[#allocation4 + $0x7e8] sm:$0xff]
        %v6781 = vld [vmem:[#allocation4 + $0x7f0] sm:$0xff]
        %v6782 = vld [vmem:[#allocation4 + $0x7f8] sm:$0xff]
        %v6783 = vld [vmem:[#allocation4 + $0x800] sm:$0xff]
        %v6784 = vld [vmem:[#allocation4 + $0x808] sm:$0xff]
        %v6785 = vld [vmem:[#allocation4 + $0x810] sm:$0xff]
        %v6786 = vld [vmem:[#allocation4 + $0x818] sm:$0xff]
        %v6787 = vld [vmem:[#allocation4 + $0x820] sm:$0xff]
        %v6788 = vld [vmem:[#allocation4 + $0x828] sm:$0xff]
        %v6789 = vld [vmem:[#allocation4 + $0x830] sm:$0xff]
        %v6790 = vld [vmem:[#allocation4 + $0x838] sm:$0xff]
        %v6791 = vld [vmem:[#allocation4 + $0x840] sm:$0xff]
        %v6792 = vld [vmem:[#allocation4 + $0x848] sm:$0xff]
        %v6793 = vld [vmem:[#allocation4 + $0x850] sm:$0xff]
        %v6794 = vld [vmem:[#allocation4 + $0x858] sm:$0xff]
        %v6795 = vld [vmem:[#allocation4 + $0x860] sm:$0xff]
        %v6796 = vld [vmem:[#allocation4 + $0x868] sm:$0xff]
        %v6797 = vld [vmem:[#allocation4 + $0x870] sm:$0xff]
        %v6798 = vld [vmem:[#allocation4 + $0x878] sm:$0xff]
        %v6799 = vld [vmem:[#allocation4 + $0x880] sm:$0xff]
        %v6800 = vld [vmem:[#allocation4 + $0x888] sm:$0xff]
        %v6801 = vld [vmem:[#allocation4 + $0x890] sm:$0xff]
        %v6802 = vld [vmem:[#allocation4 + $0x898] sm:$0xff]
        %v6803 = vld [vmem:[#allocation4 + $0x8a0] sm:$0xff]
        %v6804 = vld [vmem:[#allocation4 + $0x8a8] sm:$0xff]
        %v6805 = vld [vmem:[#allocation4 + $0x8b0] sm:$0xff]
        %v6806 = vld [vmem:[#allocation4 + $0x8b8] sm:$0xff]
        %v6807 = vld [vmem:[#allocation4 + $0x8c0] sm:$0xff]
        %v6808 = vld [vmem:[#allocation4 + $0x8c8] sm:$0xff]
        %v6809 = vld [vmem:[#allocation4 + $0x8d0] sm:$0xff]
        %v6810 = vld [vmem:[#allocation4 + $0x8d8] sm:$0xff]
        %v6811 = vld [vmem:[#allocation4 + $0x8e0] sm:$0xff]
        %v6812 = vld [vmem:[#allocation4 + $0x8e8] sm:$0xff]
        %v6813 = vld [vmem:[#allocation4 + $0x8f0] sm:$0xff]
        %v6814 = vld [vmem:[#allocation4 + $0x8f8] sm:$0xff]
        %s6815 = scalar_lea.vmem [#allocation8], 3456
        %v6816 = vld [vmem:[%s6815] sm:$0xff]
        %v6817 = vld [vmem:[%s6815 + $0x8] sm:$0xff]
        %v6818 = vld [vmem:[%s6815 + $0x10] sm:$0xff]
        %v6819 = vld [vmem:[%s6815 + $0x18] sm:$0xff]
        %v6820 = vld [vmem:[%s6815 + $0x20] sm:$0xff]
        %v6821 = vld [vmem:[%s6815 + $0x28] sm:$0xff]
        %v6822 = vld [vmem:[%s6815 + $0x30] sm:$0xff]
        %v6823 = vld [vmem:[%s6815 + $0x38] sm:$0xff]
        %v6824 = vld [vmem:[%s6815 + $0x40] sm:$0xff]
        %v6825 = vld [vmem:[%s6815 + $0x48] sm:$0xff]
        %v6826 = vld [vmem:[%s6815 + $0x50] sm:$0xff]
        %v6827 = vld [vmem:[%s6815 + $0x58] sm:$0xff]
        %v6828 = vld [vmem:[%s6815 + $0x60] sm:$0xff]
        %v6829 = vld [vmem:[%s6815 + $0x68] sm:$0xff]
        %v6830 = vld [vmem:[%s6815 + $0x70] sm:$0xff]
        %v6831 = vld [vmem:[%s6815 + $0x78] sm:$0xff]
        %v6832 = vld [vmem:[%s6815 + $0x80] sm:$0xff]
        %v6833 = vld [vmem:[%s6815 + $0x88] sm:$0xff]
        %v6834 = vld [vmem:[%s6815 + $0x90] sm:$0xff]
        %v6835 = vld [vmem:[%s6815 + $0x98] sm:$0xff]
        %v6836 = vld [vmem:[%s6815 + $0xa0] sm:$0xff]
        %v6837 = vld [vmem:[%s6815 + $0xa8] sm:$0xff]
        %v6838 = vld [vmem:[%s6815 + $0xb0] sm:$0xff]
        %v6839 = vld [vmem:[%s6815 + $0xb8] sm:$0xff]
        %v6840 = vld [vmem:[%s6815 + $0xc0] sm:$0xff]
        %v6841 = vld [vmem:[%s6815 + $0xc8] sm:$0xff]
        %v6842 = vld [vmem:[%s6815 + $0xd0] sm:$0xff]
        %v6843 = vld [vmem:[%s6815 + $0xd8] sm:$0xff]
        %v6844 = vld [vmem:[%s6815 + $0xe0] sm:$0xff]
        %v6845 = vld [vmem:[%s6815 + $0xe8] sm:$0xff]
        %v6846 = vld [vmem:[%s6815 + $0xf0] sm:$0xff]
        %v6847 = vld [vmem:[%s6815 + $0xf8] sm:$0xff]
        %v6848 = vld [vmem:[%s6815 + $0x100] sm:$0xff]
        %v6849 = vld [vmem:[%s6815 + $0x108] sm:$0xff]
        %v6850 = vld [vmem:[%s6815 + $0x110] sm:$0xff]
        %v6851 = vld [vmem:[%s6815 + $0x118] sm:$0xff]
        %v6852 = vld [vmem:[%s6815 + $0x120] sm:$0xff]
        %v6853 = vld [vmem:[%s6815 + $0x128] sm:$0xff]
        %v6854 = vld [vmem:[%s6815 + $0x130] sm:$0xff]
        %v6855 = vld [vmem:[%s6815 + $0x138] sm:$0xff]
        %v6856 = vld [vmem:[%s6815 + $0x140] sm:$0xff]
        %v6857 = vld [vmem:[%s6815 + $0x148] sm:$0xff]
        %v6858 = vld [vmem:[%s6815 + $0x150] sm:$0xff]
        %v6859 = vld [vmem:[%s6815 + $0x158] sm:$0xff]
        %v6860 = vld [vmem:[%s6815 + $0x160] sm:$0xff]
        %v6861 = vld [vmem:[%s6815 + $0x168] sm:$0xff]
        %v6862 = vld [vmem:[%s6815 + $0x170] sm:$0xff]
        %v6863 = vld [vmem:[%s6815 + $0x178] sm:$0xff]
        %v6864 = vld [vmem:[%s6815 + $0x180] sm:$0xff]
        %v6865 = vld [vmem:[%s6815 + $0x188] sm:$0xff]
        %v6866 = vld [vmem:[%s6815 + $0x190] sm:$0xff]
        %v6867 = vld [vmem:[%s6815 + $0x198] sm:$0xff]
        %v6868 = vld [vmem:[%s6815 + $0x1a0] sm:$0xff]
        %v6869 = vld [vmem:[%s6815 + $0x1a8] sm:$0xff]
        %v6870 = vld [vmem:[%s6815 + $0x1b0] sm:$0xff]
        %v6871 = vld [vmem:[%s6815 + $0x1b8] sm:$0xff]
        %v6872 = vld [vmem:[%s6815 + $0x1c0] sm:$0xff]
        %v6873 = vld [vmem:[%s6815 + $0x1c8] sm:$0xff]
        %v6874 = vld [vmem:[%s6815 + $0x1d0] sm:$0xff]
        %v6875 = vld [vmem:[%s6815 + $0x1d8] sm:$0xff]
        %v6876 = vld [vmem:[%s6815 + $0x1e0] sm:$0xff]
        %v6877 = vld [vmem:[%s6815 + $0x1e8] sm:$0xff]
        %v6878 = vld [vmem:[%s6815 + $0x1f0] sm:$0xff]
        %v6879 = vld [vmem:[%s6815 + $0x1f8] sm:$0xff]
        %v6880 = vld [vmem:[%s6815 + $0x200] sm:$0xff]
        %v6881 = vld [vmem:[%s6815 + $0x208] sm:$0xff]
        %v6882 = vld [vmem:[%s6815 + $0x210] sm:$0xff]
        %v6883 = vld [vmem:[%s6815 + $0x218] sm:$0xff]
        %v6884 = vld [vmem:[%s6815 + $0x220] sm:$0xff]
        %v6885 = vld [vmem:[%s6815 + $0x228] sm:$0xff]
        %v6886 = vld [vmem:[%s6815 + $0x230] sm:$0xff]
        %v6887 = vld [vmem:[%s6815 + $0x238] sm:$0xff]
        %v6888 = vld [vmem:[%s6815 + $0x240] sm:$0xff]
        %v6889 = vld [vmem:[%s6815 + $0x248] sm:$0xff]
        %v6890 = vld [vmem:[%s6815 + $0x250] sm:$0xff]
        %v6891 = vld [vmem:[%s6815 + $0x258] sm:$0xff]
        %v6892 = vld [vmem:[%s6815 + $0x260] sm:$0xff]
        %v6893 = vld [vmem:[%s6815 + $0x268] sm:$0xff]
        %v6894 = vld [vmem:[%s6815 + $0x270] sm:$0xff]
        %v6895 = vld [vmem:[%s6815 + $0x278] sm:$0xff]
        %v6896 = vld [vmem:[%s6815 + $0x280] sm:$0xff]
        %v6897 = vld [vmem:[%s6815 + $0x288] sm:$0xff]
        %v6898 = vld [vmem:[%s6815 + $0x290] sm:$0xff]
        %v6899 = vld [vmem:[%s6815 + $0x298] sm:$0xff]
        %v6900 = vld [vmem:[%s6815 + $0x2a0] sm:$0xff]
        %v6901 = vld [vmem:[%s6815 + $0x2a8] sm:$0xff]
        %v6902 = vld [vmem:[%s6815 + $0x2b0] sm:$0xff]
        %v6903 = vld [vmem:[%s6815 + $0x2b8] sm:$0xff]
        %v6904 = vld [vmem:[%s6815 + $0x2c0] sm:$0xff]
        %v6905 = vld [vmem:[%s6815 + $0x2c8] sm:$0xff]
        %v6906 = vld [vmem:[%s6815 + $0x2d0] sm:$0xff]
        %v6907 = vld [vmem:[%s6815 + $0x2d8] sm:$0xff]
        %v6908 = vld [vmem:[%s6815 + $0x2e0] sm:$0xff]
        %v6909 = vld [vmem:[%s6815 + $0x2e8] sm:$0xff]
        %v6910 = vld [vmem:[%s6815 + $0x2f0] sm:$0xff]
        %v6911 = vld [vmem:[%s6815 + $0x2f8] sm:$0xff]
        %v6912 = vld [vmem:[%s6815 + $0x300] sm:$0xff]
        %v6913 = vld [vmem:[%s6815 + $0x308] sm:$0xff]
        %v6914 = vld [vmem:[%s6815 + $0x310] sm:$0xff]
        %v6915 = vld [vmem:[%s6815 + $0x318] sm:$0xff]
        %v6916 = vld [vmem:[%s6815 + $0x320] sm:$0xff]
        %v6917 = vld [vmem:[%s6815 + $0x328] sm:$0xff]
        %v6918 = vld [vmem:[%s6815 + $0x330] sm:$0xff]
        %v6919 = vld [vmem:[%s6815 + $0x338] sm:$0xff]
        %v6920 = vld [vmem:[%s6815 + $0x340] sm:$0xff]
        %v6921 = vld [vmem:[%s6815 + $0x348] sm:$0xff]
        %v6922 = vld [vmem:[%s6815 + $0x350] sm:$0xff]
        %v6923 = vld [vmem:[%s6815 + $0x358] sm:$0xff]
        %v6924 = vld [vmem:[%s6815 + $0x360] sm:$0xff]
        %v6925 = vld [vmem:[%s6815 + $0x368] sm:$0xff]
        %v6926 = vld [vmem:[%s6815 + $0x370] sm:$0xff]
        %v6927 = vld [vmem:[%s6815 + $0x378] sm:$0xff]
        %v6928 = vld [vmem:[%s6815 + $0x380] sm:$0xff]
        %v6929 = vld [vmem:[%s6815 + $0x388] sm:$0xff]
        %v6930 = vld [vmem:[%s6815 + $0x390] sm:$0xff]
        %v6931 = vld [vmem:[%s6815 + $0x398] sm:$0xff]
        %v6932 = vld [vmem:[%s6815 + $0x3a0] sm:$0xff]
        %v6933 = vld [vmem:[%s6815 + $0x3a8] sm:$0xff]
        %v6934 = vld [vmem:[%s6815 + $0x3b0] sm:$0xff]
        %v6935 = vld [vmem:[%s6815 + $0x3b8] sm:$0xff]
        %v6936 = vld [vmem:[%s6815 + $0x3c0] sm:$0xff]
        %v6937 = vld [vmem:[%s6815 + $0x3c8] sm:$0xff]
        %v6938 = vld [vmem:[%s6815 + $0x3d0] sm:$0xff]
        %v6939 = vld [vmem:[%s6815 + $0x3d8] sm:$0xff]
        %v6940 = vld [vmem:[%s6815 + $0x3e0] sm:$0xff]
        %v6941 = vld [vmem:[%s6815 + $0x3e8] sm:$0xff]
        %v6942 = vld [vmem:[%s6815 + $0x3f0] sm:$0xff]
        %v6943 = vld [vmem:[%s6815 + $0x3f8] sm:$0xff]
        %v6944 = vld [vmem:[%s6815 + $0x400] sm:$0xff]
        %v6945 = vld [vmem:[%s6815 + $0x408] sm:$0xff]
        %v6946 = vld [vmem:[%s6815 + $0x410] sm:$0xff]
        %v6947 = vld [vmem:[%s6815 + $0x418] sm:$0xff]
        %v6948 = vld [vmem:[%s6815 + $0x420] sm:$0xff]
        %v6949 = vld [vmem:[%s6815 + $0x428] sm:$0xff]
        %v6950 = vld [vmem:[%s6815 + $0x430] sm:$0xff]
        %v6951 = vld [vmem:[%s6815 + $0x438] sm:$0xff]
        %v6952 = vld [vmem:[%s6815 + $0x440] sm:$0xff]
        %v6953 = vld [vmem:[%s6815 + $0x448] sm:$0xff]
        %v6954 = vld [vmem:[%s6815 + $0x450] sm:$0xff]
        %v6955 = vld [vmem:[%s6815 + $0x458] sm:$0xff]
        %v6956 = vld [vmem:[%s6815 + $0x460] sm:$0xff]
        %v6957 = vld [vmem:[%s6815 + $0x468] sm:$0xff]
        %v6958 = vld [vmem:[%s6815 + $0x470] sm:$0xff]
        %v6959 = vld [vmem:[%s6815 + $0x478] sm:$0xff]
        %v6960 = vld [vmem:[#allocation10 + $0x3] sm:$0x1]
        %v6961 = vperm.slane %v6960, 0
        %6962 = vmatpush.msra.mxu0 %v6831
        %6963 = vmatpush.msra.mxu0 %v6830
        %6964 = vmatpush.msra.mxu0 %v6829
        %6965 = vmatpush.msra.mxu0 %v6828
        %6966 = vmatpush.msra.mxu0 %v6827
        %6967 = vmatpush.msra.mxu0 %v6826
        %6968 = vmatpush.msra.mxu0 %v6825
        %6969 = vmatpush.msra.mxu0 %v6824
        %6970 = vmatpush.msra.mxu0 %v6823
        %6971 = vmatpush.msra.mxu0 %v6822
        %6972 = vmatpush.msra.mxu0 %v6821
        %6973 = vmatpush.msra.mxu0 %v6820
        %6974 = vmatpush.msra.mxu0 %v6819
        %6975 = vmatpush.msra.mxu0 %v6818
        %6976 = vmatpush.msra.mxu0 %v6817
        %6977 = vmatpush.msra.mxu0 %v6816
        %6978 = vmatmul.f32.gmra.mxu0 %v6527
        %v6979 = vpop.f32.mrf.mxu0
        %v6980 = vadd.f32 %v6961, %v6979
        %6981 = vmatmul.f32.gmra.mxu0 %v6536
        %v6982 = vpop.f32.mrf.mxu0
        %v6983 = vadd.f32 %v6961, %v6982
        %6984 = vmatmul.f32.gmra.mxu0 %v6545
        %v6985 = vpop.f32.mrf.mxu0
        %v6986 = vadd.f32 %v6961, %v6985
        %6987 = vmatmul.f32.gmra.mxu0 %v6554
        %v6988 = vpop.f32.mrf.mxu0
        %v6989 = vadd.f32 %v6961, %v6988
        %6990 = vmatmul.f32.gmra.mxu0 %v6563
        %v6991 = vpop.f32.mrf.mxu0
        %v6992 = vadd.f32 %v6961, %v6991
        %6993 = vmatmul.f32.gmra.mxu0 %v6572
        %v6994 = vpop.f32.mrf.mxu0
        %v6995 = vadd.f32 %v6961, %v6994
        %6996 = vmatmul.f32.gmra.mxu0 %v6581
        %v6997 = vpop.f32.mrf.mxu0
        %v6998 = vadd.f32 %v6961, %v6997
        %6999 = vmatmul.f32.gmra.mxu0 %v6590
        %v7000 = vpop.f32.mrf.mxu0
        %v7001 = vadd.f32 %v6961, %v7000
        %7002 = vmatmul.f32.gmra.mxu0 %v6599
        %v7003 = vpop.f32.mrf.mxu0
        %v7004 = vadd.f32 %v6961, %v7003
        %7005 = vmatmul.f32.gmra.mxu0 %v6608
        %v7006 = vpop.f32.mrf.mxu0
        %v7007 = vadd.f32 %v6961, %v7006
        %7008 = vmatmul.f32.gmra.mxu0 %v6617
        %v7009 = vpop.f32.mrf.mxu0
        %v7010 = vadd.f32 %v6961, %v7009
        %7011 = vmatmul.f32.gmra.mxu0 %v6626
        %v7012 = vpop.f32.mrf.mxu0
        %v7013 = vadd.f32 %v6961, %v7012
        %7014 = vmatmul.f32.gmra.mxu0 %v6635
        %v7015 = vpop.f32.mrf.mxu0
        %v7016 = vadd.f32 %v6961, %v7015
        %7017 = vmatmul.f32.gmra.mxu0 %v6644
        %v7018 = vpop.f32.mrf.mxu0
        %v7019 = vadd.f32 %v6961, %v7018
        %7020 = vmatmul.f32.gmra.mxu0 %v6653
        %v7021 = vpop.f32.mrf.mxu0
        %v7022 = vadd.f32 %v6961, %v7021
        %7023 = vmatmul.f32.gmra.mxu0 %v6662
        %v7024 = vpop.f32.mrf.mxu0
        %v7025 = vadd.f32 %v6961, %v7024
        %7026 = vmatmul.f32.gmra.mxu0 %v6671
        %v7027 = vpop.f32.mrf.mxu0
        %v7028 = vadd.f32 %v6961, %v7027
        %7029 = vmatmul.f32.gmra.mxu0 %v6680
        %v7030 = vpop.f32.mrf.mxu0
        %v7031 = vadd.f32 %v6961, %v7030
        %7032 = vmatmul.f32.gmra.mxu0 %v6689
        %v7033 = vpop.f32.mrf.mxu0
        %v7034 = vadd.f32 %v6961, %v7033
        %7035 = vmatmul.f32.gmra.mxu0 %v6698
        %v7036 = vpop.f32.mrf.mxu0
        %v7037 = vadd.f32 %v6961, %v7036
        %7038 = vmatmul.f32.gmra.mxu0 %v6707
        %v7039 = vpop.f32.mrf.mxu0
        %v7040 = vadd.f32 %v6961, %v7039
        %7041 = vmatmul.f32.gmra.mxu0 %v6716
        %v7042 = vpop.f32.mrf.mxu0
        %v7043 = vadd.f32 %v6961, %v7042
        %7044 = vmatmul.f32.gmra.mxu0 %v6725
        %v7045 = vpop.f32.mrf.mxu0
        %v7046 = vadd.f32 %v6961, %v7045
        %7047 = vmatmul.f32.gmra.mxu0 %v6734
        %v7048 = vpop.f32.mrf.mxu0
        %v7049 = vadd.f32 %v6961, %v7048
        %7050 = vmatmul.f32.gmra.mxu0 %v6743
        %v7051 = vpop.f32.mrf.mxu0
        %v7052 = vadd.f32 %v6961, %v7051
        %7053 = vmatmul.f32.gmra.mxu0 %v6752
        %v7054 = vpop.f32.mrf.mxu0
        %v7055 = vadd.f32 %v6961, %v7054
        %7056 = vmatmul.f32.gmra.mxu0 %v6761
        %v7057 = vpop.f32.mrf.mxu0
        %v7058 = vadd.f32 %v6961, %v7057
        %7059 = vmatmul.f32.gmra.mxu0 %v6770
        %v7060 = vpop.f32.mrf.mxu0
        %v7061 = vadd.f32 %v6961, %v7060
        %7062 = vmatmul.f32.gmra.mxu0 %v6779
        %v7063 = vpop.f32.mrf.mxu0
        %v7064 = vadd.f32 %v6961, %v7063
        %7065 = vmatmul.f32.gmra.mxu0 %v6788
        %v7066 = vpop.f32.mrf.mxu0
        %v7067 = vadd.f32 %v6961, %v7066
        %7068 = vmatmul.f32.gmra.mxu0 %v6797
        %v7069 = vpop.f32.mrf.mxu0
        %v7070 = vadd.f32 %v6961, %v7069
        %7071 = vmatmul.f32.gmra.mxu0 %v6806
        %v7072 = vpop.f32.mrf.mxu0
        %v7073 = vadd.f32 %v6961, %v7072
        %7074 = vdwg.mxu0
        %7075 = vmatpush.msra.mxu0 %v6847
        %7076 = vmatpush.msra.mxu0 %v6846
        %7077 = vmatpush.msra.mxu0 %v6845
        %7078 = vmatpush.msra.mxu0 %v6844
        %7079 = vmatpush.msra.mxu0 %v6843
        %7080 = vmatpush.msra.mxu0 %v6842
        %7081 = vmatpush.msra.mxu0 %v6841
        %7082 = vmatpush.msra.mxu0 %v6840
        %7083 = vmatpush.msra.mxu0 %v6839
        %7084 = vmatpush.msra.mxu0 %v6838
        %7085 = vmatpush.msra.mxu0 %v6837
        %7086 = vmatpush.msra.mxu0 %v6836
        %7087 = vmatpush.msra.mxu0 %v6835
        %7088 = vmatpush.msra.mxu0 %v6834
        %7089 = vmatpush.msra.mxu0 %v6833
        %7090 = vmatpush.msra.mxu0 %v6832
        %7091 = vmatmul.f32.gmra.mxu0 %v6528
        %v7092 = vpop.f32.mrf.mxu0
        %v7093 = vadd.f32 %v6980, %v7092
        %7094 = vmatmul.f32.gmra.mxu0 %v6537
        %v7095 = vpop.f32.mrf.mxu0
        %v7096 = vadd.f32 %v6983, %v7095
        %7097 = vmatmul.f32.gmra.mxu0 %v6546
        %v7098 = vpop.f32.mrf.mxu0
        %v7099 = vadd.f32 %v6986, %v7098
        %7100 = vmatmul.f32.gmra.mxu0 %v6555
        %v7101 = vpop.f32.mrf.mxu0
        %v7102 = vadd.f32 %v6989, %v7101
        %7103 = vmatmul.f32.gmra.mxu0 %v6564
        %v7104 = vpop.f32.mrf.mxu0
        %v7105 = vadd.f32 %v6992, %v7104
        %7106 = vmatmul.f32.gmra.mxu0 %v6573
        %v7107 = vpop.f32.mrf.mxu0
        %v7108 = vadd.f32 %v6995, %v7107
        %7109 = vmatmul.f32.gmra.mxu0 %v6582
        %v7110 = vpop.f32.mrf.mxu0
        %v7111 = vadd.f32 %v6998, %v7110
        %7112 = vmatmul.f32.gmra.mxu0 %v6591
        %v7113 = vpop.f32.mrf.mxu0
        %v7114 = vadd.f32 %v7001, %v7113
        %7115 = vmatmul.f32.gmra.mxu0 %v6600
        %v7116 = vpop.f32.mrf.mxu0
        %v7117 = vadd.f32 %v7004, %v7116
        %7118 = vmatmul.f32.gmra.mxu0 %v6609
        %v7119 = vpop.f32.mrf.mxu0
        %v7120 = vadd.f32 %v7007, %v7119
        %7121 = vmatmul.f32.gmra.mxu0 %v6618
        %v7122 = vpop.f32.mrf.mxu0
        %v7123 = vadd.f32 %v7010, %v7122
        %7124 = vmatmul.f32.gmra.mxu0 %v6627
        %v7125 = vpop.f32.mrf.mxu0
        %v7126 = vadd.f32 %v7013, %v7125
        %7127 = vmatmul.f32.gmra.mxu0 %v6636
        %v7128 = vpop.f32.mrf.mxu0
        %v7129 = vadd.f32 %v7016, %v7128
        %7130 = vmatmul.f32.gmra.mxu0 %v6645
        %v7131 = vpop.f32.mrf.mxu0
        %v7132 = vadd.f32 %v7019, %v7131
        %7133 = vmatmul.f32.gmra.mxu0 %v6654
        %v7134 = vpop.f32.mrf.mxu0
        %v7135 = vadd.f32 %v7022, %v7134
        %7136 = vmatmul.f32.gmra.mxu0 %v6663
        %v7137 = vpop.f32.mrf.mxu0
        %v7138 = vadd.f32 %v7025, %v7137
        %7139 = vmatmul.f32.gmra.mxu0 %v6672
        %v7140 = vpop.f32.mrf.mxu0
        %v7141 = vadd.f32 %v7028, %v7140
        %7142 = vmatmul.f32.gmra.mxu0 %v6681
        %v7143 = vpop.f32.mrf.mxu0
        %v7144 = vadd.f32 %v7031, %v7143
        %7145 = vmatmul.f32.gmra.mxu0 %v6690
        %v7146 = vpop.f32.mrf.mxu0
        %v7147 = vadd.f32 %v7034, %v7146
        %7148 = vmatmul.f32.gmra.mxu0 %v6699
        %v7149 = vpop.f32.mrf.mxu0
        %v7150 = vadd.f32 %v7037, %v7149
        %7151 = vmatmul.f32.gmra.mxu0 %v6708
        %v7152 = vpop.f32.mrf.mxu0
        %v7153 = vadd.f32 %v7040, %v7152
        %7154 = vmatmul.f32.gmra.mxu0 %v6717
        %v7155 = vpop.f32.mrf.mxu0
        %v7156 = vadd.f32 %v7043, %v7155
        %7157 = vmatmul.f32.gmra.mxu0 %v6726
        %v7158 = vpop.f32.mrf.mxu0
        %v7159 = vadd.f32 %v7046, %v7158
        %7160 = vmatmul.f32.gmra.mxu0 %v6735
        %v7161 = vpop.f32.mrf.mxu0
        %v7162 = vadd.f32 %v7049, %v7161
        %7163 = vmatmul.f32.gmra.mxu0 %v6744
        %v7164 = vpop.f32.mrf.mxu0
        %v7165 = vadd.f32 %v7052, %v7164
        %7166 = vmatmul.f32.gmra.mxu0 %v6753
        %v7167 = vpop.f32.mrf.mxu0
        %v7168 = vadd.f32 %v7055, %v7167
        %7169 = vmatmul.f32.gmra.mxu0 %v6762
        %v7170 = vpop.f32.mrf.mxu0
        %v7171 = vadd.f32 %v7058, %v7170
        %7172 = vmatmul.f32.gmra.mxu0 %v6771
        %v7173 = vpop.f32.mrf.mxu0
        %v7174 = vadd.f32 %v7061, %v7173
        %7175 = vmatmul.f32.gmra.mxu0 %v6780
        %v7176 = vpop.f32.mrf.mxu0
        %v7177 = vadd.f32 %v7064, %v7176
        %7178 = vmatmul.f32.gmra.mxu0 %v6789
        %v7179 = vpop.f32.mrf.mxu0
        %v7180 = vadd.f32 %v7067, %v7179
        %7181 = vmatmul.f32.gmra.mxu0 %v6798
        %v7182 = vpop.f32.mrf.mxu0
        %v7183 = vadd.f32 %v7070, %v7182
        %7184 = vmatmul.f32.gmra.mxu0 %v6807
        %v7185 = vpop.f32.mrf.mxu0
        %v7186 = vadd.f32 %v7073, %v7185
        %7187 = vdwg.mxu0
        %7188 = vmatpush.msra.mxu0 %v6863
        %7189 = vmatpush.msra.mxu0 %v6862
        %7190 = vmatpush.msra.mxu0 %v6861
        %7191 = vmatpush.msra.mxu0 %v6860
        %7192 = vmatpush.msra.mxu0 %v6859
        %7193 = vmatpush.msra.mxu0 %v6858
        %7194 = vmatpush.msra.mxu0 %v6857
        %7195 = vmatpush.msra.mxu0 %v6856
        %7196 = vmatpush.msra.mxu0 %v6855
        %7197 = vmatpush.msra.mxu0 %v6854
        %7198 = vmatpush.msra.mxu0 %v6853
        %7199 = vmatpush.msra.mxu0 %v6852
        %7200 = vmatpush.msra.mxu0 %v6851
        %7201 = vmatpush.msra.mxu0 %v6850
        %7202 = vmatpush.msra.mxu0 %v6849
        %7203 = vmatpush.msra.mxu0 %v6848
        %7204 = vmatmul.f32.gmra.mxu0 %v6529
        %v7205 = vpop.f32.mrf.mxu0
        %v7206 = vadd.f32 %v7093, %v7205
        %7207 = vmatmul.f32.gmra.mxu0 %v6538
        %v7208 = vpop.f32.mrf.mxu0
        %v7209 = vadd.f32 %v7096, %v7208
        %7210 = vmatmul.f32.gmra.mxu0 %v6547
        %v7211 = vpop.f32.mrf.mxu0
        %v7212 = vadd.f32 %v7099, %v7211
        %7213 = vmatmul.f32.gmra.mxu0 %v6556
        %v7214 = vpop.f32.mrf.mxu0
        %v7215 = vadd.f32 %v7102, %v7214
        %7216 = vmatmul.f32.gmra.mxu0 %v6565
        %v7217 = vpop.f32.mrf.mxu0
        %v7218 = vadd.f32 %v7105, %v7217
        %7219 = vmatmul.f32.gmra.mxu0 %v6574
        %v7220 = vpop.f32.mrf.mxu0
        %v7221 = vadd.f32 %v7108, %v7220
        %7222 = vmatmul.f32.gmra.mxu0 %v6583
        %v7223 = vpop.f32.mrf.mxu0
        %v7224 = vadd.f32 %v7111, %v7223
        %7225 = vmatmul.f32.gmra.mxu0 %v6592
        %v7226 = vpop.f32.mrf.mxu0
        %v7227 = vadd.f32 %v7114, %v7226
        %7228 = vmatmul.f32.gmra.mxu0 %v6601
        %v7229 = vpop.f32.mrf.mxu0
        %v7230 = vadd.f32 %v7117, %v7229
        %7231 = vmatmul.f32.gmra.mxu0 %v6610
        %v7232 = vpop.f32.mrf.mxu0
        %v7233 = vadd.f32 %v7120, %v7232
        %7234 = vmatmul.f32.gmra.mxu0 %v6619
        %v7235 = vpop.f32.mrf.mxu0
        %v7236 = vadd.f32 %v7123, %v7235
        %7237 = vmatmul.f32.gmra.mxu0 %v6628
        %v7238 = vpop.f32.mrf.mxu0
        %v7239 = vadd.f32 %v7126, %v7238
        %7240 = vmatmul.f32.gmra.mxu0 %v6637
        %v7241 = vpop.f32.mrf.mxu0
        %v7242 = vadd.f32 %v7129, %v7241
        %7243 = vmatmul.f32.gmra.mxu0 %v6646
        %v7244 = vpop.f32.mrf.mxu0
        %v7245 = vadd.f32 %v7132, %v7244
        %7246 = vmatmul.f32.gmra.mxu0 %v6655
        %v7247 = vpop.f32.mrf.mxu0
        %v7248 = vadd.f32 %v7135, %v7247
        %7249 = vmatmul.f32.gmra.mxu0 %v6664
        %v7250 = vpop.f32.mrf.mxu0
        %v7251 = vadd.f32 %v7138, %v7250
        %7252 = vmatmul.f32.gmra.mxu0 %v6673
        %v7253 = vpop.f32.mrf.mxu0
        %v7254 = vadd.f32 %v7141, %v7253
        %7255 = vmatmul.f32.gmra.mxu0 %v6682
        %v7256 = vpop.f32.mrf.mxu0
        %v7257 = vadd.f32 %v7144, %v7256
        %7258 = vmatmul.f32.gmra.mxu0 %v6691
        %v7259 = vpop.f32.mrf.mxu0
        %v7260 = vadd.f32 %v7147, %v7259
        %7261 = vmatmul.f32.gmra.mxu0 %v6700
        %v7262 = vpop.f32.mrf.mxu0
        %v7263 = vadd.f32 %v7150, %v7262
        %7264 = vmatmul.f32.gmra.mxu0 %v6709
        %v7265 = vpop.f32.mrf.mxu0
        %v7266 = vadd.f32 %v7153, %v7265
        %7267 = vmatmul.f32.gmra.mxu0 %v6718
        %v7268 = vpop.f32.mrf.mxu0
        %v7269 = vadd.f32 %v7156, %v7268
        %7270 = vmatmul.f32.gmra.mxu0 %v6727
        %v7271 = vpop.f32.mrf.mxu0
        %v7272 = vadd.f32 %v7159, %v7271
        %7273 = vmatmul.f32.gmra.mxu0 %v6736
        %v7274 = vpop.f32.mrf.mxu0
        %v7275 = vadd.f32 %v7162, %v7274
        %7276 = vmatmul.f32.gmra.mxu0 %v6745
        %v7277 = vpop.f32.mrf.mxu0
        %v7278 = vadd.f32 %v7165, %v7277
        %7279 = vmatmul.f32.gmra.mxu0 %v6754
        %v7280 = vpop.f32.mrf.mxu0
        %v7281 = vadd.f32 %v7168, %v7280
        %7282 = vmatmul.f32.gmra.mxu0 %v6763
        %v7283 = vpop.f32.mrf.mxu0
        %v7284 = vadd.f32 %v7171, %v7283
        %7285 = vmatmul.f32.gmra.mxu0 %v6772
        %v7286 = vpop.f32.mrf.mxu0
        %v7287 = vadd.f32 %v7174, %v7286
        %7288 = vmatmul.f32.gmra.mxu0 %v6781
        %v7289 = vpop.f32.mrf.mxu0
        %v7290 = vadd.f32 %v7177, %v7289
        %7291 = vmatmul.f32.gmra.mxu0 %v6790
        %v7292 = vpop.f32.mrf.mxu0
        %v7293 = vadd.f32 %v7180, %v7292
        %7294 = vmatmul.f32.gmra.mxu0 %v6799
        %v7295 = vpop.f32.mrf.mxu0
        %v7296 = vadd.f32 %v7183, %v7295
        %7297 = vmatmul.f32.gmra.mxu0 %v6808
        %v7298 = vpop.f32.mrf.mxu0
        %v7299 = vadd.f32 %v7186, %v7298
        %7300 = vdwg.mxu0
        %7301 = vmatpush.msra.mxu0 %v6879
        %7302 = vmatpush.msra.mxu0 %v6878
        %7303 = vmatpush.msra.mxu0 %v6877
        %7304 = vmatpush.msra.mxu0 %v6876
        %7305 = vmatpush.msra.mxu0 %v6875
        %7306 = vmatpush.msra.mxu0 %v6874
        %7307 = vmatpush.msra.mxu0 %v6873
        %7308 = vmatpush.msra.mxu0 %v6872
        %7309 = vmatpush.msra.mxu0 %v6871
        %7310 = vmatpush.msra.mxu0 %v6870
        %7311 = vmatpush.msra.mxu0 %v6869
        %7312 = vmatpush.msra.mxu0 %v6868
        %7313 = vmatpush.msra.mxu0 %v6867
        %7314 = vmatpush.msra.mxu0 %v6866
        %7315 = vmatpush.msra.mxu0 %v6865
        %7316 = vmatpush.msra.mxu0 %v6864
        %7317 = vmatmul.f32.gmra.mxu0 %v6530
        %v7318 = vpop.f32.mrf.mxu0
        %v7319 = vadd.f32 %v7206, %v7318
        %7320 = vmatmul.f32.gmra.mxu0 %v6539
        %v7321 = vpop.f32.mrf.mxu0
        %v7322 = vadd.f32 %v7209, %v7321
        %7323 = vmatmul.f32.gmra.mxu0 %v6548
        %v7324 = vpop.f32.mrf.mxu0
        %v7325 = vadd.f32 %v7212, %v7324
        %7326 = vmatmul.f32.gmra.mxu0 %v6557
        %v7327 = vpop.f32.mrf.mxu0
        %v7328 = vadd.f32 %v7215, %v7327
        %7329 = vmatmul.f32.gmra.mxu0 %v6566
        %v7330 = vpop.f32.mrf.mxu0
        %v7331 = vadd.f32 %v7218, %v7330
        %7332 = vmatmul.f32.gmra.mxu0 %v6575
        %v7333 = vpop.f32.mrf.mxu0
        %v7334 = vadd.f32 %v7221, %v7333
        %7335 = vmatmul.f32.gmra.mxu0 %v6584
        %v7336 = vpop.f32.mrf.mxu0
        %v7337 = vadd.f32 %v7224, %v7336
        %7338 = vmatmul.f32.gmra.mxu0 %v6593
        %v7339 = vpop.f32.mrf.mxu0
        %v7340 = vadd.f32 %v7227, %v7339
        %7341 = vmatmul.f32.gmra.mxu0 %v6602
        %v7342 = vpop.f32.mrf.mxu0
        %v7343 = vadd.f32 %v7230, %v7342
        %7344 = vmatmul.f32.gmra.mxu0 %v6611
        %v7345 = vpop.f32.mrf.mxu0
        %v7346 = vadd.f32 %v7233, %v7345
        %7347 = vmatmul.f32.gmra.mxu0 %v6620
        %v7348 = vpop.f32.mrf.mxu0
        %v7349 = vadd.f32 %v7236, %v7348
        %7350 = vmatmul.f32.gmra.mxu0 %v6629
        %v7351 = vpop.f32.mrf.mxu0
        %v7352 = vadd.f32 %v7239, %v7351
        %7353 = vmatmul.f32.gmra.mxu0 %v6638
        %v7354 = vpop.f32.mrf.mxu0
        %v7355 = vadd.f32 %v7242, %v7354
        %7356 = vmatmul.f32.gmra.mxu0 %v6647
        %v7357 = vpop.f32.mrf.mxu0
        %v7358 = vadd.f32 %v7245, %v7357
        %7359 = vmatmul.f32.gmra.mxu0 %v6656
        %v7360 = vpop.f32.mrf.mxu0
        %v7361 = vadd.f32 %v7248, %v7360
        %7362 = vmatmul.f32.gmra.mxu0 %v6665
        %v7363 = vpop.f32.mrf.mxu0
        %v7364 = vadd.f32 %v7251, %v7363
        %7365 = vmatmul.f32.gmra.mxu0 %v6674
        %v7366 = vpop.f32.mrf.mxu0
        %v7367 = vadd.f32 %v7254, %v7366
        %7368 = vmatmul.f32.gmra.mxu0 %v6683
        %v7369 = vpop.f32.mrf.mxu0
        %v7370 = vadd.f32 %v7257, %v7369
        %7371 = vmatmul.f32.gmra.mxu0 %v6692
        %v7372 = vpop.f32.mrf.mxu0
        %v7373 = vadd.f32 %v7260, %v7372
        %7374 = vmatmul.f32.gmra.mxu0 %v6701
        %v7375 = vpop.f32.mrf.mxu0
        %v7376 = vadd.f32 %v7263, %v7375
        %7377 = vmatmul.f32.gmra.mxu0 %v6710
        %v7378 = vpop.f32.mrf.mxu0
        %v7379 = vadd.f32 %v7266, %v7378
        %7380 = vmatmul.f32.gmra.mxu0 %v6719
        %v7381 = vpop.f32.mrf.mxu0
        %v7382 = vadd.f32 %v7269, %v7381
        %7383 = vmatmul.f32.gmra.mxu0 %v6728
        %v7384 = vpop.f32.mrf.mxu0
        %v7385 = vadd.f32 %v7272, %v7384
        %7386 = vmatmul.f32.gmra.mxu0 %v6737
        %v7387 = vpop.f32.mrf.mxu0
        %v7388 = vadd.f32 %v7275, %v7387
        %7389 = vmatmul.f32.gmra.mxu0 %v6746
        %v7390 = vpop.f32.mrf.mxu0
        %v7391 = vadd.f32 %v7278, %v7390
        %7392 = vmatmul.f32.gmra.mxu0 %v6755
        %v7393 = vpop.f32.mrf.mxu0
        %v7394 = vadd.f32 %v7281, %v7393
        %7395 = vmatmul.f32.gmra.mxu0 %v6764
        %v7396 = vpop.f32.mrf.mxu0
        %v7397 = vadd.f32 %v7284, %v7396
        %7398 = vmatmul.f32.gmra.mxu0 %v6773
        %v7399 = vpop.f32.mrf.mxu0
        %v7400 = vadd.f32 %v7287, %v7399
        %7401 = vmatmul.f32.gmra.mxu0 %v6782
        %v7402 = vpop.f32.mrf.mxu0
        %v7403 = vadd.f32 %v7290, %v7402
        %7404 = vmatmul.f32.gmra.mxu0 %v6791
        %v7405 = vpop.f32.mrf.mxu0
        %v7406 = vadd.f32 %v7293, %v7405
        %7407 = vmatmul.f32.gmra.mxu0 %v6800
        %v7408 = vpop.f32.mrf.mxu0
        %v7409 = vadd.f32 %v7296, %v7408
        %7410 = vmatmul.f32.gmra.mxu0 %v6809
        %v7411 = vpop.f32.mrf.mxu0
        %v7412 = vadd.f32 %v7299, %v7411
        %7413 = vdwg.mxu0
        %7414 = vmatpush.msra.mxu0 %v6895
        %7415 = vmatpush.msra.mxu0 %v6894
        %7416 = vmatpush.msra.mxu0 %v6893
        %7417 = vmatpush.msra.mxu0 %v6892
        %7418 = vmatpush.msra.mxu0 %v6891
        %7419 = vmatpush.msra.mxu0 %v6890
        %7420 = vmatpush.msra.mxu0 %v6889
        %7421 = vmatpush.msra.mxu0 %v6888
        %7422 = vmatpush.msra.mxu0 %v6887
        %7423 = vmatpush.msra.mxu0 %v6886
        %7424 = vmatpush.msra.mxu0 %v6885
        %7425 = vmatpush.msra.mxu0 %v6884
        %7426 = vmatpush.msra.mxu0 %v6883
        %7427 = vmatpush.msra.mxu0 %v6882
        %7428 = vmatpush.msra.mxu0 %v6881
        %7429 = vmatpush.msra.mxu0 %v6880
        %7430 = vmatmul.f32.gmra.mxu0 %v6531
        %v7431 = vpop.f32.mrf.mxu0
        %v7432 = vadd.f32 %v7319, %v7431
        %7433 = vmatmul.f32.gmra.mxu0 %v6540
        %v7434 = vpop.f32.mrf.mxu0
        %v7435 = vadd.f32 %v7322, %v7434
        %7436 = vmatmul.f32.gmra.mxu0 %v6549
        %v7437 = vpop.f32.mrf.mxu0
        %v7438 = vadd.f32 %v7325, %v7437
        %7439 = vmatmul.f32.gmra.mxu0 %v6558
        %v7440 = vpop.f32.mrf.mxu0
        %v7441 = vadd.f32 %v7328, %v7440
        %7442 = vmatmul.f32.gmra.mxu0 %v6567
        %v7443 = vpop.f32.mrf.mxu0
        %v7444 = vadd.f32 %v7331, %v7443
        %7445 = vmatmul.f32.gmra.mxu0 %v6576
        %v7446 = vpop.f32.mrf.mxu0
        %v7447 = vadd.f32 %v7334, %v7446
        %7448 = vmatmul.f32.gmra.mxu0 %v6585
        %v7449 = vpop.f32.mrf.mxu0
        %v7450 = vadd.f32 %v7337, %v7449
        %7451 = vmatmul.f32.gmra.mxu0 %v6594
        %v7452 = vpop.f32.mrf.mxu0
        %v7453 = vadd.f32 %v7340, %v7452
        %7454 = vmatmul.f32.gmra.mxu0 %v6603
        %v7455 = vpop.f32.mrf.mxu0
        %v7456 = vadd.f32 %v7343, %v7455
        %7457 = vmatmul.f32.gmra.mxu0 %v6612
        %v7458 = vpop.f32.mrf.mxu0
        %v7459 = vadd.f32 %v7346, %v7458
        %7460 = vmatmul.f32.gmra.mxu0 %v6621
        %v7461 = vpop.f32.mrf.mxu0
        %v7462 = vadd.f32 %v7349, %v7461
        %7463 = vmatmul.f32.gmra.mxu0 %v6630
        %v7464 = vpop.f32.mrf.mxu0
        %v7465 = vadd.f32 %v7352, %v7464
        %7466 = vmatmul.f32.gmra.mxu0 %v6639
        %v7467 = vpop.f32.mrf.mxu0
        %v7468 = vadd.f32 %v7355, %v7467
        %7469 = vmatmul.f32.gmra.mxu0 %v6648
        %v7470 = vpop.f32.mrf.mxu0
        %v7471 = vadd.f32 %v7358, %v7470
        %7472 = vmatmul.f32.gmra.mxu0 %v6657
        %v7473 = vpop.f32.mrf.mxu0
        %v7474 = vadd.f32 %v7361, %v7473
        %7475 = vmatmul.f32.gmra.mxu0 %v6666
        %v7476 = vpop.f32.mrf.mxu0
        %v7477 = vadd.f32 %v7364, %v7476
        %7478 = vmatmul.f32.gmra.mxu0 %v6675
        %v7479 = vpop.f32.mrf.mxu0
        %v7480 = vadd.f32 %v7367, %v7479
        %7481 = vmatmul.f32.gmra.mxu0 %v6684
        %v7482 = vpop.f32.mrf.mxu0
        %v7483 = vadd.f32 %v7370, %v7482
        %7484 = vmatmul.f32.gmra.mxu0 %v6693
        %v7485 = vpop.f32.mrf.mxu0
        %v7486 = vadd.f32 %v7373, %v7485
        %7487 = vmatmul.f32.gmra.mxu0 %v6702
        %v7488 = vpop.f32.mrf.mxu0
        %v7489 = vadd.f32 %v7376, %v7488
        %7490 = vmatmul.f32.gmra.mxu0 %v6711
        %v7491 = vpop.f32.mrf.mxu0
        %v7492 = vadd.f32 %v7379, %v7491
        %7493 = vmatmul.f32.gmra.mxu0 %v6720
        %v7494 = vpop.f32.mrf.mxu0
        %v7495 = vadd.f32 %v7382, %v7494
        %7496 = vmatmul.f32.gmra.mxu0 %v6729
        %v7497 = vpop.f32.mrf.mxu0
        %v7498 = vadd.f32 %v7385, %v7497
        %7499 = vmatmul.f32.gmra.mxu0 %v6738
        %v7500 = vpop.f32.mrf.mxu0
        %v7501 = vadd.f32 %v7388, %v7500
        %7502 = vmatmul.f32.gmra.mxu0 %v6747
        %v7503 = vpop.f32.mrf.mxu0
        %v7504 = vadd.f32 %v7391, %v7503
        %7505 = vmatmul.f32.gmra.mxu0 %v6756
        %v7506 = vpop.f32.mrf.mxu0
        %v7507 = vadd.f32 %v7394, %v7506
        %7508 = vmatmul.f32.gmra.mxu0 %v6765
        %v7509 = vpop.f32.mrf.mxu0
        %v7510 = vadd.f32 %v7397, %v7509
        %7511 = vmatmul.f32.gmra.mxu0 %v6774
        %v7512 = vpop.f32.mrf.mxu0
        %v7513 = vadd.f32 %v7400, %v7512
        %7514 = vmatmul.f32.gmra.mxu0 %v6783
        %v7515 = vpop.f32.mrf.mxu0
        %v7516 = vadd.f32 %v7403, %v7515
        %7517 = vmatmul.f32.gmra.mxu0 %v6792
        %v7518 = vpop.f32.mrf.mxu0
        %v7519 = vadd.f32 %v7406, %v7518
        %7520 = vmatmul.f32.gmra.mxu0 %v6801
        %v7521 = vpop.f32.mrf.mxu0
        %v7522 = vadd.f32 %v7409, %v7521
        %7523 = vmatmul.f32.gmra.mxu0 %v6810
        %v7524 = vpop.f32.mrf.mxu0
        %v7525 = vadd.f32 %v7412, %v7524
        %7526 = vdwg.mxu0
        %7527 = vmatpush.msra.mxu0 %v6911
        %7528 = vmatpush.msra.mxu0 %v6910
        %7529 = vmatpush.msra.mxu0 %v6909
        %7530 = vmatpush.msra.mxu0 %v6908
        %7531 = vmatpush.msra.mxu0 %v6907
        %7532 = vmatpush.msra.mxu0 %v6906
        %7533 = vmatpush.msra.mxu0 %v6905
        %7534 = vmatpush.msra.mxu0 %v6904
        %7535 = vmatpush.msra.mxu0 %v6903
        %7536 = vmatpush.msra.mxu0 %v6902
        %7537 = vmatpush.msra.mxu0 %v6901
        %7538 = vmatpush.msra.mxu0 %v6900
        %7539 = vmatpush.msra.mxu0 %v6899
        %7540 = vmatpush.msra.mxu0 %v6898
        %7541 = vmatpush.msra.mxu0 %v6897
        %7542 = vmatpush.msra.mxu0 %v6896
        %7543 = vmatmul.f32.gmra.mxu0 %v6532
        %v7544 = vpop.f32.mrf.mxu0
        %v7545 = vadd.f32 %v7432, %v7544
        %7546 = vmatmul.f32.gmra.mxu0 %v6541
        %v7547 = vpop.f32.mrf.mxu0
        %v7548 = vadd.f32 %v7435, %v7547
        %7549 = vmatmul.f32.gmra.mxu0 %v6550
        %v7550 = vpop.f32.mrf.mxu0
        %v7551 = vadd.f32 %v7438, %v7550
        %7552 = vmatmul.f32.gmra.mxu0 %v6559
        %v7553 = vpop.f32.mrf.mxu0
        %v7554 = vadd.f32 %v7441, %v7553
        %7555 = vmatmul.f32.gmra.mxu0 %v6568
        %v7556 = vpop.f32.mrf.mxu0
        %v7557 = vadd.f32 %v7444, %v7556
        %7558 = vmatmul.f32.gmra.mxu0 %v6577
        %v7559 = vpop.f32.mrf.mxu0
        %v7560 = vadd.f32 %v7447, %v7559
        %7561 = vmatmul.f32.gmra.mxu0 %v6586
        %v7562 = vpop.f32.mrf.mxu0
        %v7563 = vadd.f32 %v7450, %v7562
        %7564 = vmatmul.f32.gmra.mxu0 %v6595
        %v7565 = vpop.f32.mrf.mxu0
        %v7566 = vadd.f32 %v7453, %v7565
        %7567 = vmatmul.f32.gmra.mxu0 %v6604
        %v7568 = vpop.f32.mrf.mxu0
        %v7569 = vadd.f32 %v7456, %v7568
        %7570 = vmatmul.f32.gmra.mxu0 %v6613
        %v7571 = vpop.f32.mrf.mxu0
        %v7572 = vadd.f32 %v7459, %v7571
        %7573 = vmatmul.f32.gmra.mxu0 %v6622
        %v7574 = vpop.f32.mrf.mxu0
        %v7575 = vadd.f32 %v7462, %v7574
        %7576 = vmatmul.f32.gmra.mxu0 %v6631
        %v7577 = vpop.f32.mrf.mxu0
        %v7578 = vadd.f32 %v7465, %v7577
        %7579 = vmatmul.f32.gmra.mxu0 %v6640
        %v7580 = vpop.f32.mrf.mxu0
        %v7581 = vadd.f32 %v7468, %v7580
        %7582 = vmatmul.f32.gmra.mxu0 %v6649
        %v7583 = vpop.f32.mrf.mxu0
        %v7584 = vadd.f32 %v7471, %v7583
        %7585 = vmatmul.f32.gmra.mxu0 %v6658
        %v7586 = vpop.f32.mrf.mxu0
        %v7587 = vadd.f32 %v7474, %v7586
        %7588 = vmatmul.f32.gmra.mxu0 %v6667
        %v7589 = vpop.f32.mrf.mxu0
        %v7590 = vadd.f32 %v7477, %v7589
        %7591 = vmatmul.f32.gmra.mxu0 %v6676
        %v7592 = vpop.f32.mrf.mxu0
        %v7593 = vadd.f32 %v7480, %v7592
        %7594 = vmatmul.f32.gmra.mxu0 %v6685
        %v7595 = vpop.f32.mrf.mxu0
        %v7596 = vadd.f32 %v7483, %v7595
        %7597 = vmatmul.f32.gmra.mxu0 %v6694
        %v7598 = vpop.f32.mrf.mxu0
        %v7599 = vadd.f32 %v7486, %v7598
        %7600 = vmatmul.f32.gmra.mxu0 %v6703
        %v7601 = vpop.f32.mrf.mxu0
        %v7602 = vadd.f32 %v7489, %v7601
        %7603 = vmatmul.f32.gmra.mxu0 %v6712
        %v7604 = vpop.f32.mrf.mxu0
        %v7605 = vadd.f32 %v7492, %v7604
        %7606 = vmatmul.f32.gmra.mxu0 %v6721
        %v7607 = vpop.f32.mrf.mxu0
        %v7608 = vadd.f32 %v7495, %v7607
        %7609 = vmatmul.f32.gmra.mxu0 %v6730
        %v7610 = vpop.f32.mrf.mxu0
        %v7611 = vadd.f32 %v7498, %v7610
        %7612 = vmatmul.f32.gmra.mxu0 %v6739
        %v7613 = vpop.f32.mrf.mxu0
        %v7614 = vadd.f32 %v7501, %v7613
        %7615 = vmatmul.f32.gmra.mxu0 %v6748
        %v7616 = vpop.f32.mrf.mxu0
        %v7617 = vadd.f32 %v7504, %v7616
        %7618 = vmatmul.f32.gmra.mxu0 %v6757
        %v7619 = vpop.f32.mrf.mxu0
        %v7620 = vadd.f32 %v7507, %v7619
        %7621 = vmatmul.f32.gmra.mxu0 %v6766
        %v7622 = vpop.f32.mrf.mxu0
        %v7623 = vadd.f32 %v7510, %v7622
        %7624 = vmatmul.f32.gmra.mxu0 %v6775
        %v7625 = vpop.f32.mrf.mxu0
        %v7626 = vadd.f32 %v7513, %v7625
        %7627 = vmatmul.f32.gmra.mxu0 %v6784
        %v7628 = vpop.f32.mrf.mxu0
        %v7629 = vadd.f32 %v7516, %v7628
        %7630 = vmatmul.f32.gmra.mxu0 %v6793
        %v7631 = vpop.f32.mrf.mxu0
        %v7632 = vadd.f32 %v7519, %v7631
        %7633 = vmatmul.f32.gmra.mxu0 %v6802
        %v7634 = vpop.f32.mrf.mxu0
        %v7635 = vadd.f32 %v7522, %v7634
        %7636 = vmatmul.f32.gmra.mxu0 %v6811
        %v7637 = vpop.f32.mrf.mxu0
        %v7638 = vadd.f32 %v7525, %v7637
        %7639 = vdwg.mxu0
        %7640 = vmatpush.msra.mxu0 %v6927
        %7641 = vmatpush.msra.mxu0 %v6926
        %7642 = vmatpush.msra.mxu0 %v6925
        %7643 = vmatpush.msra.mxu0 %v6924
        %7644 = vmatpush.msra.mxu0 %v6923
        %7645 = vmatpush.msra.mxu0 %v6922
        %7646 = vmatpush.msra.mxu0 %v6921
        %7647 = vmatpush.msra.mxu0 %v6920
        %7648 = vmatpush.msra.mxu0 %v6919
        %7649 = vmatpush.msra.mxu0 %v6918
        %7650 = vmatpush.msra.mxu0 %v6917
        %7651 = vmatpush.msra.mxu0 %v6916
        %7652 = vmatpush.msra.mxu0 %v6915
        %7653 = vmatpush.msra.mxu0 %v6914
        %7654 = vmatpush.msra.mxu0 %v6913
        %7655 = vmatpush.msra.mxu0 %v6912
        %7656 = vmatmul.f32.gmra.mxu0 %v6533
        %v7657 = vpop.f32.mrf.mxu0
        %v7658 = vadd.f32 %v7545, %v7657
        %7659 = vmatmul.f32.gmra.mxu0 %v6542
        %v7660 = vpop.f32.mrf.mxu0
        %v7661 = vadd.f32 %v7548, %v7660
        %7662 = vmatmul.f32.gmra.mxu0 %v6551
        %v7663 = vpop.f32.mrf.mxu0
        %v7664 = vadd.f32 %v7551, %v7663
        %7665 = vmatmul.f32.gmra.mxu0 %v6560
        %v7666 = vpop.f32.mrf.mxu0
        %v7667 = vadd.f32 %v7554, %v7666
        %7668 = vmatmul.f32.gmra.mxu0 %v6569
        %v7669 = vpop.f32.mrf.mxu0
        %v7670 = vadd.f32 %v7557, %v7669
        %7671 = vmatmul.f32.gmra.mxu0 %v6578
        %v7672 = vpop.f32.mrf.mxu0
        %v7673 = vadd.f32 %v7560, %v7672
        %7674 = vmatmul.f32.gmra.mxu0 %v6587
        %v7675 = vpop.f32.mrf.mxu0
        %v7676 = vadd.f32 %v7563, %v7675
        %7677 = vmatmul.f32.gmra.mxu0 %v6596
        %v7678 = vpop.f32.mrf.mxu0
        %v7679 = vadd.f32 %v7566, %v7678
        %7680 = vmatmul.f32.gmra.mxu0 %v6605
        %v7681 = vpop.f32.mrf.mxu0
        %v7682 = vadd.f32 %v7569, %v7681
        %7683 = vmatmul.f32.gmra.mxu0 %v6614
        %v7684 = vpop.f32.mrf.mxu0
        %v7685 = vadd.f32 %v7572, %v7684
        %7686 = vmatmul.f32.gmra.mxu0 %v6623
        %v7687 = vpop.f32.mrf.mxu0
        %v7688 = vadd.f32 %v7575, %v7687
        %7689 = vmatmul.f32.gmra.mxu0 %v6632
        %v7690 = vpop.f32.mrf.mxu0
        %v7691 = vadd.f32 %v7578, %v7690
        %7692 = vmatmul.f32.gmra.mxu0 %v6641
        %v7693 = vpop.f32.mrf.mxu0
        %v7694 = vadd.f32 %v7581, %v7693
        %7695 = vmatmul.f32.gmra.mxu0 %v6650
        %v7696 = vpop.f32.mrf.mxu0
        %v7697 = vadd.f32 %v7584, %v7696
        %7698 = vmatmul.f32.gmra.mxu0 %v6659
        %v7699 = vpop.f32.mrf.mxu0
        %v7700 = vadd.f32 %v7587, %v7699
        %7701 = vmatmul.f32.gmra.mxu0 %v6668
        %v7702 = vpop.f32.mrf.mxu0
        %v7703 = vadd.f32 %v7590, %v7702
        %7704 = vmatmul.f32.gmra.mxu0 %v6677
        %v7705 = vpop.f32.mrf.mxu0
        %v7706 = vadd.f32 %v7593, %v7705
        %7707 = vmatmul.f32.gmra.mxu0 %v6686
        %v7708 = vpop.f32.mrf.mxu0
        %v7709 = vadd.f32 %v7596, %v7708
        %7710 = vmatmul.f32.gmra.mxu0 %v6695
        %v7711 = vpop.f32.mrf.mxu0
        %v7712 = vadd.f32 %v7599, %v7711
        %7713 = vmatmul.f32.gmra.mxu0 %v6704
        %v7714 = vpop.f32.mrf.mxu0
        %v7715 = vadd.f32 %v7602, %v7714
        %7716 = vmatmul.f32.gmra.mxu0 %v6713
        %v7717 = vpop.f32.mrf.mxu0
        %v7718 = vadd.f32 %v7605, %v7717
        %7719 = vmatmul.f32.gmra.mxu0 %v6722
        %v7720 = vpop.f32.mrf.mxu0
        %v7721 = vadd.f32 %v7608, %v7720
        %7722 = vmatmul.f32.gmra.mxu0 %v6731
        %v7723 = vpop.f32.mrf.mxu0
        %v7724 = vadd.f32 %v7611, %v7723
        %7725 = vmatmul.f32.gmra.mxu0 %v6740
        %v7726 = vpop.f32.mrf.mxu0
        %v7727 = vadd.f32 %v7614, %v7726
        %7728 = vmatmul.f32.gmra.mxu0 %v6749
        %v7729 = vpop.f32.mrf.mxu0
        %v7730 = vadd.f32 %v7617, %v7729
        %7731 = vmatmul.f32.gmra.mxu0 %v6758
        %v7732 = vpop.f32.mrf.mxu0
        %v7733 = vadd.f32 %v7620, %v7732
        %7734 = vmatmul.f32.gmra.mxu0 %v6767
        %v7735 = vpop.f32.mrf.mxu0
        %v7736 = vadd.f32 %v7623, %v7735
        %7737 = vmatmul.f32.gmra.mxu0 %v6776
        %v7738 = vpop.f32.mrf.mxu0
        %v7739 = vadd.f32 %v7626, %v7738
        %7740 = vmatmul.f32.gmra.mxu0 %v6785
        %v7741 = vpop.f32.mrf.mxu0
        %v7742 = vadd.f32 %v7629, %v7741
        %7743 = vmatmul.f32.gmra.mxu0 %v6794
        %v7744 = vpop.f32.mrf.mxu0
        %v7745 = vadd.f32 %v7632, %v7744
        %7746 = vmatmul.f32.gmra.mxu0 %v6803
        %v7747 = vpop.f32.mrf.mxu0
        %v7748 = vadd.f32 %v7635, %v7747
        %7749 = vmatmul.f32.gmra.mxu0 %v6812
        %v7750 = vpop.f32.mrf.mxu0
        %v7751 = vadd.f32 %v7638, %v7750
        %7752 = vdwg.mxu0
        %7753 = vmatpush.msra.mxu0 %v6943
        %7754 = vmatpush.msra.mxu0 %v6942
        %7755 = vmatpush.msra.mxu0 %v6941
        %7756 = vmatpush.msra.mxu0 %v6940
        %7757 = vmatpush.msra.mxu0 %v6939
        %7758 = vmatpush.msra.mxu0 %v6938
        %7759 = vmatpush.msra.mxu0 %v6937
        %7760 = vmatpush.msra.mxu0 %v6936
        %7761 = vmatpush.msra.mxu0 %v6935
        %7762 = vmatpush.msra.mxu0 %v6934
        %7763 = vmatpush.msra.mxu0 %v6933
        %7764 = vmatpush.msra.mxu0 %v6932
        %7765 = vmatpush.msra.mxu0 %v6931
        %7766 = vmatpush.msra.mxu0 %v6930
        %7767 = vmatpush.msra.mxu0 %v6929
        %7768 = vmatpush.msra.mxu0 %v6928
        %7769 = vmatmul.f32.gmra.mxu0 %v6534
        %v7770 = vpop.f32.mrf.mxu0
        %v7771 = vadd.f32 %v7658, %v7770
        %7772 = vmatmul.f32.gmra.mxu0 %v6543
        %v7773 = vpop.f32.mrf.mxu0
        %v7774 = vadd.f32 %v7661, %v7773
        %7775 = vmatmul.f32.gmra.mxu0 %v6552
        %v7776 = vpop.f32.mrf.mxu0
        %v7777 = vadd.f32 %v7664, %v7776
        %7778 = vmatmul.f32.gmra.mxu0 %v6561
        %v7779 = vpop.f32.mrf.mxu0
        %v7780 = vadd.f32 %v7667, %v7779
        %7781 = vmatmul.f32.gmra.mxu0 %v6570
        %v7782 = vpop.f32.mrf.mxu0
        %v7783 = vadd.f32 %v7670, %v7782
        %7784 = vmatmul.f32.gmra.mxu0 %v6579
        %v7785 = vpop.f32.mrf.mxu0
        %v7786 = vadd.f32 %v7673, %v7785
        %7787 = vmatmul.f32.gmra.mxu0 %v6588
        %v7788 = vpop.f32.mrf.mxu0
        %v7789 = vadd.f32 %v7676, %v7788
        %7790 = vmatmul.f32.gmra.mxu0 %v6597
        %v7791 = vpop.f32.mrf.mxu0
        %v7792 = vadd.f32 %v7679, %v7791
        %7793 = vmatmul.f32.gmra.mxu0 %v6606
        %v7794 = vpop.f32.mrf.mxu0
        %v7795 = vadd.f32 %v7682, %v7794
        %7796 = vmatmul.f32.gmra.mxu0 %v6615
        %v7797 = vpop.f32.mrf.mxu0
        %v7798 = vadd.f32 %v7685, %v7797
        %7799 = vmatmul.f32.gmra.mxu0 %v6624
        %v7800 = vpop.f32.mrf.mxu0
        %v7801 = vadd.f32 %v7688, %v7800
        %7802 = vmatmul.f32.gmra.mxu0 %v6633
        %v7803 = vpop.f32.mrf.mxu0
        %v7804 = vadd.f32 %v7691, %v7803
        %7805 = vmatmul.f32.gmra.mxu0 %v6642
        %v7806 = vpop.f32.mrf.mxu0
        %v7807 = vadd.f32 %v7694, %v7806
        %7808 = vmatmul.f32.gmra.mxu0 %v6651
        %v7809 = vpop.f32.mrf.mxu0
        %v7810 = vadd.f32 %v7697, %v7809
        %7811 = vmatmul.f32.gmra.mxu0 %v6660
        %v7812 = vpop.f32.mrf.mxu0
        %v7813 = vadd.f32 %v7700, %v7812
        %7814 = vmatmul.f32.gmra.mxu0 %v6669
        %v7815 = vpop.f32.mrf.mxu0
        %v7816 = vadd.f32 %v7703, %v7815
        %7817 = vmatmul.f32.gmra.mxu0 %v6678
        %v7818 = vpop.f32.mrf.mxu0
        %v7819 = vadd.f32 %v7706, %v7818
        %7820 = vmatmul.f32.gmra.mxu0 %v6687
        %v7821 = vpop.f32.mrf.mxu0
        %v7822 = vadd.f32 %v7709, %v7821
        %7823 = vmatmul.f32.gmra.mxu0 %v6696
        %v7824 = vpop.f32.mrf.mxu0
        %v7825 = vadd.f32 %v7712, %v7824
        %7826 = vmatmul.f32.gmra.mxu0 %v6705
        %v7827 = vpop.f32.mrf.mxu0
        %v7828 = vadd.f32 %v7715, %v7827
        %7829 = vmatmul.f32.gmra.mxu0 %v6714
        %v7830 = vpop.f32.mrf.mxu0
        %v7831 = vadd.f32 %v7718, %v7830
        %7832 = vmatmul.f32.gmra.mxu0 %v6723
        %v7833 = vpop.f32.mrf.mxu0
        %v7834 = vadd.f32 %v7721, %v7833
        %7835 = vmatmul.f32.gmra.mxu0 %v6732
        %v7836 = vpop.f32.mrf.mxu0
        %v7837 = vadd.f32 %v7724, %v7836
        %7838 = vmatmul.f32.gmra.mxu0 %v6741
        %v7839 = vpop.f32.mrf.mxu0
        %v7840 = vadd.f32 %v7727, %v7839
        %7841 = vmatmul.f32.gmra.mxu0 %v6750
        %v7842 = vpop.f32.mrf.mxu0
        %v7843 = vadd.f32 %v7730, %v7842
        %7844 = vmatmul.f32.gmra.mxu0 %v6759
        %v7845 = vpop.f32.mrf.mxu0
        %v7846 = vadd.f32 %v7733, %v7845
        %7847 = vmatmul.f32.gmra.mxu0 %v6768
        %v7848 = vpop.f32.mrf.mxu0
        %v7849 = vadd.f32 %v7736, %v7848
        %7850 = vmatmul.f32.gmra.mxu0 %v6777
        %v7851 = vpop.f32.mrf.mxu0
        %v7852 = vadd.f32 %v7739, %v7851
        %7853 = vmatmul.f32.gmra.mxu0 %v6786
        %v7854 = vpop.f32.mrf.mxu0
        %v7855 = vadd.f32 %v7742, %v7854
        %7856 = vmatmul.f32.gmra.mxu0 %v6795
        %v7857 = vpop.f32.mrf.mxu0
        %v7858 = vadd.f32 %v7745, %v7857
        %7859 = vmatmul.f32.gmra.mxu0 %v6804
        %v7860 = vpop.f32.mrf.mxu0
        %v7861 = vadd.f32 %v7748, %v7860
        %7862 = vmatmul.f32.gmra.mxu0 %v6813
        %v7863 = vpop.f32.mrf.mxu0
        %v7864 = vadd.f32 %v7751, %v7863
        %7865 = vdwg.mxu0
        %7866 = vmatpush.msra.mxu0 %v6959
        %7867 = vmatpush.msra.mxu0 %v6958
        %7868 = vmatpush.msra.mxu0 %v6957
        %7869 = vmatpush.msra.mxu0 %v6956
        %7870 = vmatpush.msra.mxu0 %v6955
        %7871 = vmatpush.msra.mxu0 %v6954
        %7872 = vmatpush.msra.mxu0 %v6953
        %7873 = vmatpush.msra.mxu0 %v6952
        %7874 = vmatpush.msra.mxu0 %v6951
        %7875 = vmatpush.msra.mxu0 %v6950
        %7876 = vmatpush.msra.mxu0 %v6949
        %7877 = vmatpush.msra.mxu0 %v6948
        %7878 = vmatpush.msra.mxu0 %v6947
        %7879 = vmatpush.msra.mxu0 %v6946
        %7880 = vmatpush.msra.mxu0 %v6945
        %7881 = vmatpush.msra.mxu0 %v6944
        %7882 = vmatmul.f32.gmra.mxu0 %v6535
        %v7883 = vpop.f32.mrf.mxu0
        %v7884 = vadd.f32 %v7771, %v7883
        %7885 = vmatmul.f32.gmra.mxu0 %v6544
        %v7886 = vpop.f32.mrf.mxu0
        %v7887 = vadd.f32 %v7774, %v7886
        %7888 = vmatmul.f32.gmra.mxu0 %v6553
        %v7889 = vpop.f32.mrf.mxu0
        %v7890 = vadd.f32 %v7777, %v7889
        %7891 = vmatmul.f32.gmra.mxu0 %v6562
        %v7892 = vpop.f32.mrf.mxu0
        %v7893 = vadd.f32 %v7780, %v7892
        %7894 = vmatmul.f32.gmra.mxu0 %v6571
        %v7895 = vpop.f32.mrf.mxu0
        %v7896 = vadd.f32 %v7783, %v7895
        %7897 = vmatmul.f32.gmra.mxu0 %v6580
        %v7898 = vpop.f32.mrf.mxu0
        %v7899 = vadd.f32 %v7786, %v7898
        %7900 = vmatmul.f32.gmra.mxu0 %v6589
        %v7901 = vpop.f32.mrf.mxu0
        %v7902 = vadd.f32 %v7789, %v7901
        %7903 = vmatmul.f32.gmra.mxu0 %v6598
        %v7904 = vpop.f32.mrf.mxu0
        %v7905 = vadd.f32 %v7792, %v7904
        %7906 = vmatmul.f32.gmra.mxu0 %v6607
        %v7907 = vpop.f32.mrf.mxu0
        %v7908 = vadd.f32 %v7795, %v7907
        %7909 = vmatmul.f32.gmra.mxu0 %v6616
        %v7910 = vpop.f32.mrf.mxu0
        %v7911 = vadd.f32 %v7798, %v7910
        %7912 = vmatmul.f32.gmra.mxu0 %v6625
        %v7913 = vpop.f32.mrf.mxu0
        %v7914 = vadd.f32 %v7801, %v7913
        %7915 = vmatmul.f32.gmra.mxu0 %v6634
        %v7916 = vpop.f32.mrf.mxu0
        %v7917 = vadd.f32 %v7804, %v7916
        %7918 = vmatmul.f32.gmra.mxu0 %v6643
        %v7919 = vpop.f32.mrf.mxu0
        %v7920 = vadd.f32 %v7807, %v7919
        %7921 = vmatmul.f32.gmra.mxu0 %v6652
        %v7922 = vpop.f32.mrf.mxu0
        %v7923 = vadd.f32 %v7810, %v7922
        %7924 = vmatmul.f32.gmra.mxu0 %v6661
        %v7925 = vpop.f32.mrf.mxu0
        %v7926 = vadd.f32 %v7813, %v7925
        %7927 = vmatmul.f32.gmra.mxu0 %v6670
        %v7928 = vpop.f32.mrf.mxu0
        %v7929 = vadd.f32 %v7816, %v7928
        %7930 = vmatmul.f32.gmra.mxu0 %v6679
        %v7931 = vpop.f32.mrf.mxu0
        %v7932 = vadd.f32 %v7819, %v7931
        %7933 = vmatmul.f32.gmra.mxu0 %v6688
        %v7934 = vpop.f32.mrf.mxu0
        %v7935 = vadd.f32 %v7822, %v7934
        %7936 = vmatmul.f32.gmra.mxu0 %v6697
        %v7937 = vpop.f32.mrf.mxu0
        %v7938 = vadd.f32 %v7825, %v7937
        %7939 = vmatmul.f32.gmra.mxu0 %v6706
        %v7940 = vpop.f32.mrf.mxu0
        %v7941 = vadd.f32 %v7828, %v7940
        %7942 = vmatmul.f32.gmra.mxu0 %v6715
        %v7943 = vpop.f32.mrf.mxu0
        %v7944 = vadd.f32 %v7831, %v7943
        %7945 = vmatmul.f32.gmra.mxu0 %v6724
        %v7946 = vpop.f32.mrf.mxu0
        %v7947 = vadd.f32 %v7834, %v7946
        %7948 = vmatmul.f32.gmra.mxu0 %v6733
        %v7949 = vpop.f32.mrf.mxu0
        %v7950 = vadd.f32 %v7837, %v7949
        %7951 = vmatmul.f32.gmra.mxu0 %v6742
        %v7952 = vpop.f32.mrf.mxu0
        %v7953 = vadd.f32 %v7840, %v7952
        %7954 = vmatmul.f32.gmra.mxu0 %v6751
        %v7955 = vpop.f32.mrf.mxu0
        %v7956 = vadd.f32 %v7843, %v7955
        %7957 = vmatmul.f32.gmra.mxu0 %v6760
        %v7958 = vpop.f32.mrf.mxu0
        %v7959 = vadd.f32 %v7846, %v7958
        %7960 = vmatmul.f32.gmra.mxu0 %v6769
        %v7961 = vpop.f32.mrf.mxu0
        %v7962 = vadd.f32 %v7849, %v7961
        %7963 = vmatmul.f32.gmra.mxu0 %v6778
        %v7964 = vpop.f32.mrf.mxu0
        %v7965 = vadd.f32 %v7852, %v7964
        %7966 = vmatmul.f32.gmra.mxu0 %v6787
        %v7967 = vpop.f32.mrf.mxu0
        %v7968 = vadd.f32 %v7855, %v7967
        %7969 = vmatmul.f32.gmra.mxu0 %v6796
        %v7970 = vpop.f32.mrf.mxu0
        %v7971 = vadd.f32 %v7858, %v7970
        %7972 = vmatmul.f32.gmra.mxu0 %v6805
        %v7973 = vpop.f32.mrf.mxu0
        %v7974 = vadd.f32 %v7861, %v7973
        %7975 = vmatmul.f32.gmra.mxu0 %v6814
        %v7976 = vpop.f32.mrf.mxu0
        %v7977 = vadd.f32 %v7864, %v7976
        %7978 = vdwg.mxu0
        %v7979 = vxor.u32 %v7884, 2147483648
        %v7980 = vxor.u32 %v7887, 2147483648
        %v7981 = vxor.u32 %v7890, 2147483648
        %v7982 = vxor.u32 %v7893, 2147483648
        %v7983 = vxor.u32 %v7896, 2147483648
        %v7984 = vxor.u32 %v7899, 2147483648
        %v7985 = vxor.u32 %v7902, 2147483648
        %v7986 = vxor.u32 %v7905, 2147483648
        %v7987 = vxor.u32 %v7908, 2147483648
        %v7988 = vxor.u32 %v7911, 2147483648
        %v7989 = vxor.u32 %v7914, 2147483648
        %v7990 = vxor.u32 %v7917, 2147483648
        %v7991 = vxor.u32 %v7920, 2147483648
        %v7992 = vxor.u32 %v7923, 2147483648
        %v7993 = vxor.u32 %v7926, 2147483648
        %v7994 = vxor.u32 %v7929, 2147483648
        %v7995 = vxor.u32 %v7932, 2147483648
        %v7996 = vxor.u32 %v7935, 2147483648
        %v7997 = vxor.u32 %v7938, 2147483648
        %v7998 = vxor.u32 %v7941, 2147483648
        %v7999 = vxor.u32 %v7944, 2147483648
        %v8000 = vxor.u32 %v7947, 2147483648
        %v8001 = vxor.u32 %v7950, 2147483648
        %v8002 = vxor.u32 %v7953, 2147483648
        %v8003 = vxor.u32 %v7956, 2147483648
        %v8004 = vxor.u32 %v7959, 2147483648
        %v8005 = vxor.u32 %v7962, 2147483648
        %v8006 = vxor.u32 %v7965, 2147483648
        %v8007 = vxor.u32 %v7968, 2147483648
        %v8008 = vxor.u32 %v7971, 2147483648
        %v8009 = vxor.u32 %v7974, 2147483648
        %v8010 = vxor.u32 %v7977, 2147483648
        %v8011 = vmul.f32 %v7979, 1.442695
        %v8012 = vpow.pop %v8011
        %v8013 = vmul.f32 %v7980, 1.442695
        %v8014 = vpow.pop %v8013
        %v8015 = vmul.f32 %v7981, 1.442695
        %v8016 = vpow.pop %v8015
        %v8017 = vmul.f32 %v7982, 1.442695
        %v8018 = vpow.pop %v8017
        %v8019 = vmul.f32 %v7983, 1.442695
        %v8020 = vpow.pop %v8019
        %v8021 = vmul.f32 %v7984, 1.442695
        %v8022 = vpow.pop %v8021
        %v8023 = vmul.f32 %v7985, 1.442695
        %v8024 = vpow.pop %v8023
        %v8025 = vmul.f32 %v7986, 1.442695
        %v8026 = vpow.pop %v8025
        %v8027 = vmul.f32 %v7987, 1.442695
        %v8028 = vpow.pop %v8027
        %v8029 = vmul.f32 %v7988, 1.442695
        %v8030 = vpow.pop %v8029
        %v8031 = vmul.f32 %v7989, 1.442695
        %v8032 = vpow.pop %v8031
        %v8033 = vmul.f32 %v7990, 1.442695
        %v8034 = vpow.pop %v8033
        %v8035 = vmul.f32 %v7991, 1.442695
        %v8036 = vpow.pop %v8035
        %v8037 = vmul.f32 %v7992, 1.442695
        %v8038 = vpow.pop %v8037
        %v8039 = vmul.f32 %v7993, 1.442695
        %v8040 = vpow.pop %v8039
        %v8041 = vmul.f32 %v7994, 1.442695
        %v8042 = vpow.pop %v8041
        %v8043 = vmul.f32 %v7995, 1.442695
        %v8044 = vpow.pop %v8043
        %v8045 = vmul.f32 %v7996, 1.442695
        %v8046 = vpow.pop %v8045
        %v8047 = vmul.f32 %v7997, 1.442695
        %v8048 = vpow.pop %v8047
        %v8049 = vmul.f32 %v7998, 1.442695
        %v8050 = vpow.pop %v8049
        %v8051 = vmul.f32 %v7999, 1.442695
        %v8052 = vpow.pop %v8051
        %v8053 = vmul.f32 %v8000, 1.442695
        %v8054 = vpow.pop %v8053
        %v8055 = vmul.f32 %v8001, 1.442695
        %v8056 = vpow.pop %v8055
        %v8057 = vmul.f32 %v8002, 1.442695
        %v8058 = vpow.pop %v8057
        %v8059 = vmul.f32 %v8003, 1.442695
        %v8060 = vpow.pop %v8059
        %v8061 = vmul.f32 %v8004, 1.442695
        %v8062 = vpow.pop %v8061
        %v8063 = vmul.f32 %v8005, 1.442695
        %v8064 = vpow.pop %v8063
        %v8065 = vmul.f32 %v8006, 1.442695
        %v8066 = vpow.pop %v8065
        %v8067 = vmul.f32 %v8007, 1.442695
        %v8068 = vpow.pop %v8067
        %v8069 = vmul.f32 %v8008, 1.442695
        %v8070 = vpow.pop %v8069
        %v8071 = vmul.f32 %v8009, 1.442695
        %v8072 = vpow.pop %v8071
        %v8073 = vmul.f32 %v8010, 1.442695
        %v8074 = vpow.pop %v8073
        %v8075 = vadd.f32 %v8012, 1.0
        %v8076 = vadd.f32 %v8014, 1.0
        %v8077 = vadd.f32 %v8016, 1.0
        %v8078 = vadd.f32 %v8018, 1.0
        %v8079 = vadd.f32 %v8020, 1.0
        %v8080 = vadd.f32 %v8022, 1.0
        %v8081 = vadd.f32 %v8024, 1.0
        %v8082 = vadd.f32 %v8026, 1.0
        %v8083 = vadd.f32 %v8028, 1.0
        %v8084 = vadd.f32 %v8030, 1.0
        %v8085 = vadd.f32 %v8032, 1.0
        %v8086 = vadd.f32 %v8034, 1.0
        %v8087 = vadd.f32 %v8036, 1.0
        %v8088 = vadd.f32 %v8038, 1.0
        %v8089 = vadd.f32 %v8040, 1.0
        %v8090 = vadd.f32 %v8042, 1.0
        %v8091 = vadd.f32 %v8044, 1.0
        %v8092 = vadd.f32 %v8046, 1.0
        %v8093 = vadd.f32 %v8048, 1.0
        %v8094 = vadd.f32 %v8050, 1.0
        %v8095 = vadd.f32 %v8052, 1.0
        %v8096 = vadd.f32 %v8054, 1.0
        %v8097 = vadd.f32 %v8056, 1.0
        %v8098 = vadd.f32 %v8058, 1.0
        %v8099 = vadd.f32 %v8060, 1.0
        %v8100 = vadd.f32 %v8062, 1.0
        %v8101 = vadd.f32 %v8064, 1.0
        %v8102 = vadd.f32 %v8066, 1.0
        %v8103 = vadd.f32 %v8068, 1.0
        %v8104 = vadd.f32 %v8070, 1.0
        %v8105 = vadd.f32 %v8072, 1.0
        %v8106 = vadd.f32 %v8074, 1.0
        %v8107 = vrcp.pop %v8075
        %v8108 = vmul.f32 %v8075, %v8107
        %v8109 = vsub.f32 1.0, %v8108
        %v8110 = vmul.f32 %v8107, %v8109
        %v8111 = vadd.f32 %v8107, %v8110
        %vm8112 = vweird.f32 %v8075
        %vm8113 = vweird.f32 %v8107
        %vm8114 = vmor %vm8112, %vm8113
        %v8115 = vsel %vm8114, %v8107, %v8111
        %v8116 = vand.u32 2147483647, %v8075
        %vm8117 = vcmp.eq.f32.partialorder %v8116, 8.507059e+37
        %v8118 = vand.u32 %v8075, 2147483648
        %v8119 = vor.u32 1.1754944e-38, %v8118
        %v8120 = vsel %vm8117, %v8119, %v8115
        %v8121 = vmul.f32 1.0, %v8120
        %v8122 = vrcp.pop %v8076
        %v8123 = vmul.f32 %v8076, %v8122
        %v8124 = vsub.f32 1.0, %v8123
        %v8125 = vmul.f32 %v8122, %v8124
        %v8126 = vadd.f32 %v8122, %v8125
        %vm8127 = vweird.f32 %v8076
        %vm8128 = vweird.f32 %v8122
        %vm8129 = vmor %vm8127, %vm8128
        %v8130 = vsel %vm8129, %v8122, %v8126
        %v8131 = vand.u32 2147483647, %v8076
        %vm8132 = vcmp.eq.f32.partialorder %v8131, 8.507059e+37
        %v8133 = vand.u32 %v8076, 2147483648
        %v8134 = vor.u32 1.1754944e-38, %v8133
        %v8135 = vsel %vm8132, %v8134, %v8130
        %v8136 = vmul.f32 1.0, %v8135
        %v8137 = vrcp.pop %v8077
        %v8138 = vmul.f32 %v8077, %v8137
        %v8139 = vsub.f32 1.0, %v8138
        %v8140 = vmul.f32 %v8137, %v8139
        %v8141 = vadd.f32 %v8137, %v8140
        %vm8142 = vweird.f32 %v8077
        %vm8143 = vweird.f32 %v8137
        %vm8144 = vmor %vm8142, %vm8143
        %v8145 = vsel %vm8144, %v8137, %v8141
        %v8146 = vand.u32 2147483647, %v8077
        %vm8147 = vcmp.eq.f32.partialorder %v8146, 8.507059e+37
        %v8148 = vand.u32 %v8077, 2147483648
        %v8149 = vor.u32 1.1754944e-38, %v8148
        %v8150 = vsel %vm8147, %v8149, %v8145
        %v8151 = vmul.f32 1.0, %v8150
        %v8152 = vrcp.pop %v8078
        %v8153 = vmul.f32 %v8078, %v8152
        %v8154 = vsub.f32 1.0, %v8153
        %v8155 = vmul.f32 %v8152, %v8154
        %v8156 = vadd.f32 %v8152, %v8155
        %vm8157 = vweird.f32 %v8078
        %vm8158 = vweird.f32 %v8152
        %vm8159 = vmor %vm8157, %vm8158
        %v8160 = vsel %vm8159, %v8152, %v8156
        %v8161 = vand.u32 2147483647, %v8078
        %vm8162 = vcmp.eq.f32.partialorder %v8161, 8.507059e+37
        %v8163 = vand.u32 %v8078, 2147483648
        %v8164 = vor.u32 1.1754944e-38, %v8163
        %v8165 = vsel %vm8162, %v8164, %v8160
        %v8166 = vmul.f32 1.0, %v8165
        %v8167 = vrcp.pop %v8079
        %v8168 = vmul.f32 %v8079, %v8167
        %v8169 = vsub.f32 1.0, %v8168
        %v8170 = vmul.f32 %v8167, %v8169
        %v8171 = vadd.f32 %v8167, %v8170
        %vm8172 = vweird.f32 %v8079
        %vm8173 = vweird.f32 %v8167
        %vm8174 = vmor %vm8172, %vm8173
        %v8175 = vsel %vm8174, %v8167, %v8171
        %v8176 = vand.u32 2147483647, %v8079
        %vm8177 = vcmp.eq.f32.partialorder %v8176, 8.507059e+37
        %v8178 = vand.u32 %v8079, 2147483648
        %v8179 = vor.u32 1.1754944e-38, %v8178
        %v8180 = vsel %vm8177, %v8179, %v8175
        %v8181 = vmul.f32 1.0, %v8180
        %v8182 = vrcp.pop %v8080
        %v8183 = vmul.f32 %v8080, %v8182
        %v8184 = vsub.f32 1.0, %v8183
        %v8185 = vmul.f32 %v8182, %v8184
        %v8186 = vadd.f32 %v8182, %v8185
        %vm8187 = vweird.f32 %v8080
        %vm8188 = vweird.f32 %v8182
        %vm8189 = vmor %vm8187, %vm8188
        %v8190 = vsel %vm8189, %v8182, %v8186
        %v8191 = vand.u32 2147483647, %v8080
        %vm8192 = vcmp.eq.f32.partialorder %v8191, 8.507059e+37
        %v8193 = vand.u32 %v8080, 2147483648
        %v8194 = vor.u32 1.1754944e-38, %v8193
        %v8195 = vsel %vm8192, %v8194, %v8190
        %v8196 = vmul.f32 1.0, %v8195
        %v8197 = vrcp.pop %v8081
        %v8198 = vmul.f32 %v8081, %v8197
        %v8199 = vsub.f32 1.0, %v8198
        %v8200 = vmul.f32 %v8197, %v8199
        %v8201 = vadd.f32 %v8197, %v8200
        %vm8202 = vweird.f32 %v8081
        %vm8203 = vweird.f32 %v8197
        %vm8204 = vmor %vm8202, %vm8203
        %v8205 = vsel %vm8204, %v8197, %v8201
        %v8206 = vand.u32 2147483647, %v8081
        %vm8207 = vcmp.eq.f32.partialorder %v8206, 8.507059e+37
        %v8208 = vand.u32 %v8081, 2147483648
        %v8209 = vor.u32 1.1754944e-38, %v8208
        %v8210 = vsel %vm8207, %v8209, %v8205
        %v8211 = vmul.f32 1.0, %v8210
        %v8212 = vrcp.pop %v8082
        %v8213 = vmul.f32 %v8082, %v8212
        %v8214 = vsub.f32 1.0, %v8213
        %v8215 = vmul.f32 %v8212, %v8214
        %v8216 = vadd.f32 %v8212, %v8215
        %vm8217 = vweird.f32 %v8082
        %vm8218 = vweird.f32 %v8212
        %vm8219 = vmor %vm8217, %vm8218
        %v8220 = vsel %vm8219, %v8212, %v8216
        %v8221 = vand.u32 2147483647, %v8082
        %vm8222 = vcmp.eq.f32.partialorder %v8221, 8.507059e+37
        %v8223 = vand.u32 %v8082, 2147483648
        %v8224 = vor.u32 1.1754944e-38, %v8223
        %v8225 = vsel %vm8222, %v8224, %v8220
        %v8226 = vmul.f32 1.0, %v8225
        %v8227 = vrcp.pop %v8083
        %v8228 = vmul.f32 %v8083, %v8227
        %v8229 = vsub.f32 1.0, %v8228
        %v8230 = vmul.f32 %v8227, %v8229
        %v8231 = vadd.f32 %v8227, %v8230
        %vm8232 = vweird.f32 %v8083
        %vm8233 = vweird.f32 %v8227
        %vm8234 = vmor %vm8232, %vm8233
        %v8235 = vsel %vm8234, %v8227, %v8231
        %v8236 = vand.u32 2147483647, %v8083
        %vm8237 = vcmp.eq.f32.partialorder %v8236, 8.507059e+37
        %v8238 = vand.u32 %v8083, 2147483648
        %v8239 = vor.u32 1.1754944e-38, %v8238
        %v8240 = vsel %vm8237, %v8239, %v8235
        %v8241 = vmul.f32 1.0, %v8240
        %v8242 = vrcp.pop %v8084
        %v8243 = vmul.f32 %v8084, %v8242
        %v8244 = vsub.f32 1.0, %v8243
        %v8245 = vmul.f32 %v8242, %v8244
        %v8246 = vadd.f32 %v8242, %v8245
        %vm8247 = vweird.f32 %v8084
        %vm8248 = vweird.f32 %v8242
        %vm8249 = vmor %vm8247, %vm8248
        %v8250 = vsel %vm8249, %v8242, %v8246
        %v8251 = vand.u32 2147483647, %v8084
        %vm8252 = vcmp.eq.f32.partialorder %v8251, 8.507059e+37
        %v8253 = vand.u32 %v8084, 2147483648
        %v8254 = vor.u32 1.1754944e-38, %v8253
        %v8255 = vsel %vm8252, %v8254, %v8250
        %v8256 = vmul.f32 1.0, %v8255
        %v8257 = vrcp.pop %v8085
        %v8258 = vmul.f32 %v8085, %v8257
        %v8259 = vsub.f32 1.0, %v8258
        %v8260 = vmul.f32 %v8257, %v8259
        %v8261 = vadd.f32 %v8257, %v8260
        %vm8262 = vweird.f32 %v8085
        %vm8263 = vweird.f32 %v8257
        %vm8264 = vmor %vm8262, %vm8263
        %v8265 = vsel %vm8264, %v8257, %v8261
        %v8266 = vand.u32 2147483647, %v8085
        %vm8267 = vcmp.eq.f32.partialorder %v8266, 8.507059e+37
        %v8268 = vand.u32 %v8085, 2147483648
        %v8269 = vor.u32 1.1754944e-38, %v8268
        %v8270 = vsel %vm8267, %v8269, %v8265
        %v8271 = vmul.f32 1.0, %v8270
        %v8272 = vrcp.pop %v8086
        %v8273 = vmul.f32 %v8086, %v8272
        %v8274 = vsub.f32 1.0, %v8273
        %v8275 = vmul.f32 %v8272, %v8274
        %v8276 = vadd.f32 %v8272, %v8275
        %vm8277 = vweird.f32 %v8086
        %vm8278 = vweird.f32 %v8272
        %vm8279 = vmor %vm8277, %vm8278
        %v8280 = vsel %vm8279, %v8272, %v8276
        %v8281 = vand.u32 2147483647, %v8086
        %vm8282 = vcmp.eq.f32.partialorder %v8281, 8.507059e+37
        %v8283 = vand.u32 %v8086, 2147483648
        %v8284 = vor.u32 1.1754944e-38, %v8283
        %v8285 = vsel %vm8282, %v8284, %v8280
        %v8286 = vmul.f32 1.0, %v8285
        %v8287 = vrcp.pop %v8087
        %v8288 = vmul.f32 %v8087, %v8287
        %v8289 = vsub.f32 1.0, %v8288
        %v8290 = vmul.f32 %v8287, %v8289
        %v8291 = vadd.f32 %v8287, %v8290
        %vm8292 = vweird.f32 %v8087
        %vm8293 = vweird.f32 %v8287
        %vm8294 = vmor %vm8292, %vm8293
        %v8295 = vsel %vm8294, %v8287, %v8291
        %v8296 = vand.u32 2147483647, %v8087
        %vm8297 = vcmp.eq.f32.partialorder %v8296, 8.507059e+37
        %v8298 = vand.u32 %v8087, 2147483648
        %v8299 = vor.u32 1.1754944e-38, %v8298
        %v8300 = vsel %vm8297, %v8299, %v8295
        %v8301 = vmul.f32 1.0, %v8300
        %v8302 = vrcp.pop %v8088
        %v8303 = vmul.f32 %v8088, %v8302
        %v8304 = vsub.f32 1.0, %v8303
        %v8305 = vmul.f32 %v8302, %v8304
        %v8306 = vadd.f32 %v8302, %v8305
        %vm8307 = vweird.f32 %v8088
        %vm8308 = vweird.f32 %v8302
        %vm8309 = vmor %vm8307, %vm8308
        %v8310 = vsel %vm8309, %v8302, %v8306
        %v8311 = vand.u32 2147483647, %v8088
        %vm8312 = vcmp.eq.f32.partialorder %v8311, 8.507059e+37
        %v8313 = vand.u32 %v8088, 2147483648
        %v8314 = vor.u32 1.1754944e-38, %v8313
        %v8315 = vsel %vm8312, %v8314, %v8310
        %v8316 = vmul.f32 1.0, %v8315
        %v8317 = vrcp.pop %v8089
        %v8318 = vmul.f32 %v8089, %v8317
        %v8319 = vsub.f32 1.0, %v8318
        %v8320 = vmul.f32 %v8317, %v8319
        %v8321 = vadd.f32 %v8317, %v8320
        %vm8322 = vweird.f32 %v8089
        %vm8323 = vweird.f32 %v8317
        %vm8324 = vmor %vm8322, %vm8323
        %v8325 = vsel %vm8324, %v8317, %v8321
        %v8326 = vand.u32 2147483647, %v8089
        %vm8327 = vcmp.eq.f32.partialorder %v8326, 8.507059e+37
        %v8328 = vand.u32 %v8089, 2147483648
        %v8329 = vor.u32 1.1754944e-38, %v8328
        %v8330 = vsel %vm8327, %v8329, %v8325
        %v8331 = vmul.f32 1.0, %v8330
        %v8332 = vrcp.pop %v8090
        %v8333 = vmul.f32 %v8090, %v8332
        %v8334 = vsub.f32 1.0, %v8333
        %v8335 = vmul.f32 %v8332, %v8334
        %v8336 = vadd.f32 %v8332, %v8335
        %vm8337 = vweird.f32 %v8090
        %vm8338 = vweird.f32 %v8332
        %vm8339 = vmor %vm8337, %vm8338
        %v8340 = vsel %vm8339, %v8332, %v8336
        %v8341 = vand.u32 2147483647, %v8090
        %vm8342 = vcmp.eq.f32.partialorder %v8341, 8.507059e+37
        %v8343 = vand.u32 %v8090, 2147483648
        %v8344 = vor.u32 1.1754944e-38, %v8343
        %v8345 = vsel %vm8342, %v8344, %v8340
        %v8346 = vmul.f32 1.0, %v8345
        %v8347 = vrcp.pop %v8091
        %v8348 = vmul.f32 %v8091, %v8347
        %v8349 = vsub.f32 1.0, %v8348
        %v8350 = vmul.f32 %v8347, %v8349
        %v8351 = vadd.f32 %v8347, %v8350
        %vm8352 = vweird.f32 %v8091
        %vm8353 = vweird.f32 %v8347
        %vm8354 = vmor %vm8352, %vm8353
        %v8355 = vsel %vm8354, %v8347, %v8351
        %v8356 = vand.u32 2147483647, %v8091
        %vm8357 = vcmp.eq.f32.partialorder %v8356, 8.507059e+37
        %v8358 = vand.u32 %v8091, 2147483648
        %v8359 = vor.u32 1.1754944e-38, %v8358
        %v8360 = vsel %vm8357, %v8359, %v8355
        %v8361 = vmul.f32 1.0, %v8360
        %v8362 = vrcp.pop %v8092
        %v8363 = vmul.f32 %v8092, %v8362
        %v8364 = vsub.f32 1.0, %v8363
        %v8365 = vmul.f32 %v8362, %v8364
        %v8366 = vadd.f32 %v8362, %v8365
        %vm8367 = vweird.f32 %v8092
        %vm8368 = vweird.f32 %v8362
        %vm8369 = vmor %vm8367, %vm8368
        %v8370 = vsel %vm8369, %v8362, %v8366
        %v8371 = vand.u32 2147483647, %v8092
        %vm8372 = vcmp.eq.f32.partialorder %v8371, 8.507059e+37
        %v8373 = vand.u32 %v8092, 2147483648
        %v8374 = vor.u32 1.1754944e-38, %v8373
        %v8375 = vsel %vm8372, %v8374, %v8370
        %v8376 = vmul.f32 1.0, %v8375
        %v8377 = vrcp.pop %v8093
        %v8378 = vmul.f32 %v8093, %v8377
        %v8379 = vsub.f32 1.0, %v8378
        %v8380 = vmul.f32 %v8377, %v8379
        %v8381 = vadd.f32 %v8377, %v8380
        %vm8382 = vweird.f32 %v8093
        %vm8383 = vweird.f32 %v8377
        %vm8384 = vmor %vm8382, %vm8383
        %v8385 = vsel %vm8384, %v8377, %v8381
        %v8386 = vand.u32 2147483647, %v8093
        %vm8387 = vcmp.eq.f32.partialorder %v8386, 8.507059e+37
        %v8388 = vand.u32 %v8093, 2147483648
        %v8389 = vor.u32 1.1754944e-38, %v8388
        %v8390 = vsel %vm8387, %v8389, %v8385
        %v8391 = vmul.f32 1.0, %v8390
        %v8392 = vrcp.pop %v8094
        %v8393 = vmul.f32 %v8094, %v8392
        %v8394 = vsub.f32 1.0, %v8393
        %v8395 = vmul.f32 %v8392, %v8394
        %v8396 = vadd.f32 %v8392, %v8395
        %vm8397 = vweird.f32 %v8094
        %vm8398 = vweird.f32 %v8392
        %vm8399 = vmor %vm8397, %vm8398
        %v8400 = vsel %vm8399, %v8392, %v8396
        %v8401 = vand.u32 2147483647, %v8094
        %vm8402 = vcmp.eq.f32.partialorder %v8401, 8.507059e+37
        %v8403 = vand.u32 %v8094, 2147483648
        %v8404 = vor.u32 1.1754944e-38, %v8403
        %v8405 = vsel %vm8402, %v8404, %v8400
        %v8406 = vmul.f32 1.0, %v8405
        %v8407 = vrcp.pop %v8095
        %v8408 = vmul.f32 %v8095, %v8407
        %v8409 = vsub.f32 1.0, %v8408
        %v8410 = vmul.f32 %v8407, %v8409
        %v8411 = vadd.f32 %v8407, %v8410
        %vm8412 = vweird.f32 %v8095
        %vm8413 = vweird.f32 %v8407
        %vm8414 = vmor %vm8412, %vm8413
        %v8415 = vsel %vm8414, %v8407, %v8411
        %v8416 = vand.u32 2147483647, %v8095
        %vm8417 = vcmp.eq.f32.partialorder %v8416, 8.507059e+37
        %v8418 = vand.u32 %v8095, 2147483648
        %v8419 = vor.u32 1.1754944e-38, %v8418
        %v8420 = vsel %vm8417, %v8419, %v8415
        %v8421 = vmul.f32 1.0, %v8420
        %v8422 = vrcp.pop %v8096
        %v8423 = vmul.f32 %v8096, %v8422
        %v8424 = vsub.f32 1.0, %v8423
        %v8425 = vmul.f32 %v8422, %v8424
        %v8426 = vadd.f32 %v8422, %v8425
        %vm8427 = vweird.f32 %v8096
        %vm8428 = vweird.f32 %v8422
        %vm8429 = vmor %vm8427, %vm8428
        %v8430 = vsel %vm8429, %v8422, %v8426
        %v8431 = vand.u32 2147483647, %v8096
        %vm8432 = vcmp.eq.f32.partialorder %v8431, 8.507059e+37
        %v8433 = vand.u32 %v8096, 2147483648
        %v8434 = vor.u32 1.1754944e-38, %v8433
        %v8435 = vsel %vm8432, %v8434, %v8430
        %v8436 = vmul.f32 1.0, %v8435
        %v8437 = vrcp.pop %v8097
        %v8438 = vmul.f32 %v8097, %v8437
        %v8439 = vsub.f32 1.0, %v8438
        %v8440 = vmul.f32 %v8437, %v8439
        %v8441 = vadd.f32 %v8437, %v8440
        %vm8442 = vweird.f32 %v8097
        %vm8443 = vweird.f32 %v8437
        %vm8444 = vmor %vm8442, %vm8443
        %v8445 = vsel %vm8444, %v8437, %v8441
        %v8446 = vand.u32 2147483647, %v8097
        %vm8447 = vcmp.eq.f32.partialorder %v8446, 8.507059e+37
        %v8448 = vand.u32 %v8097, 2147483648
        %v8449 = vor.u32 1.1754944e-38, %v8448
        %v8450 = vsel %vm8447, %v8449, %v8445
        %v8451 = vmul.f32 1.0, %v8450
        %v8452 = vrcp.pop %v8098
        %v8453 = vmul.f32 %v8098, %v8452
        %v8454 = vsub.f32 1.0, %v8453
        %v8455 = vmul.f32 %v8452, %v8454
        %v8456 = vadd.f32 %v8452, %v8455
        %vm8457 = vweird.f32 %v8098
        %vm8458 = vweird.f32 %v8452
        %vm8459 = vmor %vm8457, %vm8458
        %v8460 = vsel %vm8459, %v8452, %v8456
        %v8461 = vand.u32 2147483647, %v8098
        %vm8462 = vcmp.eq.f32.partialorder %v8461, 8.507059e+37
        %v8463 = vand.u32 %v8098, 2147483648
        %v8464 = vor.u32 1.1754944e-38, %v8463
        %v8465 = vsel %vm8462, %v8464, %v8460
        %v8466 = vmul.f32 1.0, %v8465
        %v8467 = vrcp.pop %v8099
        %v8468 = vmul.f32 %v8099, %v8467
        %v8469 = vsub.f32 1.0, %v8468
        %v8470 = vmul.f32 %v8467, %v8469
        %v8471 = vadd.f32 %v8467, %v8470
        %vm8472 = vweird.f32 %v8099
        %vm8473 = vweird.f32 %v8467
        %vm8474 = vmor %vm8472, %vm8473
        %v8475 = vsel %vm8474, %v8467, %v8471
        %v8476 = vand.u32 2147483647, %v8099
        %vm8477 = vcmp.eq.f32.partialorder %v8476, 8.507059e+37
        %v8478 = vand.u32 %v8099, 2147483648
        %v8479 = vor.u32 1.1754944e-38, %v8478
        %v8480 = vsel %vm8477, %v8479, %v8475
        %v8481 = vmul.f32 1.0, %v8480
        %v8482 = vrcp.pop %v8100
        %v8483 = vmul.f32 %v8100, %v8482
        %v8484 = vsub.f32 1.0, %v8483
        %v8485 = vmul.f32 %v8482, %v8484
        %v8486 = vadd.f32 %v8482, %v8485
        %vm8487 = vweird.f32 %v8100
        %vm8488 = vweird.f32 %v8482
        %vm8489 = vmor %vm8487, %vm8488
        %v8490 = vsel %vm8489, %v8482, %v8486
        %v8491 = vand.u32 2147483647, %v8100
        %vm8492 = vcmp.eq.f32.partialorder %v8491, 8.507059e+37
        %v8493 = vand.u32 %v8100, 2147483648
        %v8494 = vor.u32 1.1754944e-38, %v8493
        %v8495 = vsel %vm8492, %v8494, %v8490
        %v8496 = vmul.f32 1.0, %v8495
        %v8497 = vrcp.pop %v8101
        %v8498 = vmul.f32 %v8101, %v8497
        %v8499 = vsub.f32 1.0, %v8498
        %v8500 = vmul.f32 %v8497, %v8499
        %v8501 = vadd.f32 %v8497, %v8500
        %vm8502 = vweird.f32 %v8101
        %vm8503 = vweird.f32 %v8497
        %vm8504 = vmor %vm8502, %vm8503
        %v8505 = vsel %vm8504, %v8497, %v8501
        %v8506 = vand.u32 2147483647, %v8101
        %vm8507 = vcmp.eq.f32.partialorder %v8506, 8.507059e+37
        %v8508 = vand.u32 %v8101, 2147483648
        %v8509 = vor.u32 1.1754944e-38, %v8508
        %v8510 = vsel %vm8507, %v8509, %v8505
        %v8511 = vmul.f32 1.0, %v8510
        %v8512 = vrcp.pop %v8102
        %v8513 = vmul.f32 %v8102, %v8512
        %v8514 = vsub.f32 1.0, %v8513
        %v8515 = vmul.f32 %v8512, %v8514
        %v8516 = vadd.f32 %v8512, %v8515
        %vm8517 = vweird.f32 %v8102
        %vm8518 = vweird.f32 %v8512
        %vm8519 = vmor %vm8517, %vm8518
        %v8520 = vsel %vm8519, %v8512, %v8516
        %v8521 = vand.u32 2147483647, %v8102
        %vm8522 = vcmp.eq.f32.partialorder %v8521, 8.507059e+37
        %v8523 = vand.u32 %v8102, 2147483648
        %v8524 = vor.u32 1.1754944e-38, %v8523
        %v8525 = vsel %vm8522, %v8524, %v8520
        %v8526 = vmul.f32 1.0, %v8525
        %v8527 = vrcp.pop %v8103
        %v8528 = vmul.f32 %v8103, %v8527
        %v8529 = vsub.f32 1.0, %v8528
        %v8530 = vmul.f32 %v8527, %v8529
        %v8531 = vadd.f32 %v8527, %v8530
        %vm8532 = vweird.f32 %v8103
        %vm8533 = vweird.f32 %v8527
        %vm8534 = vmor %vm8532, %vm8533
        %v8535 = vsel %vm8534, %v8527, %v8531
        %v8536 = vand.u32 2147483647, %v8103
        %vm8537 = vcmp.eq.f32.partialorder %v8536, 8.507059e+37
        %v8538 = vand.u32 %v8103, 2147483648
        %v8539 = vor.u32 1.1754944e-38, %v8538
        %v8540 = vsel %vm8537, %v8539, %v8535
        %v8541 = vmul.f32 1.0, %v8540
        %v8542 = vrcp.pop %v8104
        %v8543 = vmul.f32 %v8104, %v8542
        %v8544 = vsub.f32 1.0, %v8543
        %v8545 = vmul.f32 %v8542, %v8544
        %v8546 = vadd.f32 %v8542, %v8545
        %vm8547 = vweird.f32 %v8104
        %vm8548 = vweird.f32 %v8542
        %vm8549 = vmor %vm8547, %vm8548
        %v8550 = vsel %vm8549, %v8542, %v8546
        %v8551 = vand.u32 2147483647, %v8104
        %vm8552 = vcmp.eq.f32.partialorder %v8551, 8.507059e+37
        %v8553 = vand.u32 %v8104, 2147483648
        %v8554 = vor.u32 1.1754944e-38, %v8553
        %v8555 = vsel %vm8552, %v8554, %v8550
        %v8556 = vmul.f32 1.0, %v8555
        %v8557 = vrcp.pop %v8105
        %v8558 = vmul.f32 %v8105, %v8557
        %v8559 = vsub.f32 1.0, %v8558
        %v8560 = vmul.f32 %v8557, %v8559
        %v8561 = vadd.f32 %v8557, %v8560
        %vm8562 = vweird.f32 %v8105
        %vm8563 = vweird.f32 %v8557
        %vm8564 = vmor %vm8562, %vm8563
        %v8565 = vsel %vm8564, %v8557, %v8561
        %v8566 = vand.u32 2147483647, %v8105
        %vm8567 = vcmp.eq.f32.partialorder %v8566, 8.507059e+37
        %v8568 = vand.u32 %v8105, 2147483648
        %v8569 = vor.u32 1.1754944e-38, %v8568
        %v8570 = vsel %vm8567, %v8569, %v8565
        %v8571 = vmul.f32 1.0, %v8570
        %v8572 = vrcp.pop %v8106
        %v8573 = vmul.f32 %v8106, %v8572
        %v8574 = vsub.f32 1.0, %v8573
        %v8575 = vmul.f32 %v8572, %v8574
        %v8576 = vadd.f32 %v8572, %v8575
        %vm8577 = vweird.f32 %v8106
        %vm8578 = vweird.f32 %v8572
        %vm8579 = vmor %vm8577, %vm8578
        %v8580 = vsel %vm8579, %v8572, %v8576
        %v8581 = vand.u32 2147483647, %v8106
        %vm8582 = vcmp.eq.f32.partialorder %v8581, 8.507059e+37
        %v8583 = vand.u32 %v8106, 2147483648
        %v8584 = vor.u32 1.1754944e-38, %v8583
        %v8585 = vsel %vm8582, %v8584, %v8580
        %v8586 = vmul.f32 1.0, %v8585
        %8587 = vst [vmem:[%s221] sm:$0xff] %v8121
        %8588 = vst [vmem:[%s221 + $0x8] sm:$0xff] %v8136
        %8589 = vst [vmem:[%s221 + $0x10] sm:$0xff] %v8151
        %8590 = vst [vmem:[%s221 + $0x18] sm:$0xff] %v8166
        %8591 = vst [vmem:[%s221 + $0x20] sm:$0xff] %v8181
        %8592 = vst [vmem:[%s221 + $0x28] sm:$0xff] %v8196
        %8593 = vst [vmem:[%s221 + $0x30] sm:$0xff] %v8211
        %8594 = vst [vmem:[%s221 + $0x38] sm:$0xff] %v8226
        %8595 = vst [vmem:[%s221 + $0x40] sm:$0xff] %v8241
        %8596 = vst [vmem:[%s221 + $0x48] sm:$0xff] %v8256
        %8597 = vst [vmem:[%s221 + $0x50] sm:$0xff] %v8271
        %8598 = vst [vmem:[%s221 + $0x58] sm:$0xff] %v8286
        %8599 = vst [vmem:[%s221 + $0x60] sm:$0xff] %v8301
        %8600 = vst [vmem:[%s221 + $0x68] sm:$0xff] %v8316
        %8601 = vst [vmem:[%s221 + $0x70] sm:$0xff] %v8331
        %8602 = vst [vmem:[%s221 + $0x78] sm:$0xff] %v8346
        %8603 = vst [vmem:[%s221 + $0x80] sm:$0xff] %v8361
        %8604 = vst [vmem:[%s221 + $0x88] sm:$0xff] %v8376
        %8605 = vst [vmem:[%s221 + $0x90] sm:$0xff] %v8391
        %8606 = vst [vmem:[%s221 + $0x98] sm:$0xff] %v8406
        %8607 = vst [vmem:[%s221 + $0xa0] sm:$0xff] %v8421
        %8608 = vst [vmem:[%s221 + $0xa8] sm:$0xff] %v8436
        %8609 = vst [vmem:[%s221 + $0xb0] sm:$0xff] %v8451
        %8610 = vst [vmem:[%s221 + $0xb8] sm:$0xff] %v8466
        %8611 = vst [vmem:[%s221 + $0xc0] sm:$0xff] %v8481
        %8612 = vst [vmem:[%s221 + $0xc8] sm:$0xff] %v8496
        %8613 = vst [vmem:[%s221 + $0xd0] sm:$0xff] %v8511
        %8614 = vst [vmem:[%s221 + $0xd8] sm:$0xff] %v8526
        %8615 = vst [vmem:[%s221 + $0xe0] sm:$0xff] %v8541
        %8616 = vst [vmem:[%s221 + $0xe8] sm:$0xff] %v8556
        %8617 = vst [vmem:[%s221 + $0xf0] sm:$0xff] %v8571
        %8618 = vst [vmem:[%s221 + $0xf8] sm:$0xff] %v8586
        %s8619 = sand.u32 %s97, 1
        %s8620 = scalar_lea.sflag [#allocation7], %s8619
        %s8621 = sand.u32 %s97, 1
        %s8622 = smul.addr %s8621, 256
        %s8623 = scalar_lea.vmem [#allocation11], %s8622
        // Predicated region
        $region45: #{_fused_unet.1} parent=31 // pred_check
          %p8624 = pneg %p107
        $region46: #{_fused_unet.1} parent=31 // pred_check_branch
          %8626 = sbr.rel (%p8624) target = $region48
        $region47: #{_fused_unet.1} parent=31 // pred_region
          %8628 = vsyncadd %s8620, 0
          %s8629 = smul.addr %s21, 32
          %s8630 = smul.addr %s8629, 8
          %s8631 = scalar_lea.hbm %s3, %s8630
          %s8632 = sshll.u32 %s8623, 4
          %s8633 = int_to_ptr.vmem [resolvable:$true] %s8632
          %s8634 = sshll.u32 %s8631, 4
          %s8635 = int_to_ptr.hbm [resolvable:$true] %s8634
          %8640 = dma.vmem_to_hbm [thread:$0]  %s8633, 4096, %s8635, %s8620, 128, 128, 8
        $region48: #{_fused_unet.1} parent=31 // pred_fallthru
          _
      $region32: #{_fused_unet.1} parent=5 // pred_fallthru
        _
      %p8641 = scmp.le.s32.totalorder 2, %s16
      // Predicated region
      $region49: #{_fused_unet.1} parent=5 // pred_check
        %p8642 = pneg %p8641
      $region50: #{_fused_unet.1} parent=5 // pred_check_branch
        %8644 = sbr.rel (%p8642) target = $region52
      $region51: #{_fused_unet.1} parent=5 // pred_region
        %s8645 = ssub.s32 %s16, 2
        // Predicated region
        $region53: #{_fused_unet.1} parent=51 // pred_check
          %p8646 = pneg %p113
        $region54: #{_fused_unet.1} parent=51 // pred_check_branch
          %8648 = sbr.rel (%p8646) target = $region56
        $region55: #{_fused_unet.1} parent=51 // pred_region
          %s8649 = sand.u32 %s98, 1
          %s8650 = scalar_lea.sflag [#allocation7], %s8649
          %s8651 = sand.u32 %s98, 1
          %s8652 = smul.addr %s8651, 256
          %s8653 = scalar_lea.vmem [#allocation11], %s8652
          %8655 = dma.done %s8650, 4096
        $region56: #{_fused_unet.1} parent=51 // pred_fallthru
          _
      $region52: #{_fused_unet.1} parent=5 // pred_fallthru
        _
    $region6: #{_fused_unet.1} parent=1 // loop_footer
      %s20 = sadd.s32 1, %s16
    $region7: #{_fused_unet.1} parent=1 // loop_footer_branch
      %15 = sbr.rel target = $region3
    $region8: #{_fused_unet.1} parent=1 // loop_exit
      _
    %8656 = vsyncpa [#allocation6], 1
    %s8657 = scalar_lea.sflag [#allocation6], 1
    %8658 = vsyncpa %s8657, 1
    %8659 = vsyncpa [#allocation9], 1
    %8660 = vsyncpa [#allocation7], 1
    %s8661 = scalar_lea.sflag [#allocation7], 1
    %8662 = vsyncpa %s8661, 1

</llo_original>
